<compile_context>
chip_gen: v7x
topology: tpu7x:2x2x1
jax: 0.10.0
libtpu: 0.0.40
codegen_flags: <defaults>
</compile_context>

<pallas_src>
import functools

import jax
import jax.numpy as jnp
import numpy as np
from jax import lax
from jax.experimental import pallas as pl
from jax.experimental.pallas import tpu as pltpu


# ----------------------------------------------------------------------------
# helpers
# ----------------------------------------------------------------------------
def _round_up(x, m):
    return (x + m - 1) // m * m


def _pick_m_tile(m, coutp, k):
    """Lane (flattened-spatial) tile for the conv matmul.

    Budget 2xA (full-K weights) + 2xB block + 2xout block to <= ~22 MiB so the
    largest production layer (K = 16*512, C_out = 512) still fits v7x VMEM,
    avoid gross over-padding of small M, and prefer >= 2 grid steps so both
    v7x TensorCores get work on the "parallel" M axis.
    """
    a_bytes = 2 * coutp * k * 2                       # bf16, double-buffered
    tm = 128
    for cand in (2048, 1024, 512, 256, 128):
        if a_bytes + 2 * k * cand * 2 + 2 * coutp * cand * 4 <= (22 << 20):
            tm = cand
            break
    while tm > 128 and ((_round_up(m, tm) - m) * 2 >= tm
                        or _round_up(m, tm) // tm < 2):
        tm //= 2
    return tm


def _pick_affine_tile(mp, coutp):
    """Lane tile for the BN-apply pass: ~0.5-2 MiB lane-dense blocks."""
    cap = max(128, (1 << 20) // coutp)
    t = 128
    for cand in (32768, 16384, 8192, 4096, 2048, 1024, 512, 256, 128):
        if cand <= cap and mp % cand == 0:
            t = cand
            break
    while t > 128 and mp // t < 2:
        t //= 2
    return t


# ----------------------------------------------------------------------------
# Pallas kernels
# ----------------------------------------------------------------------------
def _conv_bn_stats_kernel(a_ref, b_ref, o_ref, ms_ref, ss_ref):
    """(C_out x K) @ (K x tm) on the MXU (f32 acc) with fused BN statistics.

    Weights (a_ref) are the full-K, K-resident operand (block index constant
    across the grid); patches (b_ref) stream along the lane-dense spatial axis.
    The epilogue writes the bf16 conv tile plus this tile's per-channel sum and
    sum-of-squares, so BatchNorm statistics need no extra pass over HBM.
    """
    acc = jnp.dot(a_ref[...], b_ref[...], preferred_element_type=jnp.float32)
    o_ref[...] = acc.astype(o_ref.dtype)
    ms_ref[...] = jnp.sum(acc, axis=1, keepdims=True)[None]        # (1, Cp, 1)
    ss_ref[...] = jnp.sum(acc * acc, axis=1, keepdims=True)[None]  # (1, Cp, 1)


def _conv_bias_act_kernel(a_ref, b_ref, bias_ref, o_ref, *, act):
    """Matmul with fused conv-bias (+ LeakyReLU) epilogue (non-BN layers).

    Padded output channels have zero weights AND zero bias, so they stay
    exactly zero and cannot leak into the next layer's K.
    """
    acc = jnp.dot(a_ref[...], b_ref[...], preferred_element_type=jnp.float32)
    y = acc + bias_ref[...]                       # (Cp, 1) broadcast over lanes
    if act == "lrelu":
        y = jnp.maximum(y, 0.2 * y)               # LeakyReLU(0.2)
    o_ref[...] = y.astype(o_ref.dtype)


def _bn_act_kernel(x_ref, s_ref, b_ref, o_ref, *, act):
    """y = act(x * scale + shift); per-channel (sublane) scale/shift, f32 math."""
    y = x_ref[...].astype(jnp.float32) * s_ref[...] + b_ref[...]
    if act == "lrelu":
        y = jnp.maximum(y, 0.2 * y)
    o_ref[...] = y.astype(o_ref.dtype)


# ----------------------------------------------------------------------------
# pallas_call wrappers
# ----------------------------------------------------------------------------
_MOSAIC_PARAMS = pltpu.CompilerParams(
    dimension_semantics=("parallel",),
    vmem_limit_bytes=40 * 1024 * 1024)


def pallas_conv_bn_stats(a, b, out_dtype):
    """a: (Cp_out, K) bf16 weights; b: (K, M) bf16 patches (transposed im2col)."""
    coutp, k = a.shape
    _, m = b.shape
    tm = _pick_m_tile(m, coutp, k)
    mp = _round_up(m, tm)
    if mp != m:                                   # only the lane remainder pads
        b = jnp.pad(b, ((0, 0), (0, mp - m)))
    nmt = mp // tm
    return pl.pallas_call(
        _conv_bn_stats_kernel,
        out_shape=(jax.ShapeDtypeStruct((coutp, mp), out_dtype),
                   jax.ShapeDtypeStruct((nmt, coutp, 1), jnp.float32),
                   jax.ShapeDtypeStruct((nmt, coutp, 1), jnp.float32)),
        grid_spec=pltpu.PrefetchScalarGridSpec(
            num_scalar_prefetch=0, grid=(nmt,),
            in_specs=[pl.BlockSpec((coutp, k), lambda i: (0, 0)),
                      pl.BlockSpec((k, tm), lambda i: (0, i))],
            out_specs=[pl.BlockSpec((coutp, tm), lambda i: (0, i)),
                       pl.BlockSpec((1, coutp, 1), lambda i: (i, 0, 0)),
                       pl.BlockSpec((1, coutp, 1), lambda i: (i, 0, 0))]),
        compiler_params=_MOSAIC_PARAMS,
    )(a, b)


def pallas_conv_bias_act(a, b, bias_col, act, out_dtype):
    coutp, k = a.shape
    _, m = b.shape
    tm = _pick_m_tile(m, coutp, k)
    mp = _round_up(m, tm)
    if mp != m:
        b = jnp.pad(b, ((0, 0), (0, mp - m)))
    nmt = mp // tm
    return pl.pallas_call(
        functools.partial(_conv_bias_act_kernel, act=act),
        out_shape=jax.ShapeDtypeStruct((coutp, mp), out_dtype),
        grid_spec=pltpu.PrefetchScalarGridSpec(
            num_scalar_prefetch=0, grid=(nmt,),
            in_specs=[pl.BlockSpec((coutp, k), lambda i: (0, 0)),
                      pl.BlockSpec((k, tm), lambda i: (0, i)),
                      pl.BlockSpec((coutp, 1), lambda i: (0, 0))],
            out_specs=pl.BlockSpec((coutp, tm), lambda i: (0, i))),
        compiler_params=_MOSAIC_PARAMS,
    )(a, b, bias_col)


def pallas_bn_act(x, scale, shift, act, out_dtype):
    """x: (Cp_out, Mp) bf16 conv output; fused BN-apply + LeakyReLU."""
    coutp, mp = x.shape
    tma = _pick_affine_tile(mp, coutp)
    return pl.pallas_call(
        functools.partial(_bn_act_kernel, act=act),
        out_shape=jax.ShapeDtypeStruct((coutp, mp), out_dtype),
        grid_spec=pltpu.PrefetchScalarGridSpec(
            num_scalar_prefetch=0, grid=(mp // tma,),
            in_specs=[pl.BlockSpec((coutp, tma), lambda i: (0, i)),
                      pl.BlockSpec((coutp, 1), lambda i: (0, 0)),
                      pl.BlockSpec((coutp, 1), lambda i: (0, 0))],
            out_specs=pl.BlockSpec((coutp, tma), lambda i: (0, i))),
        compiler_params=pltpu.CompilerParams(
            dimension_semantics=("parallel",)),
    )(x, scale.reshape(coutp, 1).astype(jnp.float32),
      shift.reshape(coutp, 1).astype(jnp.float32))


# ----------------------------------------------------------------------------
# Conv layer glue (patch gather in JAX, hot path in Pallas)
# ----------------------------------------------------------------------------
def _im2col_T(x, kh, kw, stride):
    """x: (C, N, Hp, Wp) spatially padded ->
    (kh*kw*C, N*Ho*Wo) patches^T with K ordering ((ki*kw + kj)*C + c)."""
    # TODO(synk): implicit GEMM (no patch materialization) needs manual
    # make_async_copy gathers at element offsets; kept as XLA glue for now.
    c, n, hp, wp = x.shape
    ho = (hp - kh) // stride + 1
    wo = (wp - kw) // stride + 1
    taps = []
    for i in range(kh):
        for j in range(kw):
            taps.append(x[:, :, i:i + stride * (ho - 1) + 1:stride,
                          j:j + stride * (wo - 1) + 1:stride])
    p = jnp.stack(taps, axis=0)                    # (kh*kw, C, N, Ho, Wo)
    return p.reshape(kh * kw * c, n * ho * wo), (n, ho, wo)


def _conv_bn_act(y, w, bias, stride, has_bn, act, out_dtype):
    """y: (Cp_in, N, H, W) channel-padded bf16; w: PyTorch (c_out, c_in, 4, 4)."""
    cinp = y.shape[0]
    c_out, c_in, kh, kw = w.shape
    coutp = _round_up(c_out, 8 if out_dtype == jnp.float32 else 16)

    # spatial zero pad = 2   (padw = ceil((4-1)/2) = 2 in the PyTorch module)
    xp = jnp.pad(y, ((0, 0), (0, 0), (2, 2), (2, 2)))
    bmat, (n, ho, wo) = _im2col_T(xp, kh, kw, stride)     # (K, M) bf16
    m = n * ho * wo
    k = kh * kw * cinp

    # weight matrix (Cp_out, K), channels padded only to 8/16, bf16
    amat = jnp.zeros((coutp, kh, kw, cinp), jnp.bfloat16)
    amat = amat.at[:c_out, :, :, :c_in].set(
        jnp.transpose(w, (0, 2, 3, 1)).astype(jnp.bfloat16))
    amat = amat.reshape(coutp, k)

    if has_bn:
        # BatchNorm2d (training mode, gamma=1, beta=0, eps=1e-5).  Stats come
        # from the f32 MXU accumulator in the matmul epilogue; padded rows and
        # padded spatial columns are exactly zero and are excluded by dividing
        # by the true element count m.  The conv bias cancels in the mean
        # subtraction and is skipped.
        out2d, psum, psq = pallas_conv_bn_stats(amat, bmat, jnp.bfloat16)
        cnt = jnp.float32(m)
        ssum = jnp.sum(psum[:, :, 0], axis=0)              # (coutp,)
        ssq = jnp.sum(psq[:, :, 0], axis=0)
        mean = ssum / cnt
        # NOTE: E[x^2] - mean^2 in f32 with a clamp; adequate at conv-output
        # scales (|mean| << std).  A per-tile Welford combine would be safer.
        var = jnp.maximum(ssq / cnt - mean * mean, 0.0)
        inv = lax.rsqrt(var + 1e-5)
        ch_mask = (jnp.arange(coutp) < c_out).astype(jnp.float32)
        scale = inv * ch_mask                 # padded channels stay exactly zero
        shift = -mean * inv * ch_mask
        out2d = pallas_bn_act(out2d, scale, shift, act, out_dtype)
    else:
        bias_col = jnp.zeros((coutp, 1), jnp.float32)
        bias_col = bias_col.at[:c_out, 0].set(bias.astype(jnp.float32))
        out2d = pallas_conv_bias_act(amat, bmat, bias_col, act, out_dtype)

    return out2d[:, :m].reshape(coutp, n, ho, wo)


# ----------------------------------------------------------------------------
# NFeatureScalesLayerDiscriminator / MultiscaleDiscriminator forward
# ----------------------------------------------------------------------------
def _layer_plan(input_nc, ndf, n_layers):
    """[(c_in, c_out, stride, has_bn)] exactly matching the PyTorch __init__."""
    plan = [(input_nc, ndf, 2, False)]
    nf = ndf
    for _ in range(1, n_layers):
        nf_prev, nf = nf, min(nf * 2, 512)
        plan.append((nf_prev, nf, 2, True))
    nf_prev, nf = nf, min(nf * 2, 512)
    plan.append((nf_prev, nf, 1, True))
    plan.append((nf, 1, 1, False))
    return plan


def _single_d_forward(x_nchw, p, plan):
    n, c, h, w = x_nchw.shape
    cp = _round_up(c, 8)          # network input: pad only to a sublane multiple
    y = jnp.transpose(x_nchw, (1, 0, 2, 3))                 # NCHW -> (C, N, H, W)
    y = jnp.pad(y, ((0, cp - c), (0, 0), (0, 0), (0, 0))).astype(jnp.bfloat16)
    for li, (_, _, stride, has_bn) in enumerate(plan):
        is_last = li == len(plan) - 1
        y = _conv_bn_act(y, p[f"w{li}"], p[f"b{li}"], stride, has_bn,
                         act="none" if is_last else "lrelu",
                         out_dtype=jnp.float32 if is_last else jnp.bfloat16)
    # y: (8, N, Ho, Wo) f32; the single real logit channel is row 0.
    return jnp.transpose(y[:1], (1, 0, 2, 3))                # -> NCHW


def _avg_pool_3x3_s2(x_nchw):
    """AvgPool2d(3, stride=2, padding=1, count_include_pad=False) — JAX glue."""
    n, c, h, w = x_nchw.shape
    ho = (h - 1) // 2 + 1
    wo = (w - 1) // 2 + 1
    xp = jnp.pad(x_nchw, ((0, 0), (0, 0), (1, 1), (1, 1)))
    op = jnp.pad(jnp.ones((1, 1, h, w), x_nchw.dtype),
                 ((0, 0), (0, 0), (1, 1), (1, 1)))
    acc = jnp.zeros((n, c, ho, wo), x_nchw.dtype)
    cnt = jnp.zeros((1, 1, ho, wo), x_nchw.dtype)
    for i in range(3):
        for j in range(3):
            acc = acc + xp[:, :, i:i + 2 * (ho - 1) + 1:2,
                           j:j + 2 * (wo - 1) + 1:2]
            cnt = cnt + op[:, :, i:i + 2 * (ho - 1) + 1:2,
                           j:j + 2 * (wo - 1) + 1:2]
    return acc / cnt


@functools.partial(jax.jit, static_argnames=("input_nc", "ndf", "n_layers",
                                             "num_D"))
def multiscale_discriminator_forward(x_nchw, params, *, input_nc, ndf,
                                     n_layers, num_D):
    """MultiscaleDiscriminator.forward (getIntermFeat=False, use_sigmoid=False).

    Returns a tuple of num_D patch-logit maps; element i is discriminator
    `layer{num_D-1-i}` applied to the input downsampled i times (PyTorch wraps
    each in a single-element list)."""
    # TODO(synk): getIntermFeat=True / use_sigmoid=True branches are off by
    # default and are not implemented.
    plan = _layer_plan(input_nc, ndf, n_layers)
    outs = []
    cur = x_nchw
    for i in range(num_D):
        outs.append(_single_d_forward(cur, params[num_D - 1 - i], plan))
        if i != num_D - 1:
            cur = _avg_pool_3x3_s2(cur)
    return tuple(outs)


# ----------------------------------------------------------------------------
# Deterministic parameter init (shapes follow the PyTorch module)
# ----------------------------------------------------------------------------
def init_params(key, input_nc, ndf, n_layers, num_D):
    plan = _layer_plan(input_nc, ndf, n_layers)
    keys = jax.random.split(key, num_D * len(plan) * 2)
    params, ki = [], 0
    for _ in range(num_D):
        p = {}
        for li, (c_in, c_out, _, _) in enumerate(plan):
            p[f"w{li}"] = (0.02 * jax.random.normal(
                keys[ki], (c_out, c_in, 4, 4))).astype(jnp.float32)
            p[f"b{li}"] = (0.02 * jax.random.normal(
                keys[ki + 1], (c_out,))).astype(jnp.float32)
            ki += 2
        params.append(p)
    return tuple(params)


# ----------------------------------------------------------------------------
# Pure-JAX (lax.conv / reduce_window) reference for correctness checking
# ----------------------------------------------------------------------------
def _reference_single_d(x, p, plan):
    dn = ("NCHW", "OIHW", "NCHW")

    def conv(v, w, b, stride):
        y = lax.conv_general_dilated(
            v.astype(jnp.bfloat16), w.astype(jnp.bfloat16), (stride, stride),
            [(2, 2), (2, 2)], dimension_numbers=dn,
            preferred_element_type=jnp.float32)
        return y + b.astype(jnp.float32)[None, :, None, None]

    def bn(v):
        mean = jnp.mean(v, axis=(0, 2, 3), keepdims=True)
        var = jnp.mean((v - mean) ** 2, axis=(0, 2, 3), keepdims=True)
        return (v - mean) / jnp.sqrt(var + 1e-5)

    y = x
    for li, (_, _, stride, has_bn) in enumerate(plan):
        y = conv(y, p[f"w{li}"], p[f"b{li}"], stride)
        if has_bn:
            y = bn(y)
        if li != len(plan) - 1:
            y = jnp.where(y > 0, y, 0.2 * y)
    return y


def reference_forward(x, params, plan, num_D):
    def avgpool(v):
        pad = [(0, 0), (0, 0), (1, 1), (1, 1)]
        s = lax.reduce_window(v, 0.0, lax.add, (1, 1, 3, 3), (1, 1, 2, 2), pad)
        c = lax.reduce_window(jnp.ones_like(v), 0.0, lax.add,
                              (1, 1, 3, 3), (1, 1, 2, 2), pad)
        return s / c

    outs, cur = [], x
    for i in range(num_D):
        outs.append(_reference_single_d(cur, params[num_D - 1 - i], plan))
        if i != num_D - 1:
            cur = avgpool(cur)
    return outs


if __name__ == "__main__":
    input_nc, ndf, n_layers, num_D = 3, 16, 3, 3
    batch, hh, ww = 2, 32, 32

    key = jax.random.PRNGKey(0)
    kx, kp = jax.random.split(key)
    x = jax.random.normal(kx, (batch, input_nc, hh, ww), jnp.float32)
    params = init_params(kp, input_nc, ndf, n_layers, num_D)

    outs = multiscale_discriminator_forward(
        x, params, input_nc=input_nc, ndf=ndf, n_layers=n_layers, num_D=num_D)
    outs = jax.block_until_ready(outs)
    assert len(outs) == num_D

    plan = _layer_plan(input_nc, ndf, n_layers)
    refs = reference_forward(x, params, plan, num_D)
    # bf16 matmul operands + bf16 intermediate activations/conv outputs on both
    # sides -> a slightly looser tolerance than pure-f32 would need.
    for o, r in zip(outs, refs):
        assert o.shape == r.shape, (o.shape, r.shape)
        np.testing.assert_allclose(np.asarray(o), np.asarray(r),
                                   rtol=3e-2, atol=3e-2)
    print("KERNEL_OK")
</pallas_src>

<mosaic_0001>
module attributes {stable_mosaic.version = 11 : i64} {
  func.func @_conv_bias_act_kernel(%arg0: i32, %arg1: memref<16x128xbf16, #tpu.memory_space<vmem>>, %arg2: memref<128x128xbf16, #tpu.memory_space<vmem>>, %arg3: memref<16x1xf32, #tpu.memory_space<vmem>>, %arg4: memref<16x128xbf16, #tpu.memory_space<vmem>>) attributes {dimension_semantics = [#tpu.dimension_semantics<parallel>], iteration_bounds = array<i64: 1>, scalar_prefetch = 0 : i64, scratch_operands = 0 : i64, tpu.core_type = #tpu.core_type<tc>, window_params = [{pipeline_mode = #tpu.pipeline_mode<synchronous>, transform_indices = @transform_0, window_bounds = array<i64: 16, 128>}, {transform_indices = @transform_1, window_bounds = array<i64: 128, 128>}, {pipeline_mode = #tpu.pipeline_mode<synchronous>, transform_indices = @transform_2, window_bounds = array<i64: 16, 1>}, {transform_indices = @transform_3, window_bounds = array<i64: 16, 128>}]} {
    %c0 = arith.constant 0 : index
    %c0_0 = arith.constant 0 : index
    %0 = vector.load %arg1[%c0, %c0_0] : memref<16x128xbf16, #tpu.memory_space<vmem>>, vector<16x128xbf16>
    %c0_1 = arith.constant 0 : index
    %c0_2 = arith.constant 0 : index
    %1 = vector.load %arg2[%c0_1, %c0_2] : memref<128x128xbf16, #tpu.memory_space<vmem>>, vector<128x128xbf16>
    %cst = arith.constant dense<0.000000e+00> : vector<16x128xf32>
    %2 = tpu.matmul %0, %1, %cst {dimension_numbers = #tpu.dot_dimension_numbers<[1], [0], [0], [1], [0, 0, 1, 1], [], []>} : vector<16x128xbf16>, vector<128x128xbf16>, vector<16x128xf32> -> vector<16x128xf32>
    %c0_3 = arith.constant 0 : index
    %c0_4 = arith.constant 0 : index
    %3 = vector.load %arg3[%c0_3, %c0_4] : memref<16x1xf32, #tpu.memory_space<vmem>>, vector<16x1xf32>
    %4 = vector.broadcast %3 : vector<16x1xf32> to vector<16x128xf32>
    %5 = arith.addf %2, %4 : vector<16x128xf32>
    %cst_5 = arith.constant 2.000000e-01 : f32
    %6 = vector.broadcast %cst_5 : f32 to vector<16x128xf32>
    %7 = arith.mulf %6, %5 : vector<16x128xf32>
    %8 = arith.maximumf %5, %7 : vector<16x128xf32>
    %9 = arith.truncf %8 : vector<16x128xf32> to vector<16x128xbf16>
    %c0_6 = arith.constant 0 : index
    %c0_7 = arith.constant 0 : index
    %10 = vector.load %arg4[%c0_6, %c0_7] : memref<16x128xbf16, #tpu.memory_space<vmem>>, vector<16x128xbf16>
    tpu.vector_store %arg4[%c0_6, %c0_7], %9 {strides = array<i32>} : memref<16x128xbf16, #tpu.memory_space<vmem>>, vector<16x128xbf16>,
    return
  }
  func.func @transform_0(%arg0: i32) -> (i32, i32) {
    %c0_i32 = arith.constant 0 : i32
    %c0_i32_0 = arith.constant 0 : i32
    %c0_i32_1 = arith.constant 0 : i32
    return %c0_i32, %c0_i32_0 : i32, i32
  }
  func.func @transform_1(%arg0: i32) -> (i32, i32) {
    %c0_i32 = arith.constant 0 : i32
    %c0_i32_0 = arith.constant 0 : i32
    return %c0_i32, %arg0 : i32, i32
  }
  func.func @transform_2(%arg0: i32) -> (i32, i32) {
    %c0_i32 = arith.constant 0 : i32
    %c0_i32_0 = arith.constant 0 : i32
    %c0_i32_1 = arith.constant 0 : i32
    return %c0_i32, %c0_i32_0 : i32, i32
  }
  func.func @transform_3(%arg0: i32) -> (i32, i32) {
    %c0_i32 = arith.constant 0 : i32
    %c0_i32_0 = arith.constant 0 : i32
    return %c0_i32, %arg0 : i32, i32
  }
}

module attributes {stable_mosaic.version = 11 : i64} {
  func.func @_bn_act_kernel(%arg0: i32, %arg1: memref<32x128xbf16, #tpu.memory_space<vmem>>, %arg2: memref<32x1xf32, #tpu.memory_space<vmem>>, %arg3: memref<32x1xf32, #tpu.memory_space<vmem>>, %arg4: memref<32x128xbf16, #tpu.memory_space<vmem>>) attributes {dimension_semantics = [#tpu.dimension_semantics<parallel>], iteration_bounds = array<i64: 1>, scalar_prefetch = 0 : i64, scratch_operands = 0 : i64, tpu.core_type = #tpu.core_type<tc>, window_params = [{transform_indices = @transform_0, window_bounds = array<i64: 32, 128>}, {pipeline_mode = #tpu.pipeline_mode<synchronous>, transform_indices = @transform_1, window_bounds = array<i64: 32, 1>}, {pipeline_mode = #tpu.pipeline_mode<synchronous>, transform_indices = @transform_2, window_bounds = array<i64: 32, 1>}, {transform_indices = @transform_3, window_bounds = array<i64: 32, 128>}]} {
    %c0 = arith.constant 0 : index
    %c0_0 = arith.constant 0 : index
    %0 = vector.load %arg1[%c0, %c0_0] : memref<32x128xbf16, #tpu.memory_space<vmem>>, vector<32x128xbf16>
    %1 = arith.extf %0 : vector<32x128xbf16> to vector<32x128xf32>
    %c0_1 = arith.constant 0 : index
    %c0_2 = arith.constant 0 : index
    %2 = vector.load %arg2[%c0_1, %c0_2] : memref<32x1xf32, #tpu.memory_space<vmem>>, vector<32x1xf32>
    %3 = vector.broadcast %2 : vector<32x1xf32> to vector<32x128xf32>
    %4 = arith.mulf %1, %3 : vector<32x128xf32>
    %c0_3 = arith.constant 0 : index
    %c0_4 = arith.constant 0 : index
    %5 = vector.load %arg3[%c0_3, %c0_4] : memref<32x1xf32, #tpu.memory_space<vmem>>, vector<32x1xf32>
    %6 = vector.broadcast %5 : vector<32x1xf32> to vector<32x128xf32>
    %7 = arith.addf %4, %6 : vector<32x128xf32>
    %cst = arith.constant 2.000000e-01 : f32
    %8 = vector.broadcast %cst : f32 to vector<32x128xf32>
    %9 = arith.mulf %8, %7 : vector<32x128xf32>
    %10 = arith.maximumf %7, %9 : vector<32x128xf32>
    %11 = arith.truncf %10 : vector<32x128xf32> to vector<32x128xbf16>
    %c0_5 = arith.constant 0 : index
    %c0_6 = arith.constant 0 : index
    %12 = vector.load %arg4[%c0_5, %c0_6] : memref<32x128xbf16, #tpu.memory_space<vmem>>, vector<32x128xbf16>
    tpu.vector_store %arg4[%c0_5, %c0_6], %11 {strides = array<i32>} : memref<32x128xbf16, #tpu.memory_space<vmem>>, vector<32x128xbf16>,
    return
  }
  func.func @transform_0(%arg0: i32) -> (i32, i32) {
    %c0_i32 = arith.constant 0 : i32
    %c0_i32_0 = arith.constant 0 : i32
    return %c0_i32, %arg0 : i32, i32
  }
  func.func @transform_1(%arg0: i32) -> (i32, i32) {
    %c0_i32 = arith.constant 0 : i32
    %c0_i32_0 = arith.constant 0 : i32
    %c0_i32_1 = arith.constant 0 : i32
    return %c0_i32, %c0_i32_0 : i32, i32
  }
  func.func @transform_2(%arg0: i32) -> (i32, i32) {
    %c0_i32 = arith.constant 0 : i32
    %c0_i32_0 = arith.constant 0 : i32
    %c0_i32_1 = arith.constant 0 : i32
    return %c0_i32, %c0_i32_0 : i32, i32
  }
  func.func @transform_3(%arg0: i32) -> (i32, i32) {
    %c0_i32 = arith.constant 0 : i32
    %c0_i32_0 = arith.constant 0 : i32
    return %c0_i32, %arg0 : i32, i32
  }
}

module attributes {stable_mosaic.version = 11 : i64} {
  func.func @_conv_bn_stats_kernel(%arg0: i32, %arg1: memref<32x256xbf16, #tpu.memory_space<vmem>>, %arg2: memref<256x128xbf16, #tpu.memory_space<vmem>>, %arg3: memref<32x128xbf16, #tpu.memory_space<vmem>>, %arg4: memref<1x32x1xf32, #tpu.memory_space<vmem>>, %arg5: memref<1x32x1xf32, #tpu.memory_space<vmem>>) attributes {dimension_semantics = [#tpu.dimension_semantics<parallel>], iteration_bounds = array<i64: 1>, scalar_prefetch = 0 : i64, scratch_operands = 0 : i64, tpu.core_type = #tpu.core_type<tc>, window_params = [{pipeline_mode = #tpu.pipeline_mode<synchronous>, transform_indices = @transform_0, window_bounds = array<i64: 32, 256>}, {transform_indices = @transform_1, window_bounds = array<i64: 256, 128>}, {transform_indices = @transform_2, window_bounds = array<i64: 32, 128>}, {transform_indices = @transform_3, window_bounds = array<i64: 1, 32, 1>}, {transform_indices = @transform_4, window_bounds = array<i64: 1, 32, 1>}]} {
    %c0 = arith.constant 0 : index
    %c0_0 = arith.constant 0 : index
    %0 = vector.load %arg1[%c0, %c0_0] : memref<32x256xbf16, #tpu.memory_space<vmem>>, vector<32x256xbf16>
    %c0_1 = arith.constant 0 : index
    %c0_2 = arith.constant 0 : index
    %1 = vector.load %arg2[%c0_1, %c0_2] : memref<256x128xbf16, #tpu.memory_space<vmem>>, vector<256x128xbf16>
    %cst = arith.constant dense<0.000000e+00> : vector<32x128xf32>
    %2 = tpu.matmul %0, %1, %cst {dimension_numbers = #tpu.dot_dimension_numbers<[1], [0], [0], [1], [0, 0, 1, 1], [], []>} : vector<32x256xbf16>, vector<256x128xbf16>, vector<32x128xf32> -> vector<32x128xf32>
    %3 = arith.truncf %2 : vector<32x128xf32> to vector<32x128xbf16>
    %c0_3 = arith.constant 0 : index
    %c0_4 = arith.constant 0 : index
    %4 = vector.load %arg3[%c0_3, %c0_4] : memref<32x128xbf16, #tpu.memory_space<vmem>>, vector<32x128xbf16>
    tpu.vector_store %arg3[%c0_3, %c0_4], %3 {strides = array<i32>} : memref<32x128xbf16, #tpu.memory_space<vmem>>, vector<32x128xbf16>,
    %cst_5 = arith.constant dense<0.000000e+00> : vector<32xf32>
    %5 = vector.multi_reduction <add>, %2, %cst_5 [1] : vector<32x128xf32> to vector<32xf32>
    %6 = vector.shape_cast %5 : vector<32xf32> to vector<32x1xf32>
    %7 = vector.shape_cast %6 : vector<32x1xf32> to vector<1x32x1xf32>
    %c0_6 = arith.constant 0 : index
    %c0_7 = arith.constant 0 : index
    %c0_8 = arith.constant 0 : index
    %8 = vector.load %arg4[%c0_6, %c0_7, %c0_8] : memref<1x32x1xf32, #tpu.memory_space<vmem>>, vector<1x32x1xf32>
    tpu.vector_store %arg4[%c0_6, %c0_7, %c0_8], %7 {strides = array<i32>} : memref<1x32x1xf32, #tpu.memory_space<vmem>>, vector<1x32x1xf32>,
    %9 = arith.mulf %2, %2 : vector<32x128xf32>
    %cst_9 = arith.constant dense<0.000000e+00> : vector<32xf32>
    %10 = vector.multi_reduction <add>, %9, %cst_9 [1] : vector<32x128xf32> to vector<32xf32>
    %11 = vector.shape_cast %10 : vector<32xf32> to vector<32x1xf32>
    %12 = vector.shape_cast %11 : vector<32x1xf32> to vector<1x32x1xf32>
    %c0_10 = arith.constant 0 : index
    %c0_11 = arith.constant 0 : index
    %c0_12 = arith.constant 0 : index
    %13 = vector.load %arg5[%c0_10, %c0_11, %c0_12] : memref<1x32x1xf32, #tpu.memory_space<vmem>>, vector<1x32x1xf32>
    tpu.vector_store %arg5[%c0_10, %c0_11, %c0_12], %12 {strides = array<i32>} : memref<1x32x1xf32, #tpu.memory_space<vmem>>, vector<1x32x1xf32>,
    return
  }
  func.func @transform_0(%arg0: i32) -> (i32, i32) {
    %c0_i32 = arith.constant 0 : i32
    %c0_i32_0 = arith.constant 0 : i32
    %c0_i32_1 = arith.constant 0 : i32
    return %c0_i32, %c0_i32_0 : i32, i32
  }
  func.func @transform_1(%arg0: i32) -> (i32, i32) {
    %c0_i32 = arith.constant 0 : i32
    %c0_i32_0 = arith.constant 0 : i32
    return %c0_i32, %arg0 : i32, i32
  }
  func.func @transform_2(%arg0: i32) -> (i32, i32) {
    %c0_i32 = arith.constant 0 : i32
    %c0_i32_0 = arith.constant 0 : i32
    return %c0_i32, %arg0 : i32, i32
  }
  func.func @transform_3(%arg0: i32) -> (i32, i32, i32) {
    %c0_i32 = arith.constant 0 : i32
    %c0_i32_0 = arith.constant 0 : i32
    %c0_i32_1 = arith.constant 0 : i32
    return %arg0, %c0_i32, %c0_i32_0 : i32, i32, i32
  }
  func.func @transform_4(%arg0: i32) -> (i32, i32, i32) {
    %c0_i32 = arith.constant 0 : i32
    %c0_i32_0 = arith.constant 0 : i32
    %c0_i32_1 = arith.constant 0 : i32
    return %arg0, %c0_i32, %c0_i32_0 : i32, i32, i32
  }
}

module attributes {stable_mosaic.version = 11 : i64} {
  func.func @_bn_act_kernel(%arg0: i32, %arg1: memref<64x128xbf16, #tpu.memory_space<vmem>>, %arg2: memref<64x1xf32, #tpu.memory_space<vmem>>, %arg3: memref<64x1xf32, #tpu.memory_space<vmem>>, %arg4: memref<64x128xbf16, #tpu.memory_space<vmem>>) attributes {dimension_semantics = [#tpu.dimension_semantics<parallel>], iteration_bounds = array<i64: 1>, scalar_prefetch = 0 : i64, scratch_operands = 0 : i64, tpu.core_type = #tpu.core_type<tc>, window_params = [{transform_indices = @transform_0, window_bounds = array<i64: 64, 128>}, {pipeline_mode = #tpu.pipeline_mode<synchronous>, transform_indices = @transform_1, window_bounds = array<i64: 64, 1>}, {pipeline_mode = #tpu.pipeline_mode<synchronous>, transform_indices = @transform_2, window_bounds = array<i64: 64, 1>}, {transform_indices = @transform_3, window_bounds = array<i64: 64, 128>}]} {
    %c0 = arith.constant 0 : index
    %c0_0 = arith.constant 0 : index
    %0 = vector.load %arg1[%c0, %c0_0] : memref<64x128xbf16, #tpu.memory_space<vmem>>, vector<64x128xbf16>
    %1 = arith.extf %0 : vector<64x128xbf16> to vector<64x128xf32>
    %c0_1 = arith.constant 0 : index
    %c0_2 = arith.constant 0 : index
    %2 = vector.load %arg2[%c0_1, %c0_2] : memref<64x1xf32, #tpu.memory_space<vmem>>, vector<64x1xf32>
    %3 = vector.broadcast %2 : vector<64x1xf32> to vector<64x128xf32>
    %4 = arith.mulf %1, %3 : vector<64x128xf32>
    %c0_3 = arith.constant 0 : index
    %c0_4 = arith.constant 0 : index
    %5 = vector.load %arg3[%c0_3, %c0_4] : memref<64x1xf32, #tpu.memory_space<vmem>>, vector<64x1xf32>
    %6 = vector.broadcast %5 : vector<64x1xf32> to vector<64x128xf32>
    %7 = arith.addf %4, %6 : vector<64x128xf32>
    %cst = arith.constant 2.000000e-01 : f32
    %8 = vector.broadcast %cst : f32 to vector<64x128xf32>
    %9 = arith.mulf %8, %7 : vector<64x128xf32>
    %10 = arith.maximumf %7, %9 : vector<64x128xf32>
    %11 = arith.truncf %10 : vector<64x128xf32> to vector<64x128xbf16>
    %c0_5 = arith.constant 0 : index
    %c0_6 = arith.constant 0 : index
    %12 = vector.load %arg4[%c0_5, %c0_6] : memref<64x128xbf16, #tpu.memory_space<vmem>>, vector<64x128xbf16>
    tpu.vector_store %arg4[%c0_5, %c0_6], %11 {strides = array<i32>} : memref<64x128xbf16, #tpu.memory_space<vmem>>, vector<64x128xbf16>,
    return
  }
  func.func @transform_0(%arg0: i32) -> (i32, i32) {
    %c0_i32 = arith.constant 0 : i32
    %c0_i32_0 = arith.constant 0 : i32
    return %c0_i32, %arg0 : i32, i32
  }
  func.func @transform_1(%arg0: i32) -> (i32, i32) {
    %c0_i32 = arith.constant 0 : i32
    %c0_i32_0 = arith.constant 0 : i32
    %c0_i32_1 = arith.constant 0 : i32
    return %c0_i32, %c0_i32_0 : i32, i32
  }
  func.func @transform_2(%arg0: i32) -> (i32, i32) {
    %c0_i32 = arith.constant 0 : i32
    %c0_i32_0 = arith.constant 0 : i32
    %c0_i32_1 = arith.constant 0 : i32
    return %c0_i32, %c0_i32_0 : i32, i32
  }
  func.func @transform_3(%arg0: i32) -> (i32, i32) {
    %c0_i32 = arith.constant 0 : i32
    %c0_i32_0 = arith.constant 0 : i32
    return %c0_i32, %arg0 : i32, i32
  }
}

module attributes {stable_mosaic.version = 11 : i64} {
  func.func @_conv_bn_stats_kernel(%arg0: i32, %arg1: memref<64x512xbf16, #tpu.memory_space<vmem>>, %arg2: memref<512x128xbf16, #tpu.memory_space<vmem>>, %arg3: memref<64x128xbf16, #tpu.memory_space<vmem>>, %arg4: memref<1x64x1xf32, #tpu.memory_space<vmem>>, %arg5: memref<1x64x1xf32, #tpu.memory_space<vmem>>) attributes {dimension_semantics = [#tpu.dimension_semantics<parallel>], iteration_bounds = array<i64: 1>, scalar_prefetch = 0 : i64, scratch_operands = 0 : i64, tpu.core_type = #tpu.core_type<tc>, window_params = [{pipeline_mode = #tpu.pipeline_mode<synchronous>, transform_indices = @transform_0, window_bounds = array<i64: 64, 512>}, {transform_indices = @transform_1, window_bounds = array<i64: 512, 128>}, {transform_indices = @transform_2, window_bounds = array<i64: 64, 128>}, {transform_indices = @transform_3, window_bounds = array<i64: 1, 64, 1>}, {transform_indices = @transform_4, window_bounds = array<i64: 1, 64, 1>}]} {
    %c0 = arith.constant 0 : index
    %c0_0 = arith.constant 0 : index
    %0 = vector.load %arg1[%c0, %c0_0] : memref<64x512xbf16, #tpu.memory_space<vmem>>, vector<64x512xbf16>
    %c0_1 = arith.constant 0 : index
    %c0_2 = arith.constant 0 : index
    %1 = vector.load %arg2[%c0_1, %c0_2] : memref<512x128xbf16, #tpu.memory_space<vmem>>, vector<512x128xbf16>
    %cst = arith.constant dense<0.000000e+00> : vector<64x128xf32>
    %2 = tpu.matmul %0, %1, %cst {dimension_numbers = #tpu.dot_dimension_numbers<[1], [0], [0], [1], [0, 0, 1, 1], [], []>} : vector<64x512xbf16>, vector<512x128xbf16>, vector<64x128xf32> -> vector<64x128xf32>
    %3 = arith.truncf %2 : vector<64x128xf32> to vector<64x128xbf16>
    %c0_3 = arith.constant 0 : index
    %c0_4 = arith.constant 0 : index
    %4 = vector.load %arg3[%c0_3, %c0_4] : memref<64x128xbf16, #tpu.memory_space<vmem>>, vector<64x128xbf16>
    tpu.vector_store %arg3[%c0_3, %c0_4], %3 {strides = array<i32>} : memref<64x128xbf16, #tpu.memory_space<vmem>>, vector<64x128xbf16>,
    %cst_5 = arith.constant dense<0.000000e+00> : vector<64xf32>
    %5 = vector.multi_reduction <add>, %2, %cst_5 [1] : vector<64x128xf32> to vector<64xf32>
    %6 = vector.shape_cast %5 : vector<64xf32> to vector<64x1xf32>
    %7 = vector.shape_cast %6 : vector<64x1xf32> to vector<1x64x1xf32>
    %c0_6 = arith.constant 0 : index
    %c0_7 = arith.constant 0 : index
    %c0_8 = arith.constant 0 : index
    %8 = vector.load %arg4[%c0_6, %c0_7, %c0_8] : memref<1x64x1xf32, #tpu.memory_space<vmem>>, vector<1x64x1xf32>
    tpu.vector_store %arg4[%c0_6, %c0_7, %c0_8], %7 {strides = array<i32>} : memref<1x64x1xf32, #tpu.memory_space<vmem>>, vector<1x64x1xf32>,
    %9 = arith.mulf %2, %2 : vector<64x128xf32>
    %cst_9 = arith.constant dense<0.000000e+00> : vector<64xf32>
    %10 = vector.multi_reduction <add>, %9, %cst_9 [1] : vector<64x128xf32> to vector<64xf32>
    %11 = vector.shape_cast %10 : vector<64xf32> to vector<64x1xf32>
    %12 = vector.shape_cast %11 : vector<64x1xf32> to vector<1x64x1xf32>
    %c0_10 = arith.constant 0 : index
    %c0_11 = arith.constant 0 : index
    %c0_12 = arith.constant 0 : index
    %13 = vector.load %arg5[%c0_10, %c0_11, %c0_12] : memref<1x64x1xf32, #tpu.memory_space<vmem>>, vector<1x64x1xf32>
    tpu.vector_store %arg5[%c0_10, %c0_11, %c0_12], %12 {strides = array<i32>} : memref<1x64x1xf32, #tpu.memory_space<vmem>>, vector<1x64x1xf32>,
    return
  }
  func.func @transform_0(%arg0: i32) -> (i32, i32) {
    %c0_i32 = arith.constant 0 : i32
    %c0_i32_0 = arith.constant 0 : i32
    %c0_i32_1 = arith.constant 0 : i32
    return %c0_i32, %c0_i32_0 : i32, i32
  }
  func.func @transform_1(%arg0: i32) -> (i32, i32) {
    %c0_i32 = arith.constant 0 : i32
    %c0_i32_0 = arith.constant 0 : i32
    return %c0_i32, %arg0 : i32, i32
  }
  func.func @transform_2(%arg0: i32) -> (i32, i32) {
    %c0_i32 = arith.constant 0 : i32
    %c0_i32_0 = arith.constant 0 : i32
    return %c0_i32, %arg0 : i32, i32
  }
  func.func @transform_3(%arg0: i32) -> (i32, i32, i32) {
    %c0_i32 = arith.constant 0 : i32
    %c0_i32_0 = arith.constant 0 : i32
    %c0_i32_1 = arith.constant 0 : i32
    return %arg0, %c0_i32, %c0_i32_0 : i32, i32, i32
  }
  func.func @transform_4(%arg0: i32) -> (i32, i32, i32) {
    %c0_i32 = arith.constant 0 : i32
    %c0_i32_0 = arith.constant 0 : i32
    %c0_i32_1 = arith.constant 0 : i32
    return %arg0, %c0_i32, %c0_i32_0 : i32, i32, i32
  }
}

module attributes {stable_mosaic.version = 11 : i64} {
  func.func @_conv_bn_stats_kernel(%arg0: i32, %arg1: memref<128x1024xbf16, #tpu.memory_space<vmem>>, %arg2: memref<1024x128xbf16, #tpu.memory_space<vmem>>, %arg3: memref<128x128xbf16, #tpu.memory_space<vmem>>, %arg4: memref<1x128x1xf32, #tpu.memory_space<vmem>>, %arg5: memref<1x128x1xf32, #tpu.memory_space<vmem>>) attributes {dimension_semantics = [#tpu.dimension_semantics<parallel>], iteration_bounds = array<i64: 1>, scalar_prefetch = 0 : i64, scratch_operands = 0 : i64, tpu.core_type = #tpu.core_type<tc>, window_params = [{pipeline_mode = #tpu.pipeline_mode<synchronous>, transform_indices = @transform_0, window_bounds = array<i64: 128, 1024>}, {transform_indices = @transform_1, window_bounds = array<i64: 1024, 128>}, {transform_indices = @transform_2, window_bounds = array<i64: 128, 128>}, {transform_indices = @transform_3, window_bounds = array<i64: 1, 128, 1>}, {transform_indices = @transform_4, window_bounds = array<i64: 1, 128, 1>}]} {
    %c0 = arith.constant 0 : index
    %c0_0 = arith.constant 0 : index
    %0 = vector.load %arg1[%c0, %c0_0] : memref<128x1024xbf16, #tpu.memory_space<vmem>>, vector<128x1024xbf16>
    %c0_1 = arith.constant 0 : index
    %c0_2 = arith.constant 0 : index
    %1 = vector.load %arg2[%c0_1, %c0_2] : memref<1024x128xbf16, #tpu.memory_space<vmem>>, vector<1024x128xbf16>
    %cst = arith.constant dense<0.000000e+00> : vector<128x128xf32>
    %2 = tpu.matmul %0, %1, %cst {dimension_numbers = #tpu.dot_dimension_numbers<[1], [0], [0], [1], [0, 0, 1, 1], [], []>} : vector<128x1024xbf16>, vector<1024x128xbf16>, vector<128x128xf32> -> vector<128x128xf32>
    %3 = arith.truncf %2 : vector<128x128xf32> to vector<128x128xbf16>
    %c0_3 = arith.constant 0 : index
    %c0_4 = arith.constant 0 : index
    %4 = vector.load %arg3[%c0_3, %c0_4] : memref<128x128xbf16, #tpu.memory_space<vmem>>, vector<128x128xbf16>
    tpu.vector_store %arg3[%c0_3, %c0_4], %3 {strides = array<i32>} : memref<128x128xbf16, #tpu.memory_space<vmem>>, vector<128x128xbf16>,
    %cst_5 = arith.constant dense<0.000000e+00> : vector<128xf32>
    %5 = vector.multi_reduction <add>, %2, %cst_5 [1] : vector<128x128xf32> to vector<128xf32>
    %6 = vector.shape_cast %5 : vector<128xf32> to vector<128x1xf32>
    %7 = vector.shape_cast %6 : vector<128x1xf32> to vector<1x128x1xf32>
    %c0_6 = arith.constant 0 : index
    %c0_7 = arith.constant 0 : index
    %c0_8 = arith.constant 0 : index
    %8 = vector.load %arg4[%c0_6, %c0_7, %c0_8] : memref<1x128x1xf32, #tpu.memory_space<vmem>>, vector<1x128x1xf32>
    tpu.vector_store %arg4[%c0_6, %c0_7, %c0_8], %7 {strides = array<i32>} : memref<1x128x1xf32, #tpu.memory_space<vmem>>, vector<1x128x1xf32>,
    %9 = arith.mulf %2, %2 : vector<128x128xf32>
    %cst_9 = arith.constant dense<0.000000e+00> : vector<128xf32>
    %10 = vector.multi_reduction <add>, %9, %cst_9 [1] : vector<128x128xf32> to vector<128xf32>
    %11 = vector.shape_cast %10 : vector<128xf32> to vector<128x1xf32>
    %12 = vector.shape_cast %11 : vector<128x1xf32> to vector<1x128x1xf32>
    %c0_10 = arith.constant 0 : index
    %c0_11 = arith.constant 0 : index
    %c0_12 = arith.constant 0 : index
    %13 = vector.load %arg5[%c0_10, %c0_11, %c0_12] : memref<1x128x1xf32, #tpu.memory_space<vmem>>, vector<1x128x1xf32>
    tpu.vector_store %arg5[%c0_10, %c0_11, %c0_12], %12 {strides = array<i32>} : memref<1x128x1xf32, #tpu.memory_space<vmem>>, vector<1x128x1xf32>,
    return
  }
  func.func @transform_0(%arg0: i32) -> (i32, i32) {
    %c0_i32 = arith.constant 0 : i32
    %c0_i32_0 = arith.constant 0 : i32
    %c0_i32_1 = arith.constant 0 : i32
    return %c0_i32, %c0_i32_0 : i32, i32
  }
  func.func @transform_1(%arg0: i32) -> (i32, i32) {
    %c0_i32 = arith.constant 0 : i32
    %c0_i32_0 = arith.constant 0 : i32
    return %c0_i32, %arg0 : i32, i32
  }
  func.func @transform_2(%arg0: i32) -> (i32, i32) {
    %c0_i32 = arith.constant 0 : i32
    %c0_i32_0 = arith.constant 0 : i32
    return %c0_i32, %arg0 : i32, i32
  }
  func.func @transform_3(%arg0: i32) -> (i32, i32, i32) {
    %c0_i32 = arith.constant 0 : i32
    %c0_i32_0 = arith.constant 0 : i32
    %c0_i32_1 = arith.constant 0 : i32
    return %arg0, %c0_i32, %c0_i32_0 : i32, i32, i32
  }
  func.func @transform_4(%arg0: i32) -> (i32, i32, i32) {
    %c0_i32 = arith.constant 0 : i32
    %c0_i32_0 = arith.constant 0 : i32
    %c0_i32_1 = arith.constant 0 : i32
    return %arg0, %c0_i32, %c0_i32_0 : i32, i32, i32
  }
}

module attributes {stable_mosaic.version = 11 : i64} {
  func.func @_bn_act_kernel(%arg0: i32, %arg1: memref<128x128xbf16, #tpu.memory_space<vmem>>, %arg2: memref<128x1xf32, #tpu.memory_space<vmem>>, %arg3: memref<128x1xf32, #tpu.memory_space<vmem>>, %arg4: memref<128x128xbf16, #tpu.memory_space<vmem>>) attributes {dimension_semantics = [#tpu.dimension_semantics<parallel>], iteration_bounds = array<i64: 1>, scalar_prefetch = 0 : i64, scratch_operands = 0 : i64, tpu.core_type = #tpu.core_type<tc>, window_params = [{transform_indices = @transform_0, window_bounds = array<i64: 128, 128>}, {pipeline_mode = #tpu.pipeline_mode<synchronous>, transform_indices = @transform_1, window_bounds = array<i64: 128, 1>}, {pipeline_mode = #tpu.pipeline_mode<synchronous>, transform_indices = @transform_2, window_bounds = array<i64: 128, 1>}, {transform_indices = @transform_3, window_bounds = array<i64: 128, 128>}]} {
    %c0 = arith.constant 0 : index
    %c0_0 = arith.constant 0 : index
    %0 = vector.load %arg1[%c0, %c0_0] : memref<128x128xbf16, #tpu.memory_space<vmem>>, vector<128x128xbf16>
    %1 = arith.extf %0 : vector<128x128xbf16> to vector<128x128xf32>
    %c0_1 = arith.constant 0 : index
    %c0_2 = arith.constant 0 : index
    %2 = vector.load %arg2[%c0_1, %c0_2] : memref<128x1xf32, #tpu.memory_space<vmem>>, vector<128x1xf32>
    %3 = vector.broadcast %2 : vector<128x1xf32> to vector<128x128xf32>
    %4 = arith.mulf %1, %3 : vector<128x128xf32>
    %c0_3 = arith.constant 0 : index
    %c0_4 = arith.constant 0 : index
    %5 = vector.load %arg3[%c0_3, %c0_4] : memref<128x1xf32, #tpu.memory_space<vmem>>, vector<128x1xf32>
    %6 = vector.broadcast %5 : vector<128x1xf32> to vector<128x128xf32>
    %7 = arith.addf %4, %6 : vector<128x128xf32>
    %cst = arith.constant 2.000000e-01 : f32
    %8 = vector.broadcast %cst : f32 to vector<128x128xf32>
    %9 = arith.mulf %8, %7 : vector<128x128xf32>
    %10 = arith.maximumf %7, %9 : vector<128x128xf32>
    %11 = arith.truncf %10 : vector<128x128xf32> to vector<128x128xbf16>
    %c0_5 = arith.constant 0 : index
    %c0_6 = arith.constant 0 : index
    %12 = vector.load %arg4[%c0_5, %c0_6] : memref<128x128xbf16, #tpu.memory_space<vmem>>, vector<128x128xbf16>
    tpu.vector_store %arg4[%c0_5, %c0_6], %11 {strides = array<i32>} : memref<128x128xbf16, #tpu.memory_space<vmem>>, vector<128x128xbf16>,
    return
  }
  func.func @transform_0(%arg0: i32) -> (i32, i32) {
    %c0_i32 = arith.constant 0 : i32
    %c0_i32_0 = arith.constant 0 : i32
    return %c0_i32, %arg0 : i32, i32
  }
  func.func @transform_1(%arg0: i32) -> (i32, i32) {
    %c0_i32 = arith.constant 0 : i32
    %c0_i32_0 = arith.constant 0 : i32
    %c0_i32_1 = arith.constant 0 : i32
    return %c0_i32, %c0_i32_0 : i32, i32
  }
  func.func @transform_2(%arg0: i32) -> (i32, i32) {
    %c0_i32 = arith.constant 0 : i32
    %c0_i32_0 = arith.constant 0 : i32
    %c0_i32_1 = arith.constant 0 : i32
    return %c0_i32, %c0_i32_0 : i32, i32
  }
  func.func @transform_3(%arg0: i32) -> (i32, i32) {
    %c0_i32 = arith.constant 0 : i32
    %c0_i32_0 = arith.constant 0 : i32
    return %c0_i32, %arg0 : i32, i32
  }
}

module attributes {stable_mosaic.version = 11 : i64} {
  func.func @_conv_bias_act_kernel(%arg0: i32, %arg1: memref<8x2048xbf16, #tpu.memory_space<vmem>>, %arg2: memref<2048x128xbf16, #tpu.memory_space<vmem>>, %arg3: memref<8x1xf32, #tpu.memory_space<vmem>>, %arg4: memref<8x128xf32, #tpu.memory_space<vmem>>) attributes {dimension_semantics = [#tpu.dimension_semantics<parallel>], iteration_bounds = array<i64: 1>, scalar_prefetch = 0 : i64, scratch_operands = 0 : i64, tpu.core_type = #tpu.core_type<tc>, window_params = [{pipeline_mode = #tpu.pipeline_mode<synchronous>, transform_indices = @transform_0, window_bounds = array<i64: 8, 2048>}, {transform_indices = @transform_1, window_bounds = array<i64: 2048, 128>}, {pipeline_mode = #tpu.pipeline_mode<synchronous>, transform_indices = @transform_2, window_bounds = array<i64: 8, 1>}, {transform_indices = @transform_3, window_bounds = array<i64: 8, 128>}]} {
    %c0 = arith.constant 0 : index
    %c0_0 = arith.constant 0 : index
    %0 = vector.load %arg1[%c0, %c0_0] : memref<8x2048xbf16, #tpu.memory_space<vmem>>, vector<8x2048xbf16>
    %c0_1 = arith.constant 0 : index
    %c0_2 = arith.constant 0 : index
    %1 = vector.load %arg2[%c0_1, %c0_2] : memref<2048x128xbf16, #tpu.memory_space<vmem>>, vector<2048x128xbf16>
    %cst = arith.constant dense<0.000000e+00> : vector<8x128xf32>
    %2 = tpu.matmul %0, %1, %cst {dimension_numbers = #tpu.dot_dimension_numbers<[1], [0], [0], [1], [0, 0, 1, 1], [], []>} : vector<8x2048xbf16>, vector<2048x128xbf16>, vector<8x128xf32> -> vector<8x128xf32>
    %c0_3 = arith.constant 0 : index
    %c0_4 = arith.constant 0 : index
    %3 = vector.load %arg3[%c0_3, %c0_4] : memref<8x1xf32, #tpu.memory_space<vmem>>, vector<8x1xf32>
    %4 = vector.broadcast %3 : vector<8x1xf32> to vector<8x128xf32>
    %5 = arith.addf %2, %4 : vector<8x128xf32>
    %c0_5 = arith.constant 0 : index
    %c0_6 = arith.constant 0 : index
    %6 = vector.load %arg4[%c0_5, %c0_6] : memref<8x128xf32, #tpu.memory_space<vmem>>, vector<8x128xf32>
    tpu.vector_store %arg4[%c0_5, %c0_6], %5 {strides = array<i32>} : memref<8x128xf32, #tpu.memory_space<vmem>>, vector<8x128xf32>,
    return
  }
  func.func @transform_0(%arg0: i32) -> (i32, i32) {
    %c0_i32 = arith.constant 0 : i32
    %c0_i32_0 = arith.constant 0 : i32
    %c0_i32_1 = arith.constant 0 : i32
    return %c0_i32, %c0_i32_0 : i32, i32
  }
  func.func @transform_1(%arg0: i32) -> (i32, i32) {
    %c0_i32 = arith.constant 0 : i32
    %c0_i32_0 = arith.constant 0 : i32
    return %c0_i32, %arg0 : i32, i32
  }
  func.func @transform_2(%arg0: i32) -> (i32, i32) {
    %c0_i32 = arith.constant 0 : i32
    %c0_i32_0 = arith.constant 0 : i32
    %c0_i32_1 = arith.constant 0 : i32
    return %c0_i32, %c0_i32_0 : i32, i32
  }
  func.func @transform_3(%arg0: i32) -> (i32, i32) {
    %c0_i32 = arith.constant 0 : i32
    %c0_i32_0 = arith.constant 0 : i32
    return %c0_i32, %arg0 : i32, i32
  }
}

module attributes {stable_mosaic.version = 11 : i64} {
  func.func @_conv_bias_act_kernel(%arg0: i32, %arg1: memref<16x128xbf16, #tpu.memory_space<vmem>>, %arg2: memref<128x128xbf16, #tpu.memory_space<vmem>>, %arg3: memref<16x1xf32, #tpu.memory_space<vmem>>, %arg4: memref<16x128xbf16, #tpu.memory_space<vmem>>) attributes {dimension_semantics = [#tpu.dimension_semantics<parallel>], iteration_bounds = array<i64: 2>, scalar_prefetch = 0 : i64, scratch_operands = 0 : i64, tpu.core_type = #tpu.core_type<tc>, window_params = [{pipeline_mode = #tpu.pipeline_mode<synchronous>, transform_indices = @transform_0, window_bounds = array<i64: 16, 128>}, {transform_indices = @transform_1, window_bounds = array<i64: 128, 128>}, {pipeline_mode = #tpu.pipeline_mode<synchronous>, transform_indices = @transform_2, window_bounds = array<i64: 16, 1>}, {transform_indices = @transform_3, window_bounds = array<i64: 16, 128>}]} {
    %c0 = arith.constant 0 : index
    %c0_0 = arith.constant 0 : index
    %0 = vector.load %arg1[%c0, %c0_0] : memref<16x128xbf16, #tpu.memory_space<vmem>>, vector<16x128xbf16>
    %c0_1 = arith.constant 0 : index
    %c0_2 = arith.constant 0 : index
    %1 = vector.load %arg2[%c0_1, %c0_2] : memref<128x128xbf16, #tpu.memory_space<vmem>>, vector<128x128xbf16>
    %cst = arith.constant dense<0.000000e+00> : vector<16x128xf32>
    %2 = tpu.matmul %0, %1, %cst {dimension_numbers = #tpu.dot_dimension_numbers<[1], [0], [0], [1], [0, 0, 1, 1], [], []>} : vector<16x128xbf16>, vector<128x128xbf16>, vector<16x128xf32> -> vector<16x128xf32>
    %c0_3 = arith.constant 0 : index
    %c0_4 = arith.constant 0 : index
    %3 = vector.load %arg3[%c0_3, %c0_4] : memref<16x1xf32, #tpu.memory_space<vmem>>, vector<16x1xf32>
    %4 = vector.broadcast %3 : vector<16x1xf32> to vector<16x128xf32>
    %5 = arith.addf %2, %4 : vector<16x128xf32>
    %cst_5 = arith.constant 2.000000e-01 : f32
    %6 = vector.broadcast %cst_5 : f32 to vector<16x128xf32>
    %7 = arith.mulf %6, %5 : vector<16x128xf32>
    %8 = arith.maximumf %5, %7 : vector<16x128xf32>
    %9 = arith.truncf %8 : vector<16x128xf32> to vector<16x128xbf16>
    %c0_6 = arith.constant 0 : index
    %c0_7 = arith.constant 0 : index
    %10 = vector.load %arg4[%c0_6, %c0_7] : memref<16x128xbf16, #tpu.memory_space<vmem>>, vector<16x128xbf16>
    tpu.vector_store %arg4[%c0_6, %c0_7], %9 {strides = array<i32>} : memref<16x128xbf16, #tpu.memory_space<vmem>>, vector<16x128xbf16>,
    return
  }
  func.func @transform_0(%arg0: i32) -> (i32, i32) {
    %c0_i32 = arith.constant 0 : i32
    %c0_i32_0 = arith.constant 0 : i32
    %c0_i32_1 = arith.constant 0 : i32
    return %c0_i32, %c0_i32_0 : i32, i32
  }
  func.func @transform_1(%arg0: i32) -> (i32, i32) {
    %c0_i32 = arith.constant 0 : i32
    %c0_i32_0 = arith.constant 0 : i32
    return %c0_i32, %arg0 : i32, i32
  }
  func.func @transform_2(%arg0: i32) -> (i32, i32) {
    %c0_i32 = arith.constant 0 : i32
    %c0_i32_0 = arith.constant 0 : i32
    %c0_i32_1 = arith.constant 0 : i32
    return %c0_i32, %c0_i32_0 : i32, i32
  }
  func.func @transform_3(%arg0: i32) -> (i32, i32) {
    %c0_i32 = arith.constant 0 : i32
    %c0_i32_0 = arith.constant 0 : i32
    return %c0_i32, %arg0 : i32, i32
  }
}

module attributes {stable_mosaic.version = 11 : i64} {
  func.func @_conv_bias_act_kernel(%arg0: i32, %arg1: memref<16x128xbf16, #tpu.memory_space<vmem>>, %arg2: memref<128x128xbf16, #tpu.memory_space<vmem>>, %arg3: memref<16x1xf32, #tpu.memory_space<vmem>>, %arg4: memref<16x128xbf16, #tpu.memory_space<vmem>>) attributes {dimension_semantics = [#tpu.dimension_semantics<parallel>], iteration_bounds = array<i64: 5>, scalar_prefetch = 0 : i64, scratch_operands = 0 : i64, tpu.core_type = #tpu.core_type<tc>, window_params = [{pipeline_mode = #tpu.pipeline_mode<synchronous>, transform_indices = @transform_0, window_bounds = array<i64: 16, 128>}, {transform_indices = @transform_1, window_bounds = array<i64: 128, 128>}, {pipeline_mode = #tpu.pipeline_mode<synchronous>, transform_indices = @transform_2, window_bounds = array<i64: 16, 1>}, {transform_indices = @transform_3, window_bounds = array<i64: 16, 128>}]} {
    %c0 = arith.constant 0 : index
    %c0_0 = arith.constant 0 : index
    %0 = vector.load %arg1[%c0, %c0_0] : memref<16x128xbf16, #tpu.memory_space<vmem>>, vector<16x128xbf16>
    %c0_1 = arith.constant 0 : index
    %c0_2 = arith.constant 0 : index
    %1 = vector.load %arg2[%c0_1, %c0_2] : memref<128x128xbf16, #tpu.memory_space<vmem>>, vector<128x128xbf16>
    %cst = arith.constant dense<0.000000e+00> : vector<16x128xf32>
    %2 = tpu.matmul %0, %1, %cst {dimension_numbers = #tpu.dot_dimension_numbers<[1], [0], [0], [1], [0, 0, 1, 1], [], []>} : vector<16x128xbf16>, vector<128x128xbf16>, vector<16x128xf32> -> vector<16x128xf32>
    %c0_3 = arith.constant 0 : index
    %c0_4 = arith.constant 0 : index
    %3 = vector.load %arg3[%c0_3, %c0_4] : memref<16x1xf32, #tpu.memory_space<vmem>>, vector<16x1xf32>
    %4 = vector.broadcast %3 : vector<16x1xf32> to vector<16x128xf32>
    %5 = arith.addf %2, %4 : vector<16x128xf32>
    %cst_5 = arith.constant 2.000000e-01 : f32
    %6 = vector.broadcast %cst_5 : f32 to vector<16x128xf32>
    %7 = arith.mulf %6, %5 : vector<16x128xf32>
    %8 = arith.maximumf %5, %7 : vector<16x128xf32>
    %9 = arith.truncf %8 : vector<16x128xf32> to vector<16x128xbf16>
    %c0_6 = arith.constant 0 : index
    %c0_7 = arith.constant 0 : index
    %10 = vector.load %arg4[%c0_6, %c0_7] : memref<16x128xbf16, #tpu.memory_space<vmem>>, vector<16x128xbf16>
    tpu.vector_store %arg4[%c0_6, %c0_7], %9 {strides = array<i32>} : memref<16x128xbf16, #tpu.memory_space<vmem>>, vector<16x128xbf16>,
    return
  }
  func.func @transform_0(%arg0: i32) -> (i32, i32) {
    %c0_i32 = arith.constant 0 : i32
    %c0_i32_0 = arith.constant 0 : i32
    %c0_i32_1 = arith.constant 0 : i32
    return %c0_i32, %c0_i32_0 : i32, i32
  }
  func.func @transform_1(%arg0: i32) -> (i32, i32) {
    %c0_i32 = arith.constant 0 : i32
    %c0_i32_0 = arith.constant 0 : i32
    return %c0_i32, %arg0 : i32, i32
  }
  func.func @transform_2(%arg0: i32) -> (i32, i32) {
    %c0_i32 = arith.constant 0 : i32
    %c0_i32_0 = arith.constant 0 : i32
    %c0_i32_1 = arith.constant 0 : i32
    return %c0_i32, %c0_i32_0 : i32, i32
  }
  func.func @transform_3(%arg0: i32) -> (i32, i32) {
    %c0_i32 = arith.constant 0 : i32
    %c0_i32_0 = arith.constant 0 : i32
    return %c0_i32, %arg0 : i32, i32
  }
}

module attributes {stable_mosaic.version = 11 : i64} {
  func.func @_conv_bn_stats_kernel(%arg0: i32, %arg1: memref<32x256xbf16, #tpu.memory_space<vmem>>, %arg2: memref<256x128xbf16, #tpu.memory_space<vmem>>, %arg3: memref<32x128xbf16, #tpu.memory_space<vmem>>, %arg4: memref<1x32x1xf32, #tpu.memory_space<vmem>>, %arg5: memref<1x32x1xf32, #tpu.memory_space<vmem>>) attributes {dimension_semantics = [#tpu.dimension_semantics<parallel>], iteration_bounds = array<i64: 2>, scalar_prefetch = 0 : i64, scratch_operands = 0 : i64, tpu.core_type = #tpu.core_type<tc>, window_params = [{pipeline_mode = #tpu.pipeline_mode<synchronous>, transform_indices = @transform_0, window_bounds = array<i64: 32, 256>}, {transform_indices = @transform_1, window_bounds = array<i64: 256, 128>}, {transform_indices = @transform_2, window_bounds = array<i64: 32, 128>}, {transform_indices = @transform_3, window_bounds = array<i64: 1, 32, 1>}, {transform_indices = @transform_4, window_bounds = array<i64: 1, 32, 1>}]} {
    %c0 = arith.constant 0 : index
    %c0_0 = arith.constant 0 : index
    %0 = vector.load %arg1[%c0, %c0_0] : memref<32x256xbf16, #tpu.memory_space<vmem>>, vector<32x256xbf16>
    %c0_1 = arith.constant 0 : index
    %c0_2 = arith.constant 0 : index
    %1 = vector.load %arg2[%c0_1, %c0_2] : memref<256x128xbf16, #tpu.memory_space<vmem>>, vector<256x128xbf16>
    %cst = arith.constant dense<0.000000e+00> : vector<32x128xf32>
    %2 = tpu.matmul %0, %1, %cst {dimension_numbers = #tpu.dot_dimension_numbers<[1], [0], [0], [1], [0, 0, 1, 1], [], []>} : vector<32x256xbf16>, vector<256x128xbf16>, vector<32x128xf32> -> vector<32x128xf32>
    %3 = arith.truncf %2 : vector<32x128xf32> to vector<32x128xbf16>
    %c0_3 = arith.constant 0 : index
    %c0_4 = arith.constant 0 : index
    %4 = vector.load %arg3[%c0_3, %c0_4] : memref<32x128xbf16, #tpu.memory_space<vmem>>, vector<32x128xbf16>
    tpu.vector_store %arg3[%c0_3, %c0_4], %3 {strides = array<i32>} : memref<32x128xbf16, #tpu.memory_space<vmem>>, vector<32x128xbf16>,
    %cst_5 = arith.constant dense<0.000000e+00> : vector<32xf32>
    %5 = vector.multi_reduction <add>, %2, %cst_5 [1] : vector<32x128xf32> to vector<32xf32>
    %6 = vector.shape_cast %5 : vector<32xf32> to vector<32x1xf32>
    %7 = vector.shape_cast %6 : vector<32x1xf32> to vector<1x32x1xf32>
    %c0_6 = arith.constant 0 : index
    %c0_7 = arith.constant 0 : index
    %c0_8 = arith.constant 0 : index
    %8 = vector.load %arg4[%c0_6, %c0_7, %c0_8] : memref<1x32x1xf32, #tpu.memory_space<vmem>>, vector<1x32x1xf32>
    tpu.vector_store %arg4[%c0_6, %c0_7, %c0_8], %7 {strides = array<i32>} : memref<1x32x1xf32, #tpu.memory_space<vmem>>, vector<1x32x1xf32>,
    %9 = arith.mulf %2, %2 : vector<32x128xf32>
    %cst_9 = arith.constant dense<0.000000e+00> : vector<32xf32>
    %10 = vector.multi_reduction <add>, %9, %cst_9 [1] : vector<32x128xf32> to vector<32xf32>
    %11 = vector.shape_cast %10 : vector<32xf32> to vector<32x1xf32>
    %12 = vector.shape_cast %11 : vector<32x1xf32> to vector<1x32x1xf32>
    %c0_10 = arith.constant 0 : index
    %c0_11 = arith.constant 0 : index
    %c0_12 = arith.constant 0 : index
    %13 = vector.load %arg5[%c0_10, %c0_11, %c0_12] : memref<1x32x1xf32, #tpu.memory_space<vmem>>, vector<1x32x1xf32>
    tpu.vector_store %arg5[%c0_10, %c0_11, %c0_12], %12 {strides = array<i32>} : memref<1x32x1xf32, #tpu.memory_space<vmem>>, vector<1x32x1xf32>,
    return
  }
  func.func @transform_0(%arg0: i32) -> (i32, i32) {
    %c0_i32 = arith.constant 0 : i32
    %c0_i32_0 = arith.constant 0 : i32
    %c0_i32_1 = arith.constant 0 : i32
    return %c0_i32, %c0_i32_0 : i32, i32
  }
  func.func @transform_1(%arg0: i32) -> (i32, i32) {
    %c0_i32 = arith.constant 0 : i32
    %c0_i32_0 = arith.constant 0 : i32
    return %c0_i32, %arg0 : i32, i32
  }
  func.func @transform_2(%arg0: i32) -> (i32, i32) {
    %c0_i32 = arith.constant 0 : i32
    %c0_i32_0 = arith.constant 0 : i32
    return %c0_i32, %arg0 : i32, i32
  }
  func.func @transform_3(%arg0: i32) -> (i32, i32, i32) {
    %c0_i32 = arith.constant 0 : i32
    %c0_i32_0 = arith.constant 0 : i32
    %c0_i32_1 = arith.constant 0 : i32
    return %arg0, %c0_i32, %c0_i32_0 : i32, i32, i32
  }
  func.func @transform_4(%arg0: i32) -> (i32, i32, i32) {
    %c0_i32 = arith.constant 0 : i32
    %c0_i32_0 = arith.constant 0 : i32
    %c0_i32_1 = arith.constant 0 : i32
    return %arg0, %c0_i32, %c0_i32_0 : i32, i32, i32
  }
}

module attributes {stable_mosaic.version = 11 : i64} {
  func.func @_bn_act_kernel(%arg0: i32, %arg1: memref<32x128xbf16, #tpu.memory_space<vmem>>, %arg2: memref<32x1xf32, #tpu.memory_space<vmem>>, %arg3: memref<32x1xf32, #tpu.memory_space<vmem>>, %arg4: memref<32x128xbf16, #tpu.memory_space<vmem>>) attributes {dimension_semantics = [#tpu.dimension_semantics<parallel>], iteration_bounds = array<i64: 2>, scalar_prefetch = 0 : i64, scratch_operands = 0 : i64, tpu.core_type = #tpu.core_type<tc>, window_params = [{transform_indices = @transform_0, window_bounds = array<i64: 32, 128>}, {pipeline_mode = #tpu.pipeline_mode<synchronous>, transform_indices = @transform_1, window_bounds = array<i64: 32, 1>}, {pipeline_mode = #tpu.pipeline_mode<synchronous>, transform_indices = @transform_2, window_bounds = array<i64: 32, 1>}, {transform_indices = @transform_3, window_bounds = array<i64: 32, 128>}]} {
    %c0 = arith.constant 0 : index
    %c0_0 = arith.constant 0 : index
    %0 = vector.load %arg1[%c0, %c0_0] : memref<32x128xbf16, #tpu.memory_space<vmem>>, vector<32x128xbf16>
    %1 = arith.extf %0 : vector<32x128xbf16> to vector<32x128xf32>
    %c0_1 = arith.constant 0 : index
    %c0_2 = arith.constant 0 : index
    %2 = vector.load %arg2[%c0_1, %c0_2] : memref<32x1xf32, #tpu.memory_space<vmem>>, vector<32x1xf32>
    %3 = vector.broadcast %2 : vector<32x1xf32> to vector<32x128xf32>
    %4 = arith.mulf %1, %3 : vector<32x128xf32>
    %c0_3 = arith.constant 0 : index
    %c0_4 = arith.constant 0 : index
    %5 = vector.load %arg3[%c0_3, %c0_4] : memref<32x1xf32, #tpu.memory_space<vmem>>, vector<32x1xf32>
    %6 = vector.broadcast %5 : vector<32x1xf32> to vector<32x128xf32>
    %7 = arith.addf %4, %6 : vector<32x128xf32>
    %cst = arith.constant 2.000000e-01 : f32
    %8 = vector.broadcast %cst : f32 to vector<32x128xf32>
    %9 = arith.mulf %8, %7 : vector<32x128xf32>
    %10 = arith.maximumf %7, %9 : vector<32x128xf32>
    %11 = arith.truncf %10 : vector<32x128xf32> to vector<32x128xbf16>
    %c0_5 = arith.constant 0 : index
    %c0_6 = arith.constant 0 : index
    %12 = vector.load %arg4[%c0_5, %c0_6] : memref<32x128xbf16, #tpu.memory_space<vmem>>, vector<32x128xbf16>
    tpu.vector_store %arg4[%c0_5, %c0_6], %11 {strides = array<i32>} : memref<32x128xbf16, #tpu.memory_space<vmem>>, vector<32x128xbf16>,
    return
  }
  func.func @transform_0(%arg0: i32) -> (i32, i32) {
    %c0_i32 = arith.constant 0 : i32
    %c0_i32_0 = arith.constant 0 : i32
    return %c0_i32, %arg0 : i32, i32
  }
  func.func @transform_1(%arg0: i32) -> (i32, i32) {
    %c0_i32 = arith.constant 0 : i32
    %c0_i32_0 = arith.constant 0 : i32
    %c0_i32_1 = arith.constant 0 : i32
    return %c0_i32, %c0_i32_0 : i32, i32
  }
  func.func @transform_2(%arg0: i32) -> (i32, i32) {
    %c0_i32 = arith.constant 0 : i32
    %c0_i32_0 = arith.constant 0 : i32
    %c0_i32_1 = arith.constant 0 : i32
    return %c0_i32, %c0_i32_0 : i32, i32
  }
  func.func @transform_3(%arg0: i32) -> (i32, i32) {
    %c0_i32 = arith.constant 0 : i32
    %c0_i32_0 = arith.constant 0 : i32
    return %c0_i32, %arg0 : i32, i32
  }
}

</mosaic_0001>

<llo_original>
// kernel: multiscale_discriminator_forward.40
$region0: #{multiscale_discriminator_forward.40}
  #allocation0 [shape = 'u32[]', space=smem, size = 0x4, offset = 0x4, fixed_abs, tag = 'smem constant byte address 0x4 - core index']
  #allocation1 [shape = 'u32[144,128]{1,0:T(1,128)}', space=vmem, size = 0x12000, scoped, tag = 'internal scratch']
  %s0 = inlined_call_operand.vmem [shape: bf16[16,128], index: 0, kind: input, shape index: {}]
  %s1 = inlined_call_operand.vmem [shape: bf16[128,128], index: 1, kind: input, shape index: {}]
  %s2 = inlined_call_operand.vmem [shape: f32[16,1], index: 2, kind: input, shape index: {}]
  %s3 = inlined_call_operand.vmem [shape: bf16[16,128], index: 3, kind: output, shape index: {}]
  %s4 = sld [smem:[#allocation0]]
  $region22: #{multiscale_discriminator_forward.40} parent=0
    _
  %s6 = ssub.s32 1, %s4
  %s7 = scalar_select 0, %s6, %s4
  // Predicated region
  $region2: #{multiscale_discriminator_forward.40} parent=0 // pred_check
    _
  $region3: #{multiscale_discriminator_forward.40} parent=0 // pred_check_branch
    %9 = sbr.rel (0) target = $region5
  $region4: #{multiscale_discriminator_forward.40} parent=0 // pred_region
    _
  $region5: #{multiscale_discriminator_forward.40} parent=0 // pred_fallthru
    _
  // Predicated region
  $region6: #{multiscale_discriminator_forward.40} parent=0 // pred_check
    _
  $region7: #{multiscale_discriminator_forward.40} parent=0 // pred_check_branch
    %11 = sbr.rel (0) target = $region9
  $region8: #{multiscale_discriminator_forward.40} parent=0 // pred_region
    _
  $region9: #{multiscale_discriminator_forward.40} parent=0 // pred_fallthru
    _
  // Predicated region
  $region10: #{multiscale_discriminator_forward.40} parent=0 // pred_check
    _
  $region11: #{multiscale_discriminator_forward.40} parent=0 // pred_check_branch
    %13 = sbr.rel (0) target = $region13
  $region12: #{multiscale_discriminator_forward.40} parent=0 // pred_region
    _
  $region13: #{multiscale_discriminator_forward.40} parent=0 // pred_fallthru
    _
  %v15 = vld [vmem:[%s0] sm:$0xf]
  %v16 = vld [vmem:[%s0 + $0x4] sm:$0xf]
  %v17 = vld [vmem:[%s1] sm:$0xf]
  %v18 = vld [vmem:[%s1 + $0x4] sm:$0xf]
  %v19 = vld [vmem:[%s1 + $0x8] sm:$0xf]
  %v20 = vld [vmem:[%s1 + $0xc] sm:$0xf]
  %v21 = vld [vmem:[%s1 + $0x10] sm:$0xf]
  %v22 = vld [vmem:[%s1 + $0x14] sm:$0xf]
  %v23 = vld [vmem:[%s1 + $0x18] sm:$0xf]
  %v24 = vld [vmem:[%s1 + $0x1c] sm:$0xf]
  %v25 = vld [vmem:[%s1 + $0x20] sm:$0xf]
  %v26 = vld [vmem:[%s1 + $0x24] sm:$0xf]
  %v27 = vld [vmem:[%s1 + $0x28] sm:$0xf]
  %v28 = vld [vmem:[%s1 + $0x2c] sm:$0xf]
  %v29 = vld [vmem:[%s1 + $0x30] sm:$0xf]
  %v30 = vld [vmem:[%s1 + $0x34] sm:$0xf]
  %v31 = vld [vmem:[%s1 + $0x38] sm:$0xf]
  %v32 = vld [vmem:[%s1 + $0x3c] sm:$0xf]
  %v33 = vld [vmem:[%s2] sm:$0xff]
  %v34 = vld [vmem:[%s2 + $0x8] sm:$0xff]
  %36 = vset.pattern.permute.xlu0 0
  %37 = vperm.xlu0 %36, %v33
  %v38 = vpop.permute.xlu0 %37
  %41 = vset.pattern.permute.xlu0 0
  %42 = vperm.xlu0 %41, %v34
  %v43 = vpop.permute.xlu0 %42
  %v47 = vunpack.c.l.b16 %v15
  %v48 = vunpack.c.l.b16 %v16
  %v49 = vpack.c.b16 %v48, %v47
  %v67 = vunpack.c.l.b16 %v17
  %v68 = vunpack.c.l.b16 %v18
  %v69 = vunpack.c.l.b16 %v19
  %v70 = vunpack.c.l.b16 %v20
  %v71 = vunpack.c.l.b16 %v21
  %v72 = vunpack.c.l.b16 %v22
  %v73 = vunpack.c.l.b16 %v23
  %v74 = vunpack.c.l.b16 %v24
  %v75 = vunpack.c.l.b16 %v25
  %v76 = vunpack.c.l.b16 %v26
  %v77 = vunpack.c.l.b16 %v27
  %v78 = vunpack.c.l.b16 %v28
  %v79 = vunpack.c.l.b16 %v29
  %v80 = vunpack.c.l.b16 %v30
  %v81 = vunpack.c.l.b16 %v31
  %v82 = vunpack.c.l.b16 %v32
  %v83 = vpack.c.b16 %v68, %v67
  %v84 = vpack.c.b16 %v70, %v69
  %v85 = vpack.c.b16 %v72, %v71
  %v86 = vpack.c.b16 %v74, %v73
  %v87 = vpack.c.b16 %v76, %v75
  %v88 = vpack.c.b16 %v78, %v77
  %v89 = vpack.c.b16 %v80, %v79
  %v90 = vpack.c.b16 %v82, %v81
  %99 = vmatprep.subr.bf16.mxu0 0
  %100 = vmatpush1.bf16.msra.mxu0 %v83
  %101 = vmatprep.subr.bf16.mxu0 0
  %102 = vmatpush1.bf16.msra.mxu0 %v84
  %103 = vmatprep.subr.bf16.mxu0 0
  %104 = vmatpush1.bf16.msra.mxu0 %v85
  %105 = vmatprep.subr.bf16.mxu0 0
  %106 = vmatpush1.bf16.msra.mxu0 %v86
  %107 = vmatprep.subr.bf16.mxu0 0
  %108 = vmatpush1.bf16.msra.mxu0 %v87
  %109 = vmatprep.subr.bf16.mxu0 0
  %110 = vmatpush1.bf16.msra.mxu0 %v88
  %111 = vmatprep.subr.bf16.mxu0 0
  %112 = vmatpush1.bf16.msra.mxu0 %v89
  %113 = vmatprep.subr.bf16.mxu0 0
  %114 = vmatpush1.bf16.msra.mxu0 %v90
  %115 = vmatprep.subr.bf16.mxu0 0
  %116 = vmatpush1.bf16.msra.mxu0 0
  %117 = vmatprep.subr.bf16.mxu0 0
  %118 = vmatpush1.bf16.msra.mxu0 0
  %119 = vmatprep.subr.bf16.mxu0 0
  %120 = vmatpush1.bf16.msra.mxu0 0
  %121 = vmatprep.subr.bf16.mxu0 0
  %122 = vmatpush1.bf16.msra.mxu0 0
  %123 = vmatprep.subr.bf16.mxu0 0
  %124 = vmatpush1.bf16.msra.mxu0 0
  %125 = vmatprep.subr.bf16.mxu0 0
  %126 = vmatpush1.bf16.msra.mxu0 0
  %127 = vmatprep.subr.bf16.mxu0 0
  %128 = vmatpush1.bf16.msra.mxu0 0
  %129 = vmatprep.subr.bf16.mxu0 0
  %130 = vmatpush1.bf16.msra.mxu0 0
  %131 = vmatprep.mubr.bf16.mxu0 0
  %132 = vmatmul.mubr.bf16.gmra.mrb[0].mxu0 %v49
  %v133 = vpop.f32.mrb[0].mxu0
  %v134 = vadd.f32 %v38, %v133
  %v135 = vpop.f32.mrb[0].mxu0
  %v136 = vpop.f32.mrb[0].mxu0
  %v137 = vadd.f32 %v43, %v136
  %v138 = vpop.f32.mrb[0].mxu0
  %139 = vdwg.mxu0
  %v140 = vmul.f32 %v134, 0.2
  %v141 = vmul.f32 %v137, 0.2
  %v142 = vmax.f32 %v134, %v140
  %v143 = vmax.f32 %v137, %v141
  %v144 = vpack.c.bf16 %v143, %v142
  %v146 = vunpack.c.l.b16 %v144
  %v147 = vunpack.c.h.b16 %v144
  %v148 = vpack.c.b16 %v146, %v146
  %v149 = vpack.c.b16 %v147, %v147
  %152 = vst [vmem:[%s3] sm:$0xf] %v148
  %153 = vst [vmem:[%s3 + $0x4] sm:$0xf] %v149
  // Predicated region
  $region14: #{multiscale_discriminator_forward.40} parent=0 // pred_check
    _
  $region15: #{multiscale_discriminator_forward.40} parent=0 // pred_check_branch
    %155 = sbr.rel (0) target = $region17
  $region16: #{multiscale_discriminator_forward.40} parent=0 // pred_region
    _
  $region17: #{multiscale_discriminator_forward.40} parent=0 // pred_fallthru
    _
  // Predicated region
  $region18: #{multiscale_discriminator_forward.40} parent=0 // pred_check
    _
  $region19: #{multiscale_discriminator_forward.40} parent=0 // pred_check_branch
    %157 = sbr.rel (0) target = $region21
  $region20: #{multiscale_discriminator_forward.40} parent=0 // pred_region
    _
  $region21: #{multiscale_discriminator_forward.40} parent=0 // pred_fallthru
    _

// kernel: multiscale_discriminator_forward.42
$region0: #{multiscale_discriminator_forward.42}
  #allocation0 [shape = 'u32[]', space=smem, size = 0x4, offset = 0x4, fixed_abs, tag = 'smem constant byte address 0x4 - core index']
  #allocation1 [shape = 'u32[144,128]{1,0:T(1,128)}', space=vmem, size = 0x12000, scoped, tag = 'internal scratch']
  %s0 = inlined_call_operand.vmem [shape: bf16[32,128], index: 0, kind: input, shape index: {}]
  %s1 = inlined_call_operand.vmem [shape: f32[32,1], index: 1, kind: input, shape index: {}]
  %s2 = inlined_call_operand.vmem [shape: f32[32,1], index: 2, kind: input, shape index: {}]
  %s3 = inlined_call_operand.vmem [shape: bf16[32,128], index: 3, kind: output, shape index: {}]
  %s4 = sld [smem:[#allocation0]]
  $region22: #{multiscale_discriminator_forward.42} parent=0
    _
  %s6 = ssub.s32 1, %s4
  %s7 = scalar_select 0, %s6, %s4
  // Predicated region
  $region2: #{multiscale_discriminator_forward.42} parent=0 // pred_check
    _
  $region3: #{multiscale_discriminator_forward.42} parent=0 // pred_check_branch
    %9 = sbr.rel (0) target = $region5
  $region4: #{multiscale_discriminator_forward.42} parent=0 // pred_region
    _
  $region5: #{multiscale_discriminator_forward.42} parent=0 // pred_fallthru
    _
  // Predicated region
  $region6: #{multiscale_discriminator_forward.42} parent=0 // pred_check
    _
  $region7: #{multiscale_discriminator_forward.42} parent=0 // pred_check_branch
    %11 = sbr.rel (0) target = $region9
  $region8: #{multiscale_discriminator_forward.42} parent=0 // pred_region
    _
  $region9: #{multiscale_discriminator_forward.42} parent=0 // pred_fallthru
    _
  // Predicated region
  $region10: #{multiscale_discriminator_forward.42} parent=0 // pred_check
    _
  $region11: #{multiscale_discriminator_forward.42} parent=0 // pred_check_branch
    %13 = sbr.rel (0) target = $region13
  $region12: #{multiscale_discriminator_forward.42} parent=0 // pred_region
    _
  $region13: #{multiscale_discriminator_forward.42} parent=0 // pred_fallthru
    _
  %v14 = vld [vmem:[%s0] sm:$0xf]
  %v15 = vld [vmem:[%s0 + $0x4] sm:$0xf]
  %v16 = vld [vmem:[%s0 + $0x8] sm:$0xf]
  %v17 = vld [vmem:[%s0 + $0xc] sm:$0xf]
  %v18 = vunpack.c.l.bf16 %v14
  %v19 = vunpack.c.l.bf16 %v15
  %v20 = vunpack.c.l.bf16 %v16
  %v21 = vunpack.c.l.bf16 %v17
  %v22 = vld [vmem:[%s1] sm:$0xff]
  %v23 = vld [vmem:[%s1 + $0x8] sm:$0xff]
  %v24 = vld [vmem:[%s1 + $0x10] sm:$0xff]
  %v25 = vld [vmem:[%s1 + $0x18] sm:$0xff]
  %27 = vset.pattern.permute.xlu0 0
  %28 = vperm.xlu0 %27, %v22
  %v29 = vpop.permute.xlu0 %28
  %32 = vset.pattern.permute.xlu0 0
  %33 = vperm.xlu0 %32, %v23
  %v34 = vpop.permute.xlu0 %33
  %37 = vset.pattern.permute.xlu0 0
  %38 = vperm.xlu0 %37, %v24
  %v39 = vpop.permute.xlu0 %38
  %42 = vset.pattern.permute.xlu0 0
  %43 = vperm.xlu0 %42, %v25
  %v44 = vpop.permute.xlu0 %43
  %v46 = vmul.f32 %v18, %v29
  %v47 = vmul.f32 %v19, %v34
  %v48 = vmul.f32 %v20, %v39
  %v49 = vmul.f32 %v21, %v44
  %v50 = vld [vmem:[%s2] sm:$0xff]
  %v51 = vld [vmem:[%s2 + $0x8] sm:$0xff]
  %v52 = vld [vmem:[%s2 + $0x10] sm:$0xff]
  %v53 = vld [vmem:[%s2 + $0x18] sm:$0xff]
  %55 = vset.pattern.permute.xlu0 0
  %56 = vperm.xlu0 %55, %v50
  %v57 = vpop.permute.xlu0 %56
  %60 = vset.pattern.permute.xlu0 0
  %61 = vperm.xlu0 %60, %v51
  %v62 = vpop.permute.xlu0 %61
  %65 = vset.pattern.permute.xlu0 0
  %66 = vperm.xlu0 %65, %v52
  %v67 = vpop.permute.xlu0 %66
  %70 = vset.pattern.permute.xlu0 0
  %71 = vperm.xlu0 %70, %v53
  %v72 = vpop.permute.xlu0 %71
  %v74 = vadd.f32 %v46, %v57
  %v75 = vadd.f32 %v47, %v62
  %v76 = vadd.f32 %v48, %v67
  %v77 = vadd.f32 %v49, %v72
  %v78 = vmul.f32 %v74, 0.2
  %v79 = vmul.f32 %v75, 0.2
  %v80 = vmul.f32 %v76, 0.2
  %v81 = vmul.f32 %v77, 0.2
  %v82 = vmax.f32 %v74, %v78
  %v83 = vmax.f32 %v75, %v79
  %v84 = vmax.f32 %v76, %v80
  %v85 = vmax.f32 %v77, %v81
  %v86 = vpack.c.bf16 %v83, %v82
  %v87 = vpack.c.bf16 %v85, %v84
  %v90 = vunpack.c.l.b16 %v86
  %v91 = vunpack.c.h.b16 %v86
  %v92 = vunpack.c.l.b16 %v87
  %v93 = vunpack.c.h.b16 %v87
  %v94 = vpack.c.b16 %v90, %v90
  %v95 = vpack.c.b16 %v91, %v91
  %v96 = vpack.c.b16 %v92, %v92
  %v97 = vpack.c.b16 %v93, %v93
  %102 = vst [vmem:[%s3] sm:$0xf] %v94
  %103 = vst [vmem:[%s3 + $0x4] sm:$0xf] %v95
  %104 = vst [vmem:[%s3 + $0x8] sm:$0xf] %v96
  %105 = vst [vmem:[%s3 + $0xc] sm:$0xf] %v97
  // Predicated region
  $region14: #{multiscale_discriminator_forward.42} parent=0 // pred_check
    _
  $region15: #{multiscale_discriminator_forward.42} parent=0 // pred_check_branch
    %107 = sbr.rel (0) target = $region17
  $region16: #{multiscale_discriminator_forward.42} parent=0 // pred_region
    _
  $region17: #{multiscale_discriminator_forward.42} parent=0 // pred_fallthru
    _
  // Predicated region
  $region18: #{multiscale_discriminator_forward.42} parent=0 // pred_check
    _
  $region19: #{multiscale_discriminator_forward.42} parent=0 // pred_check_branch
    %109 = sbr.rel (0) target = $region21
  $region20: #{multiscale_discriminator_forward.42} parent=0 // pred_region
    _
  $region21: #{multiscale_discriminator_forward.42} parent=0 // pred_fallthru
    _

// kernel: multiscale_discriminator_forward.41
$region0: #{multiscale_discriminator_forward.41}
  #allocation0 [shape = 'u32[]', space=smem, size = 0x4, offset = 0x4, fixed_abs, tag = 'smem constant byte address 0x4 - core index']
  #allocation1 [shape = 'u32[144,128]{1,0:T(1,128)}', space=vmem, size = 0x12000, scoped, tag = 'internal scratch']
  %s0 = inlined_call_operand.vmem [shape: bf16[32,256], index: 0, kind: input, shape index: {}]
  %s1 = inlined_call_operand.vmem [shape: bf16[256,128], index: 1, kind: input, shape index: {}]
  %s2 = inlined_call_operand.vmem [shape: bf16[32,128], index: 2, kind: output, shape index: {0}]
  %s3 = inlined_call_operand.vmem [shape: f32[1,32,1], index: 3, kind: output, shape index: {1}]
  %s4 = inlined_call_operand.vmem [shape: f32[1,32,1], index: 4, kind: output, shape index: {2}]
  %5 = xla_tuple %s2, %s3, %s4
  %s6 = sld [smem:[#allocation0]]
  $region34: #{multiscale_discriminator_forward.41} parent=0
    _
  %s8 = ssub.s32 1, %s6
  %s9 = scalar_select 0, %s8, %s6
  // Predicated region
  $region2: #{multiscale_discriminator_forward.41} parent=0 // pred_check
    _
  $region3: #{multiscale_discriminator_forward.41} parent=0 // pred_check_branch
    %11 = sbr.rel (0) target = $region5
  $region4: #{multiscale_discriminator_forward.41} parent=0 // pred_region
    _
  $region5: #{multiscale_discriminator_forward.41} parent=0 // pred_fallthru
    _
  // Predicated region
  $region6: #{multiscale_discriminator_forward.41} parent=0 // pred_check
    _
  $region7: #{multiscale_discriminator_forward.41} parent=0 // pred_check_branch
    %13 = sbr.rel (0) target = $region9
  $region8: #{multiscale_discriminator_forward.41} parent=0 // pred_region
    _
  $region9: #{multiscale_discriminator_forward.41} parent=0 // pred_fallthru
    _
  %v15 = vld [vmem:[%s0] sm:$0xff]
  %v16 = vld [vmem:[%s0 + $0x8] sm:$0xff]
  %v17 = vld [vmem:[%s0 + $0x10] sm:$0xff]
  %v18 = vld [vmem:[%s0 + $0x18] sm:$0xff]
  %v19 = vld [vmem:[%s1] sm:$0xf]
  %v20 = vld [vmem:[%s1 + $0x4] sm:$0xf]
  %v21 = vld [vmem:[%s1 + $0x8] sm:$0xf]
  %v22 = vld [vmem:[%s1 + $0xc] sm:$0xf]
  %v23 = vld [vmem:[%s1 + $0x10] sm:$0xf]
  %v24 = vld [vmem:[%s1 + $0x14] sm:$0xf]
  %v25 = vld [vmem:[%s1 + $0x18] sm:$0xf]
  %v26 = vld [vmem:[%s1 + $0x1c] sm:$0xf]
  %v27 = vld [vmem:[%s1 + $0x20] sm:$0xf]
  %v28 = vld [vmem:[%s1 + $0x24] sm:$0xf]
  %v29 = vld [vmem:[%s1 + $0x28] sm:$0xf]
  %v30 = vld [vmem:[%s1 + $0x2c] sm:$0xf]
  %v31 = vld [vmem:[%s1 + $0x30] sm:$0xf]
  %v32 = vld [vmem:[%s1 + $0x34] sm:$0xf]
  %v33 = vld [vmem:[%s1 + $0x38] sm:$0xf]
  %v34 = vld [vmem:[%s1 + $0x3c] sm:$0xf]
  %v35 = vld [vmem:[%s1 + $0x40] sm:$0xf]
  %v36 = vld [vmem:[%s1 + $0x44] sm:$0xf]
  %v37 = vld [vmem:[%s1 + $0x48] sm:$0xf]
  %v38 = vld [vmem:[%s1 + $0x4c] sm:$0xf]
  %v39 = vld [vmem:[%s1 + $0x50] sm:$0xf]
  %v40 = vld [vmem:[%s1 + $0x54] sm:$0xf]
  %v41 = vld [vmem:[%s1 + $0x58] sm:$0xf]
  %v42 = vld [vmem:[%s1 + $0x5c] sm:$0xf]
  %v43 = vld [vmem:[%s1 + $0x60] sm:$0xf]
  %v44 = vld [vmem:[%s1 + $0x64] sm:$0xf]
  %v45 = vld [vmem:[%s1 + $0x68] sm:$0xf]
  %v46 = vld [vmem:[%s1 + $0x6c] sm:$0xf]
  %v47 = vld [vmem:[%s1 + $0x70] sm:$0xf]
  %v48 = vld [vmem:[%s1 + $0x74] sm:$0xf]
  %v49 = vld [vmem:[%s1 + $0x78] sm:$0xf]
  %v50 = vld [vmem:[%s1 + $0x7c] sm:$0xf]
  %v55 = vunpack.c.l.b16 %v15
  %v56 = vunpack.c.h.b16 %v15
  %v57 = vunpack.c.l.b16 %v16
  %v58 = vunpack.c.h.b16 %v16
  %v59 = vunpack.c.l.b16 %v17
  %v60 = vunpack.c.h.b16 %v17
  %v61 = vunpack.c.l.b16 %v18
  %v62 = vunpack.c.h.b16 %v18
  %v63 = vpack.c.b16 %v57, %v55
  %v64 = vpack.c.b16 %v58, %v56
  %v65 = vpack.c.b16 %v61, %v59
  %v66 = vpack.c.b16 %v62, %v60
  %v103 = vunpack.c.l.b16 %v19
  %v104 = vunpack.c.l.b16 %v20
  %v105 = vunpack.c.l.b16 %v21
  %v106 = vunpack.c.l.b16 %v22
  %v107 = vunpack.c.l.b16 %v23
  %v108 = vunpack.c.l.b16 %v24
  %v109 = vunpack.c.l.b16 %v25
  %v110 = vunpack.c.l.b16 %v26
  %v111 = vunpack.c.l.b16 %v27
  %v112 = vunpack.c.l.b16 %v28
  %v113 = vunpack.c.l.b16 %v29
  %v114 = vunpack.c.l.b16 %v30
  %v115 = vunpack.c.l.b16 %v31
  %v116 = vunpack.c.l.b16 %v32
  %v117 = vunpack.c.l.b16 %v33
  %v118 = vunpack.c.l.b16 %v34
  %v119 = vunpack.c.l.b16 %v35
  %v120 = vunpack.c.l.b16 %v36
  %v121 = vunpack.c.l.b16 %v37
  %v122 = vunpack.c.l.b16 %v38
  %v123 = vunpack.c.l.b16 %v39
  %v124 = vunpack.c.l.b16 %v40
  %v125 = vunpack.c.l.b16 %v41
  %v126 = vunpack.c.l.b16 %v42
  %v127 = vunpack.c.l.b16 %v43
  %v128 = vunpack.c.l.b16 %v44
  %v129 = vunpack.c.l.b16 %v45
  %v130 = vunpack.c.l.b16 %v46
  %v131 = vunpack.c.l.b16 %v47
  %v132 = vunpack.c.l.b16 %v48
  %v133 = vunpack.c.l.b16 %v49
  %v134 = vunpack.c.l.b16 %v50
  %v135 = vpack.c.b16 %v104, %v103
  %v136 = vpack.c.b16 %v106, %v105
  %v137 = vpack.c.b16 %v108, %v107
  %v138 = vpack.c.b16 %v110, %v109
  %v139 = vpack.c.b16 %v112, %v111
  %v140 = vpack.c.b16 %v114, %v113
  %v141 = vpack.c.b16 %v116, %v115
  %v142 = vpack.c.b16 %v118, %v117
  %v143 = vpack.c.b16 %v120, %v119
  %v144 = vpack.c.b16 %v122, %v121
  %v145 = vpack.c.b16 %v124, %v123
  %v146 = vpack.c.b16 %v126, %v125
  %v147 = vpack.c.b16 %v128, %v127
  %v148 = vpack.c.b16 %v130, %v129
  %v149 = vpack.c.b16 %v132, %v131
  %v150 = vpack.c.b16 %v134, %v133
  %167 = vmatprep.subr.bf16.mxu0 0
  %168 = vmatpush1.bf16.msra.mxu0 %v135
  %169 = vmatprep.subr.bf16.mxu0 0
  %170 = vmatpush1.bf16.msra.mxu0 %v136
  %171 = vmatprep.subr.bf16.mxu0 0
  %172 = vmatpush1.bf16.msra.mxu0 %v137
  %173 = vmatprep.subr.bf16.mxu0 0
  %174 = vmatpush1.bf16.msra.mxu0 %v138
  %175 = vmatprep.subr.bf16.mxu0 0
  %176 = vmatpush1.bf16.msra.mxu0 %v139
  %177 = vmatprep.subr.bf16.mxu0 0
  %178 = vmatpush1.bf16.msra.mxu0 %v140
  %179 = vmatprep.subr.bf16.mxu0 0
  %180 = vmatpush1.bf16.msra.mxu0 %v141
  %181 = vmatprep.subr.bf16.mxu0 0
  %182 = vmatpush1.bf16.msra.mxu0 %v142
  %183 = vmatprep.subr.bf16.mxu0 0
  %184 = vmatpush1.bf16.msra.mxu0 %v143
  %185 = vmatprep.subr.bf16.mxu0 0
  %186 = vmatpush1.bf16.msra.mxu0 %v144
  %187 = vmatprep.subr.bf16.mxu0 0
  %188 = vmatpush1.bf16.msra.mxu0 %v145
  %189 = vmatprep.subr.bf16.mxu0 0
  %190 = vmatpush1.bf16.msra.mxu0 %v146
  %191 = vmatprep.subr.bf16.mxu0 0
  %192 = vmatpush1.bf16.msra.mxu0 %v147
  %193 = vmatprep.subr.bf16.mxu0 0
  %194 = vmatpush1.bf16.msra.mxu0 %v148
  %195 = vmatprep.subr.bf16.mxu0 0
  %196 = vmatpush1.bf16.msra.mxu0 %v149
  %197 = vmatprep.subr.bf16.mxu0 0
  %198 = vmatpush1.bf16.msra.mxu0 %v150
  %199 = vmatprep.mubr.bf16.mxu0 %v64
  %200 = vmatmul.mubr.bf16.gmra.mrb[0].mxu0 %v63
  %v201 = vpop.f32.mrb[0].mxu0
  %v202 = vadd.f32 0.0, %v201
  %v203 = vpop.f32.mrb[0].mxu0
  %v204 = vpop.f32.mrb[0].mxu0
  %v205 = vadd.f32 0.0, %v204
  %v206 = vpop.f32.mrb[0].mxu0
  %207 = vmatprep.mubr.bf16.mxu0 %v66
  %208 = vmatmul.mubr.bf16.gmra.mrb[0].mxu0 %v65
  %v209 = vpop.f32.mrb[0].mxu0
  %v210 = vadd.f32 0.0, %v209
  %v211 = vpop.f32.mrb[0].mxu0
  %v212 = vpop.f32.mrb[0].mxu0
  %v213 = vadd.f32 0.0, %v212
  %v214 = vpop.f32.mrb[0].mxu0
  %215 = vdwg.mxu0
  %v216 = vpack.c.bf16 %v205, %v202
  %v217 = vpack.c.bf16 %v213, %v210
  %v220 = vunpack.c.l.b16 %v216
  %v221 = vunpack.c.h.b16 %v216
  %v222 = vunpack.c.l.b16 %v217
  %v223 = vunpack.c.h.b16 %v217
  %v224 = vpack.c.b16 %v220, %v220
  %v225 = vpack.c.b16 %v221, %v221
  %v226 = vpack.c.b16 %v222, %v222
  %v227 = vpack.c.b16 %v223, %v223
  %232 = vst [vmem:[%s2] sm:$0xf] %v224
  %233 = vst [vmem:[%s2 + $0x4] sm:$0xf] %v225
  %234 = vst [vmem:[%s2 + $0x8] sm:$0xf] %v226
  %235 = vst [vmem:[%s2 + $0xc] sm:$0xf] %v227
  %236 = vadd.xlane.f32.xlu0 %v202
  %v237 = vpop.xlane.xlu0 %236
  %238 = vadd.xlane.f32.xlu0 %v205
  %v239 = vpop.xlane.xlu0 %238
  %240 = vadd.xlane.f32.xlu0 %v210
  %v241 = vpop.xlane.xlu0 %240
  %242 = vadd.xlane.f32.xlu0 %v213
  %v243 = vpop.xlane.xlu0 %242
  %vm244 = vcmask 7168
  %245 = vst.msk [vmem:[%s3] sm:$0xff] %vm244, %v237
  %246 = vst.msk [vmem:[%s3 + $0x8] sm:$0xff] %vm244, %v239
  %247 = vst.msk [vmem:[%s3 + $0x10] sm:$0xff] %vm244, %v241
  %248 = vst.msk [vmem:[%s3 + $0x18] sm:$0xff] %vm244, %v243
  %v249 = vmul.f32 %v202, %v202
  %v250 = vmul.f32 %v205, %v205
  %v251 = vmul.f32 %v210, %v210
  %v252 = vmul.f32 %v213, %v213
  %253 = vadd.xlane.f32.xlu0 %v249
  %v254 = vpop.xlane.xlu0 %253
  %255 = vadd.xlane.f32.xlu0 %v250
  %v256 = vpop.xlane.xlu0 %255
  %257 = vadd.xlane.f32.xlu0 %v251
  %v258 = vpop.xlane.xlu0 %257
  %259 = vadd.xlane.f32.xlu0 %v252
  %v260 = vpop.xlane.xlu0 %259
  %261 = vst.msk [vmem:[%s4] sm:$0xff] %vm244, %v254
  %262 = vst.msk [vmem:[%s4 + $0x8] sm:$0xff] %vm244, %v256
  %263 = vst.msk [vmem:[%s4 + $0x10] sm:$0xff] %vm244, %v258
  %264 = vst.msk [vmem:[%s4 + $0x18] sm:$0xff] %vm244, %v260
  // Predicated region
  $region10: #{multiscale_discriminator_forward.41} parent=0 // pred_check
    _
  $region11: #{multiscale_discriminator_forward.41} parent=0 // pred_check_branch
    %266 = sbr.rel (0) target = $region13
  $region12: #{multiscale_discriminator_forward.41} parent=0 // pred_region
    _
  $region13: #{multiscale_discriminator_forward.41} parent=0 // pred_fallthru
    _
  // Predicated region
  $region14: #{multiscale_discriminator_forward.41} parent=0 // pred_check
    _
  $region15: #{multiscale_discriminator_forward.41} parent=0 // pred_check_branch
    %268 = sbr.rel (0) target = $region17
  $region16: #{multiscale_discriminator_forward.41} parent=0 // pred_region
    _
  $region17: #{multiscale_discriminator_forward.41} parent=0 // pred_fallthru
    _
  // Predicated region
  $region18: #{multiscale_discriminator_forward.41} parent=0 // pred_check
    _
  $region19: #{multiscale_discriminator_forward.41} parent=0 // pred_check_branch
    %270 = sbr.rel (0) target = $region21
  $region20: #{multiscale_discriminator_forward.41} parent=0 // pred_region
    _
  $region21: #{multiscale_discriminator_forward.41} parent=0 // pred_fallthru
    _
  // Predicated region
  $region22: #{multiscale_discriminator_forward.41} parent=0 // pred_check
    _
  $region23: #{multiscale_discriminator_forward.41} parent=0 // pred_check_branch
    %272 = sbr.rel (0) target = $region25
  $region24: #{multiscale_discriminator_forward.41} parent=0 // pred_region
    _
  $region25: #{multiscale_discriminator_forward.41} parent=0 // pred_fallthru
    _
  // Predicated region
  $region26: #{multiscale_discriminator_forward.41} parent=0 // pred_check
    _
  $region27: #{multiscale_discriminator_forward.41} parent=0 // pred_check_branch
    %274 = sbr.rel (0) target = $region29
  $region28: #{multiscale_discriminator_forward.41} parent=0 // pred_region
    _
  $region29: #{multiscale_discriminator_forward.41} parent=0 // pred_fallthru
    _
  // Predicated region
  $region30: #{multiscale_discriminator_forward.41} parent=0 // pred_check
    _
  $region31: #{multiscale_discriminator_forward.41} parent=0 // pred_check_branch
    %276 = sbr.rel (0) target = $region33
  $region32: #{multiscale_discriminator_forward.41} parent=0 // pred_region
    _
  $region33: #{multiscale_discriminator_forward.41} parent=0 // pred_fallthru
    _

// kernel: multiscale_discriminator_forward.44
$region0: #{multiscale_discriminator_forward.44}
  #allocation0 [shape = 'u32[]', space=smem, size = 0x4, offset = 0x4, fixed_abs, tag = 'smem constant byte address 0x4 - core index']
  #allocation1 [shape = 'u32[144,128]{1,0:T(1,128)}', space=vmem, size = 0x12000, scoped, tag = 'internal scratch']
  %s0 = inlined_call_operand.vmem [shape: bf16[64,128], index: 0, kind: input, shape index: {}]
  %s1 = inlined_call_operand.vmem [shape: f32[64,1], index: 1, kind: input, shape index: {}]
  %s2 = inlined_call_operand.vmem [shape: f32[64,1], index: 2, kind: input, shape index: {}]
  %s3 = inlined_call_operand.vmem [shape: bf16[64,128], index: 3, kind: output, shape index: {}]
  %s4 = sld [smem:[#allocation0]]
  $region22: #{multiscale_discriminator_forward.44} parent=0
    _
  %s6 = ssub.s32 1, %s4
  %s7 = scalar_select 0, %s6, %s4
  // Predicated region
  $region2: #{multiscale_discriminator_forward.44} parent=0 // pred_check
    _
  $region3: #{multiscale_discriminator_forward.44} parent=0 // pred_check_branch
    %9 = sbr.rel (0) target = $region5
  $region4: #{multiscale_discriminator_forward.44} parent=0 // pred_region
    _
  $region5: #{multiscale_discriminator_forward.44} parent=0 // pred_fallthru
    _
  // Predicated region
  $region6: #{multiscale_discriminator_forward.44} parent=0 // pred_check
    _
  $region7: #{multiscale_discriminator_forward.44} parent=0 // pred_check_branch
    %11 = sbr.rel (0) target = $region9
  $region8: #{multiscale_discriminator_forward.44} parent=0 // pred_region
    _
  $region9: #{multiscale_discriminator_forward.44} parent=0 // pred_fallthru
    _
  // Predicated region
  $region10: #{multiscale_discriminator_forward.44} parent=0 // pred_check
    _
  $region11: #{multiscale_discriminator_forward.44} parent=0 // pred_check_branch
    %13 = sbr.rel (0) target = $region13
  $region12: #{multiscale_discriminator_forward.44} parent=0 // pred_region
    _
  $region13: #{multiscale_discriminator_forward.44} parent=0 // pred_fallthru
    _
  %v14 = vld [vmem:[%s0] sm:$0xf]
  %v15 = vld [vmem:[%s0 + $0x4] sm:$0xf]
  %v16 = vld [vmem:[%s0 + $0x8] sm:$0xf]
  %v17 = vld [vmem:[%s0 + $0xc] sm:$0xf]
  %v18 = vld [vmem:[%s0 + $0x10] sm:$0xf]
  %v19 = vld [vmem:[%s0 + $0x14] sm:$0xf]
  %v20 = vld [vmem:[%s0 + $0x18] sm:$0xf]
  %v21 = vld [vmem:[%s0 + $0x1c] sm:$0xf]
  %v22 = vunpack.c.l.bf16 %v14
  %v23 = vunpack.c.l.bf16 %v15
  %v24 = vunpack.c.l.bf16 %v16
  %v25 = vunpack.c.l.bf16 %v17
  %v26 = vunpack.c.l.bf16 %v18
  %v27 = vunpack.c.l.bf16 %v19
  %v28 = vunpack.c.l.bf16 %v20
  %v29 = vunpack.c.l.bf16 %v21
  %v30 = vld [vmem:[%s1] sm:$0xff]
  %v31 = vld [vmem:[%s1 + $0x8] sm:$0xff]
  %v32 = vld [vmem:[%s1 + $0x10] sm:$0xff]
  %v33 = vld [vmem:[%s1 + $0x18] sm:$0xff]
  %v34 = vld [vmem:[%s1 + $0x20] sm:$0xff]
  %v35 = vld [vmem:[%s1 + $0x28] sm:$0xff]
  %v36 = vld [vmem:[%s1 + $0x30] sm:$0xff]
  %v37 = vld [vmem:[%s1 + $0x38] sm:$0xff]
  %39 = vset.pattern.permute.xlu0 0
  %40 = vperm.xlu0 %39, %v30
  %v41 = vpop.permute.xlu0 %40
  %44 = vset.pattern.permute.xlu0 0
  %45 = vperm.xlu0 %44, %v31
  %v46 = vpop.permute.xlu0 %45
  %49 = vset.pattern.permute.xlu0 0
  %50 = vperm.xlu0 %49, %v32
  %v51 = vpop.permute.xlu0 %50
  %54 = vset.pattern.permute.xlu0 0
  %55 = vperm.xlu0 %54, %v33
  %v56 = vpop.permute.xlu0 %55
  %59 = vset.pattern.permute.xlu0 0
  %60 = vperm.xlu0 %59, %v34
  %v61 = vpop.permute.xlu0 %60
  %64 = vset.pattern.permute.xlu0 0
  %65 = vperm.xlu0 %64, %v35
  %v66 = vpop.permute.xlu0 %65
  %69 = vset.pattern.permute.xlu0 0
  %70 = vperm.xlu0 %69, %v36
  %v71 = vpop.permute.xlu0 %70
  %74 = vset.pattern.permute.xlu0 0
  %75 = vperm.xlu0 %74, %v37
  %v76 = vpop.permute.xlu0 %75
  %v78 = vmul.f32 %v22, %v41
  %v79 = vmul.f32 %v23, %v46
  %v80 = vmul.f32 %v24, %v51
  %v81 = vmul.f32 %v25, %v56
  %v82 = vmul.f32 %v26, %v61
  %v83 = vmul.f32 %v27, %v66
  %v84 = vmul.f32 %v28, %v71
  %v85 = vmul.f32 %v29, %v76
  %v86 = vld [vmem:[%s2] sm:$0xff]
  %v87 = vld [vmem:[%s2 + $0x8] sm:$0xff]
  %v88 = vld [vmem:[%s2 + $0x10] sm:$0xff]
  %v89 = vld [vmem:[%s2 + $0x18] sm:$0xff]
  %v90 = vld [vmem:[%s2 + $0x20] sm:$0xff]
  %v91 = vld [vmem:[%s2 + $0x28] sm:$0xff]
  %v92 = vld [vmem:[%s2 + $0x30] sm:$0xff]
  %v93 = vld [vmem:[%s2 + $0x38] sm:$0xff]
  %95 = vset.pattern.permute.xlu0 0
  %96 = vperm.xlu0 %95, %v86
  %v97 = vpop.permute.xlu0 %96
  %100 = vset.pattern.permute.xlu0 0
  %101 = vperm.xlu0 %100, %v87
  %v102 = vpop.permute.xlu0 %101
  %105 = vset.pattern.permute.xlu0 0
  %106 = vperm.xlu0 %105, %v88
  %v107 = vpop.permute.xlu0 %106
  %110 = vset.pattern.permute.xlu0 0
  %111 = vperm.xlu0 %110, %v89
  %v112 = vpop.permute.xlu0 %111
  %115 = vset.pattern.permute.xlu0 0
  %116 = vperm.xlu0 %115, %v90
  %v117 = vpop.permute.xlu0 %116
  %120 = vset.pattern.permute.xlu0 0
  %121 = vperm.xlu0 %120, %v91
  %v122 = vpop.permute.xlu0 %121
  %125 = vset.pattern.permute.xlu0 0
  %126 = vperm.xlu0 %125, %v92
  %v127 = vpop.permute.xlu0 %126
  %130 = vset.pattern.permute.xlu0 0
  %131 = vperm.xlu0 %130, %v93
  %v132 = vpop.permute.xlu0 %131
  %v134 = vadd.f32 %v78, %v97
  %v135 = vadd.f32 %v79, %v102
  %v136 = vadd.f32 %v80, %v107
  %v137 = vadd.f32 %v81, %v112
  %v138 = vadd.f32 %v82, %v117
  %v139 = vadd.f32 %v83, %v122
  %v140 = vadd.f32 %v84, %v127
  %v141 = vadd.f32 %v85, %v132
  %v142 = vmul.f32 %v134, 0.2
  %v143 = vmul.f32 %v135, 0.2
  %v144 = vmul.f32 %v136, 0.2
  %v145 = vmul.f32 %v137, 0.2
  %v146 = vmul.f32 %v138, 0.2
  %v147 = vmul.f32 %v139, 0.2
  %v148 = vmul.f32 %v140, 0.2
  %v149 = vmul.f32 %v141, 0.2
  %v150 = vmax.f32 %v134, %v142
  %v151 = vmax.f32 %v135, %v143
  %v152 = vmax.f32 %v136, %v144
  %v153 = vmax.f32 %v137, %v145
  %v154 = vmax.f32 %v138, %v146
  %v155 = vmax.f32 %v139, %v147
  %v156 = vmax.f32 %v140, %v148
  %v157 = vmax.f32 %v141, %v149
  %v158 = vpack.c.bf16 %v151, %v150
  %v159 = vpack.c.bf16 %v153, %v152
  %v160 = vpack.c.bf16 %v155, %v154
  %v161 = vpack.c.bf16 %v157, %v156
  %v166 = vunpack.c.l.b16 %v158
  %v167 = vunpack.c.h.b16 %v158
  %v168 = vunpack.c.l.b16 %v159
  %v169 = vunpack.c.h.b16 %v159
  %v170 = vunpack.c.l.b16 %v160
  %v171 = vunpack.c.h.b16 %v160
  %v172 = vunpack.c.l.b16 %v161
  %v173 = vunpack.c.h.b16 %v161
  %v174 = vpack.c.b16 %v166, %v166
  %v175 = vpack.c.b16 %v167, %v167
  %v176 = vpack.c.b16 %v168, %v168
  %v177 = vpack.c.b16 %v169, %v169
  %v178 = vpack.c.b16 %v170, %v170
  %v179 = vpack.c.b16 %v171, %v171
  %v180 = vpack.c.b16 %v172, %v172
  %v181 = vpack.c.b16 %v173, %v173
  %190 = vst [vmem:[%s3] sm:$0xf] %v174
  %191 = vst [vmem:[%s3 + $0x4] sm:$0xf] %v175
  %192 = vst [vmem:[%s3 + $0x8] sm:$0xf] %v176
  %193 = vst [vmem:[%s3 + $0xc] sm:$0xf] %v177
  %194 = vst [vmem:[%s3 + $0x10] sm:$0xf] %v178
  %195 = vst [vmem:[%s3 + $0x14] sm:$0xf] %v179
  %196 = vst [vmem:[%s3 + $0x18] sm:$0xf] %v180
  %197 = vst [vmem:[%s3 + $0x1c] sm:$0xf] %v181
  // Predicated region
  $region14: #{multiscale_discriminator_forward.44} parent=0 // pred_check
    _
  $region15: #{multiscale_discriminator_forward.44} parent=0 // pred_check_branch
    %199 = sbr.rel (0) target = $region17
  $region16: #{multiscale_discriminator_forward.44} parent=0 // pred_region
    _
  $region17: #{multiscale_discriminator_forward.44} parent=0 // pred_fallthru
    _
  // Predicated region
  $region18: #{multiscale_discriminator_forward.44} parent=0 // pred_check
    _
  $region19: #{multiscale_discriminator_forward.44} parent=0 // pred_check_branch
    %201 = sbr.rel (0) target = $region21
  $region20: #{multiscale_discriminator_forward.44} parent=0 // pred_region
    _
  $region21: #{multiscale_discriminator_forward.44} parent=0 // pred_fallthru
    _

// kernel: multiscale_discriminator_forward.43
$region0: #{multiscale_discriminator_forward.43}
  #allocation0 [shape = 'u32[]', space=smem, size = 0x4, offset = 0x4, fixed_abs, tag = 'smem constant byte address 0x4 - core index']
  #allocation1 [shape = 'u32[144,128]{1,0:T(1,128)}', space=vmem, size = 0x12000, scoped, tag = 'internal scratch']
  %s0 = inlined_call_operand.vmem [shape: bf16[64,512], index: 0, kind: input, shape index: {}]
  %s1 = inlined_call_operand.vmem [shape: bf16[512,128], index: 1, kind: input, shape index: {}]
  %s2 = inlined_call_operand.vmem [shape: bf16[64,128], index: 2, kind: output, shape index: {0}]
  %s3 = inlined_call_operand.vmem [shape: f32[1,64,1], index: 3, kind: output, shape index: {1}]
  %s4 = inlined_call_operand.vmem [shape: f32[1,64,1], index: 4, kind: output, shape index: {2}]
  %5 = xla_tuple %s2, %s3, %s4
  %s6 = sld [smem:[#allocation0]]
  $region34: #{multiscale_discriminator_forward.43} parent=0
    _
  %s8 = ssub.s32 1, %s6
  %s9 = scalar_select 0, %s8, %s6
  // Predicated region
  $region2: #{multiscale_discriminator_forward.43} parent=0 // pred_check
    _
  $region3: #{multiscale_discriminator_forward.43} parent=0 // pred_check_branch
    %11 = sbr.rel (0) target = $region5
  $region4: #{multiscale_discriminator_forward.43} parent=0 // pred_region
    _
  $region5: #{multiscale_discriminator_forward.43} parent=0 // pred_fallthru
    _
  // Predicated region
  $region6: #{multiscale_discriminator_forward.43} parent=0 // pred_check
    _
  $region7: #{multiscale_discriminator_forward.43} parent=0 // pred_check_branch
    %13 = sbr.rel (0) target = $region9
  $region8: #{multiscale_discriminator_forward.43} parent=0 // pred_region
    _
  $region9: #{multiscale_discriminator_forward.43} parent=0 // pred_fallthru
    _
  %v15 = vld [vmem:[%s0] sm:$0xff]
  %v16 = vld [vmem:[%s0 + $0x8] sm:$0xff]
  %v17 = vld [vmem:[%s0 + $0x10] sm:$0xff]
  %v18 = vld [vmem:[%s0 + $0x18] sm:$0xff]
  %v19 = vld [vmem:[%s0 + $0x20] sm:$0xff]
  %v20 = vld [vmem:[%s0 + $0x28] sm:$0xff]
  %v21 = vld [vmem:[%s0 + $0x30] sm:$0xff]
  %v22 = vld [vmem:[%s0 + $0x38] sm:$0xff]
  %v23 = vld [vmem:[%s0 + $0x40] sm:$0xff]
  %v24 = vld [vmem:[%s0 + $0x48] sm:$0xff]
  %v25 = vld [vmem:[%s0 + $0x50] sm:$0xff]
  %v26 = vld [vmem:[%s0 + $0x58] sm:$0xff]
  %v27 = vld [vmem:[%s0 + $0x60] sm:$0xff]
  %v28 = vld [vmem:[%s0 + $0x68] sm:$0xff]
  %v29 = vld [vmem:[%s0 + $0x70] sm:$0xff]
  %v30 = vld [vmem:[%s0 + $0x78] sm:$0xff]
  %v31 = vld [vmem:[%s1] sm:$0xf]
  %v32 = vld [vmem:[%s1 + $0x4] sm:$0xf]
  %v33 = vld [vmem:[%s1 + $0x8] sm:$0xf]
  %v34 = vld [vmem:[%s1 + $0xc] sm:$0xf]
  %v35 = vld [vmem:[%s1 + $0x10] sm:$0xf]
  %v36 = vld [vmem:[%s1 + $0x14] sm:$0xf]
  %v37 = vld [vmem:[%s1 + $0x18] sm:$0xf]
  %v38 = vld [vmem:[%s1 + $0x1c] sm:$0xf]
  %v39 = vld [vmem:[%s1 + $0x20] sm:$0xf]
  %v40 = vld [vmem:[%s1 + $0x24] sm:$0xf]
  %v41 = vld [vmem:[%s1 + $0x28] sm:$0xf]
  %v42 = vld [vmem:[%s1 + $0x2c] sm:$0xf]
  %v43 = vld [vmem:[%s1 + $0x30] sm:$0xf]
  %v44 = vld [vmem:[%s1 + $0x34] sm:$0xf]
  %v45 = vld [vmem:[%s1 + $0x38] sm:$0xf]
  %v46 = vld [vmem:[%s1 + $0x3c] sm:$0xf]
  %v47 = vld [vmem:[%s1 + $0x40] sm:$0xf]
  %v48 = vld [vmem:[%s1 + $0x44] sm:$0xf]
  %v49 = vld [vmem:[%s1 + $0x48] sm:$0xf]
  %v50 = vld [vmem:[%s1 + $0x4c] sm:$0xf]
  %v51 = vld [vmem:[%s1 + $0x50] sm:$0xf]
  %v52 = vld [vmem:[%s1 + $0x54] sm:$0xf]
  %v53 = vld [vmem:[%s1 + $0x58] sm:$0xf]
  %v54 = vld [vmem:[%s1 + $0x5c] sm:$0xf]
  %v55 = vld [vmem:[%s1 + $0x60] sm:$0xf]
  %v56 = vld [vmem:[%s1 + $0x64] sm:$0xf]
  %v57 = vld [vmem:[%s1 + $0x68] sm:$0xf]
  %v58 = vld [vmem:[%s1 + $0x6c] sm:$0xf]
  %v59 = vld [vmem:[%s1 + $0x70] sm:$0xf]
  %v60 = vld [vmem:[%s1 + $0x74] sm:$0xf]
  %v61 = vld [vmem:[%s1 + $0x78] sm:$0xf]
  %v62 = vld [vmem:[%s1 + $0x7c] sm:$0xf]
  %v63 = vld [vmem:[%s1 + $0x80] sm:$0xf]
  %v64 = vld [vmem:[%s1 + $0x84] sm:$0xf]
  %v65 = vld [vmem:[%s1 + $0x88] sm:$0xf]
  %v66 = vld [vmem:[%s1 + $0x8c] sm:$0xf]
  %v67 = vld [vmem:[%s1 + $0x90] sm:$0xf]
  %v68 = vld [vmem:[%s1 + $0x94] sm:$0xf]
  %v69 = vld [vmem:[%s1 + $0x98] sm:$0xf]
  %v70 = vld [vmem:[%s1 + $0x9c] sm:$0xf]
  %v71 = vld [vmem:[%s1 + $0xa0] sm:$0xf]
  %v72 = vld [vmem:[%s1 + $0xa4] sm:$0xf]
  %v73 = vld [vmem:[%s1 + $0xa8] sm:$0xf]
  %v74 = vld [vmem:[%s1 + $0xac] sm:$0xf]
  %v75 = vld [vmem:[%s1 + $0xb0] sm:$0xf]
  %v76 = vld [vmem:[%s1 + $0xb4] sm:$0xf]
  %v77 = vld [vmem:[%s1 + $0xb8] sm:$0xf]
  %v78 = vld [vmem:[%s1 + $0xbc] sm:$0xf]
  %v79 = vld [vmem:[%s1 + $0xc0] sm:$0xf]
  %v80 = vld [vmem:[%s1 + $0xc4] sm:$0xf]
  %v81 = vld [vmem:[%s1 + $0xc8] sm:$0xf]
  %v82 = vld [vmem:[%s1 + $0xcc] sm:$0xf]
  %v83 = vld [vmem:[%s1 + $0xd0] sm:$0xf]
  %v84 = vld [vmem:[%s1 + $0xd4] sm:$0xf]
  %v85 = vld [vmem:[%s1 + $0xd8] sm:$0xf]
  %v86 = vld [vmem:[%s1 + $0xdc] sm:$0xf]
  %v87 = vld [vmem:[%s1 + $0xe0] sm:$0xf]
  %v88 = vld [vmem:[%s1 + $0xe4] sm:$0xf]
  %v89 = vld [vmem:[%s1 + $0xe8] sm:$0xf]
  %v90 = vld [vmem:[%s1 + $0xec] sm:$0xf]
  %v91 = vld [vmem:[%s1 + $0xf0] sm:$0xf]
  %v92 = vld [vmem:[%s1 + $0xf4] sm:$0xf]
  %v93 = vld [vmem:[%s1 + $0xf8] sm:$0xf]
  %v94 = vld [vmem:[%s1 + $0xfc] sm:$0xf]
  %v111 = vunpack.c.l.b16 %v15
  %v112 = vunpack.c.h.b16 %v15
  %v113 = vunpack.c.l.b16 %v16
  %v114 = vunpack.c.h.b16 %v16
  %v115 = vunpack.c.l.b16 %v17
  %v116 = vunpack.c.h.b16 %v17
  %v117 = vunpack.c.l.b16 %v18
  %v118 = vunpack.c.h.b16 %v18
  %v119 = vunpack.c.l.b16 %v19
  %v120 = vunpack.c.h.b16 %v19
  %v121 = vunpack.c.l.b16 %v20
  %v122 = vunpack.c.h.b16 %v20
  %v123 = vunpack.c.l.b16 %v21
  %v124 = vunpack.c.h.b16 %v21
  %v125 = vunpack.c.l.b16 %v22
  %v126 = vunpack.c.h.b16 %v22
  %v127 = vunpack.c.l.b16 %v23
  %v128 = vunpack.c.h.b16 %v23
  %v129 = vunpack.c.l.b16 %v24
  %v130 = vunpack.c.h.b16 %v24
  %v131 = vunpack.c.l.b16 %v25
  %v132 = vunpack.c.h.b16 %v25
  %v133 = vunpack.c.l.b16 %v26
  %v134 = vunpack.c.h.b16 %v26
  %v135 = vunpack.c.l.b16 %v27
  %v136 = vunpack.c.h.b16 %v27
  %v137 = vunpack.c.l.b16 %v28
  %v138 = vunpack.c.h.b16 %v28
  %v139 = vunpack.c.l.b16 %v29
  %v140 = vunpack.c.h.b16 %v29
  %v141 = vunpack.c.l.b16 %v30
  %v142 = vunpack.c.h.b16 %v30
  %v143 = vpack.c.b16 %v115, %v111
  %v144 = vpack.c.b16 %v116, %v112
  %v145 = vpack.c.b16 %v117, %v113
  %v146 = vpack.c.b16 %v118, %v114
  %v147 = vpack.c.b16 %v123, %v119
  %v148 = vpack.c.b16 %v124, %v120
  %v149 = vpack.c.b16 %v125, %v121
  %v150 = vpack.c.b16 %v126, %v122
  %v151 = vpack.c.b16 %v131, %v127
  %v152 = vpack.c.b16 %v132, %v128
  %v153 = vpack.c.b16 %v133, %v129
  %v154 = vpack.c.b16 %v134, %v130
  %v155 = vpack.c.b16 %v139, %v135
  %v156 = vpack.c.b16 %v140, %v136
  %v157 = vpack.c.b16 %v141, %v137
  %v158 = vpack.c.b16 %v142, %v138
  %v239 = vunpack.c.l.b16 %v31
  %v240 = vunpack.c.l.b16 %v32
  %v241 = vunpack.c.l.b16 %v33
  %v242 = vunpack.c.l.b16 %v34
  %v243 = vunpack.c.l.b16 %v35
  %v244 = vunpack.c.l.b16 %v36
  %v245 = vunpack.c.l.b16 %v37
  %v246 = vunpack.c.l.b16 %v38
  %v247 = vunpack.c.l.b16 %v39
  %v248 = vunpack.c.l.b16 %v40
  %v249 = vunpack.c.l.b16 %v41
  %v250 = vunpack.c.l.b16 %v42
  %v251 = vunpack.c.l.b16 %v43
  %v252 = vunpack.c.l.b16 %v44
  %v253 = vunpack.c.l.b16 %v45
  %v254 = vunpack.c.l.b16 %v46
  %v255 = vunpack.c.l.b16 %v47
  %v256 = vunpack.c.l.b16 %v48
  %v257 = vunpack.c.l.b16 %v49
  %v258 = vunpack.c.l.b16 %v50
  %v259 = vunpack.c.l.b16 %v51
  %v260 = vunpack.c.l.b16 %v52
  %v261 = vunpack.c.l.b16 %v53
  %v262 = vunpack.c.l.b16 %v54
  %v263 = vunpack.c.l.b16 %v55
  %v264 = vunpack.c.l.b16 %v56
  %v265 = vunpack.c.l.b16 %v57
  %v266 = vunpack.c.l.b16 %v58
  %v267 = vunpack.c.l.b16 %v59
  %v268 = vunpack.c.l.b16 %v60
  %v269 = vunpack.c.l.b16 %v61
  %v270 = vunpack.c.l.b16 %v62
  %v271 = vunpack.c.l.b16 %v63
  %v272 = vunpack.c.l.b16 %v64
  %v273 = vunpack.c.l.b16 %v65
  %v274 = vunpack.c.l.b16 %v66
  %v275 = vunpack.c.l.b16 %v67
  %v276 = vunpack.c.l.b16 %v68
  %v277 = vunpack.c.l.b16 %v69
  %v278 = vunpack.c.l.b16 %v70
  %v279 = vunpack.c.l.b16 %v71
  %v280 = vunpack.c.l.b16 %v72
  %v281 = vunpack.c.l.b16 %v73
  %v282 = vunpack.c.l.b16 %v74
  %v283 = vunpack.c.l.b16 %v75
  %v284 = vunpack.c.l.b16 %v76
  %v285 = vunpack.c.l.b16 %v77
  %v286 = vunpack.c.l.b16 %v78
  %v287 = vunpack.c.l.b16 %v79
  %v288 = vunpack.c.l.b16 %v80
  %v289 = vunpack.c.l.b16 %v81
  %v290 = vunpack.c.l.b16 %v82
  %v291 = vunpack.c.l.b16 %v83
  %v292 = vunpack.c.l.b16 %v84
  %v293 = vunpack.c.l.b16 %v85
  %v294 = vunpack.c.l.b16 %v86
  %v295 = vunpack.c.l.b16 %v87
  %v296 = vunpack.c.l.b16 %v88
  %v297 = vunpack.c.l.b16 %v89
  %v298 = vunpack.c.l.b16 %v90
  %v299 = vunpack.c.l.b16 %v91
  %v300 = vunpack.c.l.b16 %v92
  %v301 = vunpack.c.l.b16 %v93
  %v302 = vunpack.c.l.b16 %v94
  %v303 = vpack.c.b16 %v240, %v239
  %v304 = vpack.c.b16 %v242, %v241
  %v305 = vpack.c.b16 %v244, %v243
  %v306 = vpack.c.b16 %v246, %v245
  %v307 = vpack.c.b16 %v248, %v247
  %v308 = vpack.c.b16 %v250, %v249
  %v309 = vpack.c.b16 %v252, %v251
  %v310 = vpack.c.b16 %v254, %v253
  %v311 = vpack.c.b16 %v256, %v255
  %v312 = vpack.c.b16 %v258, %v257
  %v313 = vpack.c.b16 %v260, %v259
  %v314 = vpack.c.b16 %v262, %v261
  %v315 = vpack.c.b16 %v264, %v263
  %v316 = vpack.c.b16 %v266, %v265
  %v317 = vpack.c.b16 %v268, %v267
  %v318 = vpack.c.b16 %v270, %v269
  %v319 = vpack.c.b16 %v272, %v271
  %v320 = vpack.c.b16 %v274, %v273
  %v321 = vpack.c.b16 %v276, %v275
  %v322 = vpack.c.b16 %v278, %v277
  %v323 = vpack.c.b16 %v280, %v279
  %v324 = vpack.c.b16 %v282, %v281
  %v325 = vpack.c.b16 %v284, %v283
  %v326 = vpack.c.b16 %v286, %v285
  %v327 = vpack.c.b16 %v288, %v287
  %v328 = vpack.c.b16 %v290, %v289
  %v329 = vpack.c.b16 %v292, %v291
  %v330 = vpack.c.b16 %v294, %v293
  %v331 = vpack.c.b16 %v296, %v295
  %v332 = vpack.c.b16 %v298, %v297
  %v333 = vpack.c.b16 %v300, %v299
  %v334 = vpack.c.b16 %v302, %v301
  %367 = vmatprep.subr.bf16.mxu0 0
  %368 = vmatpush1.bf16.msra.mxu0 %v303
  %369 = vmatprep.subr.bf16.mxu0 0
  %370 = vmatpush1.bf16.msra.mxu0 %v304
  %371 = vmatprep.subr.bf16.mxu0 0
  %372 = vmatpush1.bf16.msra.mxu0 %v305
  %373 = vmatprep.subr.bf16.mxu0 0
  %374 = vmatpush1.bf16.msra.mxu0 %v306
  %375 = vmatprep.subr.bf16.mxu0 0
  %376 = vmatpush1.bf16.msra.mxu0 %v307
  %377 = vmatprep.subr.bf16.mxu0 0
  %378 = vmatpush1.bf16.msra.mxu0 %v308
  %379 = vmatprep.subr.bf16.mxu0 0
  %380 = vmatpush1.bf16.msra.mxu0 %v309
  %381 = vmatprep.subr.bf16.mxu0 0
  %382 = vmatpush1.bf16.msra.mxu0 %v310
  %383 = vmatprep.subr.bf16.mxu0 0
  %384 = vmatpush1.bf16.msra.mxu0 %v311
  %385 = vmatprep.subr.bf16.mxu0 0
  %386 = vmatpush1.bf16.msra.mxu0 %v312
  %387 = vmatprep.subr.bf16.mxu0 0
  %388 = vmatpush1.bf16.msra.mxu0 %v313
  %389 = vmatprep.subr.bf16.mxu0 0
  %390 = vmatpush1.bf16.msra.mxu0 %v314
  %391 = vmatprep.subr.bf16.mxu0 0
  %392 = vmatpush1.bf16.msra.mxu0 %v315
  %393 = vmatprep.subr.bf16.mxu0 0
  %394 = vmatpush1.bf16.msra.mxu0 %v316
  %395 = vmatprep.subr.bf16.mxu0 0
  %396 = vmatpush1.bf16.msra.mxu0 %v317
  %397 = vmatprep.subr.bf16.mxu0 0
  %398 = vmatpush1.bf16.msra.mxu0 %v318
  %399 = vmatprep.mubr.bf16.mxu0 %v144
  %400 = vmatmul.mubr.bf16.gmra.mrb[0].mxu0 %v143
  %v401 = vpop.f32.mrb[0].mxu0
  %v402 = vadd.f32 0.0, %v401
  %v403 = vpop.f32.mrb[0].mxu0
  %v404 = vpop.f32.mrb[0].mxu0
  %v405 = vadd.f32 0.0, %v404
  %v406 = vpop.f32.mrb[0].mxu0
  %407 = vmatprep.mubr.bf16.mxu0 %v148
  %408 = vmatmul.mubr.bf16.gmra.mrb[0].mxu0 %v147
  %v409 = vpop.f32.mrb[0].mxu0
  %v410 = vadd.f32 0.0, %v409
  %v411 = vpop.f32.mrb[0].mxu0
  %v412 = vpop.f32.mrb[0].mxu0
  %v413 = vadd.f32 0.0, %v412
  %v414 = vpop.f32.mrb[0].mxu0
  %415 = vmatprep.mubr.bf16.mxu0 %v152
  %416 = vmatmul.mubr.bf16.gmra.mrb[0].mxu0 %v151
  %v417 = vpop.f32.mrb[0].mxu0
  %v418 = vadd.f32 0.0, %v417
  %v419 = vpop.f32.mrb[0].mxu0
  %v420 = vpop.f32.mrb[0].mxu0
  %v421 = vadd.f32 0.0, %v420
  %v422 = vpop.f32.mrb[0].mxu0
  %423 = vmatprep.mubr.bf16.mxu0 %v156
  %424 = vmatmul.mubr.bf16.gmra.mrb[0].mxu0 %v155
  %v425 = vpop.f32.mrb[0].mxu0
  %v426 = vadd.f32 0.0, %v425
  %v427 = vpop.f32.mrb[0].mxu0
  %v428 = vpop.f32.mrb[0].mxu0
  %v429 = vadd.f32 0.0, %v428
  %v430 = vpop.f32.mrb[0].mxu0
  %431 = vdwg.mxu0
  %432 = vmatprep.subr.bf16.mxu0 0
  %433 = vmatpush1.bf16.msra.mxu0 %v319
  %434 = vmatprep.subr.bf16.mxu0 0
  %435 = vmatpush1.bf16.msra.mxu0 %v320
  %436 = vmatprep.subr.bf16.mxu0 0
  %437 = vmatpush1.bf16.msra.mxu0 %v321
  %438 = vmatprep.subr.bf16.mxu0 0
  %439 = vmatpush1.bf16.msra.mxu0 %v322
  %440 = vmatprep.subr.bf16.mxu0 0
  %441 = vmatpush1.bf16.msra.mxu0 %v323
  %442 = vmatprep.subr.bf16.mxu0 0
  %443 = vmatpush1.bf16.msra.mxu0 %v324
  %444 = vmatprep.subr.bf16.mxu0 0
  %445 = vmatpush1.bf16.msra.mxu0 %v325
  %446 = vmatprep.subr.bf16.mxu0 0
  %447 = vmatpush1.bf16.msra.mxu0 %v326
  %448 = vmatprep.subr.bf16.mxu0 0
  %449 = vmatpush1.bf16.msra.mxu0 %v327
  %450 = vmatprep.subr.bf16.mxu0 0
  %451 = vmatpush1.bf16.msra.mxu0 %v328
  %452 = vmatprep.subr.bf16.mxu0 0
  %453 = vmatpush1.bf16.msra.mxu0 %v329
  %454 = vmatprep.subr.bf16.mxu0 0
  %455 = vmatpush1.bf16.msra.mxu0 %v330
  %456 = vmatprep.subr.bf16.mxu0 0
  %457 = vmatpush1.bf16.msra.mxu0 %v331
  %458 = vmatprep.subr.bf16.mxu0 0
  %459 = vmatpush1.bf16.msra.mxu0 %v332
  %460 = vmatprep.subr.bf16.mxu0 0
  %461 = vmatpush1.bf16.msra.mxu0 %v333
  %462 = vmatprep.subr.bf16.mxu0 0
  %463 = vmatpush1.bf16.msra.mxu0 %v334
  %464 = vmatprep.mubr.bf16.mxu0 %v146
  %465 = vmatmul.mubr.bf16.gmra.mrb[0].mxu0 %v145
  %v466 = vpop.f32.mrb[0].mxu0
  %v467 = vadd.f32 %v402, %v466
  %v468 = vpop.f32.mrb[0].mxu0
  %v469 = vpop.f32.mrb[0].mxu0
  %v470 = vadd.f32 %v405, %v469
  %v471 = vpop.f32.mrb[0].mxu0
  %472 = vmatprep.mubr.bf16.mxu0 %v150
  %473 = vmatmul.mubr.bf16.gmra.mrb[0].mxu0 %v149
  %v474 = vpop.f32.mrb[0].mxu0
  %v475 = vadd.f32 %v410, %v474
  %v476 = vpop.f32.mrb[0].mxu0
  %v477 = vpop.f32.mrb[0].mxu0
  %v478 = vadd.f32 %v413, %v477
  %v479 = vpop.f32.mrb[0].mxu0
  %480 = vmatprep.mubr.bf16.mxu0 %v154
  %481 = vmatmul.mubr.bf16.gmra.mrb[0].mxu0 %v153
  %v482 = vpop.f32.mrb[0].mxu0
  %v483 = vadd.f32 %v418, %v482
  %v484 = vpop.f32.mrb[0].mxu0
  %v485 = vpop.f32.mrb[0].mxu0
  %v486 = vadd.f32 %v421, %v485
  %v487 = vpop.f32.mrb[0].mxu0
  %488 = vmatprep.mubr.bf16.mxu0 %v158
  %489 = vmatmul.mubr.bf16.gmra.mrb[0].mxu0 %v157
  %v490 = vpop.f32.mrb[0].mxu0
  %v491 = vadd.f32 %v426, %v490
  %v492 = vpop.f32.mrb[0].mxu0
  %v493 = vpop.f32.mrb[0].mxu0
  %v494 = vadd.f32 %v429, %v493
  %v495 = vpop.f32.mrb[0].mxu0
  %496 = vdwg.mxu0
  %v497 = vpack.c.bf16 %v470, %v467
  %v498 = vpack.c.bf16 %v478, %v475
  %v499 = vpack.c.bf16 %v486, %v483
  %v500 = vpack.c.bf16 %v494, %v491
  %v505 = vunpack.c.l.b16 %v497
  %v506 = vunpack.c.h.b16 %v497
  %v507 = vunpack.c.l.b16 %v498
  %v508 = vunpack.c.h.b16 %v498
  %v509 = vunpack.c.l.b16 %v499
  %v510 = vunpack.c.h.b16 %v499
  %v511 = vunpack.c.l.b16 %v500
  %v512 = vunpack.c.h.b16 %v500
  %v513 = vpack.c.b16 %v505, %v505
  %v514 = vpack.c.b16 %v506, %v506
  %v515 = vpack.c.b16 %v507, %v507
  %v516 = vpack.c.b16 %v508, %v508
  %v517 = vpack.c.b16 %v509, %v509
  %v518 = vpack.c.b16 %v510, %v510
  %v519 = vpack.c.b16 %v511, %v511
  %v520 = vpack.c.b16 %v512, %v512
  %529 = vst [vmem:[%s2] sm:$0xf] %v513
  %530 = vst [vmem:[%s2 + $0x4] sm:$0xf] %v514
  %531 = vst [vmem:[%s2 + $0x8] sm:$0xf] %v515
  %532 = vst [vmem:[%s2 + $0xc] sm:$0xf] %v516
  %533 = vst [vmem:[%s2 + $0x10] sm:$0xf] %v517
  %534 = vst [vmem:[%s2 + $0x14] sm:$0xf] %v518
  %535 = vst [vmem:[%s2 + $0x18] sm:$0xf] %v519
  %536 = vst [vmem:[%s2 + $0x1c] sm:$0xf] %v520
  %537 = vadd.xlane.f32.xlu0 %v467
  %v538 = vpop.xlane.xlu0 %537
  %539 = vadd.xlane.f32.xlu0 %v470
  %v540 = vpop.xlane.xlu0 %539
  %541 = vadd.xlane.f32.xlu0 %v475
  %v542 = vpop.xlane.xlu0 %541
  %543 = vadd.xlane.f32.xlu0 %v478
  %v544 = vpop.xlane.xlu0 %543
  %545 = vadd.xlane.f32.xlu0 %v483
  %v546 = vpop.xlane.xlu0 %545
  %547 = vadd.xlane.f32.xlu0 %v486
  %v548 = vpop.xlane.xlu0 %547
  %549 = vadd.xlane.f32.xlu0 %v491
  %v550 = vpop.xlane.xlu0 %549
  %551 = vadd.xlane.f32.xlu0 %v494
  %v552 = vpop.xlane.xlu0 %551
  %vm553 = vcmask 7168
  %554 = vst.msk [vmem:[%s3] sm:$0xff] %vm553, %v538
  %555 = vst.msk [vmem:[%s3 + $0x8] sm:$0xff] %vm553, %v540
  %556 = vst.msk [vmem:[%s3 + $0x10] sm:$0xff] %vm553, %v542
  %557 = vst.msk [vmem:[%s3 + $0x18] sm:$0xff] %vm553, %v544
  %558 = vst.msk [vmem:[%s3 + $0x20] sm:$0xff] %vm553, %v546
  %559 = vst.msk [vmem:[%s3 + $0x28] sm:$0xff] %vm553, %v548
  %560 = vst.msk [vmem:[%s3 + $0x30] sm:$0xff] %vm553, %v550
  %561 = vst.msk [vmem:[%s3 + $0x38] sm:$0xff] %vm553, %v552
  %v562 = vmul.f32 %v467, %v467
  %v563 = vmul.f32 %v470, %v470
  %v564 = vmul.f32 %v475, %v475
  %v565 = vmul.f32 %v478, %v478
  %v566 = vmul.f32 %v483, %v483
  %v567 = vmul.f32 %v486, %v486
  %v568 = vmul.f32 %v491, %v491
  %v569 = vmul.f32 %v494, %v494
  %570 = vadd.xlane.f32.xlu0 %v562
  %v571 = vpop.xlane.xlu0 %570
  %572 = vadd.xlane.f32.xlu0 %v563
  %v573 = vpop.xlane.xlu0 %572
  %574 = vadd.xlane.f32.xlu0 %v564
  %v575 = vpop.xlane.xlu0 %574
  %576 = vadd.xlane.f32.xlu0 %v565
  %v577 = vpop.xlane.xlu0 %576
  %578 = vadd.xlane.f32.xlu0 %v566
  %v579 = vpop.xlane.xlu0 %578
  %580 = vadd.xlane.f32.xlu0 %v567
  %v581 = vpop.xlane.xlu0 %580
  %582 = vadd.xlane.f32.xlu0 %v568
  %v583 = vpop.xlane.xlu0 %582
  %584 = vadd.xlane.f32.xlu0 %v569
  %v585 = vpop.xlane.xlu0 %584
  %586 = vst.msk [vmem:[%s4] sm:$0xff] %vm553, %v571
  %587 = vst.msk [vmem:[%s4 + $0x8] sm:$0xff] %vm553, %v573
  %588 = vst.msk [vmem:[%s4 + $0x10] sm:$0xff] %vm553, %v575
  %589 = vst.msk [vmem:[%s4 + $0x18] sm:$0xff] %vm553, %v577
  %590 = vst.msk [vmem:[%s4 + $0x20] sm:$0xff] %vm553, %v579
  %591 = vst.msk [vmem:[%s4 + $0x28] sm:$0xff] %vm553, %v581
  %592 = vst.msk [vmem:[%s4 + $0x30] sm:$0xff] %vm553, %v583
  %593 = vst.msk [vmem:[%s4 + $0x38] sm:$0xff] %vm553, %v585
  // Predicated region
  $region10: #{multiscale_discriminator_forward.43} parent=0 // pred_check
    _
  $region11: #{multiscale_discriminator_forward.43} parent=0 // pred_check_branch
    %595 = sbr.rel (0) target = $region13
  $region12: #{multiscale_discriminator_forward.43} parent=0 // pred_region
    _
  $region13: #{multiscale_discriminator_forward.43} parent=0 // pred_fallthru
    _
  // Predicated region
  $region14: #{multiscale_discriminator_forward.43} parent=0 // pred_check
    _
  $region15: #{multiscale_discriminator_forward.43} parent=0 // pred_check_branch
    %597 = sbr.rel (0) target = $region17
  $region16: #{multiscale_discriminator_forward.43} parent=0 // pred_region
    _
  $region17: #{multiscale_discriminator_forward.43} parent=0 // pred_fallthru
    _
  // Predicated region
  $region18: #{multiscale_discriminator_forward.43} parent=0 // pred_check
    _
  $region19: #{multiscale_discriminator_forward.43} parent=0 // pred_check_branch
    %599 = sbr.rel (0) target = $region21
  $region20: #{multiscale_discriminator_forward.43} parent=0 // pred_region
    _
  $region21: #{multiscale_discriminator_forward.43} parent=0 // pred_fallthru
    _
  // Predicated region
  $region22: #{multiscale_discriminator_forward.43} parent=0 // pred_check
    _
  $region23: #{multiscale_discriminator_forward.43} parent=0 // pred_check_branch
    %601 = sbr.rel (0) target = $region25
  $region24: #{multiscale_discriminator_forward.43} parent=0 // pred_region
    _
  $region25: #{multiscale_discriminator_forward.43} parent=0 // pred_fallthru
    _
  // Predicated region
  $region26: #{multiscale_discriminator_forward.43} parent=0 // pred_check
    _
  $region27: #{multiscale_discriminator_forward.43} parent=0 // pred_check_branch
    %603 = sbr.rel (0) target = $region29
  $region28: #{multiscale_discriminator_forward.43} parent=0 // pred_region
    _
  $region29: #{multiscale_discriminator_forward.43} parent=0 // pred_fallthru
    _
  // Predicated region
  $region30: #{multiscale_discriminator_forward.43} parent=0 // pred_check
    _
  $region31: #{multiscale_discriminator_forward.43} parent=0 // pred_check_branch
    %605 = sbr.rel (0) target = $region33
  $region32: #{multiscale_discriminator_forward.43} parent=0 // pred_region
    _
  $region33: #{multiscale_discriminator_forward.43} parent=0 // pred_fallthru
    _

// kernel: multiscale_discriminator_forward.46
$region0: #{multiscale_discriminator_forward.46}
  #allocation0 [shape = 'u32[]', space=smem, size = 0x4, offset = 0x4, fixed_abs, tag = 'smem constant byte address 0x4 - core index']
  #allocation1 [shape = 'u32[144,128]{1,0:T(1,128)}', space=vmem, size = 0x12000, scoped, tag = 'internal scratch']
  %s0 = inlined_call_operand.vmem [shape: bf16[128,128], index: 0, kind: input, shape index: {}]
  %s1 = inlined_call_operand.vmem [shape: f32[128,1], index: 1, kind: input, shape index: {}]
  %s2 = inlined_call_operand.vmem [shape: f32[128,1], index: 2, kind: input, shape index: {}]
  %s3 = inlined_call_operand.vmem [shape: bf16[128,128], index: 3, kind: output, shape index: {}]
  %s4 = sld [smem:[#allocation0]]
  $region22: #{multiscale_discriminator_forward.46} parent=0
    _
  %s6 = ssub.s32 1, %s4
  %s7 = scalar_select 0, %s6, %s4
  // Predicated region
  $region2: #{multiscale_discriminator_forward.46} parent=0 // pred_check
    _
  $region3: #{multiscale_discriminator_forward.46} parent=0 // pred_check_branch
    %9 = sbr.rel (0) target = $region5
  $region4: #{multiscale_discriminator_forward.46} parent=0 // pred_region
    _
  $region5: #{multiscale_discriminator_forward.46} parent=0 // pred_fallthru
    _
  // Predicated region
  $region6: #{multiscale_discriminator_forward.46} parent=0 // pred_check
    _
  $region7: #{multiscale_discriminator_forward.46} parent=0 // pred_check_branch
    %11 = sbr.rel (0) target = $region9
  $region8: #{multiscale_discriminator_forward.46} parent=0 // pred_region
    _
  $region9: #{multiscale_discriminator_forward.46} parent=0 // pred_fallthru
    _
  // Predicated region
  $region10: #{multiscale_discriminator_forward.46} parent=0 // pred_check
    _
  $region11: #{multiscale_discriminator_forward.46} parent=0 // pred_check_branch
    %13 = sbr.rel (0) target = $region13
  $region12: #{multiscale_discriminator_forward.46} parent=0 // pred_region
    _
  $region13: #{multiscale_discriminator_forward.46} parent=0 // pred_fallthru
    _
  %v14 = vld [vmem:[%s0] sm:$0xf]
  %v15 = vld [vmem:[%s0 + $0x4] sm:$0xf]
  %v16 = vld [vmem:[%s0 + $0x8] sm:$0xf]
  %v17 = vld [vmem:[%s0 + $0xc] sm:$0xf]
  %v18 = vld [vmem:[%s0 + $0x10] sm:$0xf]
  %v19 = vld [vmem:[%s0 + $0x14] sm:$0xf]
  %v20 = vld [vmem:[%s0 + $0x18] sm:$0xf]
  %v21 = vld [vmem:[%s0 + $0x1c] sm:$0xf]
  %v22 = vld [vmem:[%s0 + $0x20] sm:$0xf]
  %v23 = vld [vmem:[%s0 + $0x24] sm:$0xf]
  %v24 = vld [vmem:[%s0 + $0x28] sm:$0xf]
  %v25 = vld [vmem:[%s0 + $0x2c] sm:$0xf]
  %v26 = vld [vmem:[%s0 + $0x30] sm:$0xf]
  %v27 = vld [vmem:[%s0 + $0x34] sm:$0xf]
  %v28 = vld [vmem:[%s0 + $0x38] sm:$0xf]
  %v29 = vld [vmem:[%s0 + $0x3c] sm:$0xf]
  %v30 = vunpack.c.l.bf16 %v14
  %v31 = vunpack.c.l.bf16 %v15
  %v32 = vunpack.c.l.bf16 %v16
  %v33 = vunpack.c.l.bf16 %v17
  %v34 = vunpack.c.l.bf16 %v18
  %v35 = vunpack.c.l.bf16 %v19
  %v36 = vunpack.c.l.bf16 %v20
  %v37 = vunpack.c.l.bf16 %v21
  %v38 = vunpack.c.l.bf16 %v22
  %v39 = vunpack.c.l.bf16 %v23
  %v40 = vunpack.c.l.bf16 %v24
  %v41 = vunpack.c.l.bf16 %v25
  %v42 = vunpack.c.l.bf16 %v26
  %v43 = vunpack.c.l.bf16 %v27
  %v44 = vunpack.c.l.bf16 %v28
  %v45 = vunpack.c.l.bf16 %v29
  %v46 = vld [vmem:[%s1] sm:$0xff]
  %v47 = vld [vmem:[%s1 + $0x8] sm:$0xff]
  %v48 = vld [vmem:[%s1 + $0x10] sm:$0xff]
  %v49 = vld [vmem:[%s1 + $0x18] sm:$0xff]
  %v50 = vld [vmem:[%s1 + $0x20] sm:$0xff]
  %v51 = vld [vmem:[%s1 + $0x28] sm:$0xff]
  %v52 = vld [vmem:[%s1 + $0x30] sm:$0xff]
  %v53 = vld [vmem:[%s1 + $0x38] sm:$0xff]
  %v54 = vld [vmem:[%s1 + $0x40] sm:$0xff]
  %v55 = vld [vmem:[%s1 + $0x48] sm:$0xff]
  %v56 = vld [vmem:[%s1 + $0x50] sm:$0xff]
  %v57 = vld [vmem:[%s1 + $0x58] sm:$0xff]
  %v58 = vld [vmem:[%s1 + $0x60] sm:$0xff]
  %v59 = vld [vmem:[%s1 + $0x68] sm:$0xff]
  %v60 = vld [vmem:[%s1 + $0x70] sm:$0xff]
  %v61 = vld [vmem:[%s1 + $0x78] sm:$0xff]
  %63 = vset.pattern.permute.xlu0 0
  %64 = vperm.xlu0 %63, %v46
  %v65 = vpop.permute.xlu0 %64
  %68 = vset.pattern.permute.xlu0 0
  %69 = vperm.xlu0 %68, %v47
  %v70 = vpop.permute.xlu0 %69
  %73 = vset.pattern.permute.xlu0 0
  %74 = vperm.xlu0 %73, %v48
  %v75 = vpop.permute.xlu0 %74
  %78 = vset.pattern.permute.xlu0 0
  %79 = vperm.xlu0 %78, %v49
  %v80 = vpop.permute.xlu0 %79
  %83 = vset.pattern.permute.xlu0 0
  %84 = vperm.xlu0 %83, %v50
  %v85 = vpop.permute.xlu0 %84
  %88 = vset.pattern.permute.xlu0 0
  %89 = vperm.xlu0 %88, %v51
  %v90 = vpop.permute.xlu0 %89
  %93 = vset.pattern.permute.xlu0 0
  %94 = vperm.xlu0 %93, %v52
  %v95 = vpop.permute.xlu0 %94
  %98 = vset.pattern.permute.xlu0 0
  %99 = vperm.xlu0 %98, %v53
  %v100 = vpop.permute.xlu0 %99
  %103 = vset.pattern.permute.xlu0 0
  %104 = vperm.xlu0 %103, %v54
  %v105 = vpop.permute.xlu0 %104
  %108 = vset.pattern.permute.xlu0 0
  %109 = vperm.xlu0 %108, %v55
  %v110 = vpop.permute.xlu0 %109
  %113 = vset.pattern.permute.xlu0 0
  %114 = vperm.xlu0 %113, %v56
  %v115 = vpop.permute.xlu0 %114
  %118 = vset.pattern.permute.xlu0 0
  %119 = vperm.xlu0 %118, %v57
  %v120 = vpop.permute.xlu0 %119
  %123 = vset.pattern.permute.xlu0 0
  %124 = vperm.xlu0 %123, %v58
  %v125 = vpop.permute.xlu0 %124
  %128 = vset.pattern.permute.xlu0 0
  %129 = vperm.xlu0 %128, %v59
  %v130 = vpop.permute.xlu0 %129
  %133 = vset.pattern.permute.xlu0 0
  %134 = vperm.xlu0 %133, %v60
  %v135 = vpop.permute.xlu0 %134
  %138 = vset.pattern.permute.xlu0 0
  %139 = vperm.xlu0 %138, %v61
  %v140 = vpop.permute.xlu0 %139
  %v142 = vmul.f32 %v30, %v65
  %v143 = vmul.f32 %v31, %v70
  %v144 = vmul.f32 %v32, %v75
  %v145 = vmul.f32 %v33, %v80
  %v146 = vmul.f32 %v34, %v85
  %v147 = vmul.f32 %v35, %v90
  %v148 = vmul.f32 %v36, %v95
  %v149 = vmul.f32 %v37, %v100
  %v150 = vmul.f32 %v38, %v105
  %v151 = vmul.f32 %v39, %v110
  %v152 = vmul.f32 %v40, %v115
  %v153 = vmul.f32 %v41, %v120
  %v154 = vmul.f32 %v42, %v125
  %v155 = vmul.f32 %v43, %v130
  %v156 = vmul.f32 %v44, %v135
  %v157 = vmul.f32 %v45, %v140
  %v158 = vld [vmem:[%s2] sm:$0xff]
  %v159 = vld [vmem:[%s2 + $0x8] sm:$0xff]
  %v160 = vld [vmem:[%s2 + $0x10] sm:$0xff]
  %v161 = vld [vmem:[%s2 + $0x18] sm:$0xff]
  %v162 = vld [vmem:[%s2 + $0x20] sm:$0xff]
  %v163 = vld [vmem:[%s2 + $0x28] sm:$0xff]
  %v164 = vld [vmem:[%s2 + $0x30] sm:$0xff]
  %v165 = vld [vmem:[%s2 + $0x38] sm:$0xff]
  %v166 = vld [vmem:[%s2 + $0x40] sm:$0xff]
  %v167 = vld [vmem:[%s2 + $0x48] sm:$0xff]
  %v168 = vld [vmem:[%s2 + $0x50] sm:$0xff]
  %v169 = vld [vmem:[%s2 + $0x58] sm:$0xff]
  %v170 = vld [vmem:[%s2 + $0x60] sm:$0xff]
  %v171 = vld [vmem:[%s2 + $0x68] sm:$0xff]
  %v172 = vld [vmem:[%s2 + $0x70] sm:$0xff]
  %v173 = vld [vmem:[%s2 + $0x78] sm:$0xff]
  %175 = vset.pattern.permute.xlu0 0
  %176 = vperm.xlu0 %175, %v158
  %v177 = vpop.permute.xlu0 %176
  %180 = vset.pattern.permute.xlu0 0
  %181 = vperm.xlu0 %180, %v159
  %v182 = vpop.permute.xlu0 %181
  %185 = vset.pattern.permute.xlu0 0
  %186 = vperm.xlu0 %185, %v160
  %v187 = vpop.permute.xlu0 %186
  %190 = vset.pattern.permute.xlu0 0
  %191 = vperm.xlu0 %190, %v161
  %v192 = vpop.permute.xlu0 %191
  %195 = vset.pattern.permute.xlu0 0
  %196 = vperm.xlu0 %195, %v162
  %v197 = vpop.permute.xlu0 %196
  %200 = vset.pattern.permute.xlu0 0
  %201 = vperm.xlu0 %200, %v163
  %v202 = vpop.permute.xlu0 %201
  %205 = vset.pattern.permute.xlu0 0
  %206 = vperm.xlu0 %205, %v164
  %v207 = vpop.permute.xlu0 %206
  %210 = vset.pattern.permute.xlu0 0
  %211 = vperm.xlu0 %210, %v165
  %v212 = vpop.permute.xlu0 %211
  %215 = vset.pattern.permute.xlu0 0
  %216 = vperm.xlu0 %215, %v166
  %v217 = vpop.permute.xlu0 %216
  %220 = vset.pattern.permute.xlu0 0
  %221 = vperm.xlu0 %220, %v167
  %v222 = vpop.permute.xlu0 %221
  %225 = vset.pattern.permute.xlu0 0
  %226 = vperm.xlu0 %225, %v168
  %v227 = vpop.permute.xlu0 %226
  %230 = vset.pattern.permute.xlu0 0
  %231 = vperm.xlu0 %230, %v169
  %v232 = vpop.permute.xlu0 %231
  %235 = vset.pattern.permute.xlu0 0
  %236 = vperm.xlu0 %235, %v170
  %v237 = vpop.permute.xlu0 %236
  %240 = vset.pattern.permute.xlu0 0
  %241 = vperm.xlu0 %240, %v171
  %v242 = vpop.permute.xlu0 %241
  %245 = vset.pattern.permute.xlu0 0
  %246 = vperm.xlu0 %245, %v172
  %v247 = vpop.permute.xlu0 %246
  %250 = vset.pattern.permute.xlu0 0
  %251 = vperm.xlu0 %250, %v173
  %v252 = vpop.permute.xlu0 %251
  %v254 = vadd.f32 %v142, %v177
  %v255 = vadd.f32 %v143, %v182
  %v256 = vadd.f32 %v144, %v187
  %v257 = vadd.f32 %v145, %v192
  %v258 = vadd.f32 %v146, %v197
  %v259 = vadd.f32 %v147, %v202
  %v260 = vadd.f32 %v148, %v207
  %v261 = vadd.f32 %v149, %v212
  %v262 = vadd.f32 %v150, %v217
  %v263 = vadd.f32 %v151, %v222
  %v264 = vadd.f32 %v152, %v227
  %v265 = vadd.f32 %v153, %v232
  %v266 = vadd.f32 %v154, %v237
  %v267 = vadd.f32 %v155, %v242
  %v268 = vadd.f32 %v156, %v247
  %v269 = vadd.f32 %v157, %v252
  %v270 = vmul.f32 %v254, 0.2
  %v271 = vmul.f32 %v255, 0.2
  %v272 = vmul.f32 %v256, 0.2
  %v273 = vmul.f32 %v257, 0.2
  %v274 = vmul.f32 %v258, 0.2
  %v275 = vmul.f32 %v259, 0.2
  %v276 = vmul.f32 %v260, 0.2
  %v277 = vmul.f32 %v261, 0.2
  %v278 = vmul.f32 %v262, 0.2
  %v279 = vmul.f32 %v263, 0.2
  %v280 = vmul.f32 %v264, 0.2
  %v281 = vmul.f32 %v265, 0.2
  %v282 = vmul.f32 %v266, 0.2
  %v283 = vmul.f32 %v267, 0.2
  %v284 = vmul.f32 %v268, 0.2
  %v285 = vmul.f32 %v269, 0.2
  %v286 = vmax.f32 %v254, %v270
  %v287 = vmax.f32 %v255, %v271
  %v288 = vmax.f32 %v256, %v272
  %v289 = vmax.f32 %v257, %v273
  %v290 = vmax.f32 %v258, %v274
  %v291 = vmax.f32 %v259, %v275
  %v292 = vmax.f32 %v260, %v276
  %v293 = vmax.f32 %v261, %v277
  %v294 = vmax.f32 %v262, %v278
  %v295 = vmax.f32 %v263, %v279
  %v296 = vmax.f32 %v264, %v280
  %v297 = vmax.f32 %v265, %v281
  %v298 = vmax.f32 %v266, %v282
  %v299 = vmax.f32 %v267, %v283
  %v300 = vmax.f32 %v268, %v284
  %v301 = vmax.f32 %v269, %v285
  %v302 = vpack.c.bf16 %v287, %v286
  %v303 = vpack.c.bf16 %v289, %v288
  %v304 = vpack.c.bf16 %v291, %v290
  %v305 = vpack.c.bf16 %v293, %v292
  %v306 = vpack.c.bf16 %v295, %v294
  %v307 = vpack.c.bf16 %v297, %v296
  %v308 = vpack.c.bf16 %v299, %v298
  %v309 = vpack.c.bf16 %v301, %v300
  %v318 = vunpack.c.l.b16 %v302
  %v319 = vunpack.c.h.b16 %v302
  %v320 = vunpack.c.l.b16 %v303
  %v321 = vunpack.c.h.b16 %v303
  %v322 = vunpack.c.l.b16 %v304
  %v323 = vunpack.c.h.b16 %v304
  %v324 = vunpack.c.l.b16 %v305
  %v325 = vunpack.c.h.b16 %v305
  %v326 = vunpack.c.l.b16 %v306
  %v327 = vunpack.c.h.b16 %v306
  %v328 = vunpack.c.l.b16 %v307
  %v329 = vunpack.c.h.b16 %v307
  %v330 = vunpack.c.l.b16 %v308
  %v331 = vunpack.c.h.b16 %v308
  %v332 = vunpack.c.l.b16 %v309
  %v333 = vunpack.c.h.b16 %v309
  %v334 = vpack.c.b16 %v318, %v318
  %v335 = vpack.c.b16 %v319, %v319
  %v336 = vpack.c.b16 %v320, %v320
  %v337 = vpack.c.b16 %v321, %v321
  %v338 = vpack.c.b16 %v322, %v322
  %v339 = vpack.c.b16 %v323, %v323
  %v340 = vpack.c.b16 %v324, %v324
  %v341 = vpack.c.b16 %v325, %v325
  %v342 = vpack.c.b16 %v326, %v326
  %v343 = vpack.c.b16 %v327, %v327
  %v344 = vpack.c.b16 %v328, %v328
  %v345 = vpack.c.b16 %v329, %v329
  %v346 = vpack.c.b16 %v330, %v330
  %v347 = vpack.c.b16 %v331, %v331
  %v348 = vpack.c.b16 %v332, %v332
  %v349 = vpack.c.b16 %v333, %v333
  %366 = vst [vmem:[%s3] sm:$0xf] %v334
  %367 = vst [vmem:[%s3 + $0x4] sm:$0xf] %v335
  %368 = vst [vmem:[%s3 + $0x8] sm:$0xf] %v336
  %369 = vst [vmem:[%s3 + $0xc] sm:$0xf] %v337
  %370 = vst [vmem:[%s3 + $0x10] sm:$0xf] %v338
  %371 = vst [vmem:[%s3 + $0x14] sm:$0xf] %v339
  %372 = vst [vmem:[%s3 + $0x18] sm:$0xf] %v340
  %373 = vst [vmem:[%s3 + $0x1c] sm:$0xf] %v341
  %374 = vst [vmem:[%s3 + $0x20] sm:$0xf] %v342
  %375 = vst [vmem:[%s3 + $0x24] sm:$0xf] %v343
  %376 = vst [vmem:[%s3 + $0x28] sm:$0xf] %v344
  %377 = vst [vmem:[%s3 + $0x2c] sm:$0xf] %v345
  %378 = vst [vmem:[%s3 + $0x30] sm:$0xf] %v346
  %379 = vst [vmem:[%s3 + $0x34] sm:$0xf] %v347
  %380 = vst [vmem:[%s3 + $0x38] sm:$0xf] %v348
  %381 = vst [vmem:[%s3 + $0x3c] sm:$0xf] %v349
  // Predicated region
  $region14: #{multiscale_discriminator_forward.46} parent=0 // pred_check
    _
  $region15: #{multiscale_discriminator_forward.46} parent=0 // pred_check_branch
    %383 = sbr.rel (0) target = $region17
  $region16: #{multiscale_discriminator_forward.46} parent=0 // pred_region
    _
  $region17: #{multiscale_discriminator_forward.46} parent=0 // pred_fallthru
    _
  // Predicated region
  $region18: #{multiscale_discriminator_forward.46} parent=0 // pred_check
    _
  $region19: #{multiscale_discriminator_forward.46} parent=0 // pred_check_branch
    %385 = sbr.rel (0) target = $region21
  $region20: #{multiscale_discriminator_forward.46} parent=0 // pred_region
    _
  $region21: #{multiscale_discriminator_forward.46} parent=0 // pred_fallthru
    _

// kernel: multiscale_discriminator_forward.45
$region0: #{multiscale_discriminator_forward.45}
  #allocation0 [shape = 'u32[]', space=smem, size = 0x4, offset = 0x4, fixed_abs, tag = 'smem constant byte address 0x4 - core index']
  #allocation1 [shape = 'u32[144,128]{1,0:T(1,128)}', space=vmem, size = 0x12000, scoped, tag = 'internal scratch']
  %s0 = inlined_call_operand.vmem [shape: bf16[128,1024], index: 0, kind: input, shape index: {}]
  %s1 = inlined_call_operand.vmem [shape: bf16[1024,128], index: 1, kind: input, shape index: {}]
  %s2 = inlined_call_operand.vmem [shape: bf16[128,128], index: 2, kind: output, shape index: {0}]
  %s3 = inlined_call_operand.vmem [shape: f32[1,128,1], index: 3, kind: output, shape index: {1}]
  %s4 = inlined_call_operand.vmem [shape: f32[1,128,1], index: 4, kind: output, shape index: {2}]
  %5 = xla_tuple %s2, %s3, %s4
  %s6 = sld [smem:[#allocation0]]
  $region34: #{multiscale_discriminator_forward.45} parent=0
    _
  %s8 = ssub.s32 1, %s6
  %s9 = scalar_select 0, %s8, %s6
  // Predicated region
  $region2: #{multiscale_discriminator_forward.45} parent=0 // pred_check
    _
  $region3: #{multiscale_discriminator_forward.45} parent=0 // pred_check_branch
    %11 = sbr.rel (0) target = $region5
  $region4: #{multiscale_discriminator_forward.45} parent=0 // pred_region
    _
  $region5: #{multiscale_discriminator_forward.45} parent=0 // pred_fallthru
    _
  // Predicated region
  $region6: #{multiscale_discriminator_forward.45} parent=0 // pred_check
    _
  $region7: #{multiscale_discriminator_forward.45} parent=0 // pred_check_branch
    %13 = sbr.rel (0) target = $region9
  $region8: #{multiscale_discriminator_forward.45} parent=0 // pred_region
    _
  $region9: #{multiscale_discriminator_forward.45} parent=0 // pred_fallthru
    _
  %v15 = vld [vmem:[%s0] sm:$0xff]
  %v16 = vld [vmem:[%s0 + $0x8] sm:$0xff]
  %v17 = vld [vmem:[%s0 + $0x10] sm:$0xff]
  %v18 = vld [vmem:[%s0 + $0x18] sm:$0xff]
  %v19 = vld [vmem:[%s0 + $0x20] sm:$0xff]
  %v20 = vld [vmem:[%s0 + $0x28] sm:$0xff]
  %v21 = vld [vmem:[%s0 + $0x30] sm:$0xff]
  %v22 = vld [vmem:[%s0 + $0x38] sm:$0xff]
  %v23 = vld [vmem:[%s0 + $0x40] sm:$0xff]
  %v24 = vld [vmem:[%s0 + $0x48] sm:$0xff]
  %v25 = vld [vmem:[%s0 + $0x50] sm:$0xff]
  %v26 = vld [vmem:[%s0 + $0x58] sm:$0xff]
  %v27 = vld [vmem:[%s0 + $0x60] sm:$0xff]
  %v28 = vld [vmem:[%s0 + $0x68] sm:$0xff]
  %v29 = vld [vmem:[%s0 + $0x70] sm:$0xff]
  %v30 = vld [vmem:[%s0 + $0x78] sm:$0xff]
  %v31 = vld [vmem:[%s0 + $0x80] sm:$0xff]
  %v32 = vld [vmem:[%s0 + $0x88] sm:$0xff]
  %v33 = vld [vmem:[%s0 + $0x90] sm:$0xff]
  %v34 = vld [vmem:[%s0 + $0x98] sm:$0xff]
  %v35 = vld [vmem:[%s0 + $0xa0] sm:$0xff]
  %v36 = vld [vmem:[%s0 + $0xa8] sm:$0xff]
  %v37 = vld [vmem:[%s0 + $0xb0] sm:$0xff]
  %v38 = vld [vmem:[%s0 + $0xb8] sm:$0xff]
  %v39 = vld [vmem:[%s0 + $0xc0] sm:$0xff]
  %v40 = vld [vmem:[%s0 + $0xc8] sm:$0xff]
  %v41 = vld [vmem:[%s0 + $0xd0] sm:$0xff]
  %v42 = vld [vmem:[%s0 + $0xd8] sm:$0xff]
  %v43 = vld [vmem:[%s0 + $0xe0] sm:$0xff]
  %v44 = vld [vmem:[%s0 + $0xe8] sm:$0xff]
  %v45 = vld [vmem:[%s0 + $0xf0] sm:$0xff]
  %v46 = vld [vmem:[%s0 + $0xf8] sm:$0xff]
  %v47 = vld [vmem:[%s0 + $0x100] sm:$0xff]
  %v48 = vld [vmem:[%s0 + $0x108] sm:$0xff]
  %v49 = vld [vmem:[%s0 + $0x110] sm:$0xff]
  %v50 = vld [vmem:[%s0 + $0x118] sm:$0xff]
  %v51 = vld [vmem:[%s0 + $0x120] sm:$0xff]
  %v52 = vld [vmem:[%s0 + $0x128] sm:$0xff]
  %v53 = vld [vmem:[%s0 + $0x130] sm:$0xff]
  %v54 = vld [vmem:[%s0 + $0x138] sm:$0xff]
  %v55 = vld [vmem:[%s0 + $0x140] sm:$0xff]
  %v56 = vld [vmem:[%s0 + $0x148] sm:$0xff]
  %v57 = vld [vmem:[%s0 + $0x150] sm:$0xff]
  %v58 = vld [vmem:[%s0 + $0x158] sm:$0xff]
  %v59 = vld [vmem:[%s0 + $0x160] sm:$0xff]
  %v60 = vld [vmem:[%s0 + $0x168] sm:$0xff]
  %v61 = vld [vmem:[%s0 + $0x170] sm:$0xff]
  %v62 = vld [vmem:[%s0 + $0x178] sm:$0xff]
  %v63 = vld [vmem:[%s0 + $0x180] sm:$0xff]
  %v64 = vld [vmem:[%s0 + $0x188] sm:$0xff]
  %v65 = vld [vmem:[%s0 + $0x190] sm:$0xff]
  %v66 = vld [vmem:[%s0 + $0x198] sm:$0xff]
  %v67 = vld [vmem:[%s0 + $0x1a0] sm:$0xff]
  %v68 = vld [vmem:[%s0 + $0x1a8] sm:$0xff]
  %v69 = vld [vmem:[%s0 + $0x1b0] sm:$0xff]
  %v70 = vld [vmem:[%s0 + $0x1b8] sm:$0xff]
  %v71 = vld [vmem:[%s0 + $0x1c0] sm:$0xff]
  %v72 = vld [vmem:[%s0 + $0x1c8] sm:$0xff]
  %v73 = vld [vmem:[%s0 + $0x1d0] sm:$0xff]
  %v74 = vld [vmem:[%s0 + $0x1d8] sm:$0xff]
  %v75 = vld [vmem:[%s0 + $0x1e0] sm:$0xff]
  %v76 = vld [vmem:[%s0 + $0x1e8] sm:$0xff]
  %v77 = vld [vmem:[%s0 + $0x1f0] sm:$0xff]
  %v78 = vld [vmem:[%s0 + $0x1f8] sm:$0xff]
  %v79 = vld [vmem:[%s1] sm:$0xf]
  %v80 = vld [vmem:[%s1 + $0x4] sm:$0xf]
  %v81 = vld [vmem:[%s1 + $0x8] sm:$0xf]
  %v82 = vld [vmem:[%s1 + $0xc] sm:$0xf]
  %v83 = vld [vmem:[%s1 + $0x10] sm:$0xf]
  %v84 = vld [vmem:[%s1 + $0x14] sm:$0xf]
  %v85 = vld [vmem:[%s1 + $0x18] sm:$0xf]
  %v86 = vld [vmem:[%s1 + $0x1c] sm:$0xf]
  %v87 = vld [vmem:[%s1 + $0x20] sm:$0xf]
  %v88 = vld [vmem:[%s1 + $0x24] sm:$0xf]
  %v89 = vld [vmem:[%s1 + $0x28] sm:$0xf]
  %v90 = vld [vmem:[%s1 + $0x2c] sm:$0xf]
  %v91 = vld [vmem:[%s1 + $0x30] sm:$0xf]
  %v92 = vld [vmem:[%s1 + $0x34] sm:$0xf]
  %v93 = vld [vmem:[%s1 + $0x38] sm:$0xf]
  %v94 = vld [vmem:[%s1 + $0x3c] sm:$0xf]
  %v95 = vld [vmem:[%s1 + $0x40] sm:$0xf]
  %v96 = vld [vmem:[%s1 + $0x44] sm:$0xf]
  %v97 = vld [vmem:[%s1 + $0x48] sm:$0xf]
  %v98 = vld [vmem:[%s1 + $0x4c] sm:$0xf]
  %v99 = vld [vmem:[%s1 + $0x50] sm:$0xf]
  %v100 = vld [vmem:[%s1 + $0x54] sm:$0xf]
  %v101 = vld [vmem:[%s1 + $0x58] sm:$0xf]
  %v102 = vld [vmem:[%s1 + $0x5c] sm:$0xf]
  %v103 = vld [vmem:[%s1 + $0x60] sm:$0xf]
  %v104 = vld [vmem:[%s1 + $0x64] sm:$0xf]
  %v105 = vld [vmem:[%s1 + $0x68] sm:$0xf]
  %v106 = vld [vmem:[%s1 + $0x6c] sm:$0xf]
  %v107 = vld [vmem:[%s1 + $0x70] sm:$0xf]
  %v108 = vld [vmem:[%s1 + $0x74] sm:$0xf]
  %v109 = vld [vmem:[%s1 + $0x78] sm:$0xf]
  %v110 = vld [vmem:[%s1 + $0x7c] sm:$0xf]
  %v111 = vld [vmem:[%s1 + $0x80] sm:$0xf]
  %v112 = vld [vmem:[%s1 + $0x84] sm:$0xf]
  %v113 = vld [vmem:[%s1 + $0x88] sm:$0xf]
  %v114 = vld [vmem:[%s1 + $0x8c] sm:$0xf]
  %v115 = vld [vmem:[%s1 + $0x90] sm:$0xf]
  %v116 = vld [vmem:[%s1 + $0x94] sm:$0xf]
  %v117 = vld [vmem:[%s1 + $0x98] sm:$0xf]
  %v118 = vld [vmem:[%s1 + $0x9c] sm:$0xf]
  %v119 = vld [vmem:[%s1 + $0xa0] sm:$0xf]
  %v120 = vld [vmem:[%s1 + $0xa4] sm:$0xf]
  %v121 = vld [vmem:[%s1 + $0xa8] sm:$0xf]
  %v122 = vld [vmem:[%s1 + $0xac] sm:$0xf]
  %v123 = vld [vmem:[%s1 + $0xb0] sm:$0xf]
  %v124 = vld [vmem:[%s1 + $0xb4] sm:$0xf]
  %v125 = vld [vmem:[%s1 + $0xb8] sm:$0xf]
  %v126 = vld [vmem:[%s1 + $0xbc] sm:$0xf]
  %v127 = vld [vmem:[%s1 + $0xc0] sm:$0xf]
  %v128 = vld [vmem:[%s1 + $0xc4] sm:$0xf]
  %v129 = vld [vmem:[%s1 + $0xc8] sm:$0xf]
  %v130 = vld [vmem:[%s1 + $0xcc] sm:$0xf]
  %v131 = vld [vmem:[%s1 + $0xd0] sm:$0xf]
  %v132 = vld [vmem:[%s1 + $0xd4] sm:$0xf]
  %v133 = vld [vmem:[%s1 + $0xd8] sm:$0xf]
  %v134 = vld [vmem:[%s1 + $0xdc] sm:$0xf]
  %v135 = vld [vmem:[%s1 + $0xe0] sm:$0xf]
  %v136 = vld [vmem:[%s1 + $0xe4] sm:$0xf]
  %v137 = vld [vmem:[%s1 + $0xe8] sm:$0xf]
  %v138 = vld [vmem:[%s1 + $0xec] sm:$0xf]
  %v139 = vld [vmem:[%s1 + $0xf0] sm:$0xf]
  %v140 = vld [vmem:[%s1 + $0xf4] sm:$0xf]
  %v141 = vld [vmem:[%s1 + $0xf8] sm:$0xf]
  %v142 = vld [vmem:[%s1 + $0xfc] sm:$0xf]
  %v143 = vld [vmem:[%s1 + $0x100] sm:$0xf]
  %v144 = vld [vmem:[%s1 + $0x104] sm:$0xf]
  %v145 = vld [vmem:[%s1 + $0x108] sm:$0xf]
  %v146 = vld [vmem:[%s1 + $0x10c] sm:$0xf]
  %v147 = vld [vmem:[%s1 + $0x110] sm:$0xf]
  %v148 = vld [vmem:[%s1 + $0x114] sm:$0xf]
  %v149 = vld [vmem:[%s1 + $0x118] sm:$0xf]
  %v150 = vld [vmem:[%s1 + $0x11c] sm:$0xf]
  %v151 = vld [vmem:[%s1 + $0x120] sm:$0xf]
  %v152 = vld [vmem:[%s1 + $0x124] sm:$0xf]
  %v153 = vld [vmem:[%s1 + $0x128] sm:$0xf]
  %v154 = vld [vmem:[%s1 + $0x12c] sm:$0xf]
  %v155 = vld [vmem:[%s1 + $0x130] sm:$0xf]
  %v156 = vld [vmem:[%s1 + $0x134] sm:$0xf]
  %v157 = vld [vmem:[%s1 + $0x138] sm:$0xf]
  %v158 = vld [vmem:[%s1 + $0x13c] sm:$0xf]
  %v159 = vld [vmem:[%s1 + $0x140] sm:$0xf]
  %v160 = vld [vmem:[%s1 + $0x144] sm:$0xf]
  %v161 = vld [vmem:[%s1 + $0x148] sm:$0xf]
  %v162 = vld [vmem:[%s1 + $0x14c] sm:$0xf]
  %v163 = vld [vmem:[%s1 + $0x150] sm:$0xf]
  %v164 = vld [vmem:[%s1 + $0x154] sm:$0xf]
  %v165 = vld [vmem:[%s1 + $0x158] sm:$0xf]
  %v166 = vld [vmem:[%s1 + $0x15c] sm:$0xf]
  %v167 = vld [vmem:[%s1 + $0x160] sm:$0xf]
  %v168 = vld [vmem:[%s1 + $0x164] sm:$0xf]
  %v169 = vld [vmem:[%s1 + $0x168] sm:$0xf]
  %v170 = vld [vmem:[%s1 + $0x16c] sm:$0xf]
  %v171 = vld [vmem:[%s1 + $0x170] sm:$0xf]
  %v172 = vld [vmem:[%s1 + $0x174] sm:$0xf]
  %v173 = vld [vmem:[%s1 + $0x178] sm:$0xf]
  %v174 = vld [vmem:[%s1 + $0x17c] sm:$0xf]
  %v175 = vld [vmem:[%s1 + $0x180] sm:$0xf]
  %v176 = vld [vmem:[%s1 + $0x184] sm:$0xf]
  %v177 = vld [vmem:[%s1 + $0x188] sm:$0xf]
  %v178 = vld [vmem:[%s1 + $0x18c] sm:$0xf]
  %v179 = vld [vmem:[%s1 + $0x190] sm:$0xf]
  %v180 = vld [vmem:[%s1 + $0x194] sm:$0xf]
  %v181 = vld [vmem:[%s1 + $0x198] sm:$0xf]
  %v182 = vld [vmem:[%s1 + $0x19c] sm:$0xf]
  %v183 = vld [vmem:[%s1 + $0x1a0] sm:$0xf]
  %v184 = vld [vmem:[%s1 + $0x1a4] sm:$0xf]
  %v185 = vld [vmem:[%s1 + $0x1a8] sm:$0xf]
  %v186 = vld [vmem:[%s1 + $0x1ac] sm:$0xf]
  %v187 = vld [vmem:[%s1 + $0x1b0] sm:$0xf]
  %v188 = vld [vmem:[%s1 + $0x1b4] sm:$0xf]
  %v189 = vld [vmem:[%s1 + $0x1b8] sm:$0xf]
  %v190 = vld [vmem:[%s1 + $0x1bc] sm:$0xf]
  %v191 = vld [vmem:[%s1 + $0x1c0] sm:$0xf]
  %v192 = vld [vmem:[%s1 + $0x1c4] sm:$0xf]
  %v193 = vld [vmem:[%s1 + $0x1c8] sm:$0xf]
  %v194 = vld [vmem:[%s1 + $0x1cc] sm:$0xf]
  %v195 = vld [vmem:[%s1 + $0x1d0] sm:$0xf]
  %v196 = vld [vmem:[%s1 + $0x1d4] sm:$0xf]
  %v197 = vld [vmem:[%s1 + $0x1d8] sm:$0xf]
  %v198 = vld [vmem:[%s1 + $0x1dc] sm:$0xf]
  %v199 = vld [vmem:[%s1 + $0x1e0] sm:$0xf]
  %v200 = vld [vmem:[%s1 + $0x1e4] sm:$0xf]
  %v201 = vld [vmem:[%s1 + $0x1e8] sm:$0xf]
  %v202 = vld [vmem:[%s1 + $0x1ec] sm:$0xf]
  %v203 = vld [vmem:[%s1 + $0x1f0] sm:$0xf]
  %v204 = vld [vmem:[%s1 + $0x1f4] sm:$0xf]
  %v205 = vld [vmem:[%s1 + $0x1f8] sm:$0xf]
  %v206 = vld [vmem:[%s1 + $0x1fc] sm:$0xf]
  %v271 = vunpack.c.l.b16 %v15
  %v272 = vunpack.c.h.b16 %v15
  %v273 = vunpack.c.l.b16 %v16
  %v274 = vunpack.c.h.b16 %v16
  %v275 = vunpack.c.l.b16 %v17
  %v276 = vunpack.c.h.b16 %v17
  %v277 = vunpack.c.l.b16 %v18
  %v278 = vunpack.c.h.b16 %v18
  %v279 = vunpack.c.l.b16 %v19
  %v280 = vunpack.c.h.b16 %v19
  %v281 = vunpack.c.l.b16 %v20
  %v282 = vunpack.c.h.b16 %v20
  %v283 = vunpack.c.l.b16 %v21
  %v284 = vunpack.c.h.b16 %v21
  %v285 = vunpack.c.l.b16 %v22
  %v286 = vunpack.c.h.b16 %v22
  %v287 = vunpack.c.l.b16 %v23
  %v288 = vunpack.c.h.b16 %v23
  %v289 = vunpack.c.l.b16 %v24
  %v290 = vunpack.c.h.b16 %v24
  %v291 = vunpack.c.l.b16 %v25
  %v292 = vunpack.c.h.b16 %v25
  %v293 = vunpack.c.l.b16 %v26
  %v294 = vunpack.c.h.b16 %v26
  %v295 = vunpack.c.l.b16 %v27
  %v296 = vunpack.c.h.b16 %v27
  %v297 = vunpack.c.l.b16 %v28
  %v298 = vunpack.c.h.b16 %v28
  %v299 = vunpack.c.l.b16 %v29
  %v300 = vunpack.c.h.b16 %v29
  %v301 = vunpack.c.l.b16 %v30
  %v302 = vunpack.c.h.b16 %v30
  %v303 = vunpack.c.l.b16 %v31
  %v304 = vunpack.c.h.b16 %v31
  %v305 = vunpack.c.l.b16 %v32
  %v306 = vunpack.c.h.b16 %v32
  %v307 = vunpack.c.l.b16 %v33
  %v308 = vunpack.c.h.b16 %v33
  %v309 = vunpack.c.l.b16 %v34
  %v310 = vunpack.c.h.b16 %v34
  %v311 = vunpack.c.l.b16 %v35
  %v312 = vunpack.c.h.b16 %v35
  %v313 = vunpack.c.l.b16 %v36
  %v314 = vunpack.c.h.b16 %v36
  %v315 = vunpack.c.l.b16 %v37
  %v316 = vunpack.c.h.b16 %v37
  %v317 = vunpack.c.l.b16 %v38
  %v318 = vunpack.c.h.b16 %v38
  %v319 = vunpack.c.l.b16 %v39
  %v320 = vunpack.c.h.b16 %v39
  %v321 = vunpack.c.l.b16 %v40
  %v322 = vunpack.c.h.b16 %v40
  %v323 = vunpack.c.l.b16 %v41
  %v324 = vunpack.c.h.b16 %v41
  %v325 = vunpack.c.l.b16 %v42
  %v326 = vunpack.c.h.b16 %v42
  %v327 = vunpack.c.l.b16 %v43
  %v328 = vunpack.c.h.b16 %v43
  %v329 = vunpack.c.l.b16 %v44
  %v330 = vunpack.c.h.b16 %v44
  %v331 = vunpack.c.l.b16 %v45
  %v332 = vunpack.c.h.b16 %v45
  %v333 = vunpack.c.l.b16 %v46
  %v334 = vunpack.c.h.b16 %v46
  %v335 = vunpack.c.l.b16 %v47
  %v336 = vunpack.c.h.b16 %v47
  %v337 = vunpack.c.l.b16 %v48
  %v338 = vunpack.c.h.b16 %v48
  %v339 = vunpack.c.l.b16 %v49
  %v340 = vunpack.c.h.b16 %v49
  %v341 = vunpack.c.l.b16 %v50
  %v342 = vunpack.c.h.b16 %v50
  %v343 = vunpack.c.l.b16 %v51
  %v344 = vunpack.c.h.b16 %v51
  %v345 = vunpack.c.l.b16 %v52
  %v346 = vunpack.c.h.b16 %v52
  %v347 = vunpack.c.l.b16 %v53
  %v348 = vunpack.c.h.b16 %v53
  %v349 = vunpack.c.l.b16 %v54
  %v350 = vunpack.c.h.b16 %v54
  %v351 = vunpack.c.l.b16 %v55
  %v352 = vunpack.c.h.b16 %v55
  %v353 = vunpack.c.l.b16 %v56
  %v354 = vunpack.c.h.b16 %v56
  %v355 = vunpack.c.l.b16 %v57
  %v356 = vunpack.c.h.b16 %v57
  %v357 = vunpack.c.l.b16 %v58
  %v358 = vunpack.c.h.b16 %v58
  %v359 = vunpack.c.l.b16 %v59
  %v360 = vunpack.c.h.b16 %v59
  %v361 = vunpack.c.l.b16 %v60
  %v362 = vunpack.c.h.b16 %v60
  %v363 = vunpack.c.l.b16 %v61
  %v364 = vunpack.c.h.b16 %v61
  %v365 = vunpack.c.l.b16 %v62
  %v366 = vunpack.c.h.b16 %v62
  %v367 = vunpack.c.l.b16 %v63
  %v368 = vunpack.c.h.b16 %v63
  %v369 = vunpack.c.l.b16 %v64
  %v370 = vunpack.c.h.b16 %v64
  %v371 = vunpack.c.l.b16 %v65
  %v372 = vunpack.c.h.b16 %v65
  %v373 = vunpack.c.l.b16 %v66
  %v374 = vunpack.c.h.b16 %v66
  %v375 = vunpack.c.l.b16 %v67
  %v376 = vunpack.c.h.b16 %v67
  %v377 = vunpack.c.l.b16 %v68
  %v378 = vunpack.c.h.b16 %v68
  %v379 = vunpack.c.l.b16 %v69
  %v380 = vunpack.c.h.b16 %v69
  %v381 = vunpack.c.l.b16 %v70
  %v382 = vunpack.c.h.b16 %v70
  %v383 = vunpack.c.l.b16 %v71
  %v384 = vunpack.c.h.b16 %v71
  %v385 = vunpack.c.l.b16 %v72
  %v386 = vunpack.c.h.b16 %v72
  %v387 = vunpack.c.l.b16 %v73
  %v388 = vunpack.c.h.b16 %v73
  %v389 = vunpack.c.l.b16 %v74
  %v390 = vunpack.c.h.b16 %v74
  %v391 = vunpack.c.l.b16 %v75
  %v392 = vunpack.c.h.b16 %v75
  %v393 = vunpack.c.l.b16 %v76
  %v394 = vunpack.c.h.b16 %v76
  %v395 = vunpack.c.l.b16 %v77
  %v396 = vunpack.c.h.b16 %v77
  %v397 = vunpack.c.l.b16 %v78
  %v398 = vunpack.c.h.b16 %v78
  %v399 = vpack.c.b16 %v279, %v271
  %v400 = vpack.c.b16 %v280, %v272
  %v401 = vpack.c.b16 %v281, %v273
  %v402 = vpack.c.b16 %v282, %v274
  %v403 = vpack.c.b16 %v283, %v275
  %v404 = vpack.c.b16 %v284, %v276
  %v405 = vpack.c.b16 %v285, %v277
  %v406 = vpack.c.b16 %v286, %v278
  %v407 = vpack.c.b16 %v295, %v287
  %v408 = vpack.c.b16 %v296, %v288
  %v409 = vpack.c.b16 %v297, %v289
  %v410 = vpack.c.b16 %v298, %v290
  %v411 = vpack.c.b16 %v299, %v291
  %v412 = vpack.c.b16 %v300, %v292
  %v413 = vpack.c.b16 %v301, %v293
  %v414 = vpack.c.b16 %v302, %v294
  %v415 = vpack.c.b16 %v311, %v303
  %v416 = vpack.c.b16 %v312, %v304
  %v417 = vpack.c.b16 %v313, %v305
  %v418 = vpack.c.b16 %v314, %v306
  %v419 = vpack.c.b16 %v315, %v307
  %v420 = vpack.c.b16 %v316, %v308
  %v421 = vpack.c.b16 %v317, %v309
  %v422 = vpack.c.b16 %v318, %v310
  %v423 = vpack.c.b16 %v327, %v319
  %v424 = vpack.c.b16 %v328, %v320
  %v425 = vpack.c.b16 %v329, %v321
  %v426 = vpack.c.b16 %v330, %v322
  %v427 = vpack.c.b16 %v331, %v323
  %v428 = vpack.c.b16 %v332, %v324
  %v429 = vpack.c.b16 %v333, %v325
  %v430 = vpack.c.b16 %v334, %v326
  %v431 = vpack.c.b16 %v343, %v335
  %v432 = vpack.c.b16 %v344, %v336
  %v433 = vpack.c.b16 %v345, %v337
  %v434 = vpack.c.b16 %v346, %v338
  %v435 = vpack.c.b16 %v347, %v339
  %v436 = vpack.c.b16 %v348, %v340
  %v437 = vpack.c.b16 %v349, %v341
  %v438 = vpack.c.b16 %v350, %v342
  %v439 = vpack.c.b16 %v359, %v351
  %v440 = vpack.c.b16 %v360, %v352
  %v441 = vpack.c.b16 %v361, %v353
  %v442 = vpack.c.b16 %v362, %v354
  %v443 = vpack.c.b16 %v363, %v355
  %v444 = vpack.c.b16 %v364, %v356
  %v445 = vpack.c.b16 %v365, %v357
  %v446 = vpack.c.b16 %v366, %v358
  %v447 = vpack.c.b16 %v375, %v367
  %v448 = vpack.c.b16 %v376, %v368
  %v449 = vpack.c.b16 %v377, %v369
  %v450 = vpack.c.b16 %v378, %v370
  %v451 = vpack.c.b16 %v379, %v371
  %v452 = vpack.c.b16 %v380, %v372
  %v453 = vpack.c.b16 %v381, %v373
  %v454 = vpack.c.b16 %v382, %v374
  %v455 = vpack.c.b16 %v391, %v383
  %v456 = vpack.c.b16 %v392, %v384
  %v457 = vpack.c.b16 %v393, %v385
  %v458 = vpack.c.b16 %v394, %v386
  %v459 = vpack.c.b16 %v395, %v387
  %v460 = vpack.c.b16 %v396, %v388
  %v461 = vpack.c.b16 %v397, %v389
  %v462 = vpack.c.b16 %v398, %v390
  %v655 = vunpack.c.l.b16 %v79
  %v656 = vunpack.c.l.b16 %v80
  %v657 = vunpack.c.l.b16 %v81
  %v658 = vunpack.c.l.b16 %v82
  %v659 = vunpack.c.l.b16 %v83
  %v660 = vunpack.c.l.b16 %v84
  %v661 = vunpack.c.l.b16 %v85
  %v662 = vunpack.c.l.b16 %v86
  %v663 = vunpack.c.l.b16 %v87
  %v664 = vunpack.c.l.b16 %v88
  %v665 = vunpack.c.l.b16 %v89
  %v666 = vunpack.c.l.b16 %v90
  %v667 = vunpack.c.l.b16 %v91
  %v668 = vunpack.c.l.b16 %v92
  %v669 = vunpack.c.l.b16 %v93
  %v670 = vunpack.c.l.b16 %v94
  %v671 = vunpack.c.l.b16 %v95
  %v672 = vunpack.c.l.b16 %v96
  %v673 = vunpack.c.l.b16 %v97
  %v674 = vunpack.c.l.b16 %v98
  %v675 = vunpack.c.l.b16 %v99
  %v676 = vunpack.c.l.b16 %v100
  %v677 = vunpack.c.l.b16 %v101
  %v678 = vunpack.c.l.b16 %v102
  %v679 = vunpack.c.l.b16 %v103
  %v680 = vunpack.c.l.b16 %v104
  %v681 = vunpack.c.l.b16 %v105
  %v682 = vunpack.c.l.b16 %v106
  %v683 = vunpack.c.l.b16 %v107
  %v684 = vunpack.c.l.b16 %v108
  %v685 = vunpack.c.l.b16 %v109
  %v686 = vunpack.c.l.b16 %v110
  %v687 = vunpack.c.l.b16 %v111
  %v688 = vunpack.c.l.b16 %v112
  %v689 = vunpack.c.l.b16 %v113
  %v690 = vunpack.c.l.b16 %v114
  %v691 = vunpack.c.l.b16 %v115
  %v692 = vunpack.c.l.b16 %v116
  %v693 = vunpack.c.l.b16 %v117
  %v694 = vunpack.c.l.b16 %v118
  %v695 = vunpack.c.l.b16 %v119
  %v696 = vunpack.c.l.b16 %v120
  %v697 = vunpack.c.l.b16 %v121
  %v698 = vunpack.c.l.b16 %v122
  %v699 = vunpack.c.l.b16 %v123
  %v700 = vunpack.c.l.b16 %v124
  %v701 = vunpack.c.l.b16 %v125
  %v702 = vunpack.c.l.b16 %v126
  %v703 = vunpack.c.l.b16 %v127
  %v704 = vunpack.c.l.b16 %v128
  %v705 = vunpack.c.l.b16 %v129
  %v706 = vunpack.c.l.b16 %v130
  %v707 = vunpack.c.l.b16 %v131
  %v708 = vunpack.c.l.b16 %v132
  %v709 = vunpack.c.l.b16 %v133
  %v710 = vunpack.c.l.b16 %v134
  %v711 = vunpack.c.l.b16 %v135
  %v712 = vunpack.c.l.b16 %v136
  %v713 = vunpack.c.l.b16 %v137
  %v714 = vunpack.c.l.b16 %v138
  %v715 = vunpack.c.l.b16 %v139
  %v716 = vunpack.c.l.b16 %v140
  %v717 = vunpack.c.l.b16 %v141
  %v718 = vunpack.c.l.b16 %v142
  %v719 = vunpack.c.l.b16 %v143
  %v720 = vunpack.c.l.b16 %v144
  %v721 = vunpack.c.l.b16 %v145
  %v722 = vunpack.c.l.b16 %v146
  %v723 = vunpack.c.l.b16 %v147
  %v724 = vunpack.c.l.b16 %v148
  %v725 = vunpack.c.l.b16 %v149
  %v726 = vunpack.c.l.b16 %v150
  %v727 = vunpack.c.l.b16 %v151
  %v728 = vunpack.c.l.b16 %v152
  %v729 = vunpack.c.l.b16 %v153
  %v730 = vunpack.c.l.b16 %v154
  %v731 = vunpack.c.l.b16 %v155
  %v732 = vunpack.c.l.b16 %v156
  %v733 = vunpack.c.l.b16 %v157
  %v734 = vunpack.c.l.b16 %v158
  %v735 = vunpack.c.l.b16 %v159
  %v736 = vunpack.c.l.b16 %v160
  %v737 = vunpack.c.l.b16 %v161
  %v738 = vunpack.c.l.b16 %v162
  %v739 = vunpack.c.l.b16 %v163
  %v740 = vunpack.c.l.b16 %v164
  %v741 = vunpack.c.l.b16 %v165
  %v742 = vunpack.c.l.b16 %v166
  %v743 = vunpack.c.l.b16 %v167
  %v744 = vunpack.c.l.b16 %v168
  %v745 = vunpack.c.l.b16 %v169
  %v746 = vunpack.c.l.b16 %v170
  %v747 = vunpack.c.l.b16 %v171
  %v748 = vunpack.c.l.b16 %v172
  %v749 = vunpack.c.l.b16 %v173
  %v750 = vunpack.c.l.b16 %v174
  %v751 = vunpack.c.l.b16 %v175
  %v752 = vunpack.c.l.b16 %v176
  %v753 = vunpack.c.l.b16 %v177
  %v754 = vunpack.c.l.b16 %v178
  %v755 = vunpack.c.l.b16 %v179
  %v756 = vunpack.c.l.b16 %v180
  %v757 = vunpack.c.l.b16 %v181
  %v758 = vunpack.c.l.b16 %v182
  %v759 = vunpack.c.l.b16 %v183
  %v760 = vunpack.c.l.b16 %v184
  %v761 = vunpack.c.l.b16 %v185
  %v762 = vunpack.c.l.b16 %v186
  %v763 = vunpack.c.l.b16 %v187
  %v764 = vunpack.c.l.b16 %v188
  %v765 = vunpack.c.l.b16 %v189
  %v766 = vunpack.c.l.b16 %v190
  %v767 = vunpack.c.l.b16 %v191
  %v768 = vunpack.c.l.b16 %v192
  %v769 = vunpack.c.l.b16 %v193
  %v770 = vunpack.c.l.b16 %v194
  %v771 = vunpack.c.l.b16 %v195
  %v772 = vunpack.c.l.b16 %v196
  %v773 = vunpack.c.l.b16 %v197
  %v774 = vunpack.c.l.b16 %v198
  %v775 = vunpack.c.l.b16 %v199
  %v776 = vunpack.c.l.b16 %v200
  %v777 = vunpack.c.l.b16 %v201
  %v778 = vunpack.c.l.b16 %v202
  %v779 = vunpack.c.l.b16 %v203
  %v780 = vunpack.c.l.b16 %v204
  %v781 = vunpack.c.l.b16 %v205
  %v782 = vunpack.c.l.b16 %v206
  %v783 = vpack.c.b16 %v656, %v655
  %v784 = vpack.c.b16 %v658, %v657
  %v785 = vpack.c.b16 %v660, %v659
  %v786 = vpack.c.b16 %v662, %v661
  %v787 = vpack.c.b16 %v664, %v663
  %v788 = vpack.c.b16 %v666, %v665
  %v789 = vpack.c.b16 %v668, %v667
  %v790 = vpack.c.b16 %v670, %v669
  %v791 = vpack.c.b16 %v672, %v671
  %v792 = vpack.c.b16 %v674, %v673
  %v793 = vpack.c.b16 %v676, %v675
  %v794 = vpack.c.b16 %v678, %v677
  %v795 = vpack.c.b16 %v680, %v679
  %v796 = vpack.c.b16 %v682, %v681
  %v797 = vpack.c.b16 %v684, %v683
  %v798 = vpack.c.b16 %v686, %v685
  %v799 = vpack.c.b16 %v688, %v687
  %v800 = vpack.c.b16 %v690, %v689
  %v801 = vpack.c.b16 %v692, %v691
  %v802 = vpack.c.b16 %v694, %v693
  %v803 = vpack.c.b16 %v696, %v695
  %v804 = vpack.c.b16 %v698, %v697
  %v805 = vpack.c.b16 %v700, %v699
  %v806 = vpack.c.b16 %v702, %v701
  %v807 = vpack.c.b16 %v704, %v703
  %v808 = vpack.c.b16 %v706, %v705
  %v809 = vpack.c.b16 %v708, %v707
  %v810 = vpack.c.b16 %v710, %v709
  %v811 = vpack.c.b16 %v712, %v711
  %v812 = vpack.c.b16 %v714, %v713
  %v813 = vpack.c.b16 %v716, %v715
  %v814 = vpack.c.b16 %v718, %v717
  %v815 = vpack.c.b16 %v720, %v719
  %v816 = vpack.c.b16 %v722, %v721
  %v817 = vpack.c.b16 %v724, %v723
  %v818 = vpack.c.b16 %v726, %v725
  %v819 = vpack.c.b16 %v728, %v727
  %v820 = vpack.c.b16 %v730, %v729
  %v821 = vpack.c.b16 %v732, %v731
  %v822 = vpack.c.b16 %v734, %v733
  %v823 = vpack.c.b16 %v736, %v735
  %v824 = vpack.c.b16 %v738, %v737
  %v825 = vpack.c.b16 %v740, %v739
  %v826 = vpack.c.b16 %v742, %v741
  %v827 = vpack.c.b16 %v744, %v743
  %v828 = vpack.c.b16 %v746, %v745
  %v829 = vpack.c.b16 %v748, %v747
  %v830 = vpack.c.b16 %v750, %v749
  %v831 = vpack.c.b16 %v752, %v751
  %v832 = vpack.c.b16 %v754, %v753
  %v833 = vpack.c.b16 %v756, %v755
  %v834 = vpack.c.b16 %v758, %v757
  %v835 = vpack.c.b16 %v760, %v759
  %v836 = vpack.c.b16 %v762, %v761
  %v837 = vpack.c.b16 %v764, %v763
  %v838 = vpack.c.b16 %v766, %v765
  %v839 = vpack.c.b16 %v768, %v767
  %v840 = vpack.c.b16 %v770, %v769
  %v841 = vpack.c.b16 %v772, %v771
  %v842 = vpack.c.b16 %v774, %v773
  %v843 = vpack.c.b16 %v776, %v775
  %v844 = vpack.c.b16 %v778, %v777
  %v845 = vpack.c.b16 %v780, %v779
  %v846 = vpack.c.b16 %v782, %v781
  %911 = vmatprep.subr.bf16.mxu0 0
  %912 = vmatpush1.bf16.msra.mxu0 %v783
  %913 = vmatprep.subr.bf16.mxu0 0
  %914 = vmatpush1.bf16.msra.mxu0 %v784
  %915 = vmatprep.subr.bf16.mxu0 0
  %916 = vmatpush1.bf16.msra.mxu0 %v785
  %917 = vmatprep.subr.bf16.mxu0 0
  %918 = vmatpush1.bf16.msra.mxu0 %v786
  %919 = vmatprep.subr.bf16.mxu0 0
  %920 = vmatpush1.bf16.msra.mxu0 %v787
  %921 = vmatprep.subr.bf16.mxu0 0
  %922 = vmatpush1.bf16.msra.mxu0 %v788
  %923 = vmatprep.subr.bf16.mxu0 0
  %924 = vmatpush1.bf16.msra.mxu0 %v789
  %925 = vmatprep.subr.bf16.mxu0 0
  %926 = vmatpush1.bf16.msra.mxu0 %v790
  %927 = vmatprep.subr.bf16.mxu0 0
  %928 = vmatpush1.bf16.msra.mxu0 %v791
  %929 = vmatprep.subr.bf16.mxu0 0
  %930 = vmatpush1.bf16.msra.mxu0 %v792
  %931 = vmatprep.subr.bf16.mxu0 0
  %932 = vmatpush1.bf16.msra.mxu0 %v793
  %933 = vmatprep.subr.bf16.mxu0 0
  %934 = vmatpush1.bf16.msra.mxu0 %v794
  %935 = vmatprep.subr.bf16.mxu0 0
  %936 = vmatpush1.bf16.msra.mxu0 %v795
  %937 = vmatprep.subr.bf16.mxu0 0
  %938 = vmatpush1.bf16.msra.mxu0 %v796
  %939 = vmatprep.subr.bf16.mxu0 0
  %940 = vmatpush1.bf16.msra.mxu0 %v797
  %941 = vmatprep.subr.bf16.mxu0 0
  %942 = vmatpush1.bf16.msra.mxu0 %v798
  %943 = vmatprep.mubr.bf16.mxu0 %v400
  %944 = vmatmul.mubr.bf16.gmra.mrb[0].mxu0 %v399
  %v945 = vpop.f32.mrb[0].mxu0
  %v946 = vadd.f32 0.0, %v945
  %v947 = vpop.f32.mrb[0].mxu0
  %v948 = vpop.f32.mrb[0].mxu0
  %v949 = vadd.f32 0.0, %v948
  %v950 = vpop.f32.mrb[0].mxu0
  %951 = vmatprep.mubr.bf16.mxu0 %v408
  %952 = vmatmul.mubr.bf16.gmra.mrb[0].mxu0 %v407
  %v953 = vpop.f32.mrb[0].mxu0
  %v954 = vadd.f32 0.0, %v953
  %v955 = vpop.f32.mrb[0].mxu0
  %v956 = vpop.f32.mrb[0].mxu0
  %v957 = vadd.f32 0.0, %v956
  %v958 = vpop.f32.mrb[0].mxu0
  %959 = vmatprep.mubr.bf16.mxu0 %v416
  %960 = vmatmul.mubr.bf16.gmra.mrb[0].mxu0 %v415
  %v961 = vpop.f32.mrb[0].mxu0
  %v962 = vadd.f32 0.0, %v961
  %v963 = vpop.f32.mrb[0].mxu0
  %v964 = vpop.f32.mrb[0].mxu0
  %v965 = vadd.f32 0.0, %v964
  %v966 = vpop.f32.mrb[0].mxu0
  %967 = vmatprep.mubr.bf16.mxu0 %v424
  %968 = vmatmul.mubr.bf16.gmra.mrb[0].mxu0 %v423
  %v969 = vpop.f32.mrb[0].mxu0
  %v970 = vadd.f32 0.0, %v969
  %v971 = vpop.f32.mrb[0].mxu0
  %v972 = vpop.f32.mrb[0].mxu0
  %v973 = vadd.f32 0.0, %v972
  %v974 = vpop.f32.mrb[0].mxu0
  %975 = vmatprep.mubr.bf16.mxu0 %v432
  %976 = vmatmul.mubr.bf16.gmra.mrb[0].mxu0 %v431
  %v977 = vpop.f32.mrb[0].mxu0
  %v978 = vadd.f32 0.0, %v977
  %v979 = vpop.f32.mrb[0].mxu0
  %v980 = vpop.f32.mrb[0].mxu0
  %v981 = vadd.f32 0.0, %v980
  %v982 = vpop.f32.mrb[0].mxu0
  %983 = vmatprep.mubr.bf16.mxu0 %v440
  %984 = vmatmul.mubr.bf16.gmra.mrb[0].mxu0 %v439
  %v985 = vpop.f32.mrb[0].mxu0
  %v986 = vadd.f32 0.0, %v985
  %v987 = vpop.f32.mrb[0].mxu0
  %v988 = vpop.f32.mrb[0].mxu0
  %v989 = vadd.f32 0.0, %v988
  %v990 = vpop.f32.mrb[0].mxu0
  %991 = vmatprep.mubr.bf16.mxu0 %v448
  %992 = vmatmul.mubr.bf16.gmra.mrb[0].mxu0 %v447
  %v993 = vpop.f32.mrb[0].mxu0
  %v994 = vadd.f32 0.0, %v993
  %v995 = vpop.f32.mrb[0].mxu0
  %v996 = vpop.f32.mrb[0].mxu0
  %v997 = vadd.f32 0.0, %v996
  %v998 = vpop.f32.mrb[0].mxu0
  %999 = vmatprep.mubr.bf16.mxu0 %v456
  %1000 = vmatmul.mubr.bf16.gmra.mrb[0].mxu0 %v455
  %v1001 = vpop.f32.mrb[0].mxu0
  %v1002 = vadd.f32 0.0, %v1001
  %v1003 = vpop.f32.mrb[0].mxu0
  %v1004 = vpop.f32.mrb[0].mxu0
  %v1005 = vadd.f32 0.0, %v1004
  %v1006 = vpop.f32.mrb[0].mxu0
  %1007 = vdwg.mxu0
  %1008 = vmatprep.subr.bf16.mxu0 0
  %1009 = vmatpush1.bf16.msra.mxu0 %v799
  %1010 = vmatprep.subr.bf16.mxu0 0
  %1011 = vmatpush1.bf16.msra.mxu0 %v800
  %1012 = vmatprep.subr.bf16.mxu0 0
  %1013 = vmatpush1.bf16.msra.mxu0 %v801
  %1014 = vmatprep.subr.bf16.mxu0 0
  %1015 = vmatpush1.bf16.msra.mxu0 %v802
  %1016 = vmatprep.subr.bf16.mxu0 0
  %1017 = vmatpush1.bf16.msra.mxu0 %v803
  %1018 = vmatprep.subr.bf16.mxu0 0
  %1019 = vmatpush1.bf16.msra.mxu0 %v804
  %1020 = vmatprep.subr.bf16.mxu0 0
  %1021 = vmatpush1.bf16.msra.mxu0 %v805
  %1022 = vmatprep.subr.bf16.mxu0 0
  %1023 = vmatpush1.bf16.msra.mxu0 %v806
  %1024 = vmatprep.subr.bf16.mxu0 0
  %1025 = vmatpush1.bf16.msra.mxu0 %v807
  %1026 = vmatprep.subr.bf16.mxu0 0
  %1027 = vmatpush1.bf16.msra.mxu0 %v808
  %1028 = vmatprep.subr.bf16.mxu0 0
  %1029 = vmatpush1.bf16.msra.mxu0 %v809
  %1030 = vmatprep.subr.bf16.mxu0 0
  %1031 = vmatpush1.bf16.msra.mxu0 %v810
  %1032 = vmatprep.subr.bf16.mxu0 0
  %1033 = vmatpush1.bf16.msra.mxu0 %v811
  %1034 = vmatprep.subr.bf16.mxu0 0
  %1035 = vmatpush1.bf16.msra.mxu0 %v812
  %1036 = vmatprep.subr.bf16.mxu0 0
  %1037 = vmatpush1.bf16.msra.mxu0 %v813
  %1038 = vmatprep.subr.bf16.mxu0 0
  %1039 = vmatpush1.bf16.msra.mxu0 %v814
  %1040 = vmatprep.mubr.bf16.mxu0 %v402
  %1041 = vmatmul.mubr.bf16.gmra.mrb[0].mxu0 %v401
  %v1042 = vpop.f32.mrb[0].mxu0
  %v1043 = vadd.f32 %v946, %v1042
  %v1044 = vpop.f32.mrb[0].mxu0
  %v1045 = vpop.f32.mrb[0].mxu0
  %v1046 = vadd.f32 %v949, %v1045
  %v1047 = vpop.f32.mrb[0].mxu0
  %1048 = vmatprep.mubr.bf16.mxu0 %v410
  %1049 = vmatmul.mubr.bf16.gmra.mrb[0].mxu0 %v409
  %v1050 = vpop.f32.mrb[0].mxu0
  %v1051 = vadd.f32 %v954, %v1050
  %v1052 = vpop.f32.mrb[0].mxu0
  %v1053 = vpop.f32.mrb[0].mxu0
  %v1054 = vadd.f32 %v957, %v1053
  %v1055 = vpop.f32.mrb[0].mxu0
  %1056 = vmatprep.mubr.bf16.mxu0 %v418
  %1057 = vmatmul.mubr.bf16.gmra.mrb[0].mxu0 %v417
  %v1058 = vpop.f32.mrb[0].mxu0
  %v1059 = vadd.f32 %v962, %v1058
  %v1060 = vpop.f32.mrb[0].mxu0
  %v1061 = vpop.f32.mrb[0].mxu0
  %v1062 = vadd.f32 %v965, %v1061
  %v1063 = vpop.f32.mrb[0].mxu0
  %1064 = vmatprep.mubr.bf16.mxu0 %v426
  %1065 = vmatmul.mubr.bf16.gmra.mrb[0].mxu0 %v425
  %v1066 = vpop.f32.mrb[0].mxu0
  %v1067 = vadd.f32 %v970, %v1066
  %v1068 = vpop.f32.mrb[0].mxu0
  %v1069 = vpop.f32.mrb[0].mxu0
  %v1070 = vadd.f32 %v973, %v1069
  %v1071 = vpop.f32.mrb[0].mxu0
  %1072 = vmatprep.mubr.bf16.mxu0 %v434
  %1073 = vmatmul.mubr.bf16.gmra.mrb[0].mxu0 %v433
  %v1074 = vpop.f32.mrb[0].mxu0
  %v1075 = vadd.f32 %v978, %v1074
  %v1076 = vpop.f32.mrb[0].mxu0
  %v1077 = vpop.f32.mrb[0].mxu0
  %v1078 = vadd.f32 %v981, %v1077
  %v1079 = vpop.f32.mrb[0].mxu0
  %1080 = vmatprep.mubr.bf16.mxu0 %v442
  %1081 = vmatmul.mubr.bf16.gmra.mrb[0].mxu0 %v441
  %v1082 = vpop.f32.mrb[0].mxu0
  %v1083 = vadd.f32 %v986, %v1082
  %v1084 = vpop.f32.mrb[0].mxu0
  %v1085 = vpop.f32.mrb[0].mxu0
  %v1086 = vadd.f32 %v989, %v1085
  %v1087 = vpop.f32.mrb[0].mxu0
  %1088 = vmatprep.mubr.bf16.mxu0 %v450
  %1089 = vmatmul.mubr.bf16.gmra.mrb[0].mxu0 %v449
  %v1090 = vpop.f32.mrb[0].mxu0
  %v1091 = vadd.f32 %v994, %v1090
  %v1092 = vpop.f32.mrb[0].mxu0
  %v1093 = vpop.f32.mrb[0].mxu0
  %v1094 = vadd.f32 %v997, %v1093
  %v1095 = vpop.f32.mrb[0].mxu0
  %1096 = vmatprep.mubr.bf16.mxu0 %v458
  %1097 = vmatmul.mubr.bf16.gmra.mrb[0].mxu0 %v457
  %v1098 = vpop.f32.mrb[0].mxu0
  %v1099 = vadd.f32 %v1002, %v1098
  %v1100 = vpop.f32.mrb[0].mxu0
  %v1101 = vpop.f32.mrb[0].mxu0
  %v1102 = vadd.f32 %v1005, %v1101
  %v1103 = vpop.f32.mrb[0].mxu0
  %1104 = vdwg.mxu0
  %1105 = vmatprep.subr.bf16.mxu0 0
  %1106 = vmatpush1.bf16.msra.mxu0 %v815
  %1107 = vmatprep.subr.bf16.mxu0 0
  %1108 = vmatpush1.bf16.msra.mxu0 %v816
  %1109 = vmatprep.subr.bf16.mxu0 0
  %1110 = vmatpush1.bf16.msra.mxu0 %v817
  %1111 = vmatprep.subr.bf16.mxu0 0
  %1112 = vmatpush1.bf16.msra.mxu0 %v818
  %1113 = vmatprep.subr.bf16.mxu0 0
  %1114 = vmatpush1.bf16.msra.mxu0 %v819
  %1115 = vmatprep.subr.bf16.mxu0 0
  %1116 = vmatpush1.bf16.msra.mxu0 %v820
  %1117 = vmatprep.subr.bf16.mxu0 0
  %1118 = vmatpush1.bf16.msra.mxu0 %v821
  %1119 = vmatprep.subr.bf16.mxu0 0
  %1120 = vmatpush1.bf16.msra.mxu0 %v822
  %1121 = vmatprep.subr.bf16.mxu0 0
  %1122 = vmatpush1.bf16.msra.mxu0 %v823
  %1123 = vmatprep.subr.bf16.mxu0 0
  %1124 = vmatpush1.bf16.msra.mxu0 %v824
  %1125 = vmatprep.subr.bf16.mxu0 0
  %1126 = vmatpush1.bf16.msra.mxu0 %v825
  %1127 = vmatprep.subr.bf16.mxu0 0
  %1128 = vmatpush1.bf16.msra.mxu0 %v826
  %1129 = vmatprep.subr.bf16.mxu0 0
  %1130 = vmatpush1.bf16.msra.mxu0 %v827
  %1131 = vmatprep.subr.bf16.mxu0 0
  %1132 = vmatpush1.bf16.msra.mxu0 %v828
  %1133 = vmatprep.subr.bf16.mxu0 0
  %1134 = vmatpush1.bf16.msra.mxu0 %v829
  %1135 = vmatprep.subr.bf16.mxu0 0
  %1136 = vmatpush1.bf16.msra.mxu0 %v830
  %1137 = vmatprep.mubr.bf16.mxu0 %v404
  %1138 = vmatmul.mubr.bf16.gmra.mrb[0].mxu0 %v403
  %v1139 = vpop.f32.mrb[0].mxu0
  %v1140 = vadd.f32 %v1043, %v1139
  %v1141 = vpop.f32.mrb[0].mxu0
  %v1142 = vpop.f32.mrb[0].mxu0
  %v1143 = vadd.f32 %v1046, %v1142
  %v1144 = vpop.f32.mrb[0].mxu0
  %1145 = vmatprep.mubr.bf16.mxu0 %v412
  %1146 = vmatmul.mubr.bf16.gmra.mrb[0].mxu0 %v411
  %v1147 = vpop.f32.mrb[0].mxu0
  %v1148 = vadd.f32 %v1051, %v1147
  %v1149 = vpop.f32.mrb[0].mxu0
  %v1150 = vpop.f32.mrb[0].mxu0
  %v1151 = vadd.f32 %v1054, %v1150
  %v1152 = vpop.f32.mrb[0].mxu0
  %1153 = vmatprep.mubr.bf16.mxu0 %v420
  %1154 = vmatmul.mubr.bf16.gmra.mrb[0].mxu0 %v419
  %v1155 = vpop.f32.mrb[0].mxu0
  %v1156 = vadd.f32 %v1059, %v1155
  %v1157 = vpop.f32.mrb[0].mxu0
  %v1158 = vpop.f32.mrb[0].mxu0
  %v1159 = vadd.f32 %v1062, %v1158
  %v1160 = vpop.f32.mrb[0].mxu0
  %1161 = vmatprep.mubr.bf16.mxu0 %v428
  %1162 = vmatmul.mubr.bf16.gmra.mrb[0].mxu0 %v427
  %v1163 = vpop.f32.mrb[0].mxu0
  %v1164 = vadd.f32 %v1067, %v1163
  %v1165 = vpop.f32.mrb[0].mxu0
  %v1166 = vpop.f32.mrb[0].mxu0
  %v1167 = vadd.f32 %v1070, %v1166
  %v1168 = vpop.f32.mrb[0].mxu0
  %1169 = vmatprep.mubr.bf16.mxu0 %v436
  %1170 = vmatmul.mubr.bf16.gmra.mrb[0].mxu0 %v435
  %v1171 = vpop.f32.mrb[0].mxu0
  %v1172 = vadd.f32 %v1075, %v1171
  %v1173 = vpop.f32.mrb[0].mxu0
  %v1174 = vpop.f32.mrb[0].mxu0
  %v1175 = vadd.f32 %v1078, %v1174
  %v1176 = vpop.f32.mrb[0].mxu0
  %1177 = vmatprep.mubr.bf16.mxu0 %v444
  %1178 = vmatmul.mubr.bf16.gmra.mrb[0].mxu0 %v443
  %v1179 = vpop.f32.mrb[0].mxu0
  %v1180 = vadd.f32 %v1083, %v1179
  %v1181 = vpop.f32.mrb[0].mxu0
  %v1182 = vpop.f32.mrb[0].mxu0
  %v1183 = vadd.f32 %v1086, %v1182
  %v1184 = vpop.f32.mrb[0].mxu0
  %1185 = vmatprep.mubr.bf16.mxu0 %v452
  %1186 = vmatmul.mubr.bf16.gmra.mrb[0].mxu0 %v451
  %v1187 = vpop.f32.mrb[0].mxu0
  %v1188 = vadd.f32 %v1091, %v1187
  %v1189 = vpop.f32.mrb[0].mxu0
  %v1190 = vpop.f32.mrb[0].mxu0
  %v1191 = vadd.f32 %v1094, %v1190
  %v1192 = vpop.f32.mrb[0].mxu0
  %1193 = vmatprep.mubr.bf16.mxu0 %v460
  %1194 = vmatmul.mubr.bf16.gmra.mrb[0].mxu0 %v459
  %v1195 = vpop.f32.mrb[0].mxu0
  %v1196 = vadd.f32 %v1099, %v1195
  %v1197 = vpop.f32.mrb[0].mxu0
  %v1198 = vpop.f32.mrb[0].mxu0
  %v1199 = vadd.f32 %v1102, %v1198
  %v1200 = vpop.f32.mrb[0].mxu0
  %1201 = vdwg.mxu0
  %1202 = vmatprep.subr.bf16.mxu0 0
  %1203 = vmatpush1.bf16.msra.mxu0 %v831
  %1204 = vmatprep.subr.bf16.mxu0 0
  %1205 = vmatpush1.bf16.msra.mxu0 %v832
  %1206 = vmatprep.subr.bf16.mxu0 0
  %1207 = vmatpush1.bf16.msra.mxu0 %v833
  %1208 = vmatprep.subr.bf16.mxu0 0
  %1209 = vmatpush1.bf16.msra.mxu0 %v834
  %1210 = vmatprep.subr.bf16.mxu0 0
  %1211 = vmatpush1.bf16.msra.mxu0 %v835
  %1212 = vmatprep.subr.bf16.mxu0 0
  %1213 = vmatpush1.bf16.msra.mxu0 %v836
  %1214 = vmatprep.subr.bf16.mxu0 0
  %1215 = vmatpush1.bf16.msra.mxu0 %v837
  %1216 = vmatprep.subr.bf16.mxu0 0
  %1217 = vmatpush1.bf16.msra.mxu0 %v838
  %1218 = vmatprep.subr.bf16.mxu0 0
  %1219 = vmatpush1.bf16.msra.mxu0 %v839
  %1220 = vmatprep.subr.bf16.mxu0 0
  %1221 = vmatpush1.bf16.msra.mxu0 %v840
  %1222 = vmatprep.subr.bf16.mxu0 0
  %1223 = vmatpush1.bf16.msra.mxu0 %v841
  %1224 = vmatprep.subr.bf16.mxu0 0
  %1225 = vmatpush1.bf16.msra.mxu0 %v842
  %1226 = vmatprep.subr.bf16.mxu0 0
  %1227 = vmatpush1.bf16.msra.mxu0 %v843
  %1228 = vmatprep.subr.bf16.mxu0 0
  %1229 = vmatpush1.bf16.msra.mxu0 %v844
  %1230 = vmatprep.subr.bf16.mxu0 0
  %1231 = vmatpush1.bf16.msra.mxu0 %v845
  %1232 = vmatprep.subr.bf16.mxu0 0
  %1233 = vmatpush1.bf16.msra.mxu0 %v846
  %1234 = vmatprep.mubr.bf16.mxu0 %v406
  %1235 = vmatmul.mubr.bf16.gmra.mrb[0].mxu0 %v405
  %v1236 = vpop.f32.mrb[0].mxu0
  %v1237 = vadd.f32 %v1140, %v1236
  %v1238 = vpop.f32.mrb[0].mxu0
  %v1239 = vpop.f32.mrb[0].mxu0
  %v1240 = vadd.f32 %v1143, %v1239
  %v1241 = vpop.f32.mrb[0].mxu0
  %1242 = vmatprep.mubr.bf16.mxu0 %v414
  %1243 = vmatmul.mubr.bf16.gmra.mrb[0].mxu0 %v413
  %v1244 = vpop.f32.mrb[0].mxu0
  %v1245 = vadd.f32 %v1148, %v1244
  %v1246 = vpop.f32.mrb[0].mxu0
  %v1247 = vpop.f32.mrb[0].mxu0
  %v1248 = vadd.f32 %v1151, %v1247
  %v1249 = vpop.f32.mrb[0].mxu0
  %1250 = vmatprep.mubr.bf16.mxu0 %v422
  %1251 = vmatmul.mubr.bf16.gmra.mrb[0].mxu0 %v421
  %v1252 = vpop.f32.mrb[0].mxu0
  %v1253 = vadd.f32 %v1156, %v1252
  %v1254 = vpop.f32.mrb[0].mxu0
  %v1255 = vpop.f32.mrb[0].mxu0
  %v1256 = vadd.f32 %v1159, %v1255
  %v1257 = vpop.f32.mrb[0].mxu0
  %1258 = vmatprep.mubr.bf16.mxu0 %v430
  %1259 = vmatmul.mubr.bf16.gmra.mrb[0].mxu0 %v429
  %v1260 = vpop.f32.mrb[0].mxu0
  %v1261 = vadd.f32 %v1164, %v1260
  %v1262 = vpop.f32.mrb[0].mxu0
  %v1263 = vpop.f32.mrb[0].mxu0
  %v1264 = vadd.f32 %v1167, %v1263
  %v1265 = vpop.f32.mrb[0].mxu0
  %1266 = vmatprep.mubr.bf16.mxu0 %v438
  %1267 = vmatmul.mubr.bf16.gmra.mrb[0].mxu0 %v437
  %v1268 = vpop.f32.mrb[0].mxu0
  %v1269 = vadd.f32 %v1172, %v1268
  %v1270 = vpop.f32.mrb[0].mxu0
  %v1271 = vpop.f32.mrb[0].mxu0
  %v1272 = vadd.f32 %v1175, %v1271
  %v1273 = vpop.f32.mrb[0].mxu0
  %1274 = vmatprep.mubr.bf16.mxu0 %v446
  %1275 = vmatmul.mubr.bf16.gmra.mrb[0].mxu0 %v445
  %v1276 = vpop.f32.mrb[0].mxu0
  %v1277 = vadd.f32 %v1180, %v1276
  %v1278 = vpop.f32.mrb[0].mxu0
  %v1279 = vpop.f32.mrb[0].mxu0
  %v1280 = vadd.f32 %v1183, %v1279
  %v1281 = vpop.f32.mrb[0].mxu0
  %1282 = vmatprep.mubr.bf16.mxu0 %v454
  %1283 = vmatmul.mubr.bf16.gmra.mrb[0].mxu0 %v453
  %v1284 = vpop.f32.mrb[0].mxu0
  %v1285 = vadd.f32 %v1188, %v1284
  %v1286 = vpop.f32.mrb[0].mxu0
  %v1287 = vpop.f32.mrb[0].mxu0
  %v1288 = vadd.f32 %v1191, %v1287
  %v1289 = vpop.f32.mrb[0].mxu0
  %1290 = vmatprep.mubr.bf16.mxu0 %v462
  %1291 = vmatmul.mubr.bf16.gmra.mrb[0].mxu0 %v461
  %v1292 = vpop.f32.mrb[0].mxu0
  %v1293 = vadd.f32 %v1196, %v1292
  %v1294 = vpop.f32.mrb[0].mxu0
  %v1295 = vpop.f32.mrb[0].mxu0
  %v1296 = vadd.f32 %v1199, %v1295
  %v1297 = vpop.f32.mrb[0].mxu0
  %1298 = vdwg.mxu0
  %v1299 = vpack.c.bf16 %v1240, %v1237
  %v1300 = vpack.c.bf16 %v1248, %v1245
  %v1301 = vpack.c.bf16 %v1256, %v1253
  %v1302 = vpack.c.bf16 %v1264, %v1261
  %v1303 = vpack.c.bf16 %v1272, %v1269
  %v1304 = vpack.c.bf16 %v1280, %v1277
  %v1305 = vpack.c.bf16 %v1288, %v1285
  %v1306 = vpack.c.bf16 %v1296, %v1293
  %v1315 = vunpack.c.l.b16 %v1299
  %v1316 = vunpack.c.h.b16 %v1299
  %v1317 = vunpack.c.l.b16 %v1300
  %v1318 = vunpack.c.h.b16 %v1300
  %v1319 = vunpack.c.l.b16 %v1301
  %v1320 = vunpack.c.h.b16 %v1301
  %v1321 = vunpack.c.l.b16 %v1302
  %v1322 = vunpack.c.h.b16 %v1302
  %v1323 = vunpack.c.l.b16 %v1303
  %v1324 = vunpack.c.h.b16 %v1303
  %v1325 = vunpack.c.l.b16 %v1304
  %v1326 = vunpack.c.h.b16 %v1304
  %v1327 = vunpack.c.l.b16 %v1305
  %v1328 = vunpack.c.h.b16 %v1305
  %v1329 = vunpack.c.l.b16 %v1306
  %v1330 = vunpack.c.h.b16 %v1306
  %v1331 = vpack.c.b16 %v1315, %v1315
  %v1332 = vpack.c.b16 %v1316, %v1316
  %v1333 = vpack.c.b16 %v1317, %v1317
  %v1334 = vpack.c.b16 %v1318, %v1318
  %v1335 = vpack.c.b16 %v1319, %v1319
  %v1336 = vpack.c.b16 %v1320, %v1320
  %v1337 = vpack.c.b16 %v1321, %v1321
  %v1338 = vpack.c.b16 %v1322, %v1322
  %v1339 = vpack.c.b16 %v1323, %v1323
  %v1340 = vpack.c.b16 %v1324, %v1324
  %v1341 = vpack.c.b16 %v1325, %v1325
  %v1342 = vpack.c.b16 %v1326, %v1326
  %v1343 = vpack.c.b16 %v1327, %v1327
  %v1344 = vpack.c.b16 %v1328, %v1328
  %v1345 = vpack.c.b16 %v1329, %v1329
  %v1346 = vpack.c.b16 %v1330, %v1330
  %1363 = vst [vmem:[%s2] sm:$0xf] %v1331
  %1364 = vst [vmem:[%s2 + $0x4] sm:$0xf] %v1332
  %1365 = vst [vmem:[%s2 + $0x8] sm:$0xf] %v1333
  %1366 = vst [vmem:[%s2 + $0xc] sm:$0xf] %v1334
  %1367 = vst [vmem:[%s2 + $0x10] sm:$0xf] %v1335
  %1368 = vst [vmem:[%s2 + $0x14] sm:$0xf] %v1336
  %1369 = vst [vmem:[%s2 + $0x18] sm:$0xf] %v1337
  %1370 = vst [vmem:[%s2 + $0x1c] sm:$0xf] %v1338
  %1371 = vst [vmem:[%s2 + $0x20] sm:$0xf] %v1339
  %1372 = vst [vmem:[%s2 + $0x24] sm:$0xf] %v1340
  %1373 = vst [vmem:[%s2 + $0x28] sm:$0xf] %v1341
  %1374 = vst [vmem:[%s2 + $0x2c] sm:$0xf] %v1342
  %1375 = vst [vmem:[%s2 + $0x30] sm:$0xf] %v1343
  %1376 = vst [vmem:[%s2 + $0x34] sm:$0xf] %v1344
  %1377 = vst [vmem:[%s2 + $0x38] sm:$0xf] %v1345
  %1378 = vst [vmem:[%s2 + $0x3c] sm:$0xf] %v1346
  %1379 = vadd.xlane.f32.xlu0 %v1237
  %v1380 = vpop.xlane.xlu0 %1379
  %1381 = vadd.xlane.f32.xlu0 %v1240
  %v1382 = vpop.xlane.xlu0 %1381
  %1383 = vadd.xlane.f32.xlu0 %v1245
  %v1384 = vpop.xlane.xlu0 %1383
  %1385 = vadd.xlane.f32.xlu0 %v1248
  %v1386 = vpop.xlane.xlu0 %1385
  %1387 = vadd.xlane.f32.xlu0 %v1253
  %v1388 = vpop.xlane.xlu0 %1387
  %1389 = vadd.xlane.f32.xlu0 %v1256
  %v1390 = vpop.xlane.xlu0 %1389
  %1391 = vadd.xlane.f32.xlu0 %v1261
  %v1392 = vpop.xlane.xlu0 %1391
  %1393 = vadd.xlane.f32.xlu0 %v1264
  %v1394 = vpop.xlane.xlu0 %1393
  %1395 = vadd.xlane.f32.xlu0 %v1269
  %v1396 = vpop.xlane.xlu0 %1395
  %1397 = vadd.xlane.f32.xlu0 %v1272
  %v1398 = vpop.xlane.xlu0 %1397
  %1399 = vadd.xlane.f32.xlu0 %v1277
  %v1400 = vpop.xlane.xlu0 %1399
  %1401 = vadd.xlane.f32.xlu0 %v1280
  %v1402 = vpop.xlane.xlu0 %1401
  %1403 = vadd.xlane.f32.xlu0 %v1285
  %v1404 = vpop.xlane.xlu0 %1403
  %1405 = vadd.xlane.f32.xlu0 %v1288
  %v1406 = vpop.xlane.xlu0 %1405
  %1407 = vadd.xlane.f32.xlu0 %v1293
  %v1408 = vpop.xlane.xlu0 %1407
  %1409 = vadd.xlane.f32.xlu0 %v1296
  %v1410 = vpop.xlane.xlu0 %1409
  %vm1411 = vcmask 7168
  %1412 = vst.msk [vmem:[%s3] sm:$0xff] %vm1411, %v1380
  %1413 = vst.msk [vmem:[%s3 + $0x8] sm:$0xff] %vm1411, %v1382
  %1414 = vst.msk [vmem:[%s3 + $0x10] sm:$0xff] %vm1411, %v1384
  %1415 = vst.msk [vmem:[%s3 + $0x18] sm:$0xff] %vm1411, %v1386
  %1416 = vst.msk [vmem:[%s3 + $0x20] sm:$0xff] %vm1411, %v1388
  %1417 = vst.msk [vmem:[%s3 + $0x28] sm:$0xff] %vm1411, %v1390
  %1418 = vst.msk [vmem:[%s3 + $0x30] sm:$0xff] %vm1411, %v1392
  %1419 = vst.msk [vmem:[%s3 + $0x38] sm:$0xff] %vm1411, %v1394
  %1420 = vst.msk [vmem:[%s3 + $0x40] sm:$0xff] %vm1411, %v1396
  %1421 = vst.msk [vmem:[%s3 + $0x48] sm:$0xff] %vm1411, %v1398
  %1422 = vst.msk [vmem:[%s3 + $0x50] sm:$0xff] %vm1411, %v1400
  %1423 = vst.msk [vmem:[%s3 + $0x58] sm:$0xff] %vm1411, %v1402
  %1424 = vst.msk [vmem:[%s3 + $0x60] sm:$0xff] %vm1411, %v1404
  %1425 = vst.msk [vmem:[%s3 + $0x68] sm:$0xff] %vm1411, %v1406
  %1426 = vst.msk [vmem:[%s3 + $0x70] sm:$0xff] %vm1411, %v1408
  %1427 = vst.msk [vmem:[%s3 + $0x78] sm:$0xff] %vm1411, %v1410
  %v1428 = vmul.f32 %v1237, %v1237
  %v1429 = vmul.f32 %v1240, %v1240
  %v1430 = vmul.f32 %v1245, %v1245
  %v1431 = vmul.f32 %v1248, %v1248
  %v1432 = vmul.f32 %v1253, %v1253
  %v1433 = vmul.f32 %v1256, %v1256
  %v1434 = vmul.f32 %v1261, %v1261
  %v1435 = vmul.f32 %v1264, %v1264
  %v1436 = vmul.f32 %v1269, %v1269
  %v1437 = vmul.f32 %v1272, %v1272
  %v1438 = vmul.f32 %v1277, %v1277
  %v1439 = vmul.f32 %v1280, %v1280
  %v1440 = vmul.f32 %v1285, %v1285
  %v1441 = vmul.f32 %v1288, %v1288
  %v1442 = vmul.f32 %v1293, %v1293
  %v1443 = vmul.f32 %v1296, %v1296
  %1444 = vadd.xlane.f32.xlu0 %v1428
  %v1445 = vpop.xlane.xlu0 %1444
  %1446 = vadd.xlane.f32.xlu0 %v1429
  %v1447 = vpop.xlane.xlu0 %1446
  %1448 = vadd.xlane.f32.xlu0 %v1430
  %v1449 = vpop.xlane.xlu0 %1448
  %1450 = vadd.xlane.f32.xlu0 %v1431
  %v1451 = vpop.xlane.xlu0 %1450
  %1452 = vadd.xlane.f32.xlu0 %v1432
  %v1453 = vpop.xlane.xlu0 %1452
  %1454 = vadd.xlane.f32.xlu0 %v1433
  %v1455 = vpop.xlane.xlu0 %1454
  %1456 = vadd.xlane.f32.xlu0 %v1434
  %v1457 = vpop.xlane.xlu0 %1456
  %1458 = vadd.xlane.f32.xlu0 %v1435
  %v1459 = vpop.xlane.xlu0 %1458
  %1460 = vadd.xlane.f32.xlu0 %v1436
  %v1461 = vpop.xlane.xlu0 %1460
  %1462 = vadd.xlane.f32.xlu0 %v1437
  %v1463 = vpop.xlane.xlu0 %1462
  %1464 = vadd.xlane.f32.xlu0 %v1438
  %v1465 = vpop.xlane.xlu0 %1464
  %1466 = vadd.xlane.f32.xlu0 %v1439
  %v1467 = vpop.xlane.xlu0 %1466
  %1468 = vadd.xlane.f32.xlu0 %v1440
  %v1469 = vpop.xlane.xlu0 %1468
  %1470 = vadd.xlane.f32.xlu0 %v1441
  %v1471 = vpop.xlane.xlu0 %1470
  %1472 = vadd.xlane.f32.xlu0 %v1442
  %v1473 = vpop.xlane.xlu0 %1472
  %1474 = vadd.xlane.f32.xlu0 %v1443
  %v1475 = vpop.xlane.xlu0 %1474
  %1476 = vst.msk [vmem:[%s4] sm:$0xff] %vm1411, %v1445
  %1477 = vst.msk [vmem:[%s4 + $0x8] sm:$0xff] %vm1411, %v1447
  %1478 = vst.msk [vmem:[%s4 + $0x10] sm:$0xff] %vm1411, %v1449
  %1479 = vst.msk [vmem:[%s4 + $0x18] sm:$0xff] %vm1411, %v1451
  %1480 = vst.msk [vmem:[%s4 + $0x20] sm:$0xff] %vm1411, %v1453
  %1481 = vst.msk [vmem:[%s4 + $0x28] sm:$0xff] %vm1411, %v1455
  %1482 = vst.msk [vmem:[%s4 + $0x30] sm:$0xff] %vm1411, %v1457
  %1483 = vst.msk [vmem:[%s4 + $0x38] sm:$0xff] %vm1411, %v1459
  %1484 = vst.msk [vmem:[%s4 + $0x40] sm:$0xff] %vm1411, %v1461
  %1485 = vst.msk [vmem:[%s4 + $0x48] sm:$0xff] %vm1411, %v1463
  %1486 = vst.msk [vmem:[%s4 + $0x50] sm:$0xff] %vm1411, %v1465
  %1487 = vst.msk [vmem:[%s4 + $0x58] sm:$0xff] %vm1411, %v1467
  %1488 = vst.msk [vmem:[%s4 + $0x60] sm:$0xff] %vm1411, %v1469
  %1489 = vst.msk [vmem:[%s4 + $0x68] sm:$0xff] %vm1411, %v1471
  %1490 = vst.msk [vmem:[%s4 + $0x70] sm:$0xff] %vm1411, %v1473
  %1491 = vst.msk [vmem:[%s4 + $0x78] sm:$0xff] %vm1411, %v1475
  // Predicated region
  $region10: #{multiscale_discriminator_forward.45} parent=0 // pred_check
    _
  $region11: #{multiscale_discriminator_forward.45} parent=0 // pred_check_branch
    %1493 = sbr.rel (0) target = $region13
  $region12: #{multiscale_discriminator_forward.45} parent=0 // pred_region
    _
  $region13: #{multiscale_discriminator_forward.45} parent=0 // pred_fallthru
    _
  // Predicated region
  $region14: #{multiscale_discriminator_forward.45} parent=0 // pred_check
    _
  $region15: #{multiscale_discriminator_forward.45} parent=0 // pred_check_branch
    %1495 = sbr.rel (0) target = $region17
  $region16: #{multiscale_discriminator_forward.45} parent=0 // pred_region
    _
  $region17: #{multiscale_discriminator_forward.45} parent=0 // pred_fallthru
    _
  // Predicated region
  $region18: #{multiscale_discriminator_forward.45} parent=0 // pred_check
    _
  $region19: #{multiscale_discriminator_forward.45} parent=0 // pred_check_branch
    %1497 = sbr.rel (0) target = $region21
  $region20: #{multiscale_discriminator_forward.45} parent=0 // pred_region
    _
  $region21: #{multiscale_discriminator_forward.45} parent=0 // pred_fallthru
    _
  // Predicated region
  $region22: #{multiscale_discriminator_forward.45} parent=0 // pred_check
    _
  $region23: #{multiscale_discriminator_forward.45} parent=0 // pred_check_branch
    %1499 = sbr.rel (0) target = $region25
  $region24: #{multiscale_discriminator_forward.45} parent=0 // pred_region
    _
  $region25: #{multiscale_discriminator_forward.45} parent=0 // pred_fallthru
    _
  // Predicated region
  $region26: #{multiscale_discriminator_forward.45} parent=0 // pred_check
    _
  $region27: #{multiscale_discriminator_forward.45} parent=0 // pred_check_branch
    %1501 = sbr.rel (0) target = $region29
  $region28: #{multiscale_discriminator_forward.45} parent=0 // pred_region
    _
  $region29: #{multiscale_discriminator_forward.45} parent=0 // pred_fallthru
    _
  // Predicated region
  $region30: #{multiscale_discriminator_forward.45} parent=0 // pred_check
    _
  $region31: #{multiscale_discriminator_forward.45} parent=0 // pred_check_branch
    %1503 = sbr.rel (0) target = $region33
  $region32: #{multiscale_discriminator_forward.45} parent=0 // pred_region
    _
  $region33: #{multiscale_discriminator_forward.45} parent=0 // pred_fallthru
    _

// kernel: multiscale_discriminator_forward.47
$region0: #{multiscale_discriminator_forward.47}
  #allocation0 [shape = 'u32[]', space=smem, size = 0x4, offset = 0x4, fixed_abs, tag = 'smem constant byte address 0x4 - core index']
  #allocation1 [shape = 'u32[144,128]{1,0:T(1,128)}', space=vmem, size = 0x12000, scoped, tag = 'internal scratch']
  %s0 = inlined_call_operand.vmem [shape: bf16[8,2048], index: 0, kind: input, shape index: {}]
  %s1 = inlined_call_operand.vmem [shape: bf16[2048,128], index: 1, kind: input, shape index: {}]
  %s2 = inlined_call_operand.vmem [shape: f32[8,1], index: 2, kind: input, shape index: {}]
  %s3 = inlined_call_operand.vmem [shape: f32[8,128], index: 3, kind: output, shape index: {}]
  %s4 = sld [smem:[#allocation0]]
  $region22: #{multiscale_discriminator_forward.47} parent=0
    _
  %s6 = ssub.s32 1, %s4
  %s7 = scalar_select 0, %s6, %s4
  // Predicated region
  $region2: #{multiscale_discriminator_forward.47} parent=0 // pred_check
    _
  $region3: #{multiscale_discriminator_forward.47} parent=0 // pred_check_branch
    %9 = sbr.rel (0) target = $region5
  $region4: #{multiscale_discriminator_forward.47} parent=0 // pred_region
    _
  $region5: #{multiscale_discriminator_forward.47} parent=0 // pred_fallthru
    _
  // Predicated region
  $region6: #{multiscale_discriminator_forward.47} parent=0 // pred_check
    _
  $region7: #{multiscale_discriminator_forward.47} parent=0 // pred_check_branch
    %11 = sbr.rel (0) target = $region9
  $region8: #{multiscale_discriminator_forward.47} parent=0 // pred_region
    _
  $region9: #{multiscale_discriminator_forward.47} parent=0 // pred_fallthru
    _
  // Predicated region
  $region10: #{multiscale_discriminator_forward.47} parent=0 // pred_check
    _
  $region11: #{multiscale_discriminator_forward.47} parent=0 // pred_check_branch
    %13 = sbr.rel (0) target = $region13
  $region12: #{multiscale_discriminator_forward.47} parent=0 // pred_region
    _
  $region13: #{multiscale_discriminator_forward.47} parent=0 // pred_fallthru
    _
  %v15 = vld [vmem:[%s0] sm:$0xff]
  %v16 = vld [vmem:[%s0 + $0x8] sm:$0xff]
  %v17 = vld [vmem:[%s0 + $0x10] sm:$0xff]
  %v18 = vld [vmem:[%s0 + $0x18] sm:$0xff]
  %v19 = vld [vmem:[%s0 + $0x20] sm:$0xff]
  %v20 = vld [vmem:[%s0 + $0x28] sm:$0xff]
  %v21 = vld [vmem:[%s0 + $0x30] sm:$0xff]
  %v22 = vld [vmem:[%s0 + $0x38] sm:$0xff]
  %v23 = vld [vmem:[%s1] sm:$0xf]
  %v24 = vld [vmem:[%s1 + $0x4] sm:$0xf]
  %v25 = vld [vmem:[%s1 + $0x8] sm:$0xf]
  %v26 = vld [vmem:[%s1 + $0xc] sm:$0xf]
  %v27 = vld [vmem:[%s1 + $0x10] sm:$0xf]
  %v28 = vld [vmem:[%s1 + $0x14] sm:$0xf]
  %v29 = vld [vmem:[%s1 + $0x18] sm:$0xf]
  %v30 = vld [vmem:[%s1 + $0x1c] sm:$0xf]
  %v31 = vld [vmem:[%s1 + $0x20] sm:$0xf]
  %v32 = vld [vmem:[%s1 + $0x24] sm:$0xf]
  %v33 = vld [vmem:[%s1 + $0x28] sm:$0xf]
  %v34 = vld [vmem:[%s1 + $0x2c] sm:$0xf]
  %v35 = vld [vmem:[%s1 + $0x30] sm:$0xf]
  %v36 = vld [vmem:[%s1 + $0x34] sm:$0xf]
  %v37 = vld [vmem:[%s1 + $0x38] sm:$0xf]
  %v38 = vld [vmem:[%s1 + $0x3c] sm:$0xf]
  %v39 = vld [vmem:[%s1 + $0x40] sm:$0xf]
  %v40 = vld [vmem:[%s1 + $0x44] sm:$0xf]
  %v41 = vld [vmem:[%s1 + $0x48] sm:$0xf]
  %v42 = vld [vmem:[%s1 + $0x4c] sm:$0xf]
  %v43 = vld [vmem:[%s1 + $0x50] sm:$0xf]
  %v44 = vld [vmem:[%s1 + $0x54] sm:$0xf]
  %v45 = vld [vmem:[%s1 + $0x58] sm:$0xf]
  %v46 = vld [vmem:[%s1 + $0x5c] sm:$0xf]
  %v47 = vld [vmem:[%s1 + $0x60] sm:$0xf]
  %v48 = vld [vmem:[%s1 + $0x64] sm:$0xf]
  %v49 = vld [vmem:[%s1 + $0x68] sm:$0xf]
  %v50 = vld [vmem:[%s1 + $0x6c] sm:$0xf]
  %v51 = vld [vmem:[%s1 + $0x70] sm:$0xf]
  %v52 = vld [vmem:[%s1 + $0x74] sm:$0xf]
  %v53 = vld [vmem:[%s1 + $0x78] sm:$0xf]
  %v54 = vld [vmem:[%s1 + $0x7c] sm:$0xf]
  %v55 = vld [vmem:[%s1 + $0x80] sm:$0xf]
  %v56 = vld [vmem:[%s1 + $0x84] sm:$0xf]
  %v57 = vld [vmem:[%s1 + $0x88] sm:$0xf]
  %v58 = vld [vmem:[%s1 + $0x8c] sm:$0xf]
  %v59 = vld [vmem:[%s1 + $0x90] sm:$0xf]
  %v60 = vld [vmem:[%s1 + $0x94] sm:$0xf]
  %v61 = vld [vmem:[%s1 + $0x98] sm:$0xf]
  %v62 = vld [vmem:[%s1 + $0x9c] sm:$0xf]
  %v63 = vld [vmem:[%s1 + $0xa0] sm:$0xf]
  %v64 = vld [vmem:[%s1 + $0xa4] sm:$0xf]
  %v65 = vld [vmem:[%s1 + $0xa8] sm:$0xf]
  %v66 = vld [vmem:[%s1 + $0xac] sm:$0xf]
  %v67 = vld [vmem:[%s1 + $0xb0] sm:$0xf]
  %v68 = vld [vmem:[%s1 + $0xb4] sm:$0xf]
  %v69 = vld [vmem:[%s1 + $0xb8] sm:$0xf]
  %v70 = vld [vmem:[%s1 + $0xbc] sm:$0xf]
  %v71 = vld [vmem:[%s1 + $0xc0] sm:$0xf]
  %v72 = vld [vmem:[%s1 + $0xc4] sm:$0xf]
  %v73 = vld [vmem:[%s1 + $0xc8] sm:$0xf]
  %v74 = vld [vmem:[%s1 + $0xcc] sm:$0xf]
  %v75 = vld [vmem:[%s1 + $0xd0] sm:$0xf]
  %v76 = vld [vmem:[%s1 + $0xd4] sm:$0xf]
  %v77 = vld [vmem:[%s1 + $0xd8] sm:$0xf]
  %v78 = vld [vmem:[%s1 + $0xdc] sm:$0xf]
  %v79 = vld [vmem:[%s1 + $0xe0] sm:$0xf]
  %v80 = vld [vmem:[%s1 + $0xe4] sm:$0xf]
  %v81 = vld [vmem:[%s1 + $0xe8] sm:$0xf]
  %v82 = vld [vmem:[%s1 + $0xec] sm:$0xf]
  %v83 = vld [vmem:[%s1 + $0xf0] sm:$0xf]
  %v84 = vld [vmem:[%s1 + $0xf4] sm:$0xf]
  %v85 = vld [vmem:[%s1 + $0xf8] sm:$0xf]
  %v86 = vld [vmem:[%s1 + $0xfc] sm:$0xf]
  %v87 = vld [vmem:[%s1 + $0x100] sm:$0xf]
  %v88 = vld [vmem:[%s1 + $0x104] sm:$0xf]
  %v89 = vld [vmem:[%s1 + $0x108] sm:$0xf]
  %v90 = vld [vmem:[%s1 + $0x10c] sm:$0xf]
  %v91 = vld [vmem:[%s1 + $0x110] sm:$0xf]
  %v92 = vld [vmem:[%s1 + $0x114] sm:$0xf]
  %v93 = vld [vmem:[%s1 + $0x118] sm:$0xf]
  %v94 = vld [vmem:[%s1 + $0x11c] sm:$0xf]
  %v95 = vld [vmem:[%s1 + $0x120] sm:$0xf]
  %v96 = vld [vmem:[%s1 + $0x124] sm:$0xf]
  %v97 = vld [vmem:[%s1 + $0x128] sm:$0xf]
  %v98 = vld [vmem:[%s1 + $0x12c] sm:$0xf]
  %v99 = vld [vmem:[%s1 + $0x130] sm:$0xf]
  %v100 = vld [vmem:[%s1 + $0x134] sm:$0xf]
  %v101 = vld [vmem:[%s1 + $0x138] sm:$0xf]
  %v102 = vld [vmem:[%s1 + $0x13c] sm:$0xf]
  %v103 = vld [vmem:[%s1 + $0x140] sm:$0xf]
  %v104 = vld [vmem:[%s1 + $0x144] sm:$0xf]
  %v105 = vld [vmem:[%s1 + $0x148] sm:$0xf]
  %v106 = vld [vmem:[%s1 + $0x14c] sm:$0xf]
  %v107 = vld [vmem:[%s1 + $0x150] sm:$0xf]
  %v108 = vld [vmem:[%s1 + $0x154] sm:$0xf]
  %v109 = vld [vmem:[%s1 + $0x158] sm:$0xf]
  %v110 = vld [vmem:[%s1 + $0x15c] sm:$0xf]
  %v111 = vld [vmem:[%s1 + $0x160] sm:$0xf]
  %v112 = vld [vmem:[%s1 + $0x164] sm:$0xf]
  %v113 = vld [vmem:[%s1 + $0x168] sm:$0xf]
  %v114 = vld [vmem:[%s1 + $0x16c] sm:$0xf]
  %v115 = vld [vmem:[%s1 + $0x170] sm:$0xf]
  %v116 = vld [vmem:[%s1 + $0x174] sm:$0xf]
  %v117 = vld [vmem:[%s1 + $0x178] sm:$0xf]
  %v118 = vld [vmem:[%s1 + $0x17c] sm:$0xf]
  %v119 = vld [vmem:[%s1 + $0x180] sm:$0xf]
  %v120 = vld [vmem:[%s1 + $0x184] sm:$0xf]
  %v121 = vld [vmem:[%s1 + $0x188] sm:$0xf]
  %v122 = vld [vmem:[%s1 + $0x18c] sm:$0xf]
  %v123 = vld [vmem:[%s1 + $0x190] sm:$0xf]
  %v124 = vld [vmem:[%s1 + $0x194] sm:$0xf]
  %v125 = vld [vmem:[%s1 + $0x198] sm:$0xf]
  %v126 = vld [vmem:[%s1 + $0x19c] sm:$0xf]
  %v127 = vld [vmem:[%s1 + $0x1a0] sm:$0xf]
  %v128 = vld [vmem:[%s1 + $0x1a4] sm:$0xf]
  %v129 = vld [vmem:[%s1 + $0x1a8] sm:$0xf]
  %v130 = vld [vmem:[%s1 + $0x1ac] sm:$0xf]
  %v131 = vld [vmem:[%s1 + $0x1b0] sm:$0xf]
  %v132 = vld [vmem:[%s1 + $0x1b4] sm:$0xf]
  %v133 = vld [vmem:[%s1 + $0x1b8] sm:$0xf]
  %v134 = vld [vmem:[%s1 + $0x1bc] sm:$0xf]
  %v135 = vld [vmem:[%s1 + $0x1c0] sm:$0xf]
  %v136 = vld [vmem:[%s1 + $0x1c4] sm:$0xf]
  %v137 = vld [vmem:[%s1 + $0x1c8] sm:$0xf]
  %v138 = vld [vmem:[%s1 + $0x1cc] sm:$0xf]
  %v139 = vld [vmem:[%s1 + $0x1d0] sm:$0xf]
  %v140 = vld [vmem:[%s1 + $0x1d4] sm:$0xf]
  %v141 = vld [vmem:[%s1 + $0x1d8] sm:$0xf]
  %v142 = vld [vmem:[%s1 + $0x1dc] sm:$0xf]
  %v143 = vld [vmem:[%s1 + $0x1e0] sm:$0xf]
  %v144 = vld [vmem:[%s1 + $0x1e4] sm:$0xf]
  %v145 = vld [vmem:[%s1 + $0x1e8] sm:$0xf]
  %v146 = vld [vmem:[%s1 + $0x1ec] sm:$0xf]
  %v147 = vld [vmem:[%s1 + $0x1f0] sm:$0xf]
  %v148 = vld [vmem:[%s1 + $0x1f4] sm:$0xf]
  %v149 = vld [vmem:[%s1 + $0x1f8] sm:$0xf]
  %v150 = vld [vmem:[%s1 + $0x1fc] sm:$0xf]
  %v151 = vld [vmem:[%s1 + $0x200] sm:$0xf]
  %v152 = vld [vmem:[%s1 + $0x204] sm:$0xf]
  %v153 = vld [vmem:[%s1 + $0x208] sm:$0xf]
  %v154 = vld [vmem:[%s1 + $0x20c] sm:$0xf]
  %v155 = vld [vmem:[%s1 + $0x210] sm:$0xf]
  %v156 = vld [vmem:[%s1 + $0x214] sm:$0xf]
  %v157 = vld [vmem:[%s1 + $0x218] sm:$0xf]
  %v158 = vld [vmem:[%s1 + $0x21c] sm:$0xf]
  %v159 = vld [vmem:[%s1 + $0x220] sm:$0xf]
  %v160 = vld [vmem:[%s1 + $0x224] sm:$0xf]
  %v161 = vld [vmem:[%s1 + $0x228] sm:$0xf]
  %v162 = vld [vmem:[%s1 + $0x22c] sm:$0xf]
  %v163 = vld [vmem:[%s1 + $0x230] sm:$0xf]
  %v164 = vld [vmem:[%s1 + $0x234] sm:$0xf]
  %v165 = vld [vmem:[%s1 + $0x238] sm:$0xf]
  %v166 = vld [vmem:[%s1 + $0x23c] sm:$0xf]
  %v167 = vld [vmem:[%s1 + $0x240] sm:$0xf]
  %v168 = vld [vmem:[%s1 + $0x244] sm:$0xf]
  %v169 = vld [vmem:[%s1 + $0x248] sm:$0xf]
  %v170 = vld [vmem:[%s1 + $0x24c] sm:$0xf]
  %v171 = vld [vmem:[%s1 + $0x250] sm:$0xf]
  %v172 = vld [vmem:[%s1 + $0x254] sm:$0xf]
  %v173 = vld [vmem:[%s1 + $0x258] sm:$0xf]
  %v174 = vld [vmem:[%s1 + $0x25c] sm:$0xf]
  %v175 = vld [vmem:[%s1 + $0x260] sm:$0xf]
  %v176 = vld [vmem:[%s1 + $0x264] sm:$0xf]
  %v177 = vld [vmem:[%s1 + $0x268] sm:$0xf]
  %v178 = vld [vmem:[%s1 + $0x26c] sm:$0xf]
  %v179 = vld [vmem:[%s1 + $0x270] sm:$0xf]
  %v180 = vld [vmem:[%s1 + $0x274] sm:$0xf]
  %v181 = vld [vmem:[%s1 + $0x278] sm:$0xf]
  %v182 = vld [vmem:[%s1 + $0x27c] sm:$0xf]
  %v183 = vld [vmem:[%s1 + $0x280] sm:$0xf]
  %v184 = vld [vmem:[%s1 + $0x284] sm:$0xf]
  %v185 = vld [vmem:[%s1 + $0x288] sm:$0xf]
  %v186 = vld [vmem:[%s1 + $0x28c] sm:$0xf]
  %v187 = vld [vmem:[%s1 + $0x290] sm:$0xf]
  %v188 = vld [vmem:[%s1 + $0x294] sm:$0xf]
  %v189 = vld [vmem:[%s1 + $0x298] sm:$0xf]
  %v190 = vld [vmem:[%s1 + $0x29c] sm:$0xf]
  %v191 = vld [vmem:[%s1 + $0x2a0] sm:$0xf]
  %v192 = vld [vmem:[%s1 + $0x2a4] sm:$0xf]
  %v193 = vld [vmem:[%s1 + $0x2a8] sm:$0xf]
  %v194 = vld [vmem:[%s1 + $0x2ac] sm:$0xf]
  %v195 = vld [vmem:[%s1 + $0x2b0] sm:$0xf]
  %v196 = vld [vmem:[%s1 + $0x2b4] sm:$0xf]
  %v197 = vld [vmem:[%s1 + $0x2b8] sm:$0xf]
  %v198 = vld [vmem:[%s1 + $0x2bc] sm:$0xf]
  %v199 = vld [vmem:[%s1 + $0x2c0] sm:$0xf]
  %v200 = vld [vmem:[%s1 + $0x2c4] sm:$0xf]
  %v201 = vld [vmem:[%s1 + $0x2c8] sm:$0xf]
  %v202 = vld [vmem:[%s1 + $0x2cc] sm:$0xf]
  %v203 = vld [vmem:[%s1 + $0x2d0] sm:$0xf]
  %v204 = vld [vmem:[%s1 + $0x2d4] sm:$0xf]
  %v205 = vld [vmem:[%s1 + $0x2d8] sm:$0xf]
  %v206 = vld [vmem:[%s1 + $0x2dc] sm:$0xf]
  %v207 = vld [vmem:[%s1 + $0x2e0] sm:$0xf]
  %v208 = vld [vmem:[%s1 + $0x2e4] sm:$0xf]
  %v209 = vld [vmem:[%s1 + $0x2e8] sm:$0xf]
  %v210 = vld [vmem:[%s1 + $0x2ec] sm:$0xf]
  %v211 = vld [vmem:[%s1 + $0x2f0] sm:$0xf]
  %v212 = vld [vmem:[%s1 + $0x2f4] sm:$0xf]
  %v213 = vld [vmem:[%s1 + $0x2f8] sm:$0xf]
  %v214 = vld [vmem:[%s1 + $0x2fc] sm:$0xf]
  %v215 = vld [vmem:[%s1 + $0x300] sm:$0xf]
  %v216 = vld [vmem:[%s1 + $0x304] sm:$0xf]
  %v217 = vld [vmem:[%s1 + $0x308] sm:$0xf]
  %v218 = vld [vmem:[%s1 + $0x30c] sm:$0xf]
  %v219 = vld [vmem:[%s1 + $0x310] sm:$0xf]
  %v220 = vld [vmem:[%s1 + $0x314] sm:$0xf]
  %v221 = vld [vmem:[%s1 + $0x318] sm:$0xf]
  %v222 = vld [vmem:[%s1 + $0x31c] sm:$0xf]
  %v223 = vld [vmem:[%s1 + $0x320] sm:$0xf]
  %v224 = vld [vmem:[%s1 + $0x324] sm:$0xf]
  %v225 = vld [vmem:[%s1 + $0x328] sm:$0xf]
  %v226 = vld [vmem:[%s1 + $0x32c] sm:$0xf]
  %v227 = vld [vmem:[%s1 + $0x330] sm:$0xf]
  %v228 = vld [vmem:[%s1 + $0x334] sm:$0xf]
  %v229 = vld [vmem:[%s1 + $0x338] sm:$0xf]
  %v230 = vld [vmem:[%s1 + $0x33c] sm:$0xf]
  %v231 = vld [vmem:[%s1 + $0x340] sm:$0xf]
  %v232 = vld [vmem:[%s1 + $0x344] sm:$0xf]
  %v233 = vld [vmem:[%s1 + $0x348] sm:$0xf]
  %v234 = vld [vmem:[%s1 + $0x34c] sm:$0xf]
  %v235 = vld [vmem:[%s1 + $0x350] sm:$0xf]
  %v236 = vld [vmem:[%s1 + $0x354] sm:$0xf]
  %v237 = vld [vmem:[%s1 + $0x358] sm:$0xf]
  %v238 = vld [vmem:[%s1 + $0x35c] sm:$0xf]
  %v239 = vld [vmem:[%s1 + $0x360] sm:$0xf]
  %v240 = vld [vmem:[%s1 + $0x364] sm:$0xf]
  %v241 = vld [vmem:[%s1 + $0x368] sm:$0xf]
  %v242 = vld [vmem:[%s1 + $0x36c] sm:$0xf]
  %v243 = vld [vmem:[%s1 + $0x370] sm:$0xf]
  %v244 = vld [vmem:[%s1 + $0x374] sm:$0xf]
  %v245 = vld [vmem:[%s1 + $0x378] sm:$0xf]
  %v246 = vld [vmem:[%s1 + $0x37c] sm:$0xf]
  %v247 = vld [vmem:[%s1 + $0x380] sm:$0xf]
  %v248 = vld [vmem:[%s1 + $0x384] sm:$0xf]
  %v249 = vld [vmem:[%s1 + $0x388] sm:$0xf]
  %v250 = vld [vmem:[%s1 + $0x38c] sm:$0xf]
  %v251 = vld [vmem:[%s1 + $0x390] sm:$0xf]
  %v252 = vld [vmem:[%s1 + $0x394] sm:$0xf]
  %v253 = vld [vmem:[%s1 + $0x398] sm:$0xf]
  %v254 = vld [vmem:[%s1 + $0x39c] sm:$0xf]
  %v255 = vld [vmem:[%s1 + $0x3a0] sm:$0xf]
  %v256 = vld [vmem:[%s1 + $0x3a4] sm:$0xf]
  %v257 = vld [vmem:[%s1 + $0x3a8] sm:$0xf]
  %v258 = vld [vmem:[%s1 + $0x3ac] sm:$0xf]
  %v259 = vld [vmem:[%s1 + $0x3b0] sm:$0xf]
  %v260 = vld [vmem:[%s1 + $0x3b4] sm:$0xf]
  %v261 = vld [vmem:[%s1 + $0x3b8] sm:$0xf]
  %v262 = vld [vmem:[%s1 + $0x3bc] sm:$0xf]
  %v263 = vld [vmem:[%s1 + $0x3c0] sm:$0xf]
  %v264 = vld [vmem:[%s1 + $0x3c4] sm:$0xf]
  %v265 = vld [vmem:[%s1 + $0x3c8] sm:$0xf]
  %v266 = vld [vmem:[%s1 + $0x3cc] sm:$0xf]
  %v267 = vld [vmem:[%s1 + $0x3d0] sm:$0xf]
  %v268 = vld [vmem:[%s1 + $0x3d4] sm:$0xf]
  %v269 = vld [vmem:[%s1 + $0x3d8] sm:$0xf]
  %v270 = vld [vmem:[%s1 + $0x3dc] sm:$0xf]
  %v271 = vld [vmem:[%s1 + $0x3e0] sm:$0xf]
  %v272 = vld [vmem:[%s1 + $0x3e4] sm:$0xf]
  %v273 = vld [vmem:[%s1 + $0x3e8] sm:$0xf]
  %v274 = vld [vmem:[%s1 + $0x3ec] sm:$0xf]
  %v275 = vld [vmem:[%s1 + $0x3f0] sm:$0xf]
  %v276 = vld [vmem:[%s1 + $0x3f4] sm:$0xf]
  %v277 = vld [vmem:[%s1 + $0x3f8] sm:$0xf]
  %v278 = vld [vmem:[%s1 + $0x3fc] sm:$0xf]
  %v279 = vld [vmem:[%s2] sm:$0xff]
  %281 = vset.pattern.permute.xlu0 0
  %282 = vperm.xlu0 %281, %v279
  %v283 = vpop.permute.xlu0 %282
  %v293 = vunpack.c.l.b16 %v15
  %v294 = vunpack.c.h.b16 %v15
  %v295 = vunpack.c.l.b16 %v16
  %v296 = vunpack.c.h.b16 %v16
  %v297 = vunpack.c.l.b16 %v17
  %v298 = vunpack.c.h.b16 %v17
  %v299 = vunpack.c.l.b16 %v18
  %v300 = vunpack.c.h.b16 %v18
  %v301 = vunpack.c.l.b16 %v19
  %v302 = vunpack.c.h.b16 %v19
  %v303 = vunpack.c.l.b16 %v20
  %v304 = vunpack.c.h.b16 %v20
  %v305 = vunpack.c.l.b16 %v21
  %v306 = vunpack.c.h.b16 %v21
  %v307 = vunpack.c.l.b16 %v22
  %v308 = vunpack.c.h.b16 %v22
  %v309 = vpack.c.b16 %v293, %v293
  %v310 = vpack.c.b16 %v294, %v294
  %v311 = vpack.c.b16 %v295, %v295
  %v312 = vpack.c.b16 %v296, %v296
  %v313 = vpack.c.b16 %v297, %v297
  %v314 = vpack.c.b16 %v298, %v298
  %v315 = vpack.c.b16 %v299, %v299
  %v316 = vpack.c.b16 %v300, %v300
  %v317 = vpack.c.b16 %v301, %v301
  %v318 = vpack.c.b16 %v302, %v302
  %v319 = vpack.c.b16 %v303, %v303
  %v320 = vpack.c.b16 %v304, %v304
  %v321 = vpack.c.b16 %v305, %v305
  %v322 = vpack.c.b16 %v306, %v306
  %v323 = vpack.c.b16 %v307, %v307
  %v324 = vpack.c.b16 %v308, %v308
  %v597 = vunpack.c.l.b16 %v23
  %v598 = vunpack.c.l.b16 %v24
  %v599 = vunpack.c.l.b16 %v25
  %v600 = vunpack.c.l.b16 %v26
  %v601 = vunpack.c.l.b16 %v27
  %v602 = vunpack.c.l.b16 %v28
  %v603 = vunpack.c.l.b16 %v29
  %v604 = vunpack.c.l.b16 %v30
  %v605 = vunpack.c.l.b16 %v31
  %v606 = vunpack.c.l.b16 %v32
  %v607 = vunpack.c.l.b16 %v33
  %v608 = vunpack.c.l.b16 %v34
  %v609 = vunpack.c.l.b16 %v35
  %v610 = vunpack.c.l.b16 %v36
  %v611 = vunpack.c.l.b16 %v37
  %v612 = vunpack.c.l.b16 %v38
  %v613 = vunpack.c.l.b16 %v39
  %v614 = vunpack.c.l.b16 %v40
  %v615 = vunpack.c.l.b16 %v41
  %v616 = vunpack.c.l.b16 %v42
  %v617 = vunpack.c.l.b16 %v43
  %v618 = vunpack.c.l.b16 %v44
  %v619 = vunpack.c.l.b16 %v45
  %v620 = vunpack.c.l.b16 %v46
  %v621 = vunpack.c.l.b16 %v47
  %v622 = vunpack.c.l.b16 %v48
  %v623 = vunpack.c.l.b16 %v49
  %v624 = vunpack.c.l.b16 %v50
  %v625 = vunpack.c.l.b16 %v51
  %v626 = vunpack.c.l.b16 %v52
  %v627 = vunpack.c.l.b16 %v53
  %v628 = vunpack.c.l.b16 %v54
  %v629 = vunpack.c.l.b16 %v55
  %v630 = vunpack.c.l.b16 %v56
  %v631 = vunpack.c.l.b16 %v57
  %v632 = vunpack.c.l.b16 %v58
  %v633 = vunpack.c.l.b16 %v59
  %v634 = vunpack.c.l.b16 %v60
  %v635 = vunpack.c.l.b16 %v61
  %v636 = vunpack.c.l.b16 %v62
  %v637 = vunpack.c.l.b16 %v63
  %v638 = vunpack.c.l.b16 %v64
  %v639 = vunpack.c.l.b16 %v65
  %v640 = vunpack.c.l.b16 %v66
  %v641 = vunpack.c.l.b16 %v67
  %v642 = vunpack.c.l.b16 %v68
  %v643 = vunpack.c.l.b16 %v69
  %v644 = vunpack.c.l.b16 %v70
  %v645 = vunpack.c.l.b16 %v71
  %v646 = vunpack.c.l.b16 %v72
  %v647 = vunpack.c.l.b16 %v73
  %v648 = vunpack.c.l.b16 %v74
  %v649 = vunpack.c.l.b16 %v75
  %v650 = vunpack.c.l.b16 %v76
  %v651 = vunpack.c.l.b16 %v77
  %v652 = vunpack.c.l.b16 %v78
  %v653 = vunpack.c.l.b16 %v79
  %v654 = vunpack.c.l.b16 %v80
  %v655 = vunpack.c.l.b16 %v81
  %v656 = vunpack.c.l.b16 %v82
  %v657 = vunpack.c.l.b16 %v83
  %v658 = vunpack.c.l.b16 %v84
  %v659 = vunpack.c.l.b16 %v85
  %v660 = vunpack.c.l.b16 %v86
  %v661 = vunpack.c.l.b16 %v87
  %v662 = vunpack.c.l.b16 %v88
  %v663 = vunpack.c.l.b16 %v89
  %v664 = vunpack.c.l.b16 %v90
  %v665 = vunpack.c.l.b16 %v91
  %v666 = vunpack.c.l.b16 %v92
  %v667 = vunpack.c.l.b16 %v93
  %v668 = vunpack.c.l.b16 %v94
  %v669 = vunpack.c.l.b16 %v95
  %v670 = vunpack.c.l.b16 %v96
  %v671 = vunpack.c.l.b16 %v97
  %v672 = vunpack.c.l.b16 %v98
  %v673 = vunpack.c.l.b16 %v99
  %v674 = vunpack.c.l.b16 %v100
  %v675 = vunpack.c.l.b16 %v101
  %v676 = vunpack.c.l.b16 %v102
  %v677 = vunpack.c.l.b16 %v103
  %v678 = vunpack.c.l.b16 %v104
  %v679 = vunpack.c.l.b16 %v105
  %v680 = vunpack.c.l.b16 %v106
  %v681 = vunpack.c.l.b16 %v107
  %v682 = vunpack.c.l.b16 %v108
  %v683 = vunpack.c.l.b16 %v109
  %v684 = vunpack.c.l.b16 %v110
  %v685 = vunpack.c.l.b16 %v111
  %v686 = vunpack.c.l.b16 %v112
  %v687 = vunpack.c.l.b16 %v113
  %v688 = vunpack.c.l.b16 %v114
  %v689 = vunpack.c.l.b16 %v115
  %v690 = vunpack.c.l.b16 %v116
  %v691 = vunpack.c.l.b16 %v117
  %v692 = vunpack.c.l.b16 %v118
  %v693 = vunpack.c.l.b16 %v119
  %v694 = vunpack.c.l.b16 %v120
  %v695 = vunpack.c.l.b16 %v121
  %v696 = vunpack.c.l.b16 %v122
  %v697 = vunpack.c.l.b16 %v123
  %v698 = vunpack.c.l.b16 %v124
  %v699 = vunpack.c.l.b16 %v125
  %v700 = vunpack.c.l.b16 %v126
  %v701 = vunpack.c.l.b16 %v127
  %v702 = vunpack.c.l.b16 %v128
  %v703 = vunpack.c.l.b16 %v129
  %v704 = vunpack.c.l.b16 %v130
  %v705 = vunpack.c.l.b16 %v131
  %v706 = vunpack.c.l.b16 %v132
  %v707 = vunpack.c.l.b16 %v133
  %v708 = vunpack.c.l.b16 %v134
  %v709 = vunpack.c.l.b16 %v135
  %v710 = vunpack.c.l.b16 %v136
  %v711 = vunpack.c.l.b16 %v137
  %v712 = vunpack.c.l.b16 %v138
  %v713 = vunpack.c.l.b16 %v139
  %v714 = vunpack.c.l.b16 %v140
  %v715 = vunpack.c.l.b16 %v141
  %v716 = vunpack.c.l.b16 %v142
  %v717 = vunpack.c.l.b16 %v143
  %v718 = vunpack.c.l.b16 %v144
  %v719 = vunpack.c.l.b16 %v145
  %v720 = vunpack.c.l.b16 %v146
  %v721 = vunpack.c.l.b16 %v147
  %v722 = vunpack.c.l.b16 %v148
  %v723 = vunpack.c.l.b16 %v149
  %v724 = vunpack.c.l.b16 %v150
  %v725 = vunpack.c.l.b16 %v151
  %v726 = vunpack.c.l.b16 %v152
  %v727 = vunpack.c.l.b16 %v153
  %v728 = vunpack.c.l.b16 %v154
  %v729 = vunpack.c.l.b16 %v155
  %v730 = vunpack.c.l.b16 %v156
  %v731 = vunpack.c.l.b16 %v157
  %v732 = vunpack.c.l.b16 %v158
  %v733 = vunpack.c.l.b16 %v159
  %v734 = vunpack.c.l.b16 %v160
  %v735 = vunpack.c.l.b16 %v161
  %v736 = vunpack.c.l.b16 %v162
  %v737 = vunpack.c.l.b16 %v163
  %v738 = vunpack.c.l.b16 %v164
  %v739 = vunpack.c.l.b16 %v165
  %v740 = vunpack.c.l.b16 %v166
  %v741 = vunpack.c.l.b16 %v167
  %v742 = vunpack.c.l.b16 %v168
  %v743 = vunpack.c.l.b16 %v169
  %v744 = vunpack.c.l.b16 %v170
  %v745 = vunpack.c.l.b16 %v171
  %v746 = vunpack.c.l.b16 %v172
  %v747 = vunpack.c.l.b16 %v173
  %v748 = vunpack.c.l.b16 %v174
  %v749 = vunpack.c.l.b16 %v175
  %v750 = vunpack.c.l.b16 %v176
  %v751 = vunpack.c.l.b16 %v177
  %v752 = vunpack.c.l.b16 %v178
  %v753 = vunpack.c.l.b16 %v179
  %v754 = vunpack.c.l.b16 %v180
  %v755 = vunpack.c.l.b16 %v181
  %v756 = vunpack.c.l.b16 %v182
  %v757 = vunpack.c.l.b16 %v183
  %v758 = vunpack.c.l.b16 %v184
  %v759 = vunpack.c.l.b16 %v185
  %v760 = vunpack.c.l.b16 %v186
  %v761 = vunpack.c.l.b16 %v187
  %v762 = vunpack.c.l.b16 %v188
  %v763 = vunpack.c.l.b16 %v189
  %v764 = vunpack.c.l.b16 %v190
  %v765 = vunpack.c.l.b16 %v191
  %v766 = vunpack.c.l.b16 %v192
  %v767 = vunpack.c.l.b16 %v193
  %v768 = vunpack.c.l.b16 %v194
  %v769 = vunpack.c.l.b16 %v195
  %v770 = vunpack.c.l.b16 %v196
  %v771 = vunpack.c.l.b16 %v197
  %v772 = vunpack.c.l.b16 %v198
  %v773 = vunpack.c.l.b16 %v199
  %v774 = vunpack.c.l.b16 %v200
  %v775 = vunpack.c.l.b16 %v201
  %v776 = vunpack.c.l.b16 %v202
  %v777 = vunpack.c.l.b16 %v203
  %v778 = vunpack.c.l.b16 %v204
  %v779 = vunpack.c.l.b16 %v205
  %v780 = vunpack.c.l.b16 %v206
  %v781 = vunpack.c.l.b16 %v207
  %v782 = vunpack.c.l.b16 %v208
  %v783 = vunpack.c.l.b16 %v209
  %v784 = vunpack.c.l.b16 %v210
  %v785 = vunpack.c.l.b16 %v211
  %v786 = vunpack.c.l.b16 %v212
  %v787 = vunpack.c.l.b16 %v213
  %v788 = vunpack.c.l.b16 %v214
  %v789 = vunpack.c.l.b16 %v215
  %v790 = vunpack.c.l.b16 %v216
  %v791 = vunpack.c.l.b16 %v217
  %v792 = vunpack.c.l.b16 %v218
  %v793 = vunpack.c.l.b16 %v219
  %v794 = vunpack.c.l.b16 %v220
  %v795 = vunpack.c.l.b16 %v221
  %v796 = vunpack.c.l.b16 %v222
  %v797 = vunpack.c.l.b16 %v223
  %v798 = vunpack.c.l.b16 %v224
  %v799 = vunpack.c.l.b16 %v225
  %v800 = vunpack.c.l.b16 %v226
  %v801 = vunpack.c.l.b16 %v227
  %v802 = vunpack.c.l.b16 %v228
  %v803 = vunpack.c.l.b16 %v229
  %v804 = vunpack.c.l.b16 %v230
  %v805 = vunpack.c.l.b16 %v231
  %v806 = vunpack.c.l.b16 %v232
  %v807 = vunpack.c.l.b16 %v233
  %v808 = vunpack.c.l.b16 %v234
  %v809 = vunpack.c.l.b16 %v235
  %v810 = vunpack.c.l.b16 %v236
  %v811 = vunpack.c.l.b16 %v237
  %v812 = vunpack.c.l.b16 %v238
  %v813 = vunpack.c.l.b16 %v239
  %v814 = vunpack.c.l.b16 %v240
  %v815 = vunpack.c.l.b16 %v241
  %v816 = vunpack.c.l.b16 %v242
  %v817 = vunpack.c.l.b16 %v243
  %v818 = vunpack.c.l.b16 %v244
  %v819 = vunpack.c.l.b16 %v245
  %v820 = vunpack.c.l.b16 %v246
  %v821 = vunpack.c.l.b16 %v247
  %v822 = vunpack.c.l.b16 %v248
  %v823 = vunpack.c.l.b16 %v249
  %v824 = vunpack.c.l.b16 %v250
  %v825 = vunpack.c.l.b16 %v251
  %v826 = vunpack.c.l.b16 %v252
  %v827 = vunpack.c.l.b16 %v253
  %v828 = vunpack.c.l.b16 %v254
  %v829 = vunpack.c.l.b16 %v255
  %v830 = vunpack.c.l.b16 %v256
  %v831 = vunpack.c.l.b16 %v257
  %v832 = vunpack.c.l.b16 %v258
  %v833 = vunpack.c.l.b16 %v259
  %v834 = vunpack.c.l.b16 %v260
  %v835 = vunpack.c.l.b16 %v261
  %v836 = vunpack.c.l.b16 %v262
  %v837 = vunpack.c.l.b16 %v263
  %v838 = vunpack.c.l.b16 %v264
  %v839 = vunpack.c.l.b16 %v265
  %v840 = vunpack.c.l.b16 %v266
  %v841 = vunpack.c.l.b16 %v267
  %v842 = vunpack.c.l.b16 %v268
  %v843 = vunpack.c.l.b16 %v269
  %v844 = vunpack.c.l.b16 %v270
  %v845 = vunpack.c.l.b16 %v271
  %v846 = vunpack.c.l.b16 %v272
  %v847 = vunpack.c.l.b16 %v273
  %v848 = vunpack.c.l.b16 %v274
  %v849 = vunpack.c.l.b16 %v275
  %v850 = vunpack.c.l.b16 %v276
  %v851 = vunpack.c.l.b16 %v277
  %v852 = vunpack.c.l.b16 %v278
  %v853 = vpack.c.b16 %v598, %v597
  %v854 = vpack.c.b16 %v600, %v599
  %v855 = vpack.c.b16 %v602, %v601
  %v856 = vpack.c.b16 %v604, %v603
  %v857 = vpack.c.b16 %v606, %v605
  %v858 = vpack.c.b16 %v608, %v607
  %v859 = vpack.c.b16 %v610, %v609
  %v860 = vpack.c.b16 %v612, %v611
  %v861 = vpack.c.b16 %v614, %v613
  %v862 = vpack.c.b16 %v616, %v615
  %v863 = vpack.c.b16 %v618, %v617
  %v864 = vpack.c.b16 %v620, %v619
  %v865 = vpack.c.b16 %v622, %v621
  %v866 = vpack.c.b16 %v624, %v623
  %v867 = vpack.c.b16 %v626, %v625
  %v868 = vpack.c.b16 %v628, %v627
  %v869 = vpack.c.b16 %v630, %v629
  %v870 = vpack.c.b16 %v632, %v631
  %v871 = vpack.c.b16 %v634, %v633
  %v872 = vpack.c.b16 %v636, %v635
  %v873 = vpack.c.b16 %v638, %v637
  %v874 = vpack.c.b16 %v640, %v639
  %v875 = vpack.c.b16 %v642, %v641
  %v876 = vpack.c.b16 %v644, %v643
  %v877 = vpack.c.b16 %v646, %v645
  %v878 = vpack.c.b16 %v648, %v647
  %v879 = vpack.c.b16 %v650, %v649
  %v880 = vpack.c.b16 %v652, %v651
  %v881 = vpack.c.b16 %v654, %v653
  %v882 = vpack.c.b16 %v656, %v655
  %v883 = vpack.c.b16 %v658, %v657
  %v884 = vpack.c.b16 %v660, %v659
  %v885 = vpack.c.b16 %v662, %v661
  %v886 = vpack.c.b16 %v664, %v663
  %v887 = vpack.c.b16 %v666, %v665
  %v888 = vpack.c.b16 %v668, %v667
  %v889 = vpack.c.b16 %v670, %v669
  %v890 = vpack.c.b16 %v672, %v671
  %v891 = vpack.c.b16 %v674, %v673
  %v892 = vpack.c.b16 %v676, %v675
  %v893 = vpack.c.b16 %v678, %v677
  %v894 = vpack.c.b16 %v680, %v679
  %v895 = vpack.c.b16 %v682, %v681
  %v896 = vpack.c.b16 %v684, %v683
  %v897 = vpack.c.b16 %v686, %v685
  %v898 = vpack.c.b16 %v688, %v687
  %v899 = vpack.c.b16 %v690, %v689
  %v900 = vpack.c.b16 %v692, %v691
  %v901 = vpack.c.b16 %v694, %v693
  %v902 = vpack.c.b16 %v696, %v695
  %v903 = vpack.c.b16 %v698, %v697
  %v904 = vpack.c.b16 %v700, %v699
  %v905 = vpack.c.b16 %v702, %v701
  %v906 = vpack.c.b16 %v704, %v703
  %v907 = vpack.c.b16 %v706, %v705
  %v908 = vpack.c.b16 %v708, %v707
  %v909 = vpack.c.b16 %v710, %v709
  %v910 = vpack.c.b16 %v712, %v711
  %v911 = vpack.c.b16 %v714, %v713
  %v912 = vpack.c.b16 %v716, %v715
  %v913 = vpack.c.b16 %v718, %v717
  %v914 = vpack.c.b16 %v720, %v719
  %v915 = vpack.c.b16 %v722, %v721
  %v916 = vpack.c.b16 %v724, %v723
  %v917 = vpack.c.b16 %v726, %v725
  %v918 = vpack.c.b16 %v728, %v727
  %v919 = vpack.c.b16 %v730, %v729
  %v920 = vpack.c.b16 %v732, %v731
  %v921 = vpack.c.b16 %v734, %v733
  %v922 = vpack.c.b16 %v736, %v735
  %v923 = vpack.c.b16 %v738, %v737
  %v924 = vpack.c.b16 %v740, %v739
  %v925 = vpack.c.b16 %v742, %v741
  %v926 = vpack.c.b16 %v744, %v743
  %v927 = vpack.c.b16 %v746, %v745
  %v928 = vpack.c.b16 %v748, %v747
  %v929 = vpack.c.b16 %v750, %v749
  %v930 = vpack.c.b16 %v752, %v751
  %v931 = vpack.c.b16 %v754, %v753
  %v932 = vpack.c.b16 %v756, %v755
  %v933 = vpack.c.b16 %v758, %v757
  %v934 = vpack.c.b16 %v760, %v759
  %v935 = vpack.c.b16 %v762, %v761
  %v936 = vpack.c.b16 %v764, %v763
  %v937 = vpack.c.b16 %v766, %v765
  %v938 = vpack.c.b16 %v768, %v767
  %v939 = vpack.c.b16 %v770, %v769
  %v940 = vpack.c.b16 %v772, %v771
  %v941 = vpack.c.b16 %v774, %v773
  %v942 = vpack.c.b16 %v776, %v775
  %v943 = vpack.c.b16 %v778, %v777
  %v944 = vpack.c.b16 %v780, %v779
  %v945 = vpack.c.b16 %v782, %v781
  %v946 = vpack.c.b16 %v784, %v783
  %v947 = vpack.c.b16 %v786, %v785
  %v948 = vpack.c.b16 %v788, %v787
  %v949 = vpack.c.b16 %v790, %v789
  %v950 = vpack.c.b16 %v792, %v791
  %v951 = vpack.c.b16 %v794, %v793
  %v952 = vpack.c.b16 %v796, %v795
  %v953 = vpack.c.b16 %v798, %v797
  %v954 = vpack.c.b16 %v800, %v799
  %v955 = vpack.c.b16 %v802, %v801
  %v956 = vpack.c.b16 %v804, %v803
  %v957 = vpack.c.b16 %v806, %v805
  %v958 = vpack.c.b16 %v808, %v807
  %v959 = vpack.c.b16 %v810, %v809
  %v960 = vpack.c.b16 %v812, %v811
  %v961 = vpack.c.b16 %v814, %v813
  %v962 = vpack.c.b16 %v816, %v815
  %v963 = vpack.c.b16 %v818, %v817
  %v964 = vpack.c.b16 %v820, %v819
  %v965 = vpack.c.b16 %v822, %v821
  %v966 = vpack.c.b16 %v824, %v823
  %v967 = vpack.c.b16 %v826, %v825
  %v968 = vpack.c.b16 %v828, %v827
  %v969 = vpack.c.b16 %v830, %v829
  %v970 = vpack.c.b16 %v832, %v831
  %v971 = vpack.c.b16 %v834, %v833
  %v972 = vpack.c.b16 %v836, %v835
  %v973 = vpack.c.b16 %v838, %v837
  %v974 = vpack.c.b16 %v840, %v839
  %v975 = vpack.c.b16 %v842, %v841
  %v976 = vpack.c.b16 %v844, %v843
  %v977 = vpack.c.b16 %v846, %v845
  %v978 = vpack.c.b16 %v848, %v847
  %v979 = vpack.c.b16 %v850, %v849
  %v980 = vpack.c.b16 %v852, %v851
  %1109 = vmatprep.subr.bf16.mxu0 0
  %1110 = vmatpush1.bf16.msra.mxu0 %v853
  %1111 = vmatprep.subr.bf16.mxu0 0
  %1112 = vmatpush1.bf16.msra.mxu0 %v854
  %1113 = vmatprep.subr.bf16.mxu0 0
  %1114 = vmatpush1.bf16.msra.mxu0 %v855
  %1115 = vmatprep.subr.bf16.mxu0 0
  %1116 = vmatpush1.bf16.msra.mxu0 %v856
  %1117 = vmatprep.subr.bf16.mxu0 0
  %1118 = vmatpush1.bf16.msra.mxu0 %v857
  %1119 = vmatprep.subr.bf16.mxu0 0
  %1120 = vmatpush1.bf16.msra.mxu0 %v858
  %1121 = vmatprep.subr.bf16.mxu0 0
  %1122 = vmatpush1.bf16.msra.mxu0 %v859
  %1123 = vmatprep.subr.bf16.mxu0 0
  %1124 = vmatpush1.bf16.msra.mxu0 %v860
  %1125 = vmatprep.subr.bf16.mxu0 0
  %1126 = vmatpush1.bf16.msra.mxu0 %v861
  %1127 = vmatprep.subr.bf16.mxu0 0
  %1128 = vmatpush1.bf16.msra.mxu0 %v862
  %1129 = vmatprep.subr.bf16.mxu0 0
  %1130 = vmatpush1.bf16.msra.mxu0 %v863
  %1131 = vmatprep.subr.bf16.mxu0 0
  %1132 = vmatpush1.bf16.msra.mxu0 %v864
  %1133 = vmatprep.subr.bf16.mxu0 0
  %1134 = vmatpush1.bf16.msra.mxu0 %v865
  %1135 = vmatprep.subr.bf16.mxu0 0
  %1136 = vmatpush1.bf16.msra.mxu0 %v866
  %1137 = vmatprep.subr.bf16.mxu0 0
  %1138 = vmatpush1.bf16.msra.mxu0 %v867
  %1139 = vmatprep.subr.bf16.mxu0 0
  %1140 = vmatpush1.bf16.msra.mxu0 %v868
  %1141 = vmatprep.mubr.bf16.mxu0 %v310
  %1142 = vmatmul.mubr.bf16.gmra.mrb[0].mxu0 %v309
  %v1143 = vpop.f32.mrb[0].mxu0
  %v1144 = vadd.f32 %v283, %v1143
  %v1145 = vpop.f32.mrb[0].mxu0
  %v1146 = vpop.f32.mrb[0].mxu0
  %v1147 = vpop.f32.mrb[0].mxu0
  %1148 = vdwg.mxu0
  %1149 = vmatprep.subr.bf16.mxu0 0
  %1150 = vmatpush1.bf16.msra.mxu0 %v869
  %1151 = vmatprep.subr.bf16.mxu0 0
  %1152 = vmatpush1.bf16.msra.mxu0 %v870
  %1153 = vmatprep.subr.bf16.mxu0 0
  %1154 = vmatpush1.bf16.msra.mxu0 %v871
  %1155 = vmatprep.subr.bf16.mxu0 0
  %1156 = vmatpush1.bf16.msra.mxu0 %v872
  %1157 = vmatprep.subr.bf16.mxu0 0
  %1158 = vmatpush1.bf16.msra.mxu0 %v873
  %1159 = vmatprep.subr.bf16.mxu0 0
  %1160 = vmatpush1.bf16.msra.mxu0 %v874
  %1161 = vmatprep.subr.bf16.mxu0 0
  %1162 = vmatpush1.bf16.msra.mxu0 %v875
  %1163 = vmatprep.subr.bf16.mxu0 0
  %1164 = vmatpush1.bf16.msra.mxu0 %v876
  %1165 = vmatprep.subr.bf16.mxu0 0
  %1166 = vmatpush1.bf16.msra.mxu0 %v877
  %1167 = vmatprep.subr.bf16.mxu0 0
  %1168 = vmatpush1.bf16.msra.mxu0 %v878
  %1169 = vmatprep.subr.bf16.mxu0 0
  %1170 = vmatpush1.bf16.msra.mxu0 %v879
  %1171 = vmatprep.subr.bf16.mxu0 0
  %1172 = vmatpush1.bf16.msra.mxu0 %v880
  %1173 = vmatprep.subr.bf16.mxu0 0
  %1174 = vmatpush1.bf16.msra.mxu0 %v881
  %1175 = vmatprep.subr.bf16.mxu0 0
  %1176 = vmatpush1.bf16.msra.mxu0 %v882
  %1177 = vmatprep.subr.bf16.mxu0 0
  %1178 = vmatpush1.bf16.msra.mxu0 %v883
  %1179 = vmatprep.subr.bf16.mxu0 0
  %1180 = vmatpush1.bf16.msra.mxu0 %v884
  %1181 = vmatprep.mubr.bf16.mxu0 %v312
  %1182 = vmatmul.mubr.bf16.gmra.mrb[0].mxu0 %v311
  %v1183 = vpop.f32.mrb[0].mxu0
  %v1184 = vadd.f32 %v1144, %v1183
  %v1185 = vpop.f32.mrb[0].mxu0
  %v1186 = vpop.f32.mrb[0].mxu0
  %v1187 = vpop.f32.mrb[0].mxu0
  %1188 = vdwg.mxu0
  %1189 = vmatprep.subr.bf16.mxu0 0
  %1190 = vmatpush1.bf16.msra.mxu0 %v885
  %1191 = vmatprep.subr.bf16.mxu0 0
  %1192 = vmatpush1.bf16.msra.mxu0 %v886
  %1193 = vmatprep.subr.bf16.mxu0 0
  %1194 = vmatpush1.bf16.msra.mxu0 %v887
  %1195 = vmatprep.subr.bf16.mxu0 0
  %1196 = vmatpush1.bf16.msra.mxu0 %v888
  %1197 = vmatprep.subr.bf16.mxu0 0
  %1198 = vmatpush1.bf16.msra.mxu0 %v889
  %1199 = vmatprep.subr.bf16.mxu0 0
  %1200 = vmatpush1.bf16.msra.mxu0 %v890
  %1201 = vmatprep.subr.bf16.mxu0 0
  %1202 = vmatpush1.bf16.msra.mxu0 %v891
  %1203 = vmatprep.subr.bf16.mxu0 0
  %1204 = vmatpush1.bf16.msra.mxu0 %v892
  %1205 = vmatprep.subr.bf16.mxu0 0
  %1206 = vmatpush1.bf16.msra.mxu0 %v893
  %1207 = vmatprep.subr.bf16.mxu0 0
  %1208 = vmatpush1.bf16.msra.mxu0 %v894
  %1209 = vmatprep.subr.bf16.mxu0 0
  %1210 = vmatpush1.bf16.msra.mxu0 %v895
  %1211 = vmatprep.subr.bf16.mxu0 0
  %1212 = vmatpush1.bf16.msra.mxu0 %v896
  %1213 = vmatprep.subr.bf16.mxu0 0
  %1214 = vmatpush1.bf16.msra.mxu0 %v897
  %1215 = vmatprep.subr.bf16.mxu0 0
  %1216 = vmatpush1.bf16.msra.mxu0 %v898
  %1217 = vmatprep.subr.bf16.mxu0 0
  %1218 = vmatpush1.bf16.msra.mxu0 %v899
  %1219 = vmatprep.subr.bf16.mxu0 0
  %1220 = vmatpush1.bf16.msra.mxu0 %v900
  %1221 = vmatprep.mubr.bf16.mxu0 %v314
  %1222 = vmatmul.mubr.bf16.gmra.mrb[0].mxu0 %v313
  %v1223 = vpop.f32.mrb[0].mxu0
  %v1224 = vadd.f32 %v1184, %v1223
  %v1225 = vpop.f32.mrb[0].mxu0
  %v1226 = vpop.f32.mrb[0].mxu0
  %v1227 = vpop.f32.mrb[0].mxu0
  %1228 = vdwg.mxu0
  %1229 = vmatprep.subr.bf16.mxu0 0
  %1230 = vmatpush1.bf16.msra.mxu0 %v901
  %1231 = vmatprep.subr.bf16.mxu0 0
  %1232 = vmatpush1.bf16.msra.mxu0 %v902
  %1233 = vmatprep.subr.bf16.mxu0 0
  %1234 = vmatpush1.bf16.msra.mxu0 %v903
  %1235 = vmatprep.subr.bf16.mxu0 0
  %1236 = vmatpush1.bf16.msra.mxu0 %v904
  %1237 = vmatprep.subr.bf16.mxu0 0
  %1238 = vmatpush1.bf16.msra.mxu0 %v905
  %1239 = vmatprep.subr.bf16.mxu0 0
  %1240 = vmatpush1.bf16.msra.mxu0 %v906
  %1241 = vmatprep.subr.bf16.mxu0 0
  %1242 = vmatpush1.bf16.msra.mxu0 %v907
  %1243 = vmatprep.subr.bf16.mxu0 0
  %1244 = vmatpush1.bf16.msra.mxu0 %v908
  %1245 = vmatprep.subr.bf16.mxu0 0
  %1246 = vmatpush1.bf16.msra.mxu0 %v909
  %1247 = vmatprep.subr.bf16.mxu0 0
  %1248 = vmatpush1.bf16.msra.mxu0 %v910
  %1249 = vmatprep.subr.bf16.mxu0 0
  %1250 = vmatpush1.bf16.msra.mxu0 %v911
  %1251 = vmatprep.subr.bf16.mxu0 0
  %1252 = vmatpush1.bf16.msra.mxu0 %v912
  %1253 = vmatprep.subr.bf16.mxu0 0
  %1254 = vmatpush1.bf16.msra.mxu0 %v913
  %1255 = vmatprep.subr.bf16.mxu0 0
  %1256 = vmatpush1.bf16.msra.mxu0 %v914
  %1257 = vmatprep.subr.bf16.mxu0 0
  %1258 = vmatpush1.bf16.msra.mxu0 %v915
  %1259 = vmatprep.subr.bf16.mxu0 0
  %1260 = vmatpush1.bf16.msra.mxu0 %v916
  %1261 = vmatprep.mubr.bf16.mxu0 %v316
  %1262 = vmatmul.mubr.bf16.gmra.mrb[0].mxu0 %v315
  %v1263 = vpop.f32.mrb[0].mxu0
  %v1264 = vadd.f32 %v1224, %v1263
  %v1265 = vpop.f32.mrb[0].mxu0
  %v1266 = vpop.f32.mrb[0].mxu0
  %v1267 = vpop.f32.mrb[0].mxu0
  %1268 = vdwg.mxu0
  %1269 = vmatprep.subr.bf16.mxu0 0
  %1270 = vmatpush1.bf16.msra.mxu0 %v917
  %1271 = vmatprep.subr.bf16.mxu0 0
  %1272 = vmatpush1.bf16.msra.mxu0 %v918
  %1273 = vmatprep.subr.bf16.mxu0 0
  %1274 = vmatpush1.bf16.msra.mxu0 %v919
  %1275 = vmatprep.subr.bf16.mxu0 0
  %1276 = vmatpush1.bf16.msra.mxu0 %v920
  %1277 = vmatprep.subr.bf16.mxu0 0
  %1278 = vmatpush1.bf16.msra.mxu0 %v921
  %1279 = vmatprep.subr.bf16.mxu0 0
  %1280 = vmatpush1.bf16.msra.mxu0 %v922
  %1281 = vmatprep.subr.bf16.mxu0 0
  %1282 = vmatpush1.bf16.msra.mxu0 %v923
  %1283 = vmatprep.subr.bf16.mxu0 0
  %1284 = vmatpush1.bf16.msra.mxu0 %v924
  %1285 = vmatprep.subr.bf16.mxu0 0
  %1286 = vmatpush1.bf16.msra.mxu0 %v925
  %1287 = vmatprep.subr.bf16.mxu0 0
  %1288 = vmatpush1.bf16.msra.mxu0 %v926
  %1289 = vmatprep.subr.bf16.mxu0 0
  %1290 = vmatpush1.bf16.msra.mxu0 %v927
  %1291 = vmatprep.subr.bf16.mxu0 0
  %1292 = vmatpush1.bf16.msra.mxu0 %v928
  %1293 = vmatprep.subr.bf16.mxu0 0
  %1294 = vmatpush1.bf16.msra.mxu0 %v929
  %1295 = vmatprep.subr.bf16.mxu0 0
  %1296 = vmatpush1.bf16.msra.mxu0 %v930
  %1297 = vmatprep.subr.bf16.mxu0 0
  %1298 = vmatpush1.bf16.msra.mxu0 %v931
  %1299 = vmatprep.subr.bf16.mxu0 0
  %1300 = vmatpush1.bf16.msra.mxu0 %v932
  %1301 = vmatprep.mubr.bf16.mxu0 %v318
  %1302 = vmatmul.mubr.bf16.gmra.mrb[0].mxu0 %v317
  %v1303 = vpop.f32.mrb[0].mxu0
  %v1304 = vadd.f32 %v1264, %v1303
  %v1305 = vpop.f32.mrb[0].mxu0
  %v1306 = vpop.f32.mrb[0].mxu0
  %v1307 = vpop.f32.mrb[0].mxu0
  %1308 = vdwg.mxu0
  %1309 = vmatprep.subr.bf16.mxu0 0
  %1310 = vmatpush1.bf16.msra.mxu0 %v933
  %1311 = vmatprep.subr.bf16.mxu0 0
  %1312 = vmatpush1.bf16.msra.mxu0 %v934
  %1313 = vmatprep.subr.bf16.mxu0 0
  %1314 = vmatpush1.bf16.msra.mxu0 %v935
  %1315 = vmatprep.subr.bf16.mxu0 0
  %1316 = vmatpush1.bf16.msra.mxu0 %v936
  %1317 = vmatprep.subr.bf16.mxu0 0
  %1318 = vmatpush1.bf16.msra.mxu0 %v937
  %1319 = vmatprep.subr.bf16.mxu0 0
  %1320 = vmatpush1.bf16.msra.mxu0 %v938
  %1321 = vmatprep.subr.bf16.mxu0 0
  %1322 = vmatpush1.bf16.msra.mxu0 %v939
  %1323 = vmatprep.subr.bf16.mxu0 0
  %1324 = vmatpush1.bf16.msra.mxu0 %v940
  %1325 = vmatprep.subr.bf16.mxu0 0
  %1326 = vmatpush1.bf16.msra.mxu0 %v941
  %1327 = vmatprep.subr.bf16.mxu0 0
  %1328 = vmatpush1.bf16.msra.mxu0 %v942
  %1329 = vmatprep.subr.bf16.mxu0 0
  %1330 = vmatpush1.bf16.msra.mxu0 %v943
  %1331 = vmatprep.subr.bf16.mxu0 0
  %1332 = vmatpush1.bf16.msra.mxu0 %v944
  %1333 = vmatprep.subr.bf16.mxu0 0
  %1334 = vmatpush1.bf16.msra.mxu0 %v945
  %1335 = vmatprep.subr.bf16.mxu0 0
  %1336 = vmatpush1.bf16.msra.mxu0 %v946
  %1337 = vmatprep.subr.bf16.mxu0 0
  %1338 = vmatpush1.bf16.msra.mxu0 %v947
  %1339 = vmatprep.subr.bf16.mxu0 0
  %1340 = vmatpush1.bf16.msra.mxu0 %v948
  %1341 = vmatprep.mubr.bf16.mxu0 %v320
  %1342 = vmatmul.mubr.bf16.gmra.mrb[0].mxu0 %v319
  %v1343 = vpop.f32.mrb[0].mxu0
  %v1344 = vadd.f32 %v1304, %v1343
  %v1345 = vpop.f32.mrb[0].mxu0
  %v1346 = vpop.f32.mrb[0].mxu0
  %v1347 = vpop.f32.mrb[0].mxu0
  %1348 = vdwg.mxu0
  %1349 = vmatprep.subr.bf16.mxu0 0
  %1350 = vmatpush1.bf16.msra.mxu0 %v949
  %1351 = vmatprep.subr.bf16.mxu0 0
  %1352 = vmatpush1.bf16.msra.mxu0 %v950
  %1353 = vmatprep.subr.bf16.mxu0 0
  %1354 = vmatpush1.bf16.msra.mxu0 %v951
  %1355 = vmatprep.subr.bf16.mxu0 0
  %1356 = vmatpush1.bf16.msra.mxu0 %v952
  %1357 = vmatprep.subr.bf16.mxu0 0
  %1358 = vmatpush1.bf16.msra.mxu0 %v953
  %1359 = vmatprep.subr.bf16.mxu0 0
  %1360 = vmatpush1.bf16.msra.mxu0 %v954
  %1361 = vmatprep.subr.bf16.mxu0 0
  %1362 = vmatpush1.bf16.msra.mxu0 %v955
  %1363 = vmatprep.subr.bf16.mxu0 0
  %1364 = vmatpush1.bf16.msra.mxu0 %v956
  %1365 = vmatprep.subr.bf16.mxu0 0
  %1366 = vmatpush1.bf16.msra.mxu0 %v957
  %1367 = vmatprep.subr.bf16.mxu0 0
  %1368 = vmatpush1.bf16.msra.mxu0 %v958
  %1369 = vmatprep.subr.bf16.mxu0 0
  %1370 = vmatpush1.bf16.msra.mxu0 %v959
  %1371 = vmatprep.subr.bf16.mxu0 0
  %1372 = vmatpush1.bf16.msra.mxu0 %v960
  %1373 = vmatprep.subr.bf16.mxu0 0
  %1374 = vmatpush1.bf16.msra.mxu0 %v961
  %1375 = vmatprep.subr.bf16.mxu0 0
  %1376 = vmatpush1.bf16.msra.mxu0 %v962
  %1377 = vmatprep.subr.bf16.mxu0 0
  %1378 = vmatpush1.bf16.msra.mxu0 %v963
  %1379 = vmatprep.subr.bf16.mxu0 0
  %1380 = vmatpush1.bf16.msra.mxu0 %v964
  %1381 = vmatprep.mubr.bf16.mxu0 %v322
  %1382 = vmatmul.mubr.bf16.gmra.mrb[0].mxu0 %v321
  %v1383 = vpop.f32.mrb[0].mxu0
  %v1384 = vadd.f32 %v1344, %v1383
  %v1385 = vpop.f32.mrb[0].mxu0
  %v1386 = vpop.f32.mrb[0].mxu0
  %v1387 = vpop.f32.mrb[0].mxu0
  %1388 = vdwg.mxu0
  %1389 = vmatprep.subr.bf16.mxu0 0
  %1390 = vmatpush1.bf16.msra.mxu0 %v965
  %1391 = vmatprep.subr.bf16.mxu0 0
  %1392 = vmatpush1.bf16.msra.mxu0 %v966
  %1393 = vmatprep.subr.bf16.mxu0 0
  %1394 = vmatpush1.bf16.msra.mxu0 %v967
  %1395 = vmatprep.subr.bf16.mxu0 0
  %1396 = vmatpush1.bf16.msra.mxu0 %v968
  %1397 = vmatprep.subr.bf16.mxu0 0
  %1398 = vmatpush1.bf16.msra.mxu0 %v969
  %1399 = vmatprep.subr.bf16.mxu0 0
  %1400 = vmatpush1.bf16.msra.mxu0 %v970
  %1401 = vmatprep.subr.bf16.mxu0 0
  %1402 = vmatpush1.bf16.msra.mxu0 %v971
  %1403 = vmatprep.subr.bf16.mxu0 0
  %1404 = vmatpush1.bf16.msra.mxu0 %v972
  %1405 = vmatprep.subr.bf16.mxu0 0
  %1406 = vmatpush1.bf16.msra.mxu0 %v973
  %1407 = vmatprep.subr.bf16.mxu0 0
  %1408 = vmatpush1.bf16.msra.mxu0 %v974
  %1409 = vmatprep.subr.bf16.mxu0 0
  %1410 = vmatpush1.bf16.msra.mxu0 %v975
  %1411 = vmatprep.subr.bf16.mxu0 0
  %1412 = vmatpush1.bf16.msra.mxu0 %v976
  %1413 = vmatprep.subr.bf16.mxu0 0
  %1414 = vmatpush1.bf16.msra.mxu0 %v977
  %1415 = vmatprep.subr.bf16.mxu0 0
  %1416 = vmatpush1.bf16.msra.mxu0 %v978
  %1417 = vmatprep.subr.bf16.mxu0 0
  %1418 = vmatpush1.bf16.msra.mxu0 %v979
  %1419 = vmatprep.subr.bf16.mxu0 0
  %1420 = vmatpush1.bf16.msra.mxu0 %v980
  %1421 = vmatprep.mubr.bf16.mxu0 %v324
  %1422 = vmatmul.mubr.bf16.gmra.mrb[0].mxu0 %v323
  %v1423 = vpop.f32.mrb[0].mxu0
  %v1424 = vadd.f32 %v1384, %v1423
  %v1425 = vpop.f32.mrb[0].mxu0
  %v1426 = vpop.f32.mrb[0].mxu0
  %v1427 = vpop.f32.mrb[0].mxu0
  %1428 = vdwg.mxu0
  %1429 = vst [vmem:[%s3] sm:$0xff] %v1424
  // Predicated region
  $region14: #{multiscale_discriminator_forward.47} parent=0 // pred_check
    _
  $region15: #{multiscale_discriminator_forward.47} parent=0 // pred_check_branch
    %1431 = sbr.rel (0) target = $region17
  $region16: #{multiscale_discriminator_forward.47} parent=0 // pred_region
    _
  $region17: #{multiscale_discriminator_forward.47} parent=0 // pred_fallthru
    _
  // Predicated region
  $region18: #{multiscale_discriminator_forward.47} parent=0 // pred_check
    _
  $region19: #{multiscale_discriminator_forward.47} parent=0 // pred_check_branch
    %1433 = sbr.rel (0) target = $region21
  $region20: #{multiscale_discriminator_forward.47} parent=0 // pred_region
    _
  $region21: #{multiscale_discriminator_forward.47} parent=0 // pred_fallthru
    _

// kernel: multiscale_discriminator_forward.32
$region0: #{multiscale_discriminator_forward.32}
  #allocation0 [shape = 'u32[]', space=smem, size = 0x4, offset = 0x4, fixed_abs, tag = 'smem constant byte address 0x4 - core index']
  #allocation1 [shape = 'u32[144,128]{1,0:T(1,128)}', space=vmem, size = 0x12000, scoped, tag = 'internal scratch']
  %s0 = inlined_call_operand.vmem [shape: bf16[16,128], index: 0, kind: input, shape index: {}]
  %s1 = inlined_call_operand.vmem [shape: bf16[128,256], index: 1, kind: input, shape index: {}]
  %s2 = inlined_call_operand.vmem [shape: f32[16,1], index: 2, kind: input, shape index: {}]
  %s3 = inlined_call_operand.vmem [shape: bf16[16,256], index: 3, kind: output, shape index: {}]
  %s4 = sld [smem:[#allocation0]]
  $region123: #{multiscale_discriminator_forward.32} parent=0
    _
  %s6 = ssub.s32 1, %s4
  %s7 = scalar_select 0, %s6, %s4
  $region1: #{multiscale_discriminator_forward.32} parent=0
    #allocation2 [shape = 'u8[65536]{0}', space=vmem, size = 0x10000, scoped, tag = 'input window, operand 1']
    #allocation3 [shape = 'u8[8192]{0}', space=vmem, size = 0x2000, scoped, tag = 'output window, operand 0']
    loop: start=0, step=1, limit=4
    $region2: #{multiscale_discriminator_forward.32} parent=1 // loop_pre_header
      _
    $region3: #{multiscale_discriminator_forward.32} parent=1 // loop_header
      %s9 = sphi 0, %s13
      %p10 = scmp.ge.s32.totalorder %s9, 4
      %s17 = sphi 0, %s17
      %s19 = sphi 0, %s17
      %s20 = sphi 0, %s19
      %s34 = sphi 0, %s20
      %s40 = sphi 0, %s42
      %s43 = sphi 0, %s40
      %s44 = sphi 0, %s43
      %s60 = sphi 0, %s44
      %s64 = sphi 0, %s64
      %s66 = sphi 0, %s64
      %s67 = sphi 0, %s66
      %s81 = sphi 0, %s67
      %s87 = sphi 0, %s89
      %s90 = sphi 0, %s87
      %s91 = sphi 0, %s90
      %s107 = sphi 0, %s91
    $region4: #{multiscale_discriminator_forward.32} parent=1 // loop_header_branch
      %12 = sbr.rel (%p10) target = $region8
    $region5: #{multiscale_discriminator_forward.32} parent=1 // loop_body
      %s14 = ssub.s32 %s9, 1
      %s15 = ssub.s32 %s9, 2
      %s16 = sadd.s32 %s9, 1
      %s18 = sadd.s32 %s17, 1
      %p21 = scmp.eq.s32.totalorder %s9, 1
      %p22 = scmp.ne.s32.totalorder %s17, %s19
      %p23 = scmp.eq.s32.totalorder %s9, 0
      %p24 = por %p22, %p23
      %p25 = scmp.ne.s32.totalorder %s17, %s19
      %p26 = scmp.eq.s32.totalorder %s14, 1
      %p27 = por %p25, %p26
      %p28 = scmp.ne.s32.totalorder %s19, %s20
      %p29 = scmp.eq.s32.totalorder %s14, 0
      %p30 = por %p28, %p29
      %p31 = scmp.ne.s32.totalorder %s19, %s20
      %p32 = scmp.eq.s32.totalorder %s15, 1
      %p33 = por %p31, %p32
      %p35 = scmp.ne.s32.totalorder %s20, %s34
      %p36 = scmp.eq.s32.totalorder %s15, 0
      %p37 = por %p35, %p36
      %s38 = ssub.s32 %s9, %s16
      %p39 = scmp.eq.s32.totalorder %s38, 0
      %s41 = sadd.s32 %s40, 1
      %s42 = scalar_select %p39, %s40, %s41
      %p45 = pneg %p39
      %p46 = scmp.eq.s32.totalorder %s9, 1
      %p47 = por %p45, %p46
      %p48 = scmp.ne.s32.totalorder %s40, %s43
      %p49 = scmp.eq.s32.totalorder %s9, 0
      %p50 = por %p48, %p49
      %p51 = scmp.ne.s32.totalorder %s40, %s43
      %p52 = scmp.eq.s32.totalorder %s14, 1
      %p53 = por %p51, %p52
      %p54 = scmp.ne.s32.totalorder %s43, %s44
      %p55 = scmp.eq.s32.totalorder %s14, 0
      %p56 = por %p54, %p55
      %p57 = scmp.ne.s32.totalorder %s43, %s44
      %p58 = scmp.eq.s32.totalorder %s15, 1
      %p59 = por %p57, %p58
      %p61 = scmp.ne.s32.totalorder %s44, %s60
      %p62 = scmp.eq.s32.totalorder %s15, 0
      %p63 = por %p61, %p62
      %s65 = sadd.s32 %s64, 1
      %p68 = scmp.eq.s32.totalorder %s9, 1
      %p69 = scmp.ne.s32.totalorder %s64, %s66
      %p70 = scmp.eq.s32.totalorder %s9, 0
      %p71 = por %p69, %p70
      %p72 = scmp.ne.s32.totalorder %s64, %s66
      %p73 = scmp.eq.s32.totalorder %s14, 1
      %p74 = por %p72, %p73
      %p75 = scmp.ne.s32.totalorder %s66, %s67
      %p76 = scmp.eq.s32.totalorder %s14, 0
      %p77 = por %p75, %p76
      %p78 = scmp.ne.s32.totalorder %s66, %s67
      %p79 = scmp.eq.s32.totalorder %s15, 1
      %p80 = por %p78, %p79
      %p82 = scmp.ne.s32.totalorder %s67, %s81
      %p83 = scmp.eq.s32.totalorder %s15, 0
      %p84 = por %p82, %p83
      %s85 = ssub.s32 %s9, %s16
      %p86 = scmp.eq.s32.totalorder %s85, 0
      %s88 = sadd.s32 %s87, 1
      %s89 = scalar_select %p86, %s87, %s88
      %p92 = pneg %p86
      %p93 = scmp.eq.s32.totalorder %s9, 1
      %p94 = por %p92, %p93
      %p95 = scmp.ne.s32.totalorder %s87, %s90
      %p96 = scmp.eq.s32.totalorder %s9, 0
      %p97 = por %p95, %p96
      %p98 = scmp.ne.s32.totalorder %s87, %s90
      %p99 = scmp.eq.s32.totalorder %s14, 1
      %p100 = por %p98, %p99
      %p101 = scmp.ne.s32.totalorder %s90, %s91
      %p102 = scmp.eq.s32.totalorder %s14, 0
      %p103 = por %p101, %p102
      %p104 = scmp.ne.s32.totalorder %s90, %s91
      %p105 = scmp.eq.s32.totalorder %s15, 1
      %p106 = por %p104, %p105
      %p108 = scmp.ne.s32.totalorder %s91, %s107
      %p109 = scmp.eq.s32.totalorder %s15, 0
      %p110 = por %p108, %p109
      %p111 = scmp.le.s32.totalorder 1, %s9
      %p112 = scmp.lt.s32.totalorder %s9, 3
      %p113 = pnand %p111, %p112
      %p114 = pneg %p113
      // Predicated region
      $region9: #{multiscale_discriminator_forward.32} parent=5 // pred_check
        _
      $region10: #{multiscale_discriminator_forward.32} parent=5 // pred_check_branch
        %116 = sbr.rel (%p113) target = $region12
      $region11: #{multiscale_discriminator_forward.32} parent=5 // pred_region
        %s117 = ssub.s32 %s9, 1
        // Predicated region
        $region13: #{multiscale_discriminator_forward.32} parent=11 // pred_check
          %p118 = pneg %p30
        $region14: #{multiscale_discriminator_forward.32} parent=11 // pred_check_branch
          %120 = sbr.rel (%p118) target = $region16
        $region15: #{multiscale_discriminator_forward.32} parent=11 // pred_region
          _
        $region16: #{multiscale_discriminator_forward.32} parent=11 // pred_fallthru
          _
        // Predicated region
        $region17: #{multiscale_discriminator_forward.32} parent=11 // pred_check
          %p121 = pneg %p77
        $region18: #{multiscale_discriminator_forward.32} parent=11 // pred_check_branch
          %123 = sbr.rel (%p121) target = $region20
        $region19: #{multiscale_discriminator_forward.32} parent=11 // pred_region
          _
        $region20: #{multiscale_discriminator_forward.32} parent=11 // pred_fallthru
          _
      $region12: #{multiscale_discriminator_forward.32} parent=5 // pred_fallthru
        _
      %p124 = scmp.lt.s32.totalorder %s9, 2
      // Predicated region
      $region21: #{multiscale_discriminator_forward.32} parent=5 // pred_check
        %p125 = pneg %p124
      $region22: #{multiscale_discriminator_forward.32} parent=5 // pred_check_branch
        %127 = sbr.rel (%p125) target = $region24
      $region23: #{multiscale_discriminator_forward.32} parent=5 // pred_region
        // Predicated region
        $region25: #{multiscale_discriminator_forward.32} parent=23 // pred_check
          %p128 = pneg %p50
        $region26: #{multiscale_discriminator_forward.32} parent=23 // pred_check_branch
          %130 = sbr.rel (%p128) target = $region28
        $region27: #{multiscale_discriminator_forward.32} parent=23 // pred_region
          %s131 = sand.u32 %s40, 1
          %s132 = sand.u32 %s40, 1
          %s133 = smul.addr %s132, 64
          %s134 = scalar_lea.vmem [#allocation2], %s133
          %s135 = smul.addr %s9, 4
          %s136 = scalar_lea.vmem %s1, %s135
          // Predicated region
          $region29: #{multiscale_discriminator_forward.32} parent=27 // pred_check
            _
          $region30: #{multiscale_discriminator_forward.32} parent=27 // pred_check_branch
            %138 = sbr.rel (0) target = $region32
          $region31: #{multiscale_discriminator_forward.32} parent=27 // pred_region
            // Predicated region
            $region33: #{multiscale_discriminator_forward.32} parent=31 // pred_check
              _
            $region34: #{multiscale_discriminator_forward.32} parent=31 // pred_check_branch
              %140 = sbr.rel target = $region36
            $region35: #{multiscale_discriminator_forward.32} parent=31 // pred_region
              // Predicated region
              $region48: #{multiscale_discriminator_forward.32} parent=35 // pred_check
                _
              $region49: #{multiscale_discriminator_forward.32} parent=35 // pred_check_branch
                %185 = sbr.rel (0) target = $region51
              $region50: #{multiscale_discriminator_forward.32} parent=35 // pred_region
                loop: start=0, step=1, limit=1
                $region52: #{multiscale_discriminator_forward.32} parent=50 // loop_pre_header
                  _
                $region53: #{multiscale_discriminator_forward.32} parent=50 // loop_header
                  %s187 = sphi 0, %s191
                  %p188 = scmp.ge.s32.totalorder %s187, 1
                  %s192 = sphi %s136, %s136
                  %s193 = sphi %s134, %s134
                $region54: #{multiscale_discriminator_forward.32} parent=50 // loop_header_branch
                  %190 = sbr.rel (%p188) target = $region58
                $region55: #{multiscale_discriminator_forward.32} parent=50 // loop_body
                  _
                $region56: #{multiscale_discriminator_forward.32} parent=50 // loop_footer
                  %s191 = sadd.s32 1, %s187
                $region57: #{multiscale_discriminator_forward.32} parent=50 // loop_footer_branch
                  %186 = sbr.rel target = $region53
                $region58: #{multiscale_discriminator_forward.32} parent=50 // loop_exit
                  _
                loop: start=0, step=1, limit=1
                $region59: #{multiscale_discriminator_forward.32} parent=50 // loop_pre_header
                  _
                $region60: #{multiscale_discriminator_forward.32} parent=50 // loop_header
                  %s196 = sphi 0, %s200
                  %p197 = scmp.ge.s32.totalorder %s196, 1
                  %s201 = sphi %s136, %s136
                  %s202 = sphi %s134, %s134
                $region61: #{multiscale_discriminator_forward.32} parent=50 // loop_header_branch
                  %199 = sbr.rel (%p197) target = $region65
                $region62: #{multiscale_discriminator_forward.32} parent=50 // loop_body
                  %v203 = vld [vmem:[%s201] sm:$0xf]
                  %204 = vst [vmem:[%s202] sm:$0xf] %v203
                  %v205 = vld [vmem:[%s201 + $0x8] sm:$0xf]
                  %206 = vst [vmem:[%s202 + $0x4] sm:$0xf] %v205
                  %v207 = vld [vmem:[%s201 + $0x10] sm:$0xf]
                  %208 = vst [vmem:[%s202 + $0x8] sm:$0xf] %v207
                  %v209 = vld [vmem:[%s201 + $0x18] sm:$0xf]
                  %210 = vst [vmem:[%s202 + $0xc] sm:$0xf] %v209
                  %v211 = vld [vmem:[%s201 + $0x20] sm:$0xf]
                  %212 = vst [vmem:[%s202 + $0x10] sm:$0xf] %v211
                  %v213 = vld [vmem:[%s201 + $0x28] sm:$0xf]
                  %214 = vst [vmem:[%s202 + $0x14] sm:$0xf] %v213
                  %v215 = vld [vmem:[%s201 + $0x30] sm:$0xf]
                  %216 = vst [vmem:[%s202 + $0x18] sm:$0xf] %v215
                  %v217 = vld [vmem:[%s201 + $0x38] sm:$0xf]
                  %218 = vst [vmem:[%s202 + $0x1c] sm:$0xf] %v217
                  %v219 = vld [vmem:[%s201 + $0x40] sm:$0xf]
                  %220 = vst [vmem:[%s202 + $0x20] sm:$0xf] %v219
                  %v221 = vld [vmem:[%s201 + $0x48] sm:$0xf]
                  %222 = vst [vmem:[%s202 + $0x24] sm:$0xf] %v221
                  %v223 = vld [vmem:[%s201 + $0x50] sm:$0xf]
                  %224 = vst [vmem:[%s202 + $0x28] sm:$0xf] %v223
                  %v225 = vld [vmem:[%s201 + $0x58] sm:$0xf]
                  %226 = vst [vmem:[%s202 + $0x2c] sm:$0xf] %v225
                  %v227 = vld [vmem:[%s201 + $0x60] sm:$0xf]
                  %228 = vst [vmem:[%s202 + $0x30] sm:$0xf] %v227
                  %v229 = vld [vmem:[%s201 + $0x68] sm:$0xf]
                  %230 = vst [vmem:[%s202 + $0x34] sm:$0xf] %v229
                  %v231 = vld [vmem:[%s201 + $0x70] sm:$0xf]
                  %232 = vst [vmem:[%s202 + $0x38] sm:$0xf] %v231
                  %v233 = vld [vmem:[%s201 + $0x78] sm:$0xf]
                  %234 = vst [vmem:[%s202 + $0x3c] sm:$0xf] %v233
                $region63: #{multiscale_discriminator_forward.32} parent=50 // loop_footer
                  %s200 = sadd.s32 1, %s196
                $region64: #{multiscale_discriminator_forward.32} parent=50 // loop_footer_branch
                  %195 = sbr.rel target = $region60
                $region65: #{multiscale_discriminator_forward.32} parent=50 // loop_exit
                  _
              $region51: #{multiscale_discriminator_forward.32} parent=35 // pred_fallthru
                _
            $region36: #{multiscale_discriminator_forward.32} parent=31 // pred_fallthru
              _
            // Predicated region
            $region37: #{multiscale_discriminator_forward.32} parent=31 // pred_check
              _
            $region38: #{multiscale_discriminator_forward.32} parent=31 // pred_check_branch
              %142 = sbr.rel (0) target = $region40
            $region39: #{multiscale_discriminator_forward.32} parent=31 // pred_region
              loop: start=0, step=1, limit=1
              $region41: #{multiscale_discriminator_forward.32} parent=39 // loop_pre_header
                _
              $region42: #{multiscale_discriminator_forward.32} parent=39 // loop_header
                %s145 = sphi 0, %s149
                %p146 = scmp.ge.s32.totalorder %s145, 1
                %s150 = sphi %s136, %s136
                %s151 = sphi %s134, %s134
              $region43: #{multiscale_discriminator_forward.32} parent=39 // loop_header_branch
                %148 = sbr.rel (%p146) target = $region47
              $region44: #{multiscale_discriminator_forward.32} parent=39 // loop_body
                %v152 = vld [vmem:[%s150] sm:$0xf]
                %153 = vst [vmem:[%s151] sm:$0xf] %v152
                %v154 = vld [vmem:[%s150 + $0x8] sm:$0xf]
                %155 = vst [vmem:[%s151 + $0x4] sm:$0xf] %v154
                %v156 = vld [vmem:[%s150 + $0x10] sm:$0xf]
                %157 = vst [vmem:[%s151 + $0x8] sm:$0xf] %v156
                %v158 = vld [vmem:[%s150 + $0x18] sm:$0xf]
                %159 = vst [vmem:[%s151 + $0xc] sm:$0xf] %v158
                %v160 = vld [vmem:[%s150 + $0x20] sm:$0xf]
                %161 = vst [vmem:[%s151 + $0x10] sm:$0xf] %v160
                %v162 = vld [vmem:[%s150 + $0x28] sm:$0xf]
                %163 = vst [vmem:[%s151 + $0x14] sm:$0xf] %v162
                %v164 = vld [vmem:[%s150 + $0x30] sm:$0xf]
                %165 = vst [vmem:[%s151 + $0x18] sm:$0xf] %v164
                %v166 = vld [vmem:[%s150 + $0x38] sm:$0xf]
                %167 = vst [vmem:[%s151 + $0x1c] sm:$0xf] %v166
                %v168 = vld [vmem:[%s150 + $0x40] sm:$0xf]
                %169 = vst [vmem:[%s151 + $0x20] sm:$0xf] %v168
                %v170 = vld [vmem:[%s150 + $0x48] sm:$0xf]
                %171 = vst [vmem:[%s151 + $0x24] sm:$0xf] %v170
                %v172 = vld [vmem:[%s150 + $0x50] sm:$0xf]
                %173 = vst [vmem:[%s151 + $0x28] sm:$0xf] %v172
                %v174 = vld [vmem:[%s150 + $0x58] sm:$0xf]
                %175 = vst [vmem:[%s151 + $0x2c] sm:$0xf] %v174
                %v176 = vld [vmem:[%s150 + $0x60] sm:$0xf]
                %177 = vst [vmem:[%s151 + $0x30] sm:$0xf] %v176
                %v178 = vld [vmem:[%s150 + $0x68] sm:$0xf]
                %179 = vst [vmem:[%s151 + $0x34] sm:$0xf] %v178
                %v180 = vld [vmem:[%s150 + $0x70] sm:$0xf]
                %181 = vst [vmem:[%s151 + $0x38] sm:$0xf] %v180
                %v182 = vld [vmem:[%s150 + $0x78] sm:$0xf]
                %183 = vst [vmem:[%s151 + $0x3c] sm:$0xf] %v182
              $region45: #{multiscale_discriminator_forward.32} parent=39 // loop_footer
                %s149 = sadd.s32 1, %s145
              $region46: #{multiscale_discriminator_forward.32} parent=39 // loop_footer_branch
                %144 = sbr.rel target = $region42
              $region47: #{multiscale_discriminator_forward.32} parent=39 // loop_exit
                _
            $region40: #{multiscale_discriminator_forward.32} parent=31 // pred_fallthru
              _
          $region32: #{multiscale_discriminator_forward.32} parent=27 // pred_fallthru
            _
          %235 = vnop
        $region28: #{multiscale_discriminator_forward.32} parent=23 // pred_fallthru
          _
      $region24: #{multiscale_discriminator_forward.32} parent=5 // pred_fallthru
        _
      %p236 = scmp.le.s32.totalorder 1, %s9
      %p237 = scmp.lt.s32.totalorder %s9, 3
      %p238 = pnand %p236, %p237
      %p239 = pneg %p238
      // Predicated region
      $region66: #{multiscale_discriminator_forward.32} parent=5 // pred_check
        _
      $region67: #{multiscale_discriminator_forward.32} parent=5 // pred_check_branch
        %241 = sbr.rel (%p238) target = $region69
      $region68: #{multiscale_discriminator_forward.32} parent=5 // pred_region
        %s242 = ssub.s32 %s9, 1
        %s243 = sand.u32 %s43, 1
        %s244 = sand.u32 %s43, 1
        %s245 = smul.addr %s244, 64
        %s246 = scalar_lea.vmem [#allocation2], %s245
        // Predicated region
        $region70: #{multiscale_discriminator_forward.32} parent=68 // pred_check
          %p247 = pneg %p56
        $region71: #{multiscale_discriminator_forward.32} parent=68 // pred_check_branch
          %249 = sbr.rel (%p247) target = $region73
        $region72: #{multiscale_discriminator_forward.32} parent=68 // pred_region
          _
        $region73: #{multiscale_discriminator_forward.32} parent=68 // pred_fallthru
          _
        %p250 = pneg %p30
        %p251 = pneg %p27
        %s252 = sand.u32 %s43, 1
        %s253 = sand.u32 %s43, 1
        %s254 = smul.addr %s253, 64
        %s255 = scalar_lea.vmem [#allocation2], %s254
        %p256 = pneg %p56
        %p257 = pneg %p53
        %p258 = pneg %p77
        %p259 = pneg %p74
        %p260 = pneg %p103
        %p261 = pneg %p100
        %s262 = sand.u32 %s90, 1
        %s263 = sand.u32 %s90, 1
        %s264 = smul.addr %s263, 8
        %s265 = scalar_lea.vmem [#allocation3], %s264
        %v267 = vld [vmem:[%s0] sm:$0xf]
        %v268 = vld [vmem:[%s0 + $0x4] sm:$0xf]
        %v269 = vld [vmem:[%s246] sm:$0xf]
        %v270 = vld [vmem:[%s246 + $0x4] sm:$0xf]
        %v271 = vld [vmem:[%s246 + $0x8] sm:$0xf]
        %v272 = vld [vmem:[%s246 + $0xc] sm:$0xf]
        %v273 = vld [vmem:[%s246 + $0x10] sm:$0xf]
        %v274 = vld [vmem:[%s246 + $0x14] sm:$0xf]
        %v275 = vld [vmem:[%s246 + $0x18] sm:$0xf]
        %v276 = vld [vmem:[%s246 + $0x1c] sm:$0xf]
        %v277 = vld [vmem:[%s246 + $0x20] sm:$0xf]
        %v278 = vld [vmem:[%s246 + $0x24] sm:$0xf]
        %v279 = vld [vmem:[%s246 + $0x28] sm:$0xf]
        %v280 = vld [vmem:[%s246 + $0x2c] sm:$0xf]
        %v281 = vld [vmem:[%s246 + $0x30] sm:$0xf]
        %v282 = vld [vmem:[%s246 + $0x34] sm:$0xf]
        %v283 = vld [vmem:[%s246 + $0x38] sm:$0xf]
        %v284 = vld [vmem:[%s246 + $0x3c] sm:$0xf]
        %v285 = vld [vmem:[%s2] sm:$0xff]
        %v286 = vld [vmem:[%s2 + $0x8] sm:$0xff]
        %288 = vset.pattern.permute.xlu0 0
        %289 = vperm.xlu0 %288, %v285
        %v290 = vpop.permute.xlu0 %289
        %293 = vset.pattern.permute.xlu0 0
        %294 = vperm.xlu0 %293, %v286
        %v295 = vpop.permute.xlu0 %294
        %v299 = vunpack.c.l.b16 %v267
        %v300 = vunpack.c.l.b16 %v268
        %v301 = vpack.c.b16 %v300, %v299
        %v319 = vunpack.c.l.b16 %v269
        %v320 = vunpack.c.l.b16 %v270
        %v321 = vunpack.c.l.b16 %v271
        %v322 = vunpack.c.l.b16 %v272
        %v323 = vunpack.c.l.b16 %v273
        %v324 = vunpack.c.l.b16 %v274
        %v325 = vunpack.c.l.b16 %v275
        %v326 = vunpack.c.l.b16 %v276
        %v327 = vunpack.c.l.b16 %v277
        %v328 = vunpack.c.l.b16 %v278
        %v329 = vunpack.c.l.b16 %v279
        %v330 = vunpack.c.l.b16 %v280
        %v331 = vunpack.c.l.b16 %v281
        %v332 = vunpack.c.l.b16 %v282
        %v333 = vunpack.c.l.b16 %v283
        %v334 = vunpack.c.l.b16 %v284
        %v335 = vpack.c.b16 %v320, %v319
        %v336 = vpack.c.b16 %v322, %v321
        %v337 = vpack.c.b16 %v324, %v323
        %v338 = vpack.c.b16 %v326, %v325
        %v339 = vpack.c.b16 %v328, %v327
        %v340 = vpack.c.b16 %v330, %v329
        %v341 = vpack.c.b16 %v332, %v331
        %v342 = vpack.c.b16 %v334, %v333
        %351 = vmatprep.subr.bf16.mxu0 0
        %352 = vmatpush1.bf16.msra.mxu0 %v335
        %353 = vmatprep.subr.bf16.mxu0 0
        %354 = vmatpush1.bf16.msra.mxu0 %v336
        %355 = vmatprep.subr.bf16.mxu0 0
        %356 = vmatpush1.bf16.msra.mxu0 %v337
        %357 = vmatprep.subr.bf16.mxu0 0
        %358 = vmatpush1.bf16.msra.mxu0 %v338
        %359 = vmatprep.subr.bf16.mxu0 0
        %360 = vmatpush1.bf16.msra.mxu0 %v339
        %361 = vmatprep.subr.bf16.mxu0 0
        %362 = vmatpush1.bf16.msra.mxu0 %v340
        %363 = vmatprep.subr.bf16.mxu0 0
        %364 = vmatpush1.bf16.msra.mxu0 %v341
        %365 = vmatprep.subr.bf16.mxu0 0
        %366 = vmatpush1.bf16.msra.mxu0 %v342
        %367 = vmatprep.subr.bf16.mxu0 0
        %368 = vmatpush1.bf16.msra.mxu0 0
        %369 = vmatprep.subr.bf16.mxu0 0
        %370 = vmatpush1.bf16.msra.mxu0 0
        %371 = vmatprep.subr.bf16.mxu0 0
        %372 = vmatpush1.bf16.msra.mxu0 0
        %373 = vmatprep.subr.bf16.mxu0 0
        %374 = vmatpush1.bf16.msra.mxu0 0
        %375 = vmatprep.subr.bf16.mxu0 0
        %376 = vmatpush1.bf16.msra.mxu0 0
        %377 = vmatprep.subr.bf16.mxu0 0
        %378 = vmatpush1.bf16.msra.mxu0 0
        %379 = vmatprep.subr.bf16.mxu0 0
        %380 = vmatpush1.bf16.msra.mxu0 0
        %381 = vmatprep.subr.bf16.mxu0 0
        %382 = vmatpush1.bf16.msra.mxu0 0
        %383 = vmatprep.mubr.bf16.mxu0 0
        %384 = vmatmul.mubr.bf16.gmra.mrb[0].mxu0 %v301
        %v385 = vpop.f32.mrb[0].mxu0
        %v386 = vadd.f32 %v290, %v385
        %v387 = vpop.f32.mrb[0].mxu0
        %v388 = vpop.f32.mrb[0].mxu0
        %v389 = vadd.f32 %v295, %v388
        %v390 = vpop.f32.mrb[0].mxu0
        %391 = vdwg.mxu0
        %v392 = vmul.f32 %v386, 0.2
        %v393 = vmul.f32 %v389, 0.2
        %v394 = vmax.f32 %v386, %v392
        %v395 = vmax.f32 %v389, %v393
        %v396 = vpack.c.bf16 %v395, %v394
        %v398 = vunpack.c.l.b16 %v396
        %v399 = vunpack.c.h.b16 %v396
        %v400 = vpack.c.b16 %v398, %v398
        %v401 = vpack.c.b16 %v399, %v399
        %404 = vst [vmem:[%s265] sm:$0xf] %v400
        %405 = vst [vmem:[%s265 + $0x4] sm:$0xf] %v401
        %s406 = sand.u32 %s90, 1
        %s407 = sand.u32 %s90, 1
        %s408 = smul.addr %s407, 8
        %s409 = scalar_lea.vmem [#allocation3], %s408
        // Predicated region
        $region74: #{multiscale_discriminator_forward.32} parent=68 // pred_check
          %p410 = pneg %p100
        $region75: #{multiscale_discriminator_forward.32} parent=68 // pred_check_branch
          %412 = sbr.rel (%p410) target = $region77
        $region76: #{multiscale_discriminator_forward.32} parent=68 // pred_region
          %s413 = smul.addr %s14, 4
          %s414 = scalar_lea.vmem %s3, %s413
          // Predicated region
          $region78: #{multiscale_discriminator_forward.32} parent=76 // pred_check
            _
          $region79: #{multiscale_discriminator_forward.32} parent=76 // pred_check_branch
            %416 = sbr.rel (0) target = $region81
          $region80: #{multiscale_discriminator_forward.32} parent=76 // pred_region
            // Predicated region
            $region82: #{multiscale_discriminator_forward.32} parent=80 // pred_check
              _
            $region83: #{multiscale_discriminator_forward.32} parent=80 // pred_check_branch
              %418 = sbr.rel target = $region85
            $region84: #{multiscale_discriminator_forward.32} parent=80 // pred_region
              // Predicated region
              $region97: #{multiscale_discriminator_forward.32} parent=84 // pred_check
                _
              $region98: #{multiscale_discriminator_forward.32} parent=84 // pred_check_branch
                %435 = sbr.rel (0) target = $region100
              $region99: #{multiscale_discriminator_forward.32} parent=84 // pred_region
                loop: start=0, step=1, limit=1
                $region101: #{multiscale_discriminator_forward.32} parent=99 // loop_pre_header
                  _
                $region102: #{multiscale_discriminator_forward.32} parent=99 // loop_header
                  %s437 = sphi 0, %s441
                  %p438 = scmp.ge.s32.totalorder %s437, 1
                  %s442 = sphi %s409, %s409
                  %s443 = sphi %s414, %s414
                $region103: #{multiscale_discriminator_forward.32} parent=99 // loop_header_branch
                  %440 = sbr.rel (%p438) target = $region107
                $region104: #{multiscale_discriminator_forward.32} parent=99 // loop_body
                  _
                $region105: #{multiscale_discriminator_forward.32} parent=99 // loop_footer
                  %s441 = sadd.s32 1, %s437
                $region106: #{multiscale_discriminator_forward.32} parent=99 // loop_footer_branch
                  %436 = sbr.rel target = $region102
                $region107: #{multiscale_discriminator_forward.32} parent=99 // loop_exit
                  _
                loop: start=0, step=1, limit=1
                $region108: #{multiscale_discriminator_forward.32} parent=99 // loop_pre_header
                  _
                $region109: #{multiscale_discriminator_forward.32} parent=99 // loop_header
                  %s446 = sphi 0, %s450
                  %p447 = scmp.ge.s32.totalorder %s446, 1
                  %s451 = sphi %s409, %s409
                  %s452 = sphi %s414, %s414
                $region110: #{multiscale_discriminator_forward.32} parent=99 // loop_header_branch
                  %449 = sbr.rel (%p447) target = $region114
                $region111: #{multiscale_discriminator_forward.32} parent=99 // loop_body
                  %v453 = vld [vmem:[%s451] sm:$0xf]
                  %454 = vst [vmem:[%s452] sm:$0xf] %v453
                  %v455 = vld [vmem:[%s451 + $0x4] sm:$0xf]
                  %456 = vst [vmem:[%s452 + $0x8] sm:$0xf] %v455
                $region112: #{multiscale_discriminator_forward.32} parent=99 // loop_footer
                  %s450 = sadd.s32 1, %s446
                $region113: #{multiscale_discriminator_forward.32} parent=99 // loop_footer_branch
                  %445 = sbr.rel target = $region109
                $region114: #{multiscale_discriminator_forward.32} parent=99 // loop_exit
                  _
              $region100: #{multiscale_discriminator_forward.32} parent=84 // pred_fallthru
                _
            $region85: #{multiscale_discriminator_forward.32} parent=80 // pred_fallthru
              _
            // Predicated region
            $region86: #{multiscale_discriminator_forward.32} parent=80 // pred_check
              _
            $region87: #{multiscale_discriminator_forward.32} parent=80 // pred_check_branch
              %420 = sbr.rel (0) target = $region89
            $region88: #{multiscale_discriminator_forward.32} parent=80 // pred_region
              loop: start=0, step=1, limit=1
              $region90: #{multiscale_discriminator_forward.32} parent=88 // loop_pre_header
                _
              $region91: #{multiscale_discriminator_forward.32} parent=88 // loop_header
                %s423 = sphi 0, %s427
                %p424 = scmp.ge.s32.totalorder %s423, 1
                %s428 = sphi %s409, %s409
                %s429 = sphi %s414, %s414
              $region92: #{multiscale_discriminator_forward.32} parent=88 // loop_header_branch
                %426 = sbr.rel (%p424) target = $region96
              $region93: #{multiscale_discriminator_forward.32} parent=88 // loop_body
                %v430 = vld [vmem:[%s428] sm:$0xf]
                %431 = vst [vmem:[%s429] sm:$0xf] %v430
                %v432 = vld [vmem:[%s428 + $0x4] sm:$0xf]
                %433 = vst [vmem:[%s429 + $0x8] sm:$0xf] %v432
              $region94: #{multiscale_discriminator_forward.32} parent=88 // loop_footer
                %s427 = sadd.s32 1, %s423
              $region95: #{multiscale_discriminator_forward.32} parent=88 // loop_footer_branch
                %422 = sbr.rel target = $region91
              $region96: #{multiscale_discriminator_forward.32} parent=88 // loop_exit
                _
            $region89: #{multiscale_discriminator_forward.32} parent=80 // pred_fallthru
              _
          $region81: #{multiscale_discriminator_forward.32} parent=76 // pred_fallthru
            _
          %457 = vnop
        $region77: #{multiscale_discriminator_forward.32} parent=68 // pred_fallthru
          _
      $region69: #{multiscale_discriminator_forward.32} parent=5 // pred_fallthru
        _
      %p458 = scmp.le.s32.totalorder 2, %s9
      // Predicated region
      $region115: #{multiscale_discriminator_forward.32} parent=5 // pred_check
        %p459 = pneg %p458
      $region116: #{multiscale_discriminator_forward.32} parent=5 // pred_check_branch
        %461 = sbr.rel (%p459) target = $region118
      $region117: #{multiscale_discriminator_forward.32} parent=5 // pred_region
        %s462 = ssub.s32 %s9, 2
        // Predicated region
        $region119: #{multiscale_discriminator_forward.32} parent=117 // pred_check
          %p463 = pneg %p106
        $region120: #{multiscale_discriminator_forward.32} parent=117 // pred_check_branch
          %465 = sbr.rel (%p463) target = $region122
        $region121: #{multiscale_discriminator_forward.32} parent=117 // pred_region
          %s466 = sand.u32 %s91, 1
          %s467 = sand.u32 %s91, 1
          %s468 = smul.addr %s467, 8
          %s469 = scalar_lea.vmem [#allocation3], %s468
        $region122: #{multiscale_discriminator_forward.32} parent=117 // pred_fallthru
          _
      $region118: #{multiscale_discriminator_forward.32} parent=5 // pred_fallthru
        _
    $region6: #{multiscale_discriminator_forward.32} parent=1 // loop_footer
      %s13 = sadd.s32 1, %s9
    $region7: #{multiscale_discriminator_forward.32} parent=1 // loop_footer_branch
      %8 = sbr.rel target = $region3
    $region8: #{multiscale_discriminator_forward.32} parent=1 // loop_exit
      _

// kernel: multiscale_discriminator_forward.24
$region0: #{multiscale_discriminator_forward.24}
  #allocation0 [shape = 'u32[]', space=smem, size = 0x4, offset = 0x4, fixed_abs, tag = 'smem constant byte address 0x4 - core index']
  #allocation1 [shape = 'u32[144,128]{1,0:T(1,128)}', space=vmem, size = 0x12000, scoped, tag = 'internal scratch']
  %s0 = inlined_call_operand.vmem [shape: bf16[16,128], index: 0, kind: input, shape index: {}]
  %s1 = inlined_call_operand.vmem [shape: bf16[128,640], index: 1, kind: input, shape index: {}]
  %s2 = inlined_call_operand.vmem [shape: f32[16,1], index: 2, kind: input, shape index: {}]
  %s3 = inlined_call_operand.vmem [shape: bf16[16,640], index: 3, kind: output, shape index: {}]
  %s4 = sld [smem:[#allocation0]]
  $region123: #{multiscale_discriminator_forward.24} parent=0
    _
  %s6 = ssub.s32 1, %s4
  %s7 = scalar_select 0, %s6, %s4
  $region1: #{multiscale_discriminator_forward.24} parent=0
    #allocation2 [shape = 'u8[65536]{0}', space=vmem, size = 0x10000, scoped, tag = 'input window, operand 1']
    #allocation3 [shape = 'u8[8192]{0}', space=vmem, size = 0x2000, scoped, tag = 'output window, operand 0']
    loop: start=0, step=1, limit=7
    $region2: #{multiscale_discriminator_forward.24} parent=1 // loop_pre_header
      _
    $region3: #{multiscale_discriminator_forward.24} parent=1 // loop_header
      %s9 = sphi 0, %s13
      %p10 = scmp.ge.s32.totalorder %s9, 7
      %s17 = sphi 0, %s17
      %s19 = sphi 0, %s17
      %s20 = sphi 0, %s19
      %s34 = sphi 0, %s20
      %s40 = sphi 0, %s42
      %s43 = sphi 0, %s40
      %s44 = sphi 0, %s43
      %s60 = sphi 0, %s44
      %s64 = sphi 0, %s64
      %s66 = sphi 0, %s64
      %s67 = sphi 0, %s66
      %s81 = sphi 0, %s67
      %s87 = sphi 0, %s89
      %s90 = sphi 0, %s87
      %s91 = sphi 0, %s90
      %s107 = sphi 0, %s91
    $region4: #{multiscale_discriminator_forward.24} parent=1 // loop_header_branch
      %12 = sbr.rel (%p10) target = $region8
    $region5: #{multiscale_discriminator_forward.24} parent=1 // loop_body
      %s14 = ssub.s32 %s9, 1
      %s15 = ssub.s32 %s9, 2
      %s16 = sadd.s32 %s9, 1
      %s18 = sadd.s32 %s17, 1
      %p21 = scmp.eq.s32.totalorder %s9, 4
      %p22 = scmp.ne.s32.totalorder %s17, %s19
      %p23 = scmp.eq.s32.totalorder %s9, 0
      %p24 = por %p22, %p23
      %p25 = scmp.ne.s32.totalorder %s17, %s19
      %p26 = scmp.eq.s32.totalorder %s14, 4
      %p27 = por %p25, %p26
      %p28 = scmp.ne.s32.totalorder %s19, %s20
      %p29 = scmp.eq.s32.totalorder %s14, 0
      %p30 = por %p28, %p29
      %p31 = scmp.ne.s32.totalorder %s19, %s20
      %p32 = scmp.eq.s32.totalorder %s15, 4
      %p33 = por %p31, %p32
      %p35 = scmp.ne.s32.totalorder %s20, %s34
      %p36 = scmp.eq.s32.totalorder %s15, 0
      %p37 = por %p35, %p36
      %s38 = ssub.s32 %s9, %s16
      %p39 = scmp.eq.s32.totalorder %s38, 0
      %s41 = sadd.s32 %s40, 1
      %s42 = scalar_select %p39, %s40, %s41
      %p45 = pneg %p39
      %p46 = scmp.eq.s32.totalorder %s9, 4
      %p47 = por %p45, %p46
      %p48 = scmp.ne.s32.totalorder %s40, %s43
      %p49 = scmp.eq.s32.totalorder %s9, 0
      %p50 = por %p48, %p49
      %p51 = scmp.ne.s32.totalorder %s40, %s43
      %p52 = scmp.eq.s32.totalorder %s14, 4
      %p53 = por %p51, %p52
      %p54 = scmp.ne.s32.totalorder %s43, %s44
      %p55 = scmp.eq.s32.totalorder %s14, 0
      %p56 = por %p54, %p55
      %p57 = scmp.ne.s32.totalorder %s43, %s44
      %p58 = scmp.eq.s32.totalorder %s15, 4
      %p59 = por %p57, %p58
      %p61 = scmp.ne.s32.totalorder %s44, %s60
      %p62 = scmp.eq.s32.totalorder %s15, 0
      %p63 = por %p61, %p62
      %s65 = sadd.s32 %s64, 1
      %p68 = scmp.eq.s32.totalorder %s9, 4
      %p69 = scmp.ne.s32.totalorder %s64, %s66
      %p70 = scmp.eq.s32.totalorder %s9, 0
      %p71 = por %p69, %p70
      %p72 = scmp.ne.s32.totalorder %s64, %s66
      %p73 = scmp.eq.s32.totalorder %s14, 4
      %p74 = por %p72, %p73
      %p75 = scmp.ne.s32.totalorder %s66, %s67
      %p76 = scmp.eq.s32.totalorder %s14, 0
      %p77 = por %p75, %p76
      %p78 = scmp.ne.s32.totalorder %s66, %s67
      %p79 = scmp.eq.s32.totalorder %s15, 4
      %p80 = por %p78, %p79
      %p82 = scmp.ne.s32.totalorder %s67, %s81
      %p83 = scmp.eq.s32.totalorder %s15, 0
      %p84 = por %p82, %p83
      %s85 = ssub.s32 %s9, %s16
      %p86 = scmp.eq.s32.totalorder %s85, 0
      %s88 = sadd.s32 %s87, 1
      %s89 = scalar_select %p86, %s87, %s88
      %p92 = pneg %p86
      %p93 = scmp.eq.s32.totalorder %s9, 4
      %p94 = por %p92, %p93
      %p95 = scmp.ne.s32.totalorder %s87, %s90
      %p96 = scmp.eq.s32.totalorder %s9, 0
      %p97 = por %p95, %p96
      %p98 = scmp.ne.s32.totalorder %s87, %s90
      %p99 = scmp.eq.s32.totalorder %s14, 4
      %p100 = por %p98, %p99
      %p101 = scmp.ne.s32.totalorder %s90, %s91
      %p102 = scmp.eq.s32.totalorder %s14, 0
      %p103 = por %p101, %p102
      %p104 = scmp.ne.s32.totalorder %s90, %s91
      %p105 = scmp.eq.s32.totalorder %s15, 4
      %p106 = por %p104, %p105
      %p108 = scmp.ne.s32.totalorder %s91, %s107
      %p109 = scmp.eq.s32.totalorder %s15, 0
      %p110 = por %p108, %p109
      %p111 = scmp.le.s32.totalorder 1, %s9
      %p112 = scmp.lt.s32.totalorder %s9, 6
      %p113 = pnand %p111, %p112
      %p114 = pneg %p113
      // Predicated region
      $region9: #{multiscale_discriminator_forward.24} parent=5 // pred_check
        _
      $region10: #{multiscale_discriminator_forward.24} parent=5 // pred_check_branch
        %116 = sbr.rel (%p113) target = $region12
      $region11: #{multiscale_discriminator_forward.24} parent=5 // pred_region
        %s117 = ssub.s32 %s9, 1
        // Predicated region
        $region13: #{multiscale_discriminator_forward.24} parent=11 // pred_check
          %p118 = pneg %p30
        $region14: #{multiscale_discriminator_forward.24} parent=11 // pred_check_branch
          %120 = sbr.rel (%p118) target = $region16
        $region15: #{multiscale_discriminator_forward.24} parent=11 // pred_region
          _
        $region16: #{multiscale_discriminator_forward.24} parent=11 // pred_fallthru
          _
        // Predicated region
        $region17: #{multiscale_discriminator_forward.24} parent=11 // pred_check
          %p121 = pneg %p77
        $region18: #{multiscale_discriminator_forward.24} parent=11 // pred_check_branch
          %123 = sbr.rel (%p121) target = $region20
        $region19: #{multiscale_discriminator_forward.24} parent=11 // pred_region
          _
        $region20: #{multiscale_discriminator_forward.24} parent=11 // pred_fallthru
          _
      $region12: #{multiscale_discriminator_forward.24} parent=5 // pred_fallthru
        _
      %p124 = scmp.lt.s32.totalorder %s9, 5
      // Predicated region
      $region21: #{multiscale_discriminator_forward.24} parent=5 // pred_check
        %p125 = pneg %p124
      $region22: #{multiscale_discriminator_forward.24} parent=5 // pred_check_branch
        %127 = sbr.rel (%p125) target = $region24
      $region23: #{multiscale_discriminator_forward.24} parent=5 // pred_region
        // Predicated region
        $region25: #{multiscale_discriminator_forward.24} parent=23 // pred_check
          %p128 = pneg %p50
        $region26: #{multiscale_discriminator_forward.24} parent=23 // pred_check_branch
          %130 = sbr.rel (%p128) target = $region28
        $region27: #{multiscale_discriminator_forward.24} parent=23 // pred_region
          %s131 = sand.u32 %s40, 1
          %s132 = sand.u32 %s40, 1
          %s133 = smul.addr %s132, 64
          %s134 = scalar_lea.vmem [#allocation2], %s133
          %s135 = smul.addr %s9, 4
          %s136 = scalar_lea.vmem %s1, %s135
          // Predicated region
          $region29: #{multiscale_discriminator_forward.24} parent=27 // pred_check
            _
          $region30: #{multiscale_discriminator_forward.24} parent=27 // pred_check_branch
            %138 = sbr.rel (0) target = $region32
          $region31: #{multiscale_discriminator_forward.24} parent=27 // pred_region
            // Predicated region
            $region33: #{multiscale_discriminator_forward.24} parent=31 // pred_check
              _
            $region34: #{multiscale_discriminator_forward.24} parent=31 // pred_check_branch
              %140 = sbr.rel target = $region36
            $region35: #{multiscale_discriminator_forward.24} parent=31 // pred_region
              // Predicated region
              $region48: #{multiscale_discriminator_forward.24} parent=35 // pred_check
                _
              $region49: #{multiscale_discriminator_forward.24} parent=35 // pred_check_branch
                %185 = sbr.rel (0) target = $region51
              $region50: #{multiscale_discriminator_forward.24} parent=35 // pred_region
                loop: start=0, step=1, limit=1
                $region52: #{multiscale_discriminator_forward.24} parent=50 // loop_pre_header
                  _
                $region53: #{multiscale_discriminator_forward.24} parent=50 // loop_header
                  %s187 = sphi 0, %s191
                  %p188 = scmp.ge.s32.totalorder %s187, 1
                  %s192 = sphi %s136, %s136
                  %s193 = sphi %s134, %s134
                $region54: #{multiscale_discriminator_forward.24} parent=50 // loop_header_branch
                  %190 = sbr.rel (%p188) target = $region58
                $region55: #{multiscale_discriminator_forward.24} parent=50 // loop_body
                  _
                $region56: #{multiscale_discriminator_forward.24} parent=50 // loop_footer
                  %s191 = sadd.s32 1, %s187
                $region57: #{multiscale_discriminator_forward.24} parent=50 // loop_footer_branch
                  %186 = sbr.rel target = $region53
                $region58: #{multiscale_discriminator_forward.24} parent=50 // loop_exit
                  _
                loop: start=0, step=1, limit=1
                $region59: #{multiscale_discriminator_forward.24} parent=50 // loop_pre_header
                  _
                $region60: #{multiscale_discriminator_forward.24} parent=50 // loop_header
                  %s196 = sphi 0, %s200
                  %p197 = scmp.ge.s32.totalorder %s196, 1
                  %s201 = sphi %s136, %s136
                  %s202 = sphi %s134, %s134
                $region61: #{multiscale_discriminator_forward.24} parent=50 // loop_header_branch
                  %199 = sbr.rel (%p197) target = $region65
                $region62: #{multiscale_discriminator_forward.24} parent=50 // loop_body
                  %v203 = vld [vmem:[%s201] sm:$0xf]
                  %204 = vst [vmem:[%s202] sm:$0xf] %v203
                  %v205 = vld [vmem:[%s201 + $0x14] sm:$0xf]
                  %206 = vst [vmem:[%s202 + $0x4] sm:$0xf] %v205
                  %v207 = vld [vmem:[%s201 + $0x28] sm:$0xf]
                  %208 = vst [vmem:[%s202 + $0x8] sm:$0xf] %v207
                  %v209 = vld [vmem:[%s201 + $0x3c] sm:$0xf]
                  %210 = vst [vmem:[%s202 + $0xc] sm:$0xf] %v209
                  %v211 = vld [vmem:[%s201 + $0x50] sm:$0xf]
                  %212 = vst [vmem:[%s202 + $0x10] sm:$0xf] %v211
                  %v213 = vld [vmem:[%s201 + $0x64] sm:$0xf]
                  %214 = vst [vmem:[%s202 + $0x14] sm:$0xf] %v213
                  %v215 = vld [vmem:[%s201 + $0x78] sm:$0xf]
                  %216 = vst [vmem:[%s202 + $0x18] sm:$0xf] %v215
                  %v217 = vld [vmem:[%s201 + $0x8c] sm:$0xf]
                  %218 = vst [vmem:[%s202 + $0x1c] sm:$0xf] %v217
                  %v219 = vld [vmem:[%s201 + $0xa0] sm:$0xf]
                  %220 = vst [vmem:[%s202 + $0x20] sm:$0xf] %v219
                  %v221 = vld [vmem:[%s201 + $0xb4] sm:$0xf]
                  %222 = vst [vmem:[%s202 + $0x24] sm:$0xf] %v221
                  %v223 = vld [vmem:[%s201 + $0xc8] sm:$0xf]
                  %224 = vst [vmem:[%s202 + $0x28] sm:$0xf] %v223
                  %v225 = vld [vmem:[%s201 + $0xdc] sm:$0xf]
                  %226 = vst [vmem:[%s202 + $0x2c] sm:$0xf] %v225
                  %v227 = vld [vmem:[%s201 + $0xf0] sm:$0xf]
                  %228 = vst [vmem:[%s202 + $0x30] sm:$0xf] %v227
                  %v229 = vld [vmem:[%s201 + $0x104] sm:$0xf]
                  %230 = vst [vmem:[%s202 + $0x34] sm:$0xf] %v229
                  %v231 = vld [vmem:[%s201 + $0x118] sm:$0xf]
                  %232 = vst [vmem:[%s202 + $0x38] sm:$0xf] %v231
                  %v233 = vld [vmem:[%s201 + $0x12c] sm:$0xf]
                  %234 = vst [vmem:[%s202 + $0x3c] sm:$0xf] %v233
                $region63: #{multiscale_discriminator_forward.24} parent=50 // loop_footer
                  %s200 = sadd.s32 1, %s196
                $region64: #{multiscale_discriminator_forward.24} parent=50 // loop_footer_branch
                  %195 = sbr.rel target = $region60
                $region65: #{multiscale_discriminator_forward.24} parent=50 // loop_exit
                  _
              $region51: #{multiscale_discriminator_forward.24} parent=35 // pred_fallthru
                _
            $region36: #{multiscale_discriminator_forward.24} parent=31 // pred_fallthru
              _
            // Predicated region
            $region37: #{multiscale_discriminator_forward.24} parent=31 // pred_check
              _
            $region38: #{multiscale_discriminator_forward.24} parent=31 // pred_check_branch
              %142 = sbr.rel (0) target = $region40
            $region39: #{multiscale_discriminator_forward.24} parent=31 // pred_region
              loop: start=0, step=1, limit=1
              $region41: #{multiscale_discriminator_forward.24} parent=39 // loop_pre_header
                _
              $region42: #{multiscale_discriminator_forward.24} parent=39 // loop_header
                %s145 = sphi 0, %s149
                %p146 = scmp.ge.s32.totalorder %s145, 1
                %s150 = sphi %s136, %s136
                %s151 = sphi %s134, %s134
              $region43: #{multiscale_discriminator_forward.24} parent=39 // loop_header_branch
                %148 = sbr.rel (%p146) target = $region47
              $region44: #{multiscale_discriminator_forward.24} parent=39 // loop_body
                %v152 = vld [vmem:[%s150] sm:$0xf]
                %153 = vst [vmem:[%s151] sm:$0xf] %v152
                %v154 = vld [vmem:[%s150 + $0x14] sm:$0xf]
                %155 = vst [vmem:[%s151 + $0x4] sm:$0xf] %v154
                %v156 = vld [vmem:[%s150 + $0x28] sm:$0xf]
                %157 = vst [vmem:[%s151 + $0x8] sm:$0xf] %v156
                %v158 = vld [vmem:[%s150 + $0x3c] sm:$0xf]
                %159 = vst [vmem:[%s151 + $0xc] sm:$0xf] %v158
                %v160 = vld [vmem:[%s150 + $0x50] sm:$0xf]
                %161 = vst [vmem:[%s151 + $0x10] sm:$0xf] %v160
                %v162 = vld [vmem:[%s150 + $0x64] sm:$0xf]
                %163 = vst [vmem:[%s151 + $0x14] sm:$0xf] %v162
                %v164 = vld [vmem:[%s150 + $0x78] sm:$0xf]
                %165 = vst [vmem:[%s151 + $0x18] sm:$0xf] %v164
                %v166 = vld [vmem:[%s150 + $0x8c] sm:$0xf]
                %167 = vst [vmem:[%s151 + $0x1c] sm:$0xf] %v166
                %v168 = vld [vmem:[%s150 + $0xa0] sm:$0xf]
                %169 = vst [vmem:[%s151 + $0x20] sm:$0xf] %v168
                %v170 = vld [vmem:[%s150 + $0xb4] sm:$0xf]
                %171 = vst [vmem:[%s151 + $0x24] sm:$0xf] %v170
                %v172 = vld [vmem:[%s150 + $0xc8] sm:$0xf]
                %173 = vst [vmem:[%s151 + $0x28] sm:$0xf] %v172
                %v174 = vld [vmem:[%s150 + $0xdc] sm:$0xf]
                %175 = vst [vmem:[%s151 + $0x2c] sm:$0xf] %v174
                %v176 = vld [vmem:[%s150 + $0xf0] sm:$0xf]
                %177 = vst [vmem:[%s151 + $0x30] sm:$0xf] %v176
                %v178 = vld [vmem:[%s150 + $0x104] sm:$0xf]
                %179 = vst [vmem:[%s151 + $0x34] sm:$0xf] %v178
                %v180 = vld [vmem:[%s150 + $0x118] sm:$0xf]
                %181 = vst [vmem:[%s151 + $0x38] sm:$0xf] %v180
                %v182 = vld [vmem:[%s150 + $0x12c] sm:$0xf]
                %183 = vst [vmem:[%s151 + $0x3c] sm:$0xf] %v182
              $region45: #{multiscale_discriminator_forward.24} parent=39 // loop_footer
                %s149 = sadd.s32 1, %s145
              $region46: #{multiscale_discriminator_forward.24} parent=39 // loop_footer_branch
                %144 = sbr.rel target = $region42
              $region47: #{multiscale_discriminator_forward.24} parent=39 // loop_exit
                _
            $region40: #{multiscale_discriminator_forward.24} parent=31 // pred_fallthru
              _
          $region32: #{multiscale_discriminator_forward.24} parent=27 // pred_fallthru
            _
          %235 = vnop
        $region28: #{multiscale_discriminator_forward.24} parent=23 // pred_fallthru
          _
      $region24: #{multiscale_discriminator_forward.24} parent=5 // pred_fallthru
        _
      %p236 = scmp.le.s32.totalorder 1, %s9
      %p237 = scmp.lt.s32.totalorder %s9, 6
      %p238 = pnand %p236, %p237
      %p239 = pneg %p238
      // Predicated region
      $region66: #{multiscale_discriminator_forward.24} parent=5 // pred_check
        _
      $region67: #{multiscale_discriminator_forward.24} parent=5 // pred_check_branch
        %241 = sbr.rel (%p238) target = $region69
      $region68: #{multiscale_discriminator_forward.24} parent=5 // pred_region
        %s242 = ssub.s32 %s9, 1
        %s243 = sand.u32 %s43, 1
        %s244 = sand.u32 %s43, 1
        %s245 = smul.addr %s244, 64
        %s246 = scalar_lea.vmem [#allocation2], %s245
        // Predicated region
        $region70: #{multiscale_discriminator_forward.24} parent=68 // pred_check
          %p247 = pneg %p56
        $region71: #{multiscale_discriminator_forward.24} parent=68 // pred_check_branch
          %249 = sbr.rel (%p247) target = $region73
        $region72: #{multiscale_discriminator_forward.24} parent=68 // pred_region
          _
        $region73: #{multiscale_discriminator_forward.24} parent=68 // pred_fallthru
          _
        %p250 = pneg %p30
        %p251 = pneg %p27
        %s252 = sand.u32 %s43, 1
        %s253 = sand.u32 %s43, 1
        %s254 = smul.addr %s253, 64
        %s255 = scalar_lea.vmem [#allocation2], %s254
        %p256 = pneg %p56
        %p257 = pneg %p53
        %p258 = pneg %p77
        %p259 = pneg %p74
        %p260 = pneg %p103
        %p261 = pneg %p100
        %s262 = sand.u32 %s90, 1
        %s263 = sand.u32 %s90, 1
        %s264 = smul.addr %s263, 8
        %s265 = scalar_lea.vmem [#allocation3], %s264
        %v267 = vld [vmem:[%s0] sm:$0xf]
        %v268 = vld [vmem:[%s0 + $0x4] sm:$0xf]
        %v269 = vld [vmem:[%s246] sm:$0xf]
        %v270 = vld [vmem:[%s246 + $0x4] sm:$0xf]
        %v271 = vld [vmem:[%s246 + $0x8] sm:$0xf]
        %v272 = vld [vmem:[%s246 + $0xc] sm:$0xf]
        %v273 = vld [vmem:[%s246 + $0x10] sm:$0xf]
        %v274 = vld [vmem:[%s246 + $0x14] sm:$0xf]
        %v275 = vld [vmem:[%s246 + $0x18] sm:$0xf]
        %v276 = vld [vmem:[%s246 + $0x1c] sm:$0xf]
        %v277 = vld [vmem:[%s246 + $0x20] sm:$0xf]
        %v278 = vld [vmem:[%s246 + $0x24] sm:$0xf]
        %v279 = vld [vmem:[%s246 + $0x28] sm:$0xf]
        %v280 = vld [vmem:[%s246 + $0x2c] sm:$0xf]
        %v281 = vld [vmem:[%s246 + $0x30] sm:$0xf]
        %v282 = vld [vmem:[%s246 + $0x34] sm:$0xf]
        %v283 = vld [vmem:[%s246 + $0x38] sm:$0xf]
        %v284 = vld [vmem:[%s246 + $0x3c] sm:$0xf]
        %v285 = vld [vmem:[%s2] sm:$0xff]
        %v286 = vld [vmem:[%s2 + $0x8] sm:$0xff]
        %288 = vset.pattern.permute.xlu0 0
        %289 = vperm.xlu0 %288, %v285
        %v290 = vpop.permute.xlu0 %289
        %293 = vset.pattern.permute.xlu0 0
        %294 = vperm.xlu0 %293, %v286
        %v295 = vpop.permute.xlu0 %294
        %v299 = vunpack.c.l.b16 %v267
        %v300 = vunpack.c.l.b16 %v268
        %v301 = vpack.c.b16 %v300, %v299
        %v319 = vunpack.c.l.b16 %v269
        %v320 = vunpack.c.l.b16 %v270
        %v321 = vunpack.c.l.b16 %v271
        %v322 = vunpack.c.l.b16 %v272
        %v323 = vunpack.c.l.b16 %v273
        %v324 = vunpack.c.l.b16 %v274
        %v325 = vunpack.c.l.b16 %v275
        %v326 = vunpack.c.l.b16 %v276
        %v327 = vunpack.c.l.b16 %v277
        %v328 = vunpack.c.l.b16 %v278
        %v329 = vunpack.c.l.b16 %v279
        %v330 = vunpack.c.l.b16 %v280
        %v331 = vunpack.c.l.b16 %v281
        %v332 = vunpack.c.l.b16 %v282
        %v333 = vunpack.c.l.b16 %v283
        %v334 = vunpack.c.l.b16 %v284
        %v335 = vpack.c.b16 %v320, %v319
        %v336 = vpack.c.b16 %v322, %v321
        %v337 = vpack.c.b16 %v324, %v323
        %v338 = vpack.c.b16 %v326, %v325
        %v339 = vpack.c.b16 %v328, %v327
        %v340 = vpack.c.b16 %v330, %v329
        %v341 = vpack.c.b16 %v332, %v331
        %v342 = vpack.c.b16 %v334, %v333
        %351 = vmatprep.subr.bf16.mxu0 0
        %352 = vmatpush1.bf16.msra.mxu0 %v335
        %353 = vmatprep.subr.bf16.mxu0 0
        %354 = vmatpush1.bf16.msra.mxu0 %v336
        %355 = vmatprep.subr.bf16.mxu0 0
        %356 = vmatpush1.bf16.msra.mxu0 %v337
        %357 = vmatprep.subr.bf16.mxu0 0
        %358 = vmatpush1.bf16.msra.mxu0 %v338
        %359 = vmatprep.subr.bf16.mxu0 0
        %360 = vmatpush1.bf16.msra.mxu0 %v339
        %361 = vmatprep.subr.bf16.mxu0 0
        %362 = vmatpush1.bf16.msra.mxu0 %v340
        %363 = vmatprep.subr.bf16.mxu0 0
        %364 = vmatpush1.bf16.msra.mxu0 %v341
        %365 = vmatprep.subr.bf16.mxu0 0
        %366 = vmatpush1.bf16.msra.mxu0 %v342
        %367 = vmatprep.subr.bf16.mxu0 0
        %368 = vmatpush1.bf16.msra.mxu0 0
        %369 = vmatprep.subr.bf16.mxu0 0
        %370 = vmatpush1.bf16.msra.mxu0 0
        %371 = vmatprep.subr.bf16.mxu0 0
        %372 = vmatpush1.bf16.msra.mxu0 0
        %373 = vmatprep.subr.bf16.mxu0 0
        %374 = vmatpush1.bf16.msra.mxu0 0
        %375 = vmatprep.subr.bf16.mxu0 0
        %376 = vmatpush1.bf16.msra.mxu0 0
        %377 = vmatprep.subr.bf16.mxu0 0
        %378 = vmatpush1.bf16.msra.mxu0 0
        %379 = vmatprep.subr.bf16.mxu0 0
        %380 = vmatpush1.bf16.msra.mxu0 0
        %381 = vmatprep.subr.bf16.mxu0 0
        %382 = vmatpush1.bf16.msra.mxu0 0
        %383 = vmatprep.mubr.bf16.mxu0 0
        %384 = vmatmul.mubr.bf16.gmra.mrb[0].mxu0 %v301
        %v385 = vpop.f32.mrb[0].mxu0
        %v386 = vadd.f32 %v290, %v385
        %v387 = vpop.f32.mrb[0].mxu0
        %v388 = vpop.f32.mrb[0].mxu0
        %v389 = vadd.f32 %v295, %v388
        %v390 = vpop.f32.mrb[0].mxu0
        %391 = vdwg.mxu0
        %v392 = vmul.f32 %v386, 0.2
        %v393 = vmul.f32 %v389, 0.2
        %v394 = vmax.f32 %v386, %v392
        %v395 = vmax.f32 %v389, %v393
        %v396 = vpack.c.bf16 %v395, %v394
        %v398 = vunpack.c.l.b16 %v396
        %v399 = vunpack.c.h.b16 %v396
        %v400 = vpack.c.b16 %v398, %v398
        %v401 = vpack.c.b16 %v399, %v399
        %404 = vst [vmem:[%s265] sm:$0xf] %v400
        %405 = vst [vmem:[%s265 + $0x4] sm:$0xf] %v401
        %s406 = sand.u32 %s90, 1
        %s407 = sand.u32 %s90, 1
        %s408 = smul.addr %s407, 8
        %s409 = scalar_lea.vmem [#allocation3], %s408
        // Predicated region
        $region74: #{multiscale_discriminator_forward.24} parent=68 // pred_check
          %p410 = pneg %p100
        $region75: #{multiscale_discriminator_forward.24} parent=68 // pred_check_branch
          %412 = sbr.rel (%p410) target = $region77
        $region76: #{multiscale_discriminator_forward.24} parent=68 // pred_region
          %s413 = smul.addr %s14, 4
          %s414 = scalar_lea.vmem %s3, %s413
          // Predicated region
          $region78: #{multiscale_discriminator_forward.24} parent=76 // pred_check
            _
          $region79: #{multiscale_discriminator_forward.24} parent=76 // pred_check_branch
            %416 = sbr.rel (0) target = $region81
          $region80: #{multiscale_discriminator_forward.24} parent=76 // pred_region
            // Predicated region
            $region82: #{multiscale_discriminator_forward.24} parent=80 // pred_check
              _
            $region83: #{multiscale_discriminator_forward.24} parent=80 // pred_check_branch
              %418 = sbr.rel target = $region85
            $region84: #{multiscale_discriminator_forward.24} parent=80 // pred_region
              // Predicated region
              $region97: #{multiscale_discriminator_forward.24} parent=84 // pred_check
                _
              $region98: #{multiscale_discriminator_forward.24} parent=84 // pred_check_branch
                %435 = sbr.rel (0) target = $region100
              $region99: #{multiscale_discriminator_forward.24} parent=84 // pred_region
                loop: start=0, step=1, limit=1
                $region101: #{multiscale_discriminator_forward.24} parent=99 // loop_pre_header
                  _
                $region102: #{multiscale_discriminator_forward.24} parent=99 // loop_header
                  %s437 = sphi 0, %s441
                  %p438 = scmp.ge.s32.totalorder %s437, 1
                  %s442 = sphi %s409, %s409
                  %s443 = sphi %s414, %s414
                $region103: #{multiscale_discriminator_forward.24} parent=99 // loop_header_branch
                  %440 = sbr.rel (%p438) target = $region107
                $region104: #{multiscale_discriminator_forward.24} parent=99 // loop_body
                  _
                $region105: #{multiscale_discriminator_forward.24} parent=99 // loop_footer
                  %s441 = sadd.s32 1, %s437
                $region106: #{multiscale_discriminator_forward.24} parent=99 // loop_footer_branch
                  %436 = sbr.rel target = $region102
                $region107: #{multiscale_discriminator_forward.24} parent=99 // loop_exit
                  _
                loop: start=0, step=1, limit=1
                $region108: #{multiscale_discriminator_forward.24} parent=99 // loop_pre_header
                  _
                $region109: #{multiscale_discriminator_forward.24} parent=99 // loop_header
                  %s446 = sphi 0, %s450
                  %p447 = scmp.ge.s32.totalorder %s446, 1
                  %s451 = sphi %s409, %s409
                  %s452 = sphi %s414, %s414
                $region110: #{multiscale_discriminator_forward.24} parent=99 // loop_header_branch
                  %449 = sbr.rel (%p447) target = $region114
                $region111: #{multiscale_discriminator_forward.24} parent=99 // loop_body
                  %v453 = vld [vmem:[%s451] sm:$0xf]
                  %454 = vst [vmem:[%s452] sm:$0xf] %v453
                  %v455 = vld [vmem:[%s451 + $0x4] sm:$0xf]
                  %456 = vst [vmem:[%s452 + $0x14] sm:$0xf] %v455
                $region112: #{multiscale_discriminator_forward.24} parent=99 // loop_footer
                  %s450 = sadd.s32 1, %s446
                $region113: #{multiscale_discriminator_forward.24} parent=99 // loop_footer_branch
                  %445 = sbr.rel target = $region109
                $region114: #{multiscale_discriminator_forward.24} parent=99 // loop_exit
                  _
              $region100: #{multiscale_discriminator_forward.24} parent=84 // pred_fallthru
                _
            $region85: #{multiscale_discriminator_forward.24} parent=80 // pred_fallthru
              _
            // Predicated region
            $region86: #{multiscale_discriminator_forward.24} parent=80 // pred_check
              _
            $region87: #{multiscale_discriminator_forward.24} parent=80 // pred_check_branch
              %420 = sbr.rel (0) target = $region89
            $region88: #{multiscale_discriminator_forward.24} parent=80 // pred_region
              loop: start=0, step=1, limit=1
              $region90: #{multiscale_discriminator_forward.24} parent=88 // loop_pre_header
                _
              $region91: #{multiscale_discriminator_forward.24} parent=88 // loop_header
                %s423 = sphi 0, %s427
                %p424 = scmp.ge.s32.totalorder %s423, 1
                %s428 = sphi %s409, %s409
                %s429 = sphi %s414, %s414
              $region92: #{multiscale_discriminator_forward.24} parent=88 // loop_header_branch
                %426 = sbr.rel (%p424) target = $region96
              $region93: #{multiscale_discriminator_forward.24} parent=88 // loop_body
                %v430 = vld [vmem:[%s428] sm:$0xf]
                %431 = vst [vmem:[%s429] sm:$0xf] %v430
                %v432 = vld [vmem:[%s428 + $0x4] sm:$0xf]
                %433 = vst [vmem:[%s429 + $0x14] sm:$0xf] %v432
              $region94: #{multiscale_discriminator_forward.24} parent=88 // loop_footer
                %s427 = sadd.s32 1, %s423
              $region95: #{multiscale_discriminator_forward.24} parent=88 // loop_footer_branch
                %422 = sbr.rel target = $region91
              $region96: #{multiscale_discriminator_forward.24} parent=88 // loop_exit
                _
            $region89: #{multiscale_discriminator_forward.24} parent=80 // pred_fallthru
              _
          $region81: #{multiscale_discriminator_forward.24} parent=76 // pred_fallthru
            _
          %457 = vnop
        $region77: #{multiscale_discriminator_forward.24} parent=68 // pred_fallthru
          _
      $region69: #{multiscale_discriminator_forward.24} parent=5 // pred_fallthru
        _
      %p458 = scmp.le.s32.totalorder 2, %s9
      // Predicated region
      $region115: #{multiscale_discriminator_forward.24} parent=5 // pred_check
        %p459 = pneg %p458
      $region116: #{multiscale_discriminator_forward.24} parent=5 // pred_check_branch
        %461 = sbr.rel (%p459) target = $region118
      $region117: #{multiscale_discriminator_forward.24} parent=5 // pred_region
        %s462 = ssub.s32 %s9, 2
        // Predicated region
        $region119: #{multiscale_discriminator_forward.24} parent=117 // pred_check
          %p463 = pneg %p106
        $region120: #{multiscale_discriminator_forward.24} parent=117 // pred_check_branch
          %465 = sbr.rel (%p463) target = $region122
        $region121: #{multiscale_discriminator_forward.24} parent=117 // pred_region
          %s466 = sand.u32 %s91, 1
          %s467 = sand.u32 %s91, 1
          %s468 = smul.addr %s467, 8
          %s469 = scalar_lea.vmem [#allocation3], %s468
        $region122: #{multiscale_discriminator_forward.24} parent=117 // pred_fallthru
          _
      $region118: #{multiscale_discriminator_forward.24} parent=5 // pred_fallthru
        _
    $region6: #{multiscale_discriminator_forward.24} parent=1 // loop_footer
      %s13 = sadd.s32 1, %s9
    $region7: #{multiscale_discriminator_forward.24} parent=1 // loop_footer_branch
      %8 = sbr.rel target = $region3
    $region8: #{multiscale_discriminator_forward.24} parent=1 // loop_exit
      _

// kernel: multiscale_discriminator_forward.25
$region0: #{multiscale_discriminator_forward.25}
  #allocation0 [shape = 'u32[]', space=smem, size = 0x4, offset = 0x4, fixed_abs, tag = 'smem constant byte address 0x4 - core index']
  #allocation1 [shape = 'u32[144,128]{1,0:T(1,128)}', space=vmem, size = 0x12000, scoped, tag = 'internal scratch']
  %s0 = inlined_call_operand.vmem [shape: bf16[32,256], index: 0, kind: input, shape index: {}]
  %s1 = inlined_call_operand.vmem [shape: bf16[256,256], index: 1, kind: input, shape index: {}]
  %s2 = inlined_call_operand.vmem [shape: bf16[32,256], index: 2, kind: output, shape index: {0}]
  %s3 = inlined_call_operand.vmem [shape: f32[2,32,1], index: 3, kind: output, shape index: {1}]
  %s4 = inlined_call_operand.vmem [shape: f32[2,32,1], index: 4, kind: output, shape index: {2}]
  %5 = xla_tuple %s2, %s3, %s4
  %s6 = sld [smem:[#allocation0]]
  $region135: #{multiscale_discriminator_forward.25} parent=0
    _
  %s8 = ssub.s32 1, %s6
  %s9 = scalar_select 0, %s8, %s6
  $region1: #{multiscale_discriminator_forward.25} parent=0
    #allocation2 [shape = 'u8[131072]{0}', space=vmem, size = 0x20000, scoped, tag = 'input window, operand 1']
    #allocation3 [shape = 'u8[16384]{0}', space=vmem, size = 0x4000, scoped, tag = 'output window, operand 0']
    loop: start=0, step=1, limit=4
    $region2: #{multiscale_discriminator_forward.25} parent=1 // loop_pre_header
      _
    $region3: #{multiscale_discriminator_forward.25} parent=1 // loop_header
      %s11 = sphi 0, %s15
      %p12 = scmp.ge.s32.totalorder %s11, 4
      %s19 = sphi 0, %s19
      %s21 = sphi 0, %s19
      %s22 = sphi 0, %s21
      %s36 = sphi 0, %s22
      %s42 = sphi 0, %s44
      %s45 = sphi 0, %s42
      %s46 = sphi 0, %s45
      %s62 = sphi 0, %s46
      %s68 = sphi 0, %s70
      %s71 = sphi 0, %s68
      %s72 = sphi 0, %s71
      %s88 = sphi 0, %s72
      %s94 = sphi 0, %s96
      %s97 = sphi 0, %s94
      %s98 = sphi 0, %s97
      %s114 = sphi 0, %s98
      %s120 = sphi 0, %s122
      %s123 = sphi 0, %s120
      %s124 = sphi 0, %s123
      %s140 = sphi 0, %s124
    $region4: #{multiscale_discriminator_forward.25} parent=1 // loop_header_branch
      %14 = sbr.rel (%p12) target = $region8
    $region5: #{multiscale_discriminator_forward.25} parent=1 // loop_body
      %s16 = ssub.s32 %s11, 1
      %s17 = ssub.s32 %s11, 2
      %s18 = sadd.s32 %s11, 1
      %s20 = sadd.s32 %s19, 1
      %p23 = scmp.eq.s32.totalorder %s11, 1
      %p24 = scmp.ne.s32.totalorder %s19, %s21
      %p25 = scmp.eq.s32.totalorder %s11, 0
      %p26 = por %p24, %p25
      %p27 = scmp.ne.s32.totalorder %s19, %s21
      %p28 = scmp.eq.s32.totalorder %s16, 1
      %p29 = por %p27, %p28
      %p30 = scmp.ne.s32.totalorder %s21, %s22
      %p31 = scmp.eq.s32.totalorder %s16, 0
      %p32 = por %p30, %p31
      %p33 = scmp.ne.s32.totalorder %s21, %s22
      %p34 = scmp.eq.s32.totalorder %s17, 1
      %p35 = por %p33, %p34
      %p37 = scmp.ne.s32.totalorder %s22, %s36
      %p38 = scmp.eq.s32.totalorder %s17, 0
      %p39 = por %p37, %p38
      %s40 = ssub.s32 %s11, %s18
      %p41 = scmp.eq.s32.totalorder %s40, 0
      %s43 = sadd.s32 %s42, 1
      %s44 = scalar_select %p41, %s42, %s43
      %p47 = pneg %p41
      %p48 = scmp.eq.s32.totalorder %s11, 1
      %p49 = por %p47, %p48
      %p50 = scmp.ne.s32.totalorder %s42, %s45
      %p51 = scmp.eq.s32.totalorder %s11, 0
      %p52 = por %p50, %p51
      %p53 = scmp.ne.s32.totalorder %s42, %s45
      %p54 = scmp.eq.s32.totalorder %s16, 1
      %p55 = por %p53, %p54
      %p56 = scmp.ne.s32.totalorder %s45, %s46
      %p57 = scmp.eq.s32.totalorder %s16, 0
      %p58 = por %p56, %p57
      %p59 = scmp.ne.s32.totalorder %s45, %s46
      %p60 = scmp.eq.s32.totalorder %s17, 1
      %p61 = por %p59, %p60
      %p63 = scmp.ne.s32.totalorder %s46, %s62
      %p64 = scmp.eq.s32.totalorder %s17, 0
      %p65 = por %p63, %p64
      %s66 = ssub.s32 %s11, %s18
      %p67 = scmp.eq.s32.totalorder %s66, 0
      %s69 = sadd.s32 %s68, 1
      %s70 = scalar_select %p67, %s68, %s69
      %p73 = pneg %p67
      %p74 = scmp.eq.s32.totalorder %s11, 1
      %p75 = por %p73, %p74
      %p76 = scmp.ne.s32.totalorder %s68, %s71
      %p77 = scmp.eq.s32.totalorder %s11, 0
      %p78 = por %p76, %p77
      %p79 = scmp.ne.s32.totalorder %s68, %s71
      %p80 = scmp.eq.s32.totalorder %s16, 1
      %p81 = por %p79, %p80
      %p82 = scmp.ne.s32.totalorder %s71, %s72
      %p83 = scmp.eq.s32.totalorder %s16, 0
      %p84 = por %p82, %p83
      %p85 = scmp.ne.s32.totalorder %s71, %s72
      %p86 = scmp.eq.s32.totalorder %s17, 1
      %p87 = por %p85, %p86
      %p89 = scmp.ne.s32.totalorder %s72, %s88
      %p90 = scmp.eq.s32.totalorder %s17, 0
      %p91 = por %p89, %p90
      %s92 = ssub.s32 %s11, %s18
      %p93 = scmp.eq.s32.totalorder %s92, 0
      %s95 = sadd.s32 %s94, 1
      %s96 = scalar_select %p93, %s94, %s95
      %p99 = pneg %p93
      %p100 = scmp.eq.s32.totalorder %s11, 1
      %p101 = por %p99, %p100
      %p102 = scmp.ne.s32.totalorder %s94, %s97
      %p103 = scmp.eq.s32.totalorder %s11, 0
      %p104 = por %p102, %p103
      %p105 = scmp.ne.s32.totalorder %s94, %s97
      %p106 = scmp.eq.s32.totalorder %s16, 1
      %p107 = por %p105, %p106
      %p108 = scmp.ne.s32.totalorder %s97, %s98
      %p109 = scmp.eq.s32.totalorder %s16, 0
      %p110 = por %p108, %p109
      %p111 = scmp.ne.s32.totalorder %s97, %s98
      %p112 = scmp.eq.s32.totalorder %s17, 1
      %p113 = por %p111, %p112
      %p115 = scmp.ne.s32.totalorder %s98, %s114
      %p116 = scmp.eq.s32.totalorder %s17, 0
      %p117 = por %p115, %p116
      %s118 = ssub.s32 %s11, %s18
      %p119 = scmp.eq.s32.totalorder %s118, 0
      %s121 = sadd.s32 %s120, 1
      %s122 = scalar_select %p119, %s120, %s121
      %p125 = pneg %p119
      %p126 = scmp.eq.s32.totalorder %s11, 1
      %p127 = por %p125, %p126
      %p128 = scmp.ne.s32.totalorder %s120, %s123
      %p129 = scmp.eq.s32.totalorder %s11, 0
      %p130 = por %p128, %p129
      %p131 = scmp.ne.s32.totalorder %s120, %s123
      %p132 = scmp.eq.s32.totalorder %s16, 1
      %p133 = por %p131, %p132
      %p134 = scmp.ne.s32.totalorder %s123, %s124
      %p135 = scmp.eq.s32.totalorder %s16, 0
      %p136 = por %p134, %p135
      %p137 = scmp.ne.s32.totalorder %s123, %s124
      %p138 = scmp.eq.s32.totalorder %s17, 1
      %p139 = por %p137, %p138
      %p141 = scmp.ne.s32.totalorder %s124, %s140
      %p142 = scmp.eq.s32.totalorder %s17, 0
      %p143 = por %p141, %p142
      %p144 = scmp.le.s32.totalorder 1, %s11
      %p145 = scmp.lt.s32.totalorder %s11, 3
      %p146 = pnand %p144, %p145
      %p147 = pneg %p146
      // Predicated region
      $region9: #{multiscale_discriminator_forward.25} parent=5 // pred_check
        _
      $region10: #{multiscale_discriminator_forward.25} parent=5 // pred_check_branch
        %149 = sbr.rel (%p146) target = $region12
      $region11: #{multiscale_discriminator_forward.25} parent=5 // pred_region
        %s150 = ssub.s32 %s11, 1
        // Predicated region
        $region13: #{multiscale_discriminator_forward.25} parent=11 // pred_check
          %p151 = pneg %p32
        $region14: #{multiscale_discriminator_forward.25} parent=11 // pred_check_branch
          %153 = sbr.rel (%p151) target = $region16
        $region15: #{multiscale_discriminator_forward.25} parent=11 // pred_region
          _
        $region16: #{multiscale_discriminator_forward.25} parent=11 // pred_fallthru
          _
      $region12: #{multiscale_discriminator_forward.25} parent=5 // pred_fallthru
        _
      %p154 = scmp.lt.s32.totalorder %s11, 2
      // Predicated region
      $region17: #{multiscale_discriminator_forward.25} parent=5 // pred_check
        %p155 = pneg %p154
      $region18: #{multiscale_discriminator_forward.25} parent=5 // pred_check_branch
        %157 = sbr.rel (%p155) target = $region20
      $region19: #{multiscale_discriminator_forward.25} parent=5 // pred_region
        // Predicated region
        $region21: #{multiscale_discriminator_forward.25} parent=19 // pred_check
          %p158 = pneg %p52
        $region22: #{multiscale_discriminator_forward.25} parent=19 // pred_check_branch
          %160 = sbr.rel (%p158) target = $region24
        $region23: #{multiscale_discriminator_forward.25} parent=19 // pred_region
          %s161 = sand.u32 %s42, 1
          %s162 = sand.u32 %s42, 1
          %s163 = smul.addr %s162, 128
          %s164 = scalar_lea.vmem [#allocation2], %s163
          %s165 = smul.addr %s11, 4
          %s166 = scalar_lea.vmem %s1, %s165
          // Predicated region
          $region25: #{multiscale_discriminator_forward.25} parent=23 // pred_check
            _
          $region26: #{multiscale_discriminator_forward.25} parent=23 // pred_check_branch
            %168 = sbr.rel (0) target = $region28
          $region27: #{multiscale_discriminator_forward.25} parent=23 // pred_region
            // Predicated region
            $region29: #{multiscale_discriminator_forward.25} parent=27 // pred_check
              _
            $region30: #{multiscale_discriminator_forward.25} parent=27 // pred_check_branch
              %170 = sbr.rel target = $region32
            $region31: #{multiscale_discriminator_forward.25} parent=27 // pred_region
              // Predicated region
              $region44: #{multiscale_discriminator_forward.25} parent=31 // pred_check
                _
              $region45: #{multiscale_discriminator_forward.25} parent=31 // pred_check_branch
                %247 = sbr.rel (0) target = $region47
              $region46: #{multiscale_discriminator_forward.25} parent=31 // pred_region
                loop: start=0, step=1, limit=1
                $region48: #{multiscale_discriminator_forward.25} parent=46 // loop_pre_header
                  _
                $region49: #{multiscale_discriminator_forward.25} parent=46 // loop_header
                  %s249 = sphi 0, %s253
                  %p250 = scmp.ge.s32.totalorder %s249, 1
                  %s254 = sphi %s166, %s166
                  %s255 = sphi %s164, %s164
                $region50: #{multiscale_discriminator_forward.25} parent=46 // loop_header_branch
                  %252 = sbr.rel (%p250) target = $region54
                $region51: #{multiscale_discriminator_forward.25} parent=46 // loop_body
                  _
                $region52: #{multiscale_discriminator_forward.25} parent=46 // loop_footer
                  %s253 = sadd.s32 1, %s249
                $region53: #{multiscale_discriminator_forward.25} parent=46 // loop_footer_branch
                  %248 = sbr.rel target = $region49
                $region54: #{multiscale_discriminator_forward.25} parent=46 // loop_exit
                  _
                loop: start=0, step=1, limit=1
                $region55: #{multiscale_discriminator_forward.25} parent=46 // loop_pre_header
                  _
                $region56: #{multiscale_discriminator_forward.25} parent=46 // loop_header
                  %s258 = sphi 0, %s262
                  %p259 = scmp.ge.s32.totalorder %s258, 1
                  %s263 = sphi %s166, %s166
                  %s264 = sphi %s164, %s164
                $region57: #{multiscale_discriminator_forward.25} parent=46 // loop_header_branch
                  %261 = sbr.rel (%p259) target = $region61
                $region58: #{multiscale_discriminator_forward.25} parent=46 // loop_body
                  %v265 = vld [vmem:[%s263] sm:$0xf]
                  %266 = vst [vmem:[%s264] sm:$0xf] %v265
                  %v267 = vld [vmem:[%s263 + $0x8] sm:$0xf]
                  %268 = vst [vmem:[%s264 + $0x4] sm:$0xf] %v267
                  %v269 = vld [vmem:[%s263 + $0x10] sm:$0xf]
                  %270 = vst [vmem:[%s264 + $0x8] sm:$0xf] %v269
                  %v271 = vld [vmem:[%s263 + $0x18] sm:$0xf]
                  %272 = vst [vmem:[%s264 + $0xc] sm:$0xf] %v271
                  %v273 = vld [vmem:[%s263 + $0x20] sm:$0xf]
                  %274 = vst [vmem:[%s264 + $0x10] sm:$0xf] %v273
                  %v275 = vld [vmem:[%s263 + $0x28] sm:$0xf]
                  %276 = vst [vmem:[%s264 + $0x14] sm:$0xf] %v275
                  %v277 = vld [vmem:[%s263 + $0x30] sm:$0xf]
                  %278 = vst [vmem:[%s264 + $0x18] sm:$0xf] %v277
                  %v279 = vld [vmem:[%s263 + $0x38] sm:$0xf]
                  %280 = vst [vmem:[%s264 + $0x1c] sm:$0xf] %v279
                  %v281 = vld [vmem:[%s263 + $0x40] sm:$0xf]
                  %282 = vst [vmem:[%s264 + $0x20] sm:$0xf] %v281
                  %v283 = vld [vmem:[%s263 + $0x48] sm:$0xf]
                  %284 = vst [vmem:[%s264 + $0x24] sm:$0xf] %v283
                  %v285 = vld [vmem:[%s263 + $0x50] sm:$0xf]
                  %286 = vst [vmem:[%s264 + $0x28] sm:$0xf] %v285
                  %v287 = vld [vmem:[%s263 + $0x58] sm:$0xf]
                  %288 = vst [vmem:[%s264 + $0x2c] sm:$0xf] %v287
                  %v289 = vld [vmem:[%s263 + $0x60] sm:$0xf]
                  %290 = vst [vmem:[%s264 + $0x30] sm:$0xf] %v289
                  %v291 = vld [vmem:[%s263 + $0x68] sm:$0xf]
                  %292 = vst [vmem:[%s264 + $0x34] sm:$0xf] %v291
                  %v293 = vld [vmem:[%s263 + $0x70] sm:$0xf]
                  %294 = vst [vmem:[%s264 + $0x38] sm:$0xf] %v293
                  %v295 = vld [vmem:[%s263 + $0x78] sm:$0xf]
                  %296 = vst [vmem:[%s264 + $0x3c] sm:$0xf] %v295
                  %v297 = vld [vmem:[%s263 + $0x80] sm:$0xf]
                  %298 = vst [vmem:[%s264 + $0x40] sm:$0xf] %v297
                  %v299 = vld [vmem:[%s263 + $0x88] sm:$0xf]
                  %300 = vst [vmem:[%s264 + $0x44] sm:$0xf] %v299
                  %v301 = vld [vmem:[%s263 + $0x90] sm:$0xf]
                  %302 = vst [vmem:[%s264 + $0x48] sm:$0xf] %v301
                  %v303 = vld [vmem:[%s263 + $0x98] sm:$0xf]
                  %304 = vst [vmem:[%s264 + $0x4c] sm:$0xf] %v303
                  %v305 = vld [vmem:[%s263 + $0xa0] sm:$0xf]
                  %306 = vst [vmem:[%s264 + $0x50] sm:$0xf] %v305
                  %v307 = vld [vmem:[%s263 + $0xa8] sm:$0xf]
                  %308 = vst [vmem:[%s264 + $0x54] sm:$0xf] %v307
                  %v309 = vld [vmem:[%s263 + $0xb0] sm:$0xf]
                  %310 = vst [vmem:[%s264 + $0x58] sm:$0xf] %v309
                  %v311 = vld [vmem:[%s263 + $0xb8] sm:$0xf]
                  %312 = vst [vmem:[%s264 + $0x5c] sm:$0xf] %v311
                  %v313 = vld [vmem:[%s263 + $0xc0] sm:$0xf]
                  %314 = vst [vmem:[%s264 + $0x60] sm:$0xf] %v313
                  %v315 = vld [vmem:[%s263 + $0xc8] sm:$0xf]
                  %316 = vst [vmem:[%s264 + $0x64] sm:$0xf] %v315
                  %v317 = vld [vmem:[%s263 + $0xd0] sm:$0xf]
                  %318 = vst [vmem:[%s264 + $0x68] sm:$0xf] %v317
                  %v319 = vld [vmem:[%s263 + $0xd8] sm:$0xf]
                  %320 = vst [vmem:[%s264 + $0x6c] sm:$0xf] %v319
                  %v321 = vld [vmem:[%s263 + $0xe0] sm:$0xf]
                  %322 = vst [vmem:[%s264 + $0x70] sm:$0xf] %v321
                  %v323 = vld [vmem:[%s263 + $0xe8] sm:$0xf]
                  %324 = vst [vmem:[%s264 + $0x74] sm:$0xf] %v323
                  %v325 = vld [vmem:[%s263 + $0xf0] sm:$0xf]
                  %326 = vst [vmem:[%s264 + $0x78] sm:$0xf] %v325
                  %v327 = vld [vmem:[%s263 + $0xf8] sm:$0xf]
                  %328 = vst [vmem:[%s264 + $0x7c] sm:$0xf] %v327
                $region59: #{multiscale_discriminator_forward.25} parent=46 // loop_footer
                  %s262 = sadd.s32 1, %s258
                $region60: #{multiscale_discriminator_forward.25} parent=46 // loop_footer_branch
                  %257 = sbr.rel target = $region56
                $region61: #{multiscale_discriminator_forward.25} parent=46 // loop_exit
                  _
              $region47: #{multiscale_discriminator_forward.25} parent=31 // pred_fallthru
                _
            $region32: #{multiscale_discriminator_forward.25} parent=27 // pred_fallthru
              _
            // Predicated region
            $region33: #{multiscale_discriminator_forward.25} parent=27 // pred_check
              _
            $region34: #{multiscale_discriminator_forward.25} parent=27 // pred_check_branch
              %172 = sbr.rel (0) target = $region36
            $region35: #{multiscale_discriminator_forward.25} parent=27 // pred_region
              loop: start=0, step=1, limit=1
              $region37: #{multiscale_discriminator_forward.25} parent=35 // loop_pre_header
                _
              $region38: #{multiscale_discriminator_forward.25} parent=35 // loop_header
                %s175 = sphi 0, %s179
                %p176 = scmp.ge.s32.totalorder %s175, 1
                %s180 = sphi %s166, %s166
                %s181 = sphi %s164, %s164
              $region39: #{multiscale_discriminator_forward.25} parent=35 // loop_header_branch
                %178 = sbr.rel (%p176) target = $region43
              $region40: #{multiscale_discriminator_forward.25} parent=35 // loop_body
                %v182 = vld [vmem:[%s180] sm:$0xf]
                %183 = vst [vmem:[%s181] sm:$0xf] %v182
                %v184 = vld [vmem:[%s180 + $0x8] sm:$0xf]
                %185 = vst [vmem:[%s181 + $0x4] sm:$0xf] %v184
                %v186 = vld [vmem:[%s180 + $0x10] sm:$0xf]
                %187 = vst [vmem:[%s181 + $0x8] sm:$0xf] %v186
                %v188 = vld [vmem:[%s180 + $0x18] sm:$0xf]
                %189 = vst [vmem:[%s181 + $0xc] sm:$0xf] %v188
                %v190 = vld [vmem:[%s180 + $0x20] sm:$0xf]
                %191 = vst [vmem:[%s181 + $0x10] sm:$0xf] %v190
                %v192 = vld [vmem:[%s180 + $0x28] sm:$0xf]
                %193 = vst [vmem:[%s181 + $0x14] sm:$0xf] %v192
                %v194 = vld [vmem:[%s180 + $0x30] sm:$0xf]
                %195 = vst [vmem:[%s181 + $0x18] sm:$0xf] %v194
                %v196 = vld [vmem:[%s180 + $0x38] sm:$0xf]
                %197 = vst [vmem:[%s181 + $0x1c] sm:$0xf] %v196
                %v198 = vld [vmem:[%s180 + $0x40] sm:$0xf]
                %199 = vst [vmem:[%s181 + $0x20] sm:$0xf] %v198
                %v200 = vld [vmem:[%s180 + $0x48] sm:$0xf]
                %201 = vst [vmem:[%s181 + $0x24] sm:$0xf] %v200
                %v202 = vld [vmem:[%s180 + $0x50] sm:$0xf]
                %203 = vst [vmem:[%s181 + $0x28] sm:$0xf] %v202
                %v204 = vld [vmem:[%s180 + $0x58] sm:$0xf]
                %205 = vst [vmem:[%s181 + $0x2c] sm:$0xf] %v204
                %v206 = vld [vmem:[%s180 + $0x60] sm:$0xf]
                %207 = vst [vmem:[%s181 + $0x30] sm:$0xf] %v206
                %v208 = vld [vmem:[%s180 + $0x68] sm:$0xf]
                %209 = vst [vmem:[%s181 + $0x34] sm:$0xf] %v208
                %v210 = vld [vmem:[%s180 + $0x70] sm:$0xf]
                %211 = vst [vmem:[%s181 + $0x38] sm:$0xf] %v210
                %v212 = vld [vmem:[%s180 + $0x78] sm:$0xf]
                %213 = vst [vmem:[%s181 + $0x3c] sm:$0xf] %v212
                %v214 = vld [vmem:[%s180 + $0x80] sm:$0xf]
                %215 = vst [vmem:[%s181 + $0x40] sm:$0xf] %v214
                %v216 = vld [vmem:[%s180 + $0x88] sm:$0xf]
                %217 = vst [vmem:[%s181 + $0x44] sm:$0xf] %v216
                %v218 = vld [vmem:[%s180 + $0x90] sm:$0xf]
                %219 = vst [vmem:[%s181 + $0x48] sm:$0xf] %v218
                %v220 = vld [vmem:[%s180 + $0x98] sm:$0xf]
                %221 = vst [vmem:[%s181 + $0x4c] sm:$0xf] %v220
                %v222 = vld [vmem:[%s180 + $0xa0] sm:$0xf]
                %223 = vst [vmem:[%s181 + $0x50] sm:$0xf] %v222
                %v224 = vld [vmem:[%s180 + $0xa8] sm:$0xf]
                %225 = vst [vmem:[%s181 + $0x54] sm:$0xf] %v224
                %v226 = vld [vmem:[%s180 + $0xb0] sm:$0xf]
                %227 = vst [vmem:[%s181 + $0x58] sm:$0xf] %v226
                %v228 = vld [vmem:[%s180 + $0xb8] sm:$0xf]
                %229 = vst [vmem:[%s181 + $0x5c] sm:$0xf] %v228
                %v230 = vld [vmem:[%s180 + $0xc0] sm:$0xf]
                %231 = vst [vmem:[%s181 + $0x60] sm:$0xf] %v230
                %v232 = vld [vmem:[%s180 + $0xc8] sm:$0xf]
                %233 = vst [vmem:[%s181 + $0x64] sm:$0xf] %v232
                %v234 = vld [vmem:[%s180 + $0xd0] sm:$0xf]
                %235 = vst [vmem:[%s181 + $0x68] sm:$0xf] %v234
                %v236 = vld [vmem:[%s180 + $0xd8] sm:$0xf]
                %237 = vst [vmem:[%s181 + $0x6c] sm:$0xf] %v236
                %v238 = vld [vmem:[%s180 + $0xe0] sm:$0xf]
                %239 = vst [vmem:[%s181 + $0x70] sm:$0xf] %v238
                %v240 = vld [vmem:[%s180 + $0xe8] sm:$0xf]
                %241 = vst [vmem:[%s181 + $0x74] sm:$0xf] %v240
                %v242 = vld [vmem:[%s180 + $0xf0] sm:$0xf]
                %243 = vst [vmem:[%s181 + $0x78] sm:$0xf] %v242
                %v244 = vld [vmem:[%s180 + $0xf8] sm:$0xf]
                %245 = vst [vmem:[%s181 + $0x7c] sm:$0xf] %v244
              $region41: #{multiscale_discriminator_forward.25} parent=35 // loop_footer
                %s179 = sadd.s32 1, %s175
              $region42: #{multiscale_discriminator_forward.25} parent=35 // loop_footer_branch
                %174 = sbr.rel target = $region38
              $region43: #{multiscale_discriminator_forward.25} parent=35 // loop_exit
                _
            $region36: #{multiscale_discriminator_forward.25} parent=27 // pred_fallthru
              _
          $region28: #{multiscale_discriminator_forward.25} parent=23 // pred_fallthru
            _
          %329 = vnop
        $region24: #{multiscale_discriminator_forward.25} parent=19 // pred_fallthru
          _
      $region20: #{multiscale_discriminator_forward.25} parent=5 // pred_fallthru
        _
      %p330 = scmp.le.s32.totalorder 1, %s11
      %p331 = scmp.lt.s32.totalorder %s11, 3
      %p332 = pnand %p330, %p331
      %p333 = pneg %p332
      // Predicated region
      $region62: #{multiscale_discriminator_forward.25} parent=5 // pred_check
        _
      $region63: #{multiscale_discriminator_forward.25} parent=5 // pred_check_branch
        %335 = sbr.rel (%p332) target = $region65
      $region64: #{multiscale_discriminator_forward.25} parent=5 // pred_region
        %s336 = ssub.s32 %s11, 1
        %s337 = sand.u32 %s45, 1
        %s338 = sand.u32 %s45, 1
        %s339 = smul.addr %s338, 128
        %s340 = scalar_lea.vmem [#allocation2], %s339
        // Predicated region
        $region66: #{multiscale_discriminator_forward.25} parent=64 // pred_check
          %p341 = pneg %p58
        $region67: #{multiscale_discriminator_forward.25} parent=64 // pred_check_branch
          %343 = sbr.rel (%p341) target = $region69
        $region68: #{multiscale_discriminator_forward.25} parent=64 // pred_region
          _
        $region69: #{multiscale_discriminator_forward.25} parent=64 // pred_fallthru
          _
        %p344 = pneg %p32
        %p345 = pneg %p29
        %s346 = sand.u32 %s45, 1
        %s347 = sand.u32 %s45, 1
        %s348 = smul.addr %s347, 128
        %s349 = scalar_lea.vmem [#allocation2], %s348
        %p350 = pneg %p58
        %p351 = pneg %p55
        %p352 = pneg %p84
        %p353 = pneg %p81
        %s354 = sand.u32 %s71, 1
        %s355 = sand.u32 %s71, 1
        %s356 = smul.addr %s355, 16
        %s357 = scalar_lea.vmem [#allocation3], %s356
        %p358 = pneg %p110
        %p359 = pneg %p107
        %p360 = scmp.lt.s32.totalorder %s16, 1
        %s361 = scalar_select %p360, %s16, 1
        %s362 = smul.addr %s361, 4
        %s363 = smul.addr %s362, 8
        %s364 = scalar_lea.vmem %s3, %s363
        %p365 = pneg %p136
        %p366 = pneg %p133
        %p367 = scmp.lt.s32.totalorder %s16, 1
        %s368 = scalar_select %p367, %s16, 1
        %s369 = smul.addr %s368, 4
        %s370 = smul.addr %s369, 8
        %s371 = scalar_lea.vmem %s4, %s370
        %p372 = scmp.lt.s32.totalorder %s16, 1
        %s373 = scalar_select %p372, %s16, 1
        %s374 = smul.addr %s373, 4
        %s375 = smul.addr %s374, 8
        %s376 = scalar_lea.vmem %s3, %s375
        %p377 = scmp.lt.s32.totalorder %s16, 1
        %s378 = scalar_select %p377, %s16, 1
        %s379 = smul.addr %s378, 4
        %s380 = smul.addr %s379, 8
        %s381 = scalar_lea.vmem %s4, %s380
        %v383 = vld [vmem:[%s0] sm:$0xff]
        %v384 = vld [vmem:[%s0 + $0x8] sm:$0xff]
        %v385 = vld [vmem:[%s0 + $0x10] sm:$0xff]
        %v386 = vld [vmem:[%s0 + $0x18] sm:$0xff]
        %v387 = vld [vmem:[%s340] sm:$0xf]
        %v388 = vld [vmem:[%s340 + $0x4] sm:$0xf]
        %v389 = vld [vmem:[%s340 + $0x8] sm:$0xf]
        %v390 = vld [vmem:[%s340 + $0xc] sm:$0xf]
        %v391 = vld [vmem:[%s340 + $0x10] sm:$0xf]
        %v392 = vld [vmem:[%s340 + $0x14] sm:$0xf]
        %v393 = vld [vmem:[%s340 + $0x18] sm:$0xf]
        %v394 = vld [vmem:[%s340 + $0x1c] sm:$0xf]
        %v395 = vld [vmem:[%s340 + $0x20] sm:$0xf]
        %v396 = vld [vmem:[%s340 + $0x24] sm:$0xf]
        %v397 = vld [vmem:[%s340 + $0x28] sm:$0xf]
        %v398 = vld [vmem:[%s340 + $0x2c] sm:$0xf]
        %v399 = vld [vmem:[%s340 + $0x30] sm:$0xf]
        %v400 = vld [vmem:[%s340 + $0x34] sm:$0xf]
        %v401 = vld [vmem:[%s340 + $0x38] sm:$0xf]
        %v402 = vld [vmem:[%s340 + $0x3c] sm:$0xf]
        %v403 = vld [vmem:[%s340 + $0x40] sm:$0xf]
        %v404 = vld [vmem:[%s340 + $0x44] sm:$0xf]
        %v405 = vld [vmem:[%s340 + $0x48] sm:$0xf]
        %v406 = vld [vmem:[%s340 + $0x4c] sm:$0xf]
        %v407 = vld [vmem:[%s340 + $0x50] sm:$0xf]
        %v408 = vld [vmem:[%s340 + $0x54] sm:$0xf]
        %v409 = vld [vmem:[%s340 + $0x58] sm:$0xf]
        %v410 = vld [vmem:[%s340 + $0x5c] sm:$0xf]
        %v411 = vld [vmem:[%s340 + $0x60] sm:$0xf]
        %v412 = vld [vmem:[%s340 + $0x64] sm:$0xf]
        %v413 = vld [vmem:[%s340 + $0x68] sm:$0xf]
        %v414 = vld [vmem:[%s340 + $0x6c] sm:$0xf]
        %v415 = vld [vmem:[%s340 + $0x70] sm:$0xf]
        %v416 = vld [vmem:[%s340 + $0x74] sm:$0xf]
        %v417 = vld [vmem:[%s340 + $0x78] sm:$0xf]
        %v418 = vld [vmem:[%s340 + $0x7c] sm:$0xf]
        %v423 = vunpack.c.l.b16 %v383
        %v424 = vunpack.c.h.b16 %v383
        %v425 = vunpack.c.l.b16 %v384
        %v426 = vunpack.c.h.b16 %v384
        %v427 = vunpack.c.l.b16 %v385
        %v428 = vunpack.c.h.b16 %v385
        %v429 = vunpack.c.l.b16 %v386
        %v430 = vunpack.c.h.b16 %v386
        %v431 = vpack.c.b16 %v425, %v423
        %v432 = vpack.c.b16 %v426, %v424
        %v433 = vpack.c.b16 %v429, %v427
        %v434 = vpack.c.b16 %v430, %v428
        %v471 = vunpack.c.l.b16 %v387
        %v472 = vunpack.c.l.b16 %v388
        %v473 = vunpack.c.l.b16 %v389
        %v474 = vunpack.c.l.b16 %v390
        %v475 = vunpack.c.l.b16 %v391
        %v476 = vunpack.c.l.b16 %v392
        %v477 = vunpack.c.l.b16 %v393
        %v478 = vunpack.c.l.b16 %v394
        %v479 = vunpack.c.l.b16 %v395
        %v480 = vunpack.c.l.b16 %v396
        %v481 = vunpack.c.l.b16 %v397
        %v482 = vunpack.c.l.b16 %v398
        %v483 = vunpack.c.l.b16 %v399
        %v484 = vunpack.c.l.b16 %v400
        %v485 = vunpack.c.l.b16 %v401
        %v486 = vunpack.c.l.b16 %v402
        %v487 = vunpack.c.l.b16 %v403
        %v488 = vunpack.c.l.b16 %v404
        %v489 = vunpack.c.l.b16 %v405
        %v490 = vunpack.c.l.b16 %v406
        %v491 = vunpack.c.l.b16 %v407
        %v492 = vunpack.c.l.b16 %v408
        %v493 = vunpack.c.l.b16 %v409
        %v494 = vunpack.c.l.b16 %v410
        %v495 = vunpack.c.l.b16 %v411
        %v496 = vunpack.c.l.b16 %v412
        %v497 = vunpack.c.l.b16 %v413
        %v498 = vunpack.c.l.b16 %v414
        %v499 = vunpack.c.l.b16 %v415
        %v500 = vunpack.c.l.b16 %v416
        %v501 = vunpack.c.l.b16 %v417
        %v502 = vunpack.c.l.b16 %v418
        %v503 = vpack.c.b16 %v472, %v471
        %v504 = vpack.c.b16 %v474, %v473
        %v505 = vpack.c.b16 %v476, %v475
        %v506 = vpack.c.b16 %v478, %v477
        %v507 = vpack.c.b16 %v480, %v479
        %v508 = vpack.c.b16 %v482, %v481
        %v509 = vpack.c.b16 %v484, %v483
        %v510 = vpack.c.b16 %v486, %v485
        %v511 = vpack.c.b16 %v488, %v487
        %v512 = vpack.c.b16 %v490, %v489
        %v513 = vpack.c.b16 %v492, %v491
        %v514 = vpack.c.b16 %v494, %v493
        %v515 = vpack.c.b16 %v496, %v495
        %v516 = vpack.c.b16 %v498, %v497
        %v517 = vpack.c.b16 %v500, %v499
        %v518 = vpack.c.b16 %v502, %v501
        %535 = vmatprep.subr.bf16.mxu0 0
        %536 = vmatpush1.bf16.msra.mxu0 %v503
        %537 = vmatprep.subr.bf16.mxu0 0
        %538 = vmatpush1.bf16.msra.mxu0 %v504
        %539 = vmatprep.subr.bf16.mxu0 0
        %540 = vmatpush1.bf16.msra.mxu0 %v505
        %541 = vmatprep.subr.bf16.mxu0 0
        %542 = vmatpush1.bf16.msra.mxu0 %v506
        %543 = vmatprep.subr.bf16.mxu0 0
        %544 = vmatpush1.bf16.msra.mxu0 %v507
        %545 = vmatprep.subr.bf16.mxu0 0
        %546 = vmatpush1.bf16.msra.mxu0 %v508
        %547 = vmatprep.subr.bf16.mxu0 0
        %548 = vmatpush1.bf16.msra.mxu0 %v509
        %549 = vmatprep.subr.bf16.mxu0 0
        %550 = vmatpush1.bf16.msra.mxu0 %v510
        %551 = vmatprep.subr.bf16.mxu0 0
        %552 = vmatpush1.bf16.msra.mxu0 %v511
        %553 = vmatprep.subr.bf16.mxu0 0
        %554 = vmatpush1.bf16.msra.mxu0 %v512
        %555 = vmatprep.subr.bf16.mxu0 0
        %556 = vmatpush1.bf16.msra.mxu0 %v513
        %557 = vmatprep.subr.bf16.mxu0 0
        %558 = vmatpush1.bf16.msra.mxu0 %v514
        %559 = vmatprep.subr.bf16.mxu0 0
        %560 = vmatpush1.bf16.msra.mxu0 %v515
        %561 = vmatprep.subr.bf16.mxu0 0
        %562 = vmatpush1.bf16.msra.mxu0 %v516
        %563 = vmatprep.subr.bf16.mxu0 0
        %564 = vmatpush1.bf16.msra.mxu0 %v517
        %565 = vmatprep.subr.bf16.mxu0 0
        %566 = vmatpush1.bf16.msra.mxu0 %v518
        %567 = vmatprep.mubr.bf16.mxu0 %v432
        %568 = vmatmul.mubr.bf16.gmra.mrb[0].mxu0 %v431
        %v569 = vpop.f32.mrb[0].mxu0
        %v570 = vadd.f32 0.0, %v569
        %v571 = vpop.f32.mrb[0].mxu0
        %v572 = vpop.f32.mrb[0].mxu0
        %v573 = vadd.f32 0.0, %v572
        %v574 = vpop.f32.mrb[0].mxu0
        %575 = vmatprep.mubr.bf16.mxu0 %v434
        %576 = vmatmul.mubr.bf16.gmra.mrb[0].mxu0 %v433
        %v577 = vpop.f32.mrb[0].mxu0
        %v578 = vadd.f32 0.0, %v577
        %v579 = vpop.f32.mrb[0].mxu0
        %v580 = vpop.f32.mrb[0].mxu0
        %v581 = vadd.f32 0.0, %v580
        %v582 = vpop.f32.mrb[0].mxu0
        %583 = vdwg.mxu0
        %v584 = vpack.c.bf16 %v573, %v570
        %v585 = vpack.c.bf16 %v581, %v578
        %v588 = vunpack.c.l.b16 %v584
        %v589 = vunpack.c.h.b16 %v584
        %v590 = vunpack.c.l.b16 %v585
        %v591 = vunpack.c.h.b16 %v585
        %v592 = vpack.c.b16 %v588, %v588
        %v593 = vpack.c.b16 %v589, %v589
        %v594 = vpack.c.b16 %v590, %v590
        %v595 = vpack.c.b16 %v591, %v591
        %600 = vst [vmem:[%s357] sm:$0xf] %v592
        %601 = vst [vmem:[%s357 + $0x4] sm:$0xf] %v593
        %602 = vst [vmem:[%s357 + $0x8] sm:$0xf] %v594
        %603 = vst [vmem:[%s357 + $0xc] sm:$0xf] %v595
        %604 = vadd.xlane.f32.xlu0 %v570
        %v605 = vpop.xlane.xlu0 %604
        %606 = vadd.xlane.f32.xlu0 %v573
        %v607 = vpop.xlane.xlu0 %606
        %608 = vadd.xlane.f32.xlu0 %v578
        %v609 = vpop.xlane.xlu0 %608
        %610 = vadd.xlane.f32.xlu0 %v581
        %v611 = vpop.xlane.xlu0 %610
        %vm612 = vcmask 7168
        %613 = vst.msk [vmem:[%s376] sm:$0xff] %vm612, %v605
        %614 = vst.msk [vmem:[%s376 + $0x8] sm:$0xff] %vm612, %v607
        %615 = vst.msk [vmem:[%s376 + $0x10] sm:$0xff] %vm612, %v609
        %616 = vst.msk [vmem:[%s376 + $0x18] sm:$0xff] %vm612, %v611
        %v617 = vmul.f32 %v570, %v570
        %v618 = vmul.f32 %v573, %v573
        %v619 = vmul.f32 %v578, %v578
        %v620 = vmul.f32 %v581, %v581
        %621 = vadd.xlane.f32.xlu0 %v617
        %v622 = vpop.xlane.xlu0 %621
        %623 = vadd.xlane.f32.xlu0 %v618
        %v624 = vpop.xlane.xlu0 %623
        %625 = vadd.xlane.f32.xlu0 %v619
        %v626 = vpop.xlane.xlu0 %625
        %627 = vadd.xlane.f32.xlu0 %v620
        %v628 = vpop.xlane.xlu0 %627
        %629 = vst.msk [vmem:[%s381] sm:$0xff] %vm612, %v622
        %630 = vst.msk [vmem:[%s381 + $0x8] sm:$0xff] %vm612, %v624
        %631 = vst.msk [vmem:[%s381 + $0x10] sm:$0xff] %vm612, %v626
        %632 = vst.msk [vmem:[%s381 + $0x18] sm:$0xff] %vm612, %v628
        %s633 = sand.u32 %s71, 1
        %s634 = sand.u32 %s71, 1
        %s635 = smul.addr %s634, 16
        %s636 = scalar_lea.vmem [#allocation3], %s635
        %p637 = scmp.lt.s32.totalorder %s16, 1
        %s638 = scalar_select %p637, %s16, 1
        %s639 = smul.addr %s638, 4
        %s640 = smul.addr %s639, 8
        %s641 = scalar_lea.vmem %s3, %s640
        %p642 = scmp.lt.s32.totalorder %s16, 1
        %s643 = scalar_select %p642, %s16, 1
        %s644 = smul.addr %s643, 4
        %s645 = smul.addr %s644, 8
        %s646 = scalar_lea.vmem %s4, %s645
        // Predicated region
        $region70: #{multiscale_discriminator_forward.25} parent=64 // pred_check
          %p647 = pneg %p81
        $region71: #{multiscale_discriminator_forward.25} parent=64 // pred_check_branch
          %649 = sbr.rel (%p647) target = $region73
        $region72: #{multiscale_discriminator_forward.25} parent=64 // pred_region
          %s650 = smul.addr %s16, 4
          %s651 = scalar_lea.vmem %s2, %s650
          // Predicated region
          $region74: #{multiscale_discriminator_forward.25} parent=72 // pred_check
            _
          $region75: #{multiscale_discriminator_forward.25} parent=72 // pred_check_branch
            %653 = sbr.rel (0) target = $region77
          $region76: #{multiscale_discriminator_forward.25} parent=72 // pred_region
            // Predicated region
            $region78: #{multiscale_discriminator_forward.25} parent=76 // pred_check
              _
            $region79: #{multiscale_discriminator_forward.25} parent=76 // pred_check_branch
              %655 = sbr.rel target = $region81
            $region80: #{multiscale_discriminator_forward.25} parent=76 // pred_region
              // Predicated region
              $region93: #{multiscale_discriminator_forward.25} parent=80 // pred_check
                _
              $region94: #{multiscale_discriminator_forward.25} parent=80 // pred_check_branch
                %676 = sbr.rel (0) target = $region96
              $region95: #{multiscale_discriminator_forward.25} parent=80 // pred_region
                loop: start=0, step=1, limit=1
                $region97: #{multiscale_discriminator_forward.25} parent=95 // loop_pre_header
                  _
                $region98: #{multiscale_discriminator_forward.25} parent=95 // loop_header
                  %s678 = sphi 0, %s682
                  %p679 = scmp.ge.s32.totalorder %s678, 1
                  %s683 = sphi %s636, %s636
                  %s684 = sphi %s651, %s651
                $region99: #{multiscale_discriminator_forward.25} parent=95 // loop_header_branch
                  %681 = sbr.rel (%p679) target = $region103
                $region100: #{multiscale_discriminator_forward.25} parent=95 // loop_body
                  _
                $region101: #{multiscale_discriminator_forward.25} parent=95 // loop_footer
                  %s682 = sadd.s32 1, %s678
                $region102: #{multiscale_discriminator_forward.25} parent=95 // loop_footer_branch
                  %677 = sbr.rel target = $region98
                $region103: #{multiscale_discriminator_forward.25} parent=95 // loop_exit
                  _
                loop: start=0, step=1, limit=1
                $region104: #{multiscale_discriminator_forward.25} parent=95 // loop_pre_header
                  _
                $region105: #{multiscale_discriminator_forward.25} parent=95 // loop_header
                  %s687 = sphi 0, %s691
                  %p688 = scmp.ge.s32.totalorder %s687, 1
                  %s692 = sphi %s636, %s636
                  %s693 = sphi %s651, %s651
                $region106: #{multiscale_discriminator_forward.25} parent=95 // loop_header_branch
                  %690 = sbr.rel (%p688) target = $region110
                $region107: #{multiscale_discriminator_forward.25} parent=95 // loop_body
                  %v694 = vld [vmem:[%s692] sm:$0xf]
                  %695 = vst [vmem:[%s693] sm:$0xf] %v694
                  %v696 = vld [vmem:[%s692 + $0x4] sm:$0xf]
                  %697 = vst [vmem:[%s693 + $0x8] sm:$0xf] %v696
                  %v698 = vld [vmem:[%s692 + $0x8] sm:$0xf]
                  %699 = vst [vmem:[%s693 + $0x10] sm:$0xf] %v698
                  %v700 = vld [vmem:[%s692 + $0xc] sm:$0xf]
                  %701 = vst [vmem:[%s693 + $0x18] sm:$0xf] %v700
                $region108: #{multiscale_discriminator_forward.25} parent=95 // loop_footer
                  %s691 = sadd.s32 1, %s687
                $region109: #{multiscale_discriminator_forward.25} parent=95 // loop_footer_branch
                  %686 = sbr.rel target = $region105
                $region110: #{multiscale_discriminator_forward.25} parent=95 // loop_exit
                  _
              $region96: #{multiscale_discriminator_forward.25} parent=80 // pred_fallthru
                _
            $region81: #{multiscale_discriminator_forward.25} parent=76 // pred_fallthru
              _
            // Predicated region
            $region82: #{multiscale_discriminator_forward.25} parent=76 // pred_check
              _
            $region83: #{multiscale_discriminator_forward.25} parent=76 // pred_check_branch
              %657 = sbr.rel (0) target = $region85
            $region84: #{multiscale_discriminator_forward.25} parent=76 // pred_region
              loop: start=0, step=1, limit=1
              $region86: #{multiscale_discriminator_forward.25} parent=84 // loop_pre_header
                _
              $region87: #{multiscale_discriminator_forward.25} parent=84 // loop_header
                %s660 = sphi 0, %s664
                %p661 = scmp.ge.s32.totalorder %s660, 1
                %s665 = sphi %s636, %s636
                %s666 = sphi %s651, %s651
              $region88: #{multiscale_discriminator_forward.25} parent=84 // loop_header_branch
                %663 = sbr.rel (%p661) target = $region92
              $region89: #{multiscale_discriminator_forward.25} parent=84 // loop_body
                %v667 = vld [vmem:[%s665] sm:$0xf]
                %668 = vst [vmem:[%s666] sm:$0xf] %v667
                %v669 = vld [vmem:[%s665 + $0x4] sm:$0xf]
                %670 = vst [vmem:[%s666 + $0x8] sm:$0xf] %v669
                %v671 = vld [vmem:[%s665 + $0x8] sm:$0xf]
                %672 = vst [vmem:[%s666 + $0x10] sm:$0xf] %v671
                %v673 = vld [vmem:[%s665 + $0xc] sm:$0xf]
                %674 = vst [vmem:[%s666 + $0x18] sm:$0xf] %v673
              $region90: #{multiscale_discriminator_forward.25} parent=84 // loop_footer
                %s664 = sadd.s32 1, %s660
              $region91: #{multiscale_discriminator_forward.25} parent=84 // loop_footer_branch
                %659 = sbr.rel target = $region87
              $region92: #{multiscale_discriminator_forward.25} parent=84 // loop_exit
                _
            $region85: #{multiscale_discriminator_forward.25} parent=76 // pred_fallthru
              _
          $region77: #{multiscale_discriminator_forward.25} parent=72 // pred_fallthru
            _
          %702 = vnop
        $region73: #{multiscale_discriminator_forward.25} parent=64 // pred_fallthru
          _
        // Predicated region
        $region111: #{multiscale_discriminator_forward.25} parent=64 // pred_check
          %p703 = pneg %p107
        $region112: #{multiscale_discriminator_forward.25} parent=64 // pred_check_branch
          %705 = sbr.rel (%p703) target = $region114
        $region113: #{multiscale_discriminator_forward.25} parent=64 // pred_region
          _
        $region114: #{multiscale_discriminator_forward.25} parent=64 // pred_fallthru
          _
        // Predicated region
        $region115: #{multiscale_discriminator_forward.25} parent=64 // pred_check
          %p706 = pneg %p133
        $region116: #{multiscale_discriminator_forward.25} parent=64 // pred_check_branch
          %708 = sbr.rel (%p706) target = $region118
        $region117: #{multiscale_discriminator_forward.25} parent=64 // pred_region
          _
        $region118: #{multiscale_discriminator_forward.25} parent=64 // pred_fallthru
          _
      $region65: #{multiscale_discriminator_forward.25} parent=5 // pred_fallthru
        _
      %p709 = scmp.le.s32.totalorder 2, %s11
      // Predicated region
      $region119: #{multiscale_discriminator_forward.25} parent=5 // pred_check
        %p710 = pneg %p709
      $region120: #{multiscale_discriminator_forward.25} parent=5 // pred_check_branch
        %712 = sbr.rel (%p710) target = $region122
      $region121: #{multiscale_discriminator_forward.25} parent=5 // pred_region
        %s713 = ssub.s32 %s11, 2
        // Predicated region
        $region123: #{multiscale_discriminator_forward.25} parent=121 // pred_check
          %p714 = pneg %p87
        $region124: #{multiscale_discriminator_forward.25} parent=121 // pred_check_branch
          %716 = sbr.rel (%p714) target = $region126
        $region125: #{multiscale_discriminator_forward.25} parent=121 // pred_region
          %s717 = sand.u32 %s72, 1
          %s718 = sand.u32 %s72, 1
          %s719 = smul.addr %s718, 16
          %s720 = scalar_lea.vmem [#allocation3], %s719
        $region126: #{multiscale_discriminator_forward.25} parent=121 // pred_fallthru
          _
        // Predicated region
        $region127: #{multiscale_discriminator_forward.25} parent=121 // pred_check
          %p721 = pneg %p113
        $region128: #{multiscale_discriminator_forward.25} parent=121 // pred_check_branch
          %723 = sbr.rel (%p721) target = $region130
        $region129: #{multiscale_discriminator_forward.25} parent=121 // pred_region
          %p724 = scmp.lt.s32.totalorder %s17, 1
          %s725 = scalar_select %p724, %s17, 1
          %s726 = smul.addr %s725, 4
          %s727 = smul.addr %s726, 8
          %s728 = scalar_lea.vmem %s3, %s727
        $region130: #{multiscale_discriminator_forward.25} parent=121 // pred_fallthru
          _
        // Predicated region
        $region131: #{multiscale_discriminator_forward.25} parent=121 // pred_check
          %p729 = pneg %p139
        $region132: #{multiscale_discriminator_forward.25} parent=121 // pred_check_branch
          %731 = sbr.rel (%p729) target = $region134
        $region133: #{multiscale_discriminator_forward.25} parent=121 // pred_region
          %p732 = scmp.lt.s32.totalorder %s17, 1
          %s733 = scalar_select %p732, %s17, 1
          %s734 = smul.addr %s733, 4
          %s735 = smul.addr %s734, 8
          %s736 = scalar_lea.vmem %s4, %s735
        $region134: #{multiscale_discriminator_forward.25} parent=121 // pred_fallthru
          _
      $region122: #{multiscale_discriminator_forward.25} parent=5 // pred_fallthru
        _
    $region6: #{multiscale_discriminator_forward.25} parent=1 // loop_footer
      %s15 = sadd.s32 1, %s11
    $region7: #{multiscale_discriminator_forward.25} parent=1 // loop_footer_branch
      %10 = sbr.rel target = $region3
    $region8: #{multiscale_discriminator_forward.25} parent=1 // loop_exit
      _

// kernel: multiscale_discriminator_forward.26
$region0: #{multiscale_discriminator_forward.26}
  #allocation0 [shape = 'u32[]', space=smem, size = 0x4, offset = 0x4, fixed_abs, tag = 'smem constant byte address 0x4 - core index']
  #allocation1 [shape = 'u32[144,128]{1,0:T(1,128)}', space=vmem, size = 0x12000, scoped, tag = 'internal scratch']
  %s0 = inlined_call_operand.vmem [shape: bf16[32,256], index: 0, kind: input, shape index: {}]
  %s1 = inlined_call_operand.vmem [shape: f32[32,1], index: 1, kind: input, shape index: {}]
  %s2 = inlined_call_operand.vmem [shape: f32[32,1], index: 2, kind: input, shape index: {}]
  %s3 = inlined_call_operand.vmem [shape: bf16[32,256], index: 3, kind: output, shape index: {}]
  %s4 = sld [smem:[#allocation0]]
  $region123: #{multiscale_discriminator_forward.26} parent=0
    _
  %s6 = ssub.s32 1, %s4
  %s7 = scalar_select 0, %s6, %s4
  $region1: #{multiscale_discriminator_forward.26} parent=0
    #allocation2 [shape = 'u8[16384]{0}', space=vmem, size = 0x4000, scoped, tag = 'input window, operand 0']
    #allocation3 [shape = 'u8[16384]{0}', space=vmem, size = 0x4000, scoped, tag = 'output window, operand 0']
    loop: start=0, step=1, limit=4
    $region2: #{multiscale_discriminator_forward.26} parent=1 // loop_pre_header
      _
    $region3: #{multiscale_discriminator_forward.26} parent=1 // loop_header
      %s9 = sphi 0, %s13
      %p10 = scmp.ge.s32.totalorder %s9, 4
      %s19 = sphi 0, %s21
      %s22 = sphi 0, %s19
      %s23 = sphi 0, %s22
      %s39 = sphi 0, %s23
      %s43 = sphi 0, %s43
      %s45 = sphi 0, %s43
      %s46 = sphi 0, %s45
      %s60 = sphi 0, %s46
      %s64 = sphi 0, %s64
      %s66 = sphi 0, %s64
      %s67 = sphi 0, %s66
      %s81 = sphi 0, %s67
      %s87 = sphi 0, %s89
      %s90 = sphi 0, %s87
      %s91 = sphi 0, %s90
      %s107 = sphi 0, %s91
    $region4: #{multiscale_discriminator_forward.26} parent=1 // loop_header_branch
      %12 = sbr.rel (%p10) target = $region8
    $region5: #{multiscale_discriminator_forward.26} parent=1 // loop_body
      %s14 = ssub.s32 %s9, 1
      %s15 = ssub.s32 %s9, 2
      %s16 = sadd.s32 %s9, 1
      %s17 = ssub.s32 %s9, %s16
      %p18 = scmp.eq.s32.totalorder %s17, 0
      %s20 = sadd.s32 %s19, 1
      %s21 = scalar_select %p18, %s19, %s20
      %p24 = pneg %p18
      %p25 = scmp.eq.s32.totalorder %s9, 1
      %p26 = por %p24, %p25
      %p27 = scmp.ne.s32.totalorder %s19, %s22
      %p28 = scmp.eq.s32.totalorder %s9, 0
      %p29 = por %p27, %p28
      %p30 = scmp.ne.s32.totalorder %s19, %s22
      %p31 = scmp.eq.s32.totalorder %s14, 1
      %p32 = por %p30, %p31
      %p33 = scmp.ne.s32.totalorder %s22, %s23
      %p34 = scmp.eq.s32.totalorder %s14, 0
      %p35 = por %p33, %p34
      %p36 = scmp.ne.s32.totalorder %s22, %s23
      %p37 = scmp.eq.s32.totalorder %s15, 1
      %p38 = por %p36, %p37
      %p40 = scmp.ne.s32.totalorder %s23, %s39
      %p41 = scmp.eq.s32.totalorder %s15, 0
      %p42 = por %p40, %p41
      %s44 = sadd.s32 %s43, 1
      %p47 = scmp.eq.s32.totalorder %s9, 1
      %p48 = scmp.ne.s32.totalorder %s43, %s45
      %p49 = scmp.eq.s32.totalorder %s9, 0
      %p50 = por %p48, %p49
      %p51 = scmp.ne.s32.totalorder %s43, %s45
      %p52 = scmp.eq.s32.totalorder %s14, 1
      %p53 = por %p51, %p52
      %p54 = scmp.ne.s32.totalorder %s45, %s46
      %p55 = scmp.eq.s32.totalorder %s14, 0
      %p56 = por %p54, %p55
      %p57 = scmp.ne.s32.totalorder %s45, %s46
      %p58 = scmp.eq.s32.totalorder %s15, 1
      %p59 = por %p57, %p58
      %p61 = scmp.ne.s32.totalorder %s46, %s60
      %p62 = scmp.eq.s32.totalorder %s15, 0
      %p63 = por %p61, %p62
      %s65 = sadd.s32 %s64, 1
      %p68 = scmp.eq.s32.totalorder %s9, 1
      %p69 = scmp.ne.s32.totalorder %s64, %s66
      %p70 = scmp.eq.s32.totalorder %s9, 0
      %p71 = por %p69, %p70
      %p72 = scmp.ne.s32.totalorder %s64, %s66
      %p73 = scmp.eq.s32.totalorder %s14, 1
      %p74 = por %p72, %p73
      %p75 = scmp.ne.s32.totalorder %s66, %s67
      %p76 = scmp.eq.s32.totalorder %s14, 0
      %p77 = por %p75, %p76
      %p78 = scmp.ne.s32.totalorder %s66, %s67
      %p79 = scmp.eq.s32.totalorder %s15, 1
      %p80 = por %p78, %p79
      %p82 = scmp.ne.s32.totalorder %s67, %s81
      %p83 = scmp.eq.s32.totalorder %s15, 0
      %p84 = por %p82, %p83
      %s85 = ssub.s32 %s9, %s16
      %p86 = scmp.eq.s32.totalorder %s85, 0
      %s88 = sadd.s32 %s87, 1
      %s89 = scalar_select %p86, %s87, %s88
      %p92 = pneg %p86
      %p93 = scmp.eq.s32.totalorder %s9, 1
      %p94 = por %p92, %p93
      %p95 = scmp.ne.s32.totalorder %s87, %s90
      %p96 = scmp.eq.s32.totalorder %s9, 0
      %p97 = por %p95, %p96
      %p98 = scmp.ne.s32.totalorder %s87, %s90
      %p99 = scmp.eq.s32.totalorder %s14, 1
      %p100 = por %p98, %p99
      %p101 = scmp.ne.s32.totalorder %s90, %s91
      %p102 = scmp.eq.s32.totalorder %s14, 0
      %p103 = por %p101, %p102
      %p104 = scmp.ne.s32.totalorder %s90, %s91
      %p105 = scmp.eq.s32.totalorder %s15, 1
      %p106 = por %p104, %p105
      %p108 = scmp.ne.s32.totalorder %s91, %s107
      %p109 = scmp.eq.s32.totalorder %s15, 0
      %p110 = por %p108, %p109
      %p111 = scmp.le.s32.totalorder 1, %s9
      %p112 = scmp.lt.s32.totalorder %s9, 3
      %p113 = pnand %p111, %p112
      %p114 = pneg %p113
      // Predicated region
      $region9: #{multiscale_discriminator_forward.26} parent=5 // pred_check
        _
      $region10: #{multiscale_discriminator_forward.26} parent=5 // pred_check_branch
        %116 = sbr.rel (%p113) target = $region12
      $region11: #{multiscale_discriminator_forward.26} parent=5 // pred_region
        %s117 = ssub.s32 %s9, 1
        // Predicated region
        $region13: #{multiscale_discriminator_forward.26} parent=11 // pred_check
          %p118 = pneg %p56
        $region14: #{multiscale_discriminator_forward.26} parent=11 // pred_check_branch
          %120 = sbr.rel (%p118) target = $region16
        $region15: #{multiscale_discriminator_forward.26} parent=11 // pred_region
          _
        $region16: #{multiscale_discriminator_forward.26} parent=11 // pred_fallthru
          _
        // Predicated region
        $region17: #{multiscale_discriminator_forward.26} parent=11 // pred_check
          %p121 = pneg %p77
        $region18: #{multiscale_discriminator_forward.26} parent=11 // pred_check_branch
          %123 = sbr.rel (%p121) target = $region20
        $region19: #{multiscale_discriminator_forward.26} parent=11 // pred_region
          _
        $region20: #{multiscale_discriminator_forward.26} parent=11 // pred_fallthru
          _
      $region12: #{multiscale_discriminator_forward.26} parent=5 // pred_fallthru
        _
      %p124 = scmp.lt.s32.totalorder %s9, 2
      // Predicated region
      $region21: #{multiscale_discriminator_forward.26} parent=5 // pred_check
        %p125 = pneg %p124
      $region22: #{multiscale_discriminator_forward.26} parent=5 // pred_check_branch
        %127 = sbr.rel (%p125) target = $region24
      $region23: #{multiscale_discriminator_forward.26} parent=5 // pred_region
        // Predicated region
        $region25: #{multiscale_discriminator_forward.26} parent=23 // pred_check
          %p128 = pneg %p29
        $region26: #{multiscale_discriminator_forward.26} parent=23 // pred_check_branch
          %130 = sbr.rel (%p128) target = $region28
        $region27: #{multiscale_discriminator_forward.26} parent=23 // pred_region
          %s131 = sand.u32 %s19, 1
          %s132 = sand.u32 %s19, 1
          %s133 = smul.addr %s132, 16
          %s134 = scalar_lea.vmem [#allocation2], %s133
          %s135 = smul.addr %s9, 4
          %s136 = scalar_lea.vmem %s0, %s135
          // Predicated region
          $region29: #{multiscale_discriminator_forward.26} parent=27 // pred_check
            _
          $region30: #{multiscale_discriminator_forward.26} parent=27 // pred_check_branch
            %138 = sbr.rel (0) target = $region32
          $region31: #{multiscale_discriminator_forward.26} parent=27 // pred_region
            // Predicated region
            $region33: #{multiscale_discriminator_forward.26} parent=31 // pred_check
              _
            $region34: #{multiscale_discriminator_forward.26} parent=31 // pred_check_branch
              %140 = sbr.rel target = $region36
            $region35: #{multiscale_discriminator_forward.26} parent=31 // pred_region
              // Predicated region
              $region48: #{multiscale_discriminator_forward.26} parent=35 // pred_check
                _
              $region49: #{multiscale_discriminator_forward.26} parent=35 // pred_check_branch
                %161 = sbr.rel (0) target = $region51
              $region50: #{multiscale_discriminator_forward.26} parent=35 // pred_region
                loop: start=0, step=1, limit=1
                $region52: #{multiscale_discriminator_forward.26} parent=50 // loop_pre_header
                  _
                $region53: #{multiscale_discriminator_forward.26} parent=50 // loop_header
                  %s163 = sphi 0, %s167
                  %p164 = scmp.ge.s32.totalorder %s163, 1
                  %s168 = sphi %s136, %s136
                  %s169 = sphi %s134, %s134
                $region54: #{multiscale_discriminator_forward.26} parent=50 // loop_header_branch
                  %166 = sbr.rel (%p164) target = $region58
                $region55: #{multiscale_discriminator_forward.26} parent=50 // loop_body
                  _
                $region56: #{multiscale_discriminator_forward.26} parent=50 // loop_footer
                  %s167 = sadd.s32 1, %s163
                $region57: #{multiscale_discriminator_forward.26} parent=50 // loop_footer_branch
                  %162 = sbr.rel target = $region53
                $region58: #{multiscale_discriminator_forward.26} parent=50 // loop_exit
                  _
                loop: start=0, step=1, limit=1
                $region59: #{multiscale_discriminator_forward.26} parent=50 // loop_pre_header
                  _
                $region60: #{multiscale_discriminator_forward.26} parent=50 // loop_header
                  %s172 = sphi 0, %s176
                  %p173 = scmp.ge.s32.totalorder %s172, 1
                  %s177 = sphi %s136, %s136
                  %s178 = sphi %s134, %s134
                $region61: #{multiscale_discriminator_forward.26} parent=50 // loop_header_branch
                  %175 = sbr.rel (%p173) target = $region65
                $region62: #{multiscale_discriminator_forward.26} parent=50 // loop_body
                  %v179 = vld [vmem:[%s177] sm:$0xf]
                  %180 = vst [vmem:[%s178] sm:$0xf] %v179
                  %v181 = vld [vmem:[%s177 + $0x8] sm:$0xf]
                  %182 = vst [vmem:[%s178 + $0x4] sm:$0xf] %v181
                  %v183 = vld [vmem:[%s177 + $0x10] sm:$0xf]
                  %184 = vst [vmem:[%s178 + $0x8] sm:$0xf] %v183
                  %v185 = vld [vmem:[%s177 + $0x18] sm:$0xf]
                  %186 = vst [vmem:[%s178 + $0xc] sm:$0xf] %v185
                $region63: #{multiscale_discriminator_forward.26} parent=50 // loop_footer
                  %s176 = sadd.s32 1, %s172
                $region64: #{multiscale_discriminator_forward.26} parent=50 // loop_footer_branch
                  %171 = sbr.rel target = $region60
                $region65: #{multiscale_discriminator_forward.26} parent=50 // loop_exit
                  _
              $region51: #{multiscale_discriminator_forward.26} parent=35 // pred_fallthru
                _
            $region36: #{multiscale_discriminator_forward.26} parent=31 // pred_fallthru
              _
            // Predicated region
            $region37: #{multiscale_discriminator_forward.26} parent=31 // pred_check
              _
            $region38: #{multiscale_discriminator_forward.26} parent=31 // pred_check_branch
              %142 = sbr.rel (0) target = $region40
            $region39: #{multiscale_discriminator_forward.26} parent=31 // pred_region
              loop: start=0, step=1, limit=1
              $region41: #{multiscale_discriminator_forward.26} parent=39 // loop_pre_header
                _
              $region42: #{multiscale_discriminator_forward.26} parent=39 // loop_header
                %s145 = sphi 0, %s149
                %p146 = scmp.ge.s32.totalorder %s145, 1
                %s150 = sphi %s136, %s136
                %s151 = sphi %s134, %s134
              $region43: #{multiscale_discriminator_forward.26} parent=39 // loop_header_branch
                %148 = sbr.rel (%p146) target = $region47
              $region44: #{multiscale_discriminator_forward.26} parent=39 // loop_body
                %v152 = vld [vmem:[%s150] sm:$0xf]
                %153 = vst [vmem:[%s151] sm:$0xf] %v152
                %v154 = vld [vmem:[%s150 + $0x8] sm:$0xf]
                %155 = vst [vmem:[%s151 + $0x4] sm:$0xf] %v154
                %v156 = vld [vmem:[%s150 + $0x10] sm:$0xf]
                %157 = vst [vmem:[%s151 + $0x8] sm:$0xf] %v156
                %v158 = vld [vmem:[%s150 + $0x18] sm:$0xf]
                %159 = vst [vmem:[%s151 + $0xc] sm:$0xf] %v158
              $region45: #{multiscale_discriminator_forward.26} parent=39 // loop_footer
                %s149 = sadd.s32 1, %s145
              $region46: #{multiscale_discriminator_forward.26} parent=39 // loop_footer_branch
                %144 = sbr.rel target = $region42
              $region47: #{multiscale_discriminator_forward.26} parent=39 // loop_exit
                _
            $region40: #{multiscale_discriminator_forward.26} parent=31 // pred_fallthru
              _
          $region32: #{multiscale_discriminator_forward.26} parent=27 // pred_fallthru
            _
          %187 = vnop
        $region28: #{multiscale_discriminator_forward.26} parent=23 // pred_fallthru
          _
      $region24: #{multiscale_discriminator_forward.26} parent=5 // pred_fallthru
        _
      %p188 = scmp.le.s32.totalorder 1, %s9
      %p189 = scmp.lt.s32.totalorder %s9, 3
      %p190 = pnand %p188, %p189
      %p191 = pneg %p190
      // Predicated region
      $region66: #{multiscale_discriminator_forward.26} parent=5 // pred_check
        _
      $region67: #{multiscale_discriminator_forward.26} parent=5 // pred_check_branch
        %193 = sbr.rel (%p190) target = $region69
      $region68: #{multiscale_discriminator_forward.26} parent=5 // pred_region
        %s194 = ssub.s32 %s9, 1
        %s195 = sand.u32 %s22, 1
        %s196 = sand.u32 %s22, 1
        %s197 = smul.addr %s196, 16
        %s198 = scalar_lea.vmem [#allocation2], %s197
        // Predicated region
        $region70: #{multiscale_discriminator_forward.26} parent=68 // pred_check
          %p199 = pneg %p35
        $region71: #{multiscale_discriminator_forward.26} parent=68 // pred_check_branch
          %201 = sbr.rel (%p199) target = $region73
        $region72: #{multiscale_discriminator_forward.26} parent=68 // pred_region
          _
        $region73: #{multiscale_discriminator_forward.26} parent=68 // pred_fallthru
          _
        %s202 = sand.u32 %s22, 1
        %s203 = sand.u32 %s22, 1
        %s204 = smul.addr %s203, 16
        %s205 = scalar_lea.vmem [#allocation2], %s204
        %p206 = pneg %p35
        %p207 = pneg %p32
        %p208 = pneg %p56
        %p209 = pneg %p53
        %p210 = pneg %p77
        %p211 = pneg %p74
        %p212 = pneg %p103
        %p213 = pneg %p100
        %s214 = sand.u32 %s90, 1
        %s215 = sand.u32 %s90, 1
        %s216 = smul.addr %s215, 16
        %s217 = scalar_lea.vmem [#allocation3], %s216
        %v218 = vld [vmem:[%s198] sm:$0xf]
        %v219 = vld [vmem:[%s198 + $0x4] sm:$0xf]
        %v220 = vld [vmem:[%s198 + $0x8] sm:$0xf]
        %v221 = vld [vmem:[%s198 + $0xc] sm:$0xf]
        %v222 = vunpack.c.l.bf16 %v218
        %v223 = vunpack.c.l.bf16 %v219
        %v224 = vunpack.c.l.bf16 %v220
        %v225 = vunpack.c.l.bf16 %v221
        %v226 = vld [vmem:[%s1] sm:$0xff]
        %v227 = vld [vmem:[%s1 + $0x8] sm:$0xff]
        %v228 = vld [vmem:[%s1 + $0x10] sm:$0xff]
        %v229 = vld [vmem:[%s1 + $0x18] sm:$0xff]
        %231 = vset.pattern.permute.xlu0 0
        %232 = vperm.xlu0 %231, %v226
        %v233 = vpop.permute.xlu0 %232
        %236 = vset.pattern.permute.xlu0 0
        %237 = vperm.xlu0 %236, %v227
        %v238 = vpop.permute.xlu0 %237
        %241 = vset.pattern.permute.xlu0 0
        %242 = vperm.xlu0 %241, %v228
        %v243 = vpop.permute.xlu0 %242
        %246 = vset.pattern.permute.xlu0 0
        %247 = vperm.xlu0 %246, %v229
        %v248 = vpop.permute.xlu0 %247
        %v250 = vmul.f32 %v222, %v233
        %v251 = vmul.f32 %v223, %v238
        %v252 = vmul.f32 %v224, %v243
        %v253 = vmul.f32 %v225, %v248
        %v254 = vld [vmem:[%s2] sm:$0xff]
        %v255 = vld [vmem:[%s2 + $0x8] sm:$0xff]
        %v256 = vld [vmem:[%s2 + $0x10] sm:$0xff]
        %v257 = vld [vmem:[%s2 + $0x18] sm:$0xff]
        %259 = vset.pattern.permute.xlu0 0
        %260 = vperm.xlu0 %259, %v254
        %v261 = vpop.permute.xlu0 %260
        %264 = vset.pattern.permute.xlu0 0
        %265 = vperm.xlu0 %264, %v255
        %v266 = vpop.permute.xlu0 %265
        %269 = vset.pattern.permute.xlu0 0
        %270 = vperm.xlu0 %269, %v256
        %v271 = vpop.permute.xlu0 %270
        %274 = vset.pattern.permute.xlu0 0
        %275 = vperm.xlu0 %274, %v257
        %v276 = vpop.permute.xlu0 %275
        %v278 = vadd.f32 %v250, %v261
        %v279 = vadd.f32 %v251, %v266
        %v280 = vadd.f32 %v252, %v271
        %v281 = vadd.f32 %v253, %v276
        %v282 = vmul.f32 %v278, 0.2
        %v283 = vmul.f32 %v279, 0.2
        %v284 = vmul.f32 %v280, 0.2
        %v285 = vmul.f32 %v281, 0.2
        %v286 = vmax.f32 %v278, %v282
        %v287 = vmax.f32 %v279, %v283
        %v288 = vmax.f32 %v280, %v284
        %v289 = vmax.f32 %v281, %v285
        %v290 = vpack.c.bf16 %v287, %v286
        %v291 = vpack.c.bf16 %v289, %v288
        %v294 = vunpack.c.l.b16 %v290
        %v295 = vunpack.c.h.b16 %v290
        %v296 = vunpack.c.l.b16 %v291
        %v297 = vunpack.c.h.b16 %v291
        %v298 = vpack.c.b16 %v294, %v294
        %v299 = vpack.c.b16 %v295, %v295
        %v300 = vpack.c.b16 %v296, %v296
        %v301 = vpack.c.b16 %v297, %v297
        %306 = vst [vmem:[%s217] sm:$0xf] %v298
        %307 = vst [vmem:[%s217 + $0x4] sm:$0xf] %v299
        %308 = vst [vmem:[%s217 + $0x8] sm:$0xf] %v300
        %309 = vst [vmem:[%s217 + $0xc] sm:$0xf] %v301
        %s310 = sand.u32 %s90, 1
        %s311 = sand.u32 %s90, 1
        %s312 = smul.addr %s311, 16
        %s313 = scalar_lea.vmem [#allocation3], %s312
        // Predicated region
        $region74: #{multiscale_discriminator_forward.26} parent=68 // pred_check
          %p314 = pneg %p100
        $region75: #{multiscale_discriminator_forward.26} parent=68 // pred_check_branch
          %316 = sbr.rel (%p314) target = $region77
        $region76: #{multiscale_discriminator_forward.26} parent=68 // pred_region
          %s317 = smul.addr %s14, 4
          %s318 = scalar_lea.vmem %s3, %s317
          // Predicated region
          $region78: #{multiscale_discriminator_forward.26} parent=76 // pred_check
            _
          $region79: #{multiscale_discriminator_forward.26} parent=76 // pred_check_branch
            %320 = sbr.rel (0) target = $region81
          $region80: #{multiscale_discriminator_forward.26} parent=76 // pred_region
            // Predicated region
            $region82: #{multiscale_discriminator_forward.26} parent=80 // pred_check
              _
            $region83: #{multiscale_discriminator_forward.26} parent=80 // pred_check_branch
              %322 = sbr.rel target = $region85
            $region84: #{multiscale_discriminator_forward.26} parent=80 // pred_region
              // Predicated region
              $region97: #{multiscale_discriminator_forward.26} parent=84 // pred_check
                _
              $region98: #{multiscale_discriminator_forward.26} parent=84 // pred_check_branch
                %343 = sbr.rel (0) target = $region100
              $region99: #{multiscale_discriminator_forward.26} parent=84 // pred_region
                loop: start=0, step=1, limit=1
                $region101: #{multiscale_discriminator_forward.26} parent=99 // loop_pre_header
                  _
                $region102: #{multiscale_discriminator_forward.26} parent=99 // loop_header
                  %s345 = sphi 0, %s349
                  %p346 = scmp.ge.s32.totalorder %s345, 1
                  %s350 = sphi %s313, %s313
                  %s351 = sphi %s318, %s318
                $region103: #{multiscale_discriminator_forward.26} parent=99 // loop_header_branch
                  %348 = sbr.rel (%p346) target = $region107
                $region104: #{multiscale_discriminator_forward.26} parent=99 // loop_body
                  _
                $region105: #{multiscale_discriminator_forward.26} parent=99 // loop_footer
                  %s349 = sadd.s32 1, %s345
                $region106: #{multiscale_discriminator_forward.26} parent=99 // loop_footer_branch
                  %344 = sbr.rel target = $region102
                $region107: #{multiscale_discriminator_forward.26} parent=99 // loop_exit
                  _
                loop: start=0, step=1, limit=1
                $region108: #{multiscale_discriminator_forward.26} parent=99 // loop_pre_header
                  _
                $region109: #{multiscale_discriminator_forward.26} parent=99 // loop_header
                  %s354 = sphi 0, %s358
                  %p355 = scmp.ge.s32.totalorder %s354, 1
                  %s359 = sphi %s313, %s313
                  %s360 = sphi %s318, %s318
                $region110: #{multiscale_discriminator_forward.26} parent=99 // loop_header_branch
                  %357 = sbr.rel (%p355) target = $region114
                $region111: #{multiscale_discriminator_forward.26} parent=99 // loop_body
                  %v361 = vld [vmem:[%s359] sm:$0xf]
                  %362 = vst [vmem:[%s360] sm:$0xf] %v361
                  %v363 = vld [vmem:[%s359 + $0x4] sm:$0xf]
                  %364 = vst [vmem:[%s360 + $0x8] sm:$0xf] %v363
                  %v365 = vld [vmem:[%s359 + $0x8] sm:$0xf]
                  %366 = vst [vmem:[%s360 + $0x10] sm:$0xf] %v365
                  %v367 = vld [vmem:[%s359 + $0xc] sm:$0xf]
                  %368 = vst [vmem:[%s360 + $0x18] sm:$0xf] %v367
                $region112: #{multiscale_discriminator_forward.26} parent=99 // loop_footer
                  %s358 = sadd.s32 1, %s354
                $region113: #{multiscale_discriminator_forward.26} parent=99 // loop_footer_branch
                  %353 = sbr.rel target = $region109
                $region114: #{multiscale_discriminator_forward.26} parent=99 // loop_exit
                  _
              $region100: #{multiscale_discriminator_forward.26} parent=84 // pred_fallthru
                _
            $region85: #{multiscale_discriminator_forward.26} parent=80 // pred_fallthru
              _
            // Predicated region
            $region86: #{multiscale_discriminator_forward.26} parent=80 // pred_check
              _
            $region87: #{multiscale_discriminator_forward.26} parent=80 // pred_check_branch
              %324 = sbr.rel (0) target = $region89
            $region88: #{multiscale_discriminator_forward.26} parent=80 // pred_region
              loop: start=0, step=1, limit=1
              $region90: #{multiscale_discriminator_forward.26} parent=88 // loop_pre_header
                _
              $region91: #{multiscale_discriminator_forward.26} parent=88 // loop_header
                %s327 = sphi 0, %s331
                %p328 = scmp.ge.s32.totalorder %s327, 1
                %s332 = sphi %s313, %s313
                %s333 = sphi %s318, %s318
              $region92: #{multiscale_discriminator_forward.26} parent=88 // loop_header_branch
                %330 = sbr.rel (%p328) target = $region96
              $region93: #{multiscale_discriminator_forward.26} parent=88 // loop_body
                %v334 = vld [vmem:[%s332] sm:$0xf]
                %335 = vst [vmem:[%s333] sm:$0xf] %v334
                %v336 = vld [vmem:[%s332 + $0x4] sm:$0xf]
                %337 = vst [vmem:[%s333 + $0x8] sm:$0xf] %v336
                %v338 = vld [vmem:[%s332 + $0x8] sm:$0xf]
                %339 = vst [vmem:[%s333 + $0x10] sm:$0xf] %v338
                %v340 = vld [vmem:[%s332 + $0xc] sm:$0xf]
                %341 = vst [vmem:[%s333 + $0x18] sm:$0xf] %v340
              $region94: #{multiscale_discriminator_forward.26} parent=88 // loop_footer
                %s331 = sadd.s32 1, %s327
              $region95: #{multiscale_discriminator_forward.26} parent=88 // loop_footer_branch
                %326 = sbr.rel target = $region91
              $region96: #{multiscale_discriminator_forward.26} parent=88 // loop_exit
                _
            $region89: #{multiscale_discriminator_forward.26} parent=80 // pred_fallthru
              _
          $region81: #{multiscale_discriminator_forward.26} parent=76 // pred_fallthru
            _
          %369 = vnop
        $region77: #{multiscale_discriminator_forward.26} parent=68 // pred_fallthru
          _
      $region69: #{multiscale_discriminator_forward.26} parent=5 // pred_fallthru
        _
      %p370 = scmp.le.s32.totalorder 2, %s9
      // Predicated region
      $region115: #{multiscale_discriminator_forward.26} parent=5 // pred_check
        %p371 = pneg %p370
      $region116: #{multiscale_discriminator_forward.26} parent=5 // pred_check_branch
        %373 = sbr.rel (%p371) target = $region118
      $region117: #{multiscale_discriminator_forward.26} parent=5 // pred_region
        %s374 = ssub.s32 %s9, 2
        // Predicated region
        $region119: #{multiscale_discriminator_forward.26} parent=117 // pred_check
          %p375 = pneg %p106
        $region120: #{multiscale_discriminator_forward.26} parent=117 // pred_check_branch
          %377 = sbr.rel (%p375) target = $region122
        $region121: #{multiscale_discriminator_forward.26} parent=117 // pred_region
          %s378 = sand.u32 %s91, 1
          %s379 = sand.u32 %s91, 1
          %s380 = smul.addr %s379, 16
          %s381 = scalar_lea.vmem [#allocation3], %s380
        $region122: #{multiscale_discriminator_forward.26} parent=117 // pred_fallthru
          _
      $region118: #{multiscale_discriminator_forward.26} parent=5 // pred_fallthru
        _
    $region6: #{multiscale_discriminator_forward.26} parent=1 // loop_footer
      %s13 = sadd.s32 1, %s9
    $region7: #{multiscale_discriminator_forward.26} parent=1 // loop_footer_branch
      %8 = sbr.rel target = $region3
    $region8: #{multiscale_discriminator_forward.26} parent=1 // loop_exit
      _

</llo_original>
